<compile_context>
chip_gen: v5e
topology: v5e:2x2
jax: 0.10.0
libtpu: 0.0.40
codegen_flags: <defaults>
</compile_context>

<pallas_src>
import jax
import jax.numpy as jnp
from jax import lax
from jax.experimental import pallas as pl
from jax.experimental.pallas import tpu as pltpu


def _round_up(x, m):
    return (x + m - 1) // m * m


def _largest_divisor_leq(n, cap):
    for d in range(min(cap, n), 0, -1):
        if n % d == 0:
            return d
    return 1


def _gates_to_hc(gates, c_prev, H):
    """gates:(B,4H) f32 in PyTorch (i,f,g,o) order, c_prev:(B,H) f32."""
    i = jax.nn.sigmoid(gates[:, 0 * H:1 * H])
    f = jax.nn.sigmoid(gates[:, 1 * H:2 * H])
    g = jnp.tanh(gates[:, 2 * H:3 * H])
    o = jax.nn.sigmoid(gates[:, 3 * H:4 * H])
    c_new = f * c_prev + i * g
    h_new = o * jnp.tanh(c_new)
    return h_new, c_new


# ------------------------------ encoder kernel -------------------------------
def _encoder_kernel(x_ref, len_ref,
                    wih0_ref, whh0_ref, b0_ref,
                    w1_ref, b1_ref,
                    h_out_ref, c_out_ref,
                    xg_ref, xh_ref, st_ref):
    """Time-chunked 2-layer LSTM encoder.

    Grid axis 0 iterates over time chunks ("arbitrary"); the recurrent state
    lives in st_ref (4, B, H) f32 across chunks.

    x_ref:   (Tc*B, E)  bf16 embedded source for this chunk (time-major)
    len_ref: (B, 1)     int32 lengths (packed-sequence masking)
    w1_ref:  (2H, 4H)   bf16  concat([W_ih1; W_hh1], axis=0)
    xg_ref:  (Tc*B, 4H) bf16 scratch: hoisted layer-0 input projection
    xh_ref:  (B, 2H)    bf16 scratch: fused [h0, h1] operand (no per-step concat)
    st_ref:  (4, B, H)  f32 scratch: h0, c0, h1, c1
    """
    c = pl.program_id(0)
    num_c = pl.num_programs(0)
    B = len_ref.shape[0]
    H = whh0_ref.shape[0]
    Tc = x_ref.shape[0] // B

    @pl.when(c == 0)
    def _():
        st_ref[...] = jnp.zeros_like(st_ref)

    # Hoisted layer-0 input projection for the whole chunk: one MXU matmul.
    xg_ref[...] = (jnp.dot(x_ref[...], wih0_ref[...],
                           preferred_element_type=jnp.float32)
                   + b0_ref[...]).astype(jnp.bfloat16)

    def step(t_local, carry):
        h0, c0, h1, c1 = carry
        t = c * Tc + t_local
        valid = t < len_ref[...]                                   # (B, 1)
        off = pl.multiple_of(t_local * B, B)

        # layer 0: only the recurrent matmul remains per step
        g0 = (xg_ref[pl.ds(off, B), :].astype(jnp.float32)
              + jnp.dot(h0.astype(jnp.bfloat16), whh0_ref[...],
                        preferred_element_type=jnp.float32))
        h0n, c0n = _gates_to_hc(g0, c0, H)
        h0n = jnp.where(valid, h0n, h0)
        c0n = jnp.where(valid, c0n, c0)

        # layer 1: fused [x, h] @ [W_ih1; W_hh1] via the persistent xh scratch
        xh_ref[:, :H] = h0n.astype(jnp.bfloat16)
        xh_ref[:, H:] = h1.astype(jnp.bfloat16)
        g1 = jnp.dot(xh_ref[...], w1_ref[...],
                     preferred_element_type=jnp.float32) + b1_ref[...]
        h1n, c1n = _gates_to_hc(g1, c1, H)
        h1n = jnp.where(valid, h1n, h1)
        c1n = jnp.where(valid, c1n, c1)
        return h0n, c0n, h1n, c1n

    carry0 = (st_ref[0], st_ref[1], st_ref[2], st_ref[3])
    h0, c0, h1, c1 = lax.fori_loop(0, Tc, step, carry0, unroll=True)
    st_ref[0] = h0
    st_ref[1] = c0
    st_ref[2] = h1
    st_ref[3] = c1

    @pl.when(c == num_c - 1)
    def _():
        h_out_ref[0] = h0
        h_out_ref[1] = h1
        c_out_ref[0] = c0
        c_out_ref[1] = c1


def _encoder_call(params, x2d, len2d, T, B, E, H):
    Tc = _largest_divisor_leq(T, 16)              # time-chunk size
    G = 4 * H
    w1 = jnp.concatenate([params["enc_wih1"], params["enc_whh1"]],
                         axis=0).astype(jnp.bfloat16)              # (2H, 4H)
    wih0 = params["enc_wih0"].astype(jnp.bfloat16)
    whh0 = params["enc_whh0"].astype(jnp.bfloat16)

    grid_spec = pltpu.PrefetchScalarGridSpec(
        num_scalar_prefetch=0,
        grid=(T // Tc,),
        in_specs=[
            pl.BlockSpec((Tc * B, E), lambda c: (c, 0)),   # x chunk (bf16)
            pl.BlockSpec((B, 1), lambda c: (0, 0)),        # lengths
            pl.BlockSpec((E, G), lambda c: (0, 0)),        # W_ih0
            pl.BlockSpec((H, G), lambda c: (0, 0)),        # W_hh0
            pl.BlockSpec((1, G), lambda c: (0, 0)),        # b0
            pl.BlockSpec((2 * H, G), lambda c: (0, 0)),    # [W_ih1; W_hh1]
            pl.BlockSpec((1, G), lambda c: (0, 0)),        # b1
        ],
        out_specs=(pl.BlockSpec((2, B, H), lambda c: (0, 0, 0)),
                   pl.BlockSpec((2, B, H), lambda c: (0, 0, 0))),
        scratch_shapes=[
            pltpu.VMEM((Tc * B, G), jnp.bfloat16),   # hoisted input projection
            pltpu.VMEM((B, 2 * H), jnp.bfloat16),    # fused [h0, h1] operand
            pltpu.VMEM((4, B, H), jnp.float32),      # carried h0,c0,h1,c1
        ],
    )
    return pl.pallas_call(
        _encoder_kernel,
        out_shape=(jax.ShapeDtypeStruct((2, B, H), jnp.float32),
                   jax.ShapeDtypeStruct((2, B, H), jnp.float32)),
        grid_spec=grid_spec,
        compiler_params=pltpu.CompilerParams(
            dimension_semantics=("arbitrary",),
            vmem_limit_bytes=64 * 1024 * 1024),
    )(x2d, len2d, wih0, whh0, params["enc_b0"], w1, params["enc_b1"])


# --------------------------- fused decoder kernel -----------------------------
def _decoder_kernel(tf_ref,                       # SMEM scalar prefetch: (Tdec,) int32
                    dst_ref,                      # (L, B, 1) int32 target tokens (time-major)
                    embproj_ref,                  # (Vp, 4H) bf16  emb_dec @ W_ih0 (prefolded)
                    const0_ref, const1_ref,       # (B, 4H)  f32   h_ctx @ W_hh + b (hoisted)
                    c0_ref, c1_ref,               # (B, H)   f32   encoder cell states
                    wih1_ref,                     # (H, 4H)  bf16
                    fcw_ref, fcb_ref,             # (H, Vp) bf16, (1, Vp) f32
                    logits_ref,                   # out block (K, B, Vp) f32
                    tok_ref):                     # VMEM scratch (B, 1) int32: carried token
    prog = pl.program_id(0)
    K = logits_ref.shape[0]
    B, H = c0_ref.shape
    Vp = fcw_ref.shape[1]

    @pl.when(prog == 0)
    def _():
        tok_ref[...] = dst_ref[0]                 # inp = dst[:, 0]

    # Built once per program, reused for one-hot AND argmax across all K steps.
    lane = lax.broadcasted_iota(jnp.int32, (B, Vp), 1)

    def body(j, tok):
        step = prog * K + j

        # layer 0: embedding gather + input projection as ONE one-hot matmul;
        # the constant context contribution (h_ctx0 @ W_hh0 + b0) is pre-added.
        onehot = (lane == tok).astype(jnp.bfloat16)
        g0 = jnp.dot(onehot, embproj_ref[...],
                     preferred_element_type=jnp.float32) + const0_ref[...]
        h0n, _ = _gates_to_hc(g0, c0_ref[...], H)

        # layer 1 (inter-layer dropout is identity in eval)
        g1 = jnp.dot(h0n.astype(jnp.bfloat16), wih1_ref[...],
                     preferred_element_type=jnp.float32) + const1_ref[...]
        h1n, _ = _gates_to_hc(g1, c1_ref[...], H)

        # dropout(p=0.1) -> identity (eval); fc1 with lane-dense padded vocab
        logits = jnp.dot(h1n.astype(jnp.bfloat16), fcw_ref[...],
                         preferred_element_type=jnp.float32) + fcb_ref[...]
        logits_ref[j] = logits

        # next-token feedback, fully on-chip: teacher token vs argmax(logits)
        m = jnp.max(logits, axis=-1, keepdims=True)
        amax = jnp.min(jnp.where(logits == m, lane, Vp),
                       axis=-1, keepdims=True)                       # (B,1) i32
        teacher = dst_ref[step + 1]                                  # (B,1) i32
        return jnp.where(tf_ref[step] > 0, teacher, amax)

    tok = lax.fori_loop(0, K, body, tok_ref[...], unroll=True)
    tok_ref[...] = tok


def _decoder_call(params, dst_p, tf_flags, h_ctx, c_ctx):
    B, L = dst_p.shape
    Tdec = L - 1
    H = params["dec_whh0"].shape[0]
    V = params["fc_w"].shape[1]
    Vp = _round_up(V, 128)
    G = 4 * H
    K = _largest_divisor_leq(Tdec, 8)             # decode steps per grid program

    # One-time hoists (constant across all decode steps, outside the grid loop):
    embproj = jnp.dot(params["emb_dec"], params["dec_wih0"])             # (V, 4H)
    embproj = jnp.pad(embproj, ((0, Vp - V), (0, 0))).astype(jnp.bfloat16)
    const0 = jnp.dot(h_ctx[0], params["dec_whh0"]) + params["dec_b0"]    # (B, 4H) f32
    const1 = jnp.dot(h_ctx[1], params["dec_whh1"]) + params["dec_b1"]    # (B, 4H) f32
    fcw = jnp.pad(params["fc_w"], ((0, 0), (0, Vp - V))).astype(jnp.bfloat16)
    fcb = jnp.pad(params["fc_b"], ((0, 0), (0, Vp - V)), constant_values=-1e9)
    wih1 = params["dec_wih1"].astype(jnp.bfloat16)

    dst_t = jnp.transpose(dst_p, (1, 0)).reshape(L, B, 1).astype(jnp.int32)

    grid_spec = pltpu.PrefetchScalarGridSpec(
        num_scalar_prefetch=1,
        grid=(Tdec // K,),
        in_specs=[
            pl.BlockSpec((L, B, 1), lambda i, tf: (0, 0, 0)),   # tokens, resident
            pl.BlockSpec((Vp, G), lambda i, tf: (0, 0)),        # emb @ W_ih0, resident
            pl.BlockSpec((B, G), lambda i, tf: (0, 0)),         # const0
            pl.BlockSpec((B, G), lambda i, tf: (0, 0)),         # const1
            pl.BlockSpec((B, H), lambda i, tf: (0, 0)),         # c_ctx[0]
            pl.BlockSpec((B, H), lambda i, tf: (0, 0)),         # c_ctx[1]
            pl.BlockSpec((H, G), lambda i, tf: (0, 0)),         # W_ih1
            pl.BlockSpec((H, Vp), lambda i, tf: (0, 0)),        # fc_w (padded)
            pl.BlockSpec((1, Vp), lambda i, tf: (0, 0)),        # fc_b (padded)
        ],
        out_specs=pl.BlockSpec((K, B, Vp), lambda i, tf: (i, 0, 0)),
        scratch_shapes=[pltpu.VMEM((B, 1), jnp.int32)],
    )

    logits = pl.pallas_call(
        _decoder_kernel,
        out_shape=jax.ShapeDtypeStruct((Tdec, B, Vp), jnp.float32),
        grid_spec=grid_spec,
        compiler_params=pltpu.CompilerParams(
            dimension_semantics=("arbitrary",),
            vmem_limit_bytes=64 * 1024 * 1024),
    )(tf_flags, dst_t, embproj, const0, const1, c_ctx[0], c_ctx[1],
      wih1, fcw, fcb)
    return logits                                                # (Tdec, B, Vp)


# ------------------------------- full forward --------------------------------
@jax.jit
def seq2seq_forward(params, src, lengths, dst, tf_key, teacher_forcing_ratio=0.5):
    B0, T = src.shape
    _, L = dst.shape
    E = params["emb_enc"].shape[1]
    H = params["enc_whh0"].shape[0]
    V = params["fc_w"].shape[1]

    # Pad batch to the f32 sublane count (8) so vregs / MXU rows are occupied.
    Bp = max(8, _round_up(B0, 8))
    pad = Bp - B0
    src_p = jnp.pad(src, ((0, pad), (0, 0)))
    dst_p = jnp.pad(dst, ((0, pad), (0, 0)))
    len_p = jnp.pad(lengths, (0, pad)).reshape(Bp, 1).astype(jnp.int32)

    # Encoder embedding lookup (XLA gather glue), time-major, flattened over (T, B).
    x = jnp.take(params["emb_enc"], src_p, axis=0)                 # (Bp, T, E)
    x2d = jnp.transpose(x, (1, 0, 2)).reshape(T * Bp, E).astype(jnp.bfloat16)

    h_ctx, c_ctx = _encoder_call(params, x2d, len_p, T, Bp, E, H)  # (2, Bp, H) each

    Tdec = L - 1
    # Deterministic stand-in for torch.rand(1) per step.
    tf_flags = (jax.random.uniform(tf_key, (Tdec,)) <
                teacher_forcing_ratio).astype(jnp.int32)

    logits = _decoder_call(params, dst_p, tf_flags, h_ctx, c_ctx)  # (Tdec, Bp, Vp)
    return jnp.transpose(logits[:, :B0, :V], (1, 0, 2))            # (B0, Tdec, V)


# ------------------------------- parameter init -------------------------------
def init_params(key, vocab_size, padding_idx, embedding_size=64, hidden_size=128):
    ks = jax.random.split(key, 16)
    E, H, V = embedding_size, hidden_size, vocab_size
    scale = 0.1

    def w(k, shape):
        return (scale * jax.random.normal(k, shape)).astype(jnp.float32)

    emb_enc = w(ks[0], (V, E)).at[padding_idx].set(0.0)
    emb_dec = w(ks[1], (V, E)).at[padding_idx].set(0.0)

    params = {
        "emb_enc": emb_enc,
        "emb_dec": emb_dec,
        # encoder LSTM (2 layers), weights pre-transposed, gate order (i, f, g, o)
        "enc_wih0": w(ks[2], (E, 4 * H)),
        "enc_whh0": w(ks[3], (H, 4 * H)),
        "enc_b0": w(ks[4], (1, 4 * H)),
        "enc_wih1": w(ks[5], (H, 4 * H)),
        "enc_whh1": w(ks[6], (H, 4 * H)),
        "enc_b1": w(ks[7], (1, 4 * H)),
        # decoder LSTM (2 layers)
        "dec_wih0": w(ks[8], (E, 4 * H)),
        "dec_whh0": w(ks[9], (H, 4 * H)),
        "dec_b0": w(ks[10], (1, 4 * H)),
        "dec_wih1": w(ks[11], (H, 4 * H)),
        "dec_whh1": w(ks[12], (H, 4 * H)),
        "dec_b1": w(ks[13], (1, 4 * H)),
        # decoder fc1: hidden -> vocab
        "fc_w": w(ks[14], (H, V)),
        "fc_b": w(ks[15], (1, V)),
    }
    return params


if __name__ == "__main__":
    VOCAB = 100
    PAD = 0
    B, T_SRC, T_DST = 2, 8, 6
    E, H = 64, 128

    root = jax.random.PRNGKey(0)
    k_param, k_src, k_dst, k_tf = jax.random.split(root, 4)

    params = init_params(k_param, VOCAB, PAD, E, H)

    src = jax.random.randint(k_src, (B, T_SRC), 1, VOCAB, dtype=jnp.int32)
    lengths = jnp.array([8, 5], dtype=jnp.int32)      # sorted desc (pack_padded_sequence)
    pos = jnp.arange(T_SRC)[None, :]
    src = jnp.where(pos < lengths[:, None], src, PAD)  # zero out padded positions
    dst = jax.random.randint(k_dst, (B, T_DST), 1, VOCAB, dtype=jnp.int32)

    res = seq2seq_forward(params, src, lengths, dst, k_tf, 0.5)
    res = jax.block_until_ready(res)

    assert res.shape == (B, T_DST - 1, VOCAB), res.shape
    assert bool(jnp.all(jnp.isfinite(res)))
    print("KERNEL_OK")
</pallas_src>

<mosaic_0001>
module attributes {stable_mosaic.version = 11 : i64} {
  func.func @_encoder_kernel(%arg0: i32, %arg1: memref<64x64xbf16, #tpu.memory_space<vmem>>, %arg2: memref<8x1xi32, #tpu.memory_space<vmem>>, %arg3: memref<64x512xbf16, #tpu.memory_space<vmem>>, %arg4: memref<128x512xbf16, #tpu.memory_space<vmem>>, %arg5: memref<1x512xf32, #tpu.memory_space<vmem>>, %arg6: memref<256x512xbf16, #tpu.memory_space<vmem>>, %arg7: memref<1x512xf32, #tpu.memory_space<vmem>>, %arg8: memref<2x8x128xf32, #tpu.memory_space<vmem>>, %arg9: memref<2x8x128xf32, #tpu.memory_space<vmem>>, %arg10: memref<64x512xbf16, #tpu.memory_space<vmem>>, %arg11: memref<8x256xbf16, #tpu.memory_space<vmem>>, %arg12: memref<4x8x128xf32, #tpu.memory_space<vmem>>) attributes {dimension_semantics = [#tpu.dimension_semantics<arbitrary>], iteration_bounds = array<i64: 1>, scalar_prefetch = 0 : i64, scratch_operands = 3 : i64, tpu.core_type = #tpu.core_type<tc>, window_params = [{transform_indices = @transform_0, window_bounds = array<i64: 64, 64>}, {pipeline_mode = #tpu.pipeline_mode<synchronous>, transform_indices = @transform_1, window_bounds = array<i64: 8, 1>}, {pipeline_mode = #tpu.pipeline_mode<synchronous>, transform_indices = @transform_2, window_bounds = array<i64: 64, 512>}, {pipeline_mode = #tpu.pipeline_mode<synchronous>, transform_indices = @transform_3, window_bounds = array<i64: 128, 512>}, {pipeline_mode = #tpu.pipeline_mode<synchronous>, transform_indices = @transform_4, window_bounds = array<i64: 1, 512>}, {pipeline_mode = #tpu.pipeline_mode<synchronous>, transform_indices = @transform_5, window_bounds = array<i64: 256, 512>}, {pipeline_mode = #tpu.pipeline_mode<synchronous>, transform_indices = @transform_6, window_bounds = array<i64: 1, 512>}, {pipeline_mode = #tpu.pipeline_mode<synchronous>, transform_indices = @transform_7, window_bounds = array<i64: 2, 8, 128>}, {pipeline_mode = #tpu.pipeline_mode<synchronous>, transform_indices = @transform_8, window_bounds = array<i64: 2, 8, 128>}]} {
    %c0_i32 = arith.constant 0 : i32
    %0 = arith.cmpi eq, %arg0, %c0_i32 : i32
    %1 = arith.extui %0 : i1 to i32
    %c0_i32_0 = arith.constant 0 : i32
    %2 = arith.cmpi ne, %1, %c0_i32_0 : i32
    scf.if %2 {
      %cst_231 = arith.constant 0.000000e+00 : f32
      %722 = vector.broadcast %cst_231 : f32 to vector<4x8x128xf32>
      %c0_232 = arith.constant 0 : index
      %c0_233 = arith.constant 0 : index
      %c0_234 = arith.constant 0 : index
      %723 = vector.load %arg12[%c0_232, %c0_233, %c0_234] : memref<4x8x128xf32, #tpu.memory_space<vmem>>, vector<4x8x128xf32>
      tpu.vector_store %arg12[%c0_232, %c0_233, %c0_234], %722 {strides = array<i32>} : memref<4x8x128xf32, #tpu.memory_space<vmem>>, vector<4x8x128xf32>,
    } else {
    }
    %c0 = arith.constant 0 : index
    %c0_1 = arith.constant 0 : index
    %3 = vector.load %arg1[%c0, %c0_1] : memref<64x64xbf16, #tpu.memory_space<vmem>>, vector<64x64xbf16>
    %c0_2 = arith.constant 0 : index
    %c0_3 = arith.constant 0 : index
    %4 = vector.load %arg3[%c0_2, %c0_3] : memref<64x512xbf16, #tpu.memory_space<vmem>>, vector<64x512xbf16>
    %cst = arith.constant dense<0.000000e+00> : vector<64x512xf32>
    %5 = tpu.matmul %3, %4, %cst {dimension_numbers = #tpu.dot_dimension_numbers<[1], [0], [0], [1], [0, 0, 1, 1], [], []>} : vector<64x64xbf16>, vector<64x512xbf16>, vector<64x512xf32> -> vector<64x512xf32>
    %c0_4 = arith.constant 0 : index
    %c0_5 = arith.constant 0 : index
    %6 = vector.load %arg5[%c0_4, %c0_5] : memref<1x512xf32, #tpu.memory_space<vmem>>, vector<1x512xf32>
    %7 = vector.broadcast %6 : vector<1x512xf32> to vector<64x512xf32>
    %8 = arith.addf %5, %7 : vector<64x512xf32>
    %9 = arith.truncf %8 : vector<64x512xf32> to vector<64x512xbf16>
    %c0_6 = arith.constant 0 : index
    %c0_7 = arith.constant 0 : index
    %10 = vector.load %arg10[%c0_6, %c0_7] : memref<64x512xbf16, #tpu.memory_space<vmem>>, vector<64x512xbf16>
    tpu.vector_store %arg10[%c0_6, %c0_7], %9 {strides = array<i32>} : memref<64x512xbf16, #tpu.memory_space<vmem>>, vector<64x512xbf16>,
    %c0_8 = arith.constant 0 : index
    %c0_9 = arith.constant 0 : index
    %c0_10 = arith.constant 0 : index
    %11 = vector.load %arg12[%c0_8, %c0_9, %c0_10] : memref<4x8x128xf32, #tpu.memory_space<vmem>>, vector<1x8x128xf32>
    %12 = vector.shape_cast %11 : vector<1x8x128xf32> to vector<8x128xf32>
    %c1 = arith.constant 1 : index
    %c0_11 = arith.constant 0 : index
    %c0_12 = arith.constant 0 : index
    %13 = vector.load %arg12[%c1, %c0_11, %c0_12] : memref<4x8x128xf32, #tpu.memory_space<vmem>>, vector<1x8x128xf32>
    %14 = vector.shape_cast %13 : vector<1x8x128xf32> to vector<8x128xf32>
    %c2 = arith.constant 2 : index
    %c0_13 = arith.constant 0 : index
    %c0_14 = arith.constant 0 : index
    %15 = vector.load %arg12[%c2, %c0_13, %c0_14] : memref<4x8x128xf32, #tpu.memory_space<vmem>>, vector<1x8x128xf32>
    %16 = vector.shape_cast %15 : vector<1x8x128xf32> to vector<8x128xf32>
    %c3 = arith.constant 3 : index
    %c0_15 = arith.constant 0 : index
    %c0_16 = arith.constant 0 : index
    %17 = vector.load %arg12[%c3, %c0_15, %c0_16] : memref<4x8x128xf32, #tpu.memory_space<vmem>>, vector<1x8x128xf32>
    %18 = vector.shape_cast %17 : vector<1x8x128xf32> to vector<8x128xf32>
    %c0_i32_17 = arith.constant 0 : i32
    %c8_i32 = arith.constant 8 : i32
    %19 = arith.muli %arg0, %c8_i32 : i32
    %20 = arith.addi %19, %c0_i32_17 : i32
    %c0_18 = arith.constant 0 : index
    %c0_19 = arith.constant 0 : index
    %21 = vector.load %arg2[%c0_18, %c0_19] : memref<8x1xi32, #tpu.memory_space<vmem>>, vector<8x1xi32>
    %22 = vector.broadcast %20 : i32 to vector<8x1xi32>
    %23 = arith.cmpi slt, %22, %21 : vector<8x1xi32>
    %c8_i32_20 = arith.constant 8 : i32
    %24 = arith.muli %c0_i32_17, %c8_i32_20 : i32
    %25 = tpu.assume_multiple %24, 8 : i32
    %26 = arith.index_cast %25 : i32 to index
    %c0_21 = arith.constant 0 : index
    %27 = vector.load %arg10[%26, %c0_21] : memref<64x512xbf16, #tpu.memory_space<vmem>>, vector<8x512xbf16>
    %28 = arith.extf %27 : vector<8x512xbf16> to vector<8x512xf32>
    %29 = arith.truncf %12 : vector<8x128xf32> to vector<8x128xbf16>
    %c0_22 = arith.constant 0 : index
    %c0_23 = arith.constant 0 : index
    %30 = vector.load %arg4[%c0_22, %c0_23] : memref<128x512xbf16, #tpu.memory_space<vmem>>, vector<128x512xbf16>
    %cst_24 = arith.constant dense<0.000000e+00> : vector<8x512xf32>
    %31 = tpu.matmul %29, %30, %cst_24 {dimension_numbers = #tpu.dot_dimension_numbers<[1], [0], [0], [1], [0, 0, 1, 1], [], []>} : vector<8x128xbf16>, vector<128x512xbf16>, vector<8x512xf32> -> vector<8x512xf32>
    %32 = arith.addf %28, %31 : vector<8x512xf32>
    %33 = vector.extract_strided_slice %32 {offsets = [0, 0], sizes = [8, 128], strides = [1, 1]} : vector<8x512xf32> to vector<8x128xf32>
    %34 = arith.negf %33 : vector<8x128xf32>
    %35 = math.exp %34 : vector<8x128xf32>
    %cst_25 = arith.constant 1.000000e+00 : f32
    %36 = vector.broadcast %cst_25 : f32 to vector<8x128xf32>
    %37 = arith.addf %36, %35 : vector<8x128xf32>
    %38 = arith.divf %36, %37 : vector<8x128xf32>
    %39 = vector.extract_strided_slice %32 {offsets = [0, 128], sizes = [8, 128], strides = [1, 1]} : vector<8x512xf32> to vector<8x128xf32>
    %40 = arith.negf %39 : vector<8x128xf32>
    %41 = math.exp %40 : vector<8x128xf32>
    %cst_26 = arith.constant 1.000000e+00 : f32
    %42 = vector.broadcast %cst_26 : f32 to vector<8x128xf32>
    %43 = arith.addf %42, %41 : vector<8x128xf32>
    %44 = arith.divf %42, %43 : vector<8x128xf32>
    %45 = vector.extract_strided_slice %32 {offsets = [0, 256], sizes = [8, 128], strides = [1, 1]} : vector<8x512xf32> to vector<8x128xf32>
    %46 = math.tanh %45 : vector<8x128xf32>
    %47 = vector.extract_strided_slice %32 {offsets = [0, 384], sizes = [8, 128], strides = [1, 1]} : vector<8x512xf32> to vector<8x128xf32>
    %48 = arith.negf %47 : vector<8x128xf32>
    %49 = math.exp %48 : vector<8x128xf32>
    %cst_27 = arith.constant 1.000000e+00 : f32
    %50 = vector.broadcast %cst_27 : f32 to vector<8x128xf32>
    %51 = arith.addf %50, %49 : vector<8x128xf32>
    %52 = arith.divf %50, %51 : vector<8x128xf32>
    %53 = arith.mulf %44, %14 : vector<8x128xf32>
    %54 = arith.mulf %38, %46 : vector<8x128xf32>
    %55 = arith.addf %53, %54 : vector<8x128xf32>
    %56 = math.tanh %55 : vector<8x128xf32>
    %57 = arith.mulf %52, %56 : vector<8x128xf32>
    %58 = vector.shape_cast %23 : vector<8x1xi1> to vector<8x1xi1>
    %59 = vector.broadcast %58 : vector<8x1xi1> to vector<8x128xi1>
    %60 = arith.select %59, %57, %12 : vector<8x128xi1>, vector<8x128xf32>
    %61 = vector.shape_cast %23 : vector<8x1xi1> to vector<8x1xi1>
    %62 = vector.broadcast %61 : vector<8x1xi1> to vector<8x128xi1>
    %63 = arith.select %62, %55, %14 : vector<8x128xi1>, vector<8x128xf32>
    %64 = arith.truncf %60 : vector<8x128xf32> to vector<8x128xbf16>
    %c0_28 = arith.constant 0 : index
    %c0_29 = arith.constant 0 : index
    %65 = vector.load %arg11[%c0_28, %c0_29] : memref<8x256xbf16, #tpu.memory_space<vmem>>, vector<8x128xbf16>
    tpu.vector_store %arg11[%c0_28, %c0_29], %64 {strides = array<i32>} : memref<8x256xbf16, #tpu.memory_space<vmem>>, vector<8x128xbf16>,
    %66 = arith.truncf %16 : vector<8x128xf32> to vector<8x128xbf16>
    %c0_30 = arith.constant 0 : index
    %c128 = arith.constant 128 : index
    %67 = vector.load %arg11[%c0_30, %c128] : memref<8x256xbf16, #tpu.memory_space<vmem>>, vector<8x128xbf16>
    tpu.vector_store %arg11[%c0_30, %c128], %66 {strides = array<i32>} : memref<8x256xbf16, #tpu.memory_space<vmem>>, vector<8x128xbf16>,
    %c0_31 = arith.constant 0 : index
    %c0_32 = arith.constant 0 : index
    %68 = vector.load %arg11[%c0_31, %c0_32] : memref<8x256xbf16, #tpu.memory_space<vmem>>, vector<8x256xbf16>
    %c0_33 = arith.constant 0 : index
    %c0_34 = arith.constant 0 : index
    %69 = vector.load %arg6[%c0_33, %c0_34] : memref<256x512xbf16, #tpu.memory_space<vmem>>, vector<256x512xbf16>
    %cst_35 = arith.constant dense<0.000000e+00> : vector<8x512xf32>
    %70 = tpu.matmul %68, %69, %cst_35 {dimension_numbers = #tpu.dot_dimension_numbers<[1], [0], [0], [1], [0, 0, 1, 1], [], []>} : vector<8x256xbf16>, vector<256x512xbf16>, vector<8x512xf32> -> vector<8x512xf32>
    %c0_36 = arith.constant 0 : index
    %c0_37 = arith.constant 0 : index
    %71 = vector.load %arg7[%c0_36, %c0_37] : memref<1x512xf32, #tpu.memory_space<vmem>>, vector<1x512xf32>
    %72 = vector.broadcast %71 : vector<1x512xf32> to vector<8x512xf32>
    %73 = arith.addf %70, %72 : vector<8x512xf32>
    %74 = vector.extract_strided_slice %73 {offsets = [0, 0], sizes = [8, 128], strides = [1, 1]} : vector<8x512xf32> to vector<8x128xf32>
    %75 = arith.negf %74 : vector<8x128xf32>
    %76 = math.exp %75 : vector<8x128xf32>
    %cst_38 = arith.constant 1.000000e+00 : f32
    %77 = vector.broadcast %cst_38 : f32 to vector<8x128xf32>
    %78 = arith.addf %77, %76 : vector<8x128xf32>
    %79 = arith.divf %77, %78 : vector<8x128xf32>
    %80 = vector.extract_strided_slice %73 {offsets = [0, 128], sizes = [8, 128], strides = [1, 1]} : vector<8x512xf32> to vector<8x128xf32>
    %81 = arith.negf %80 : vector<8x128xf32>
    %82 = math.exp %81 : vector<8x128xf32>
    %cst_39 = arith.constant 1.000000e+00 : f32
    %83 = vector.broadcast %cst_39 : f32 to vector<8x128xf32>
    %84 = arith.addf %83, %82 : vector<8x128xf32>
    %85 = arith.divf %83, %84 : vector<8x128xf32>
    %86 = vector.extract_strided_slice %73 {offsets = [0, 256], sizes = [8, 128], strides = [1, 1]} : vector<8x512xf32> to vector<8x128xf32>
    %87 = math.tanh %86 : vector<8x128xf32>
    %88 = vector.extract_strided_slice %73 {offsets = [0, 384], sizes = [8, 128], strides = [1, 1]} : vector<8x512xf32> to vector<8x128xf32>
    %89 = arith.negf %88 : vector<8x128xf32>
    %90 = math.exp %89 : vector<8x128xf32>
    %cst_40 = arith.constant 1.000000e+00 : f32
    %91 = vector.broadcast %cst_40 : f32 to vector<8x128xf32>
    %92 = arith.addf %91, %90 : vector<8x128xf32>
    %93 = arith.divf %91, %92 : vector<8x128xf32>
    %94 = arith.mulf %85, %18 : vector<8x128xf32>
    %95 = arith.mulf %79, %87 : vector<8x128xf32>
    %96 = arith.addf %94, %95 : vector<8x128xf32>
    %97 = math.tanh %96 : vector<8x128xf32>
    %98 = arith.mulf %93, %97 : vector<8x128xf32>
    %99 = vector.shape_cast %23 : vector<8x1xi1> to vector<8x1xi1>
    %100 = vector.broadcast %99 : vector<8x1xi1> to vector<8x128xi1>
    %101 = arith.select %100, %98, %16 : vector<8x128xi1>, vector<8x128xf32>
    %102 = vector.shape_cast %23 : vector<8x1xi1> to vector<8x1xi1>
    %103 = vector.broadcast %102 : vector<8x1xi1> to vector<8x128xi1>
    %104 = arith.select %103, %96, %18 : vector<8x128xi1>, vector<8x128xf32>
    %c1_i32 = arith.constant 1 : i32
    %c8_i32_41 = arith.constant 8 : i32
    %105 = arith.muli %arg0, %c8_i32_41 : i32
    %106 = arith.addi %105, %c1_i32 : i32
    %c0_42 = arith.constant 0 : index
    %c0_43 = arith.constant 0 : index
    %107 = vector.load %arg2[%c0_42, %c0_43] : memref<8x1xi32, #tpu.memory_space<vmem>>, vector<8x1xi32>
    %108 = vector.broadcast %106 : i32 to vector<8x1xi32>
    %109 = arith.cmpi slt, %108, %107 : vector<8x1xi32>
    %c8_i32_44 = arith.constant 8 : i32
    %110 = arith.muli %c1_i32, %c8_i32_44 : i32
    %111 = tpu.assume_multiple %110, 8 : i32
    %112 = arith.index_cast %111 : i32 to index
    %c0_45 = arith.constant 0 : index
    %113 = vector.load %arg10[%112, %c0_45] : memref<64x512xbf16, #tpu.memory_space<vmem>>, vector<8x512xbf16>
    %114 = arith.extf %113 : vector<8x512xbf16> to vector<8x512xf32>
    %115 = arith.truncf %60 : vector<8x128xf32> to vector<8x128xbf16>
    %c0_46 = arith.constant 0 : index
    %c0_47 = arith.constant 0 : index
    %116 = vector.load %arg4[%c0_46, %c0_47] : memref<128x512xbf16, #tpu.memory_space<vmem>>, vector<128x512xbf16>
    %cst_48 = arith.constant dense<0.000000e+00> : vector<8x512xf32>
    %117 = tpu.matmul %115, %116, %cst_48 {dimension_numbers = #tpu.dot_dimension_numbers<[1], [0], [0], [1], [0, 0, 1, 1], [], []>} : vector<8x128xbf16>, vector<128x512xbf16>, vector<8x512xf32> -> vector<8x512xf32>
    %118 = arith.addf %114, %117 : vector<8x512xf32>
    %119 = vector.extract_strided_slice %118 {offsets = [0, 0], sizes = [8, 128], strides = [1, 1]} : vector<8x512xf32> to vector<8x128xf32>
    %120 = arith.negf %119 : vector<8x128xf32>
    %121 = math.exp %120 : vector<8x128xf32>
    %cst_49 = arith.constant 1.000000e+00 : f32
    %122 = vector.broadcast %cst_49 : f32 to vector<8x128xf32>
    %123 = arith.addf %122, %121 : vector<8x128xf32>
    %124 = arith.divf %122, %123 : vector<8x128xf32>
    %125 = vector.extract_strided_slice %118 {offsets = [0, 128], sizes = [8, 128], strides = [1, 1]} : vector<8x512xf32> to vector<8x128xf32>
    %126 = arith.negf %125 : vector<8x128xf32>
    %127 = math.exp %126 : vector<8x128xf32>
    %cst_50 = arith.constant 1.000000e+00 : f32
    %128 = vector.broadcast %cst_50 : f32 to vector<8x128xf32>
    %129 = arith.addf %128, %127 : vector<8x128xf32>
    %130 = arith.divf %128, %129 : vector<8x128xf32>
    %131 = vector.extract_strided_slice %118 {offsets = [0, 256], sizes = [8, 128], strides = [1, 1]} : vector<8x512xf32> to vector<8x128xf32>
    %132 = math.tanh %131 : vector<8x128xf32>
    %133 = vector.extract_strided_slice %118 {offsets = [0, 384], sizes = [8, 128], strides = [1, 1]} : vector<8x512xf32> to vector<8x128xf32>
    %134 = arith.negf %133 : vector<8x128xf32>
    %135 = math.exp %134 : vector<8x128xf32>
    %cst_51 = arith.constant 1.000000e+00 : f32
    %136 = vector.broadcast %cst_51 : f32 to vector<8x128xf32>
    %137 = arith.addf %136, %135 : vector<8x128xf32>
    %138 = arith.divf %136, %137 : vector<8x128xf32>
    %139 = arith.mulf %130, %63 : vector<8x128xf32>
    %140 = arith.mulf %124, %132 : vector<8x128xf32>
    %141 = arith.addf %139, %140 : vector<8x128xf32>
    %142 = math.tanh %141 : vector<8x128xf32>
    %143 = arith.mulf %138, %142 : vector<8x128xf32>
    %144 = vector.shape_cast %109 : vector<8x1xi1> to vector<8x1xi1>
    %145 = vector.broadcast %144 : vector<8x1xi1> to vector<8x128xi1>
    %146 = arith.select %145, %143, %60 : vector<8x128xi1>, vector<8x128xf32>
    %147 = vector.shape_cast %109 : vector<8x1xi1> to vector<8x1xi1>
    %148 = vector.broadcast %147 : vector<8x1xi1> to vector<8x128xi1>
    %149 = arith.select %148, %141, %63 : vector<8x128xi1>, vector<8x128xf32>
    %150 = arith.truncf %146 : vector<8x128xf32> to vector<8x128xbf16>
    %c0_52 = arith.constant 0 : index
    %c0_53 = arith.constant 0 : index
    %151 = vector.load %arg11[%c0_52, %c0_53] : memref<8x256xbf16, #tpu.memory_space<vmem>>, vector<8x128xbf16>
    tpu.vector_store %arg11[%c0_52, %c0_53], %150 {strides = array<i32>} : memref<8x256xbf16, #tpu.memory_space<vmem>>, vector<8x128xbf16>,
    %152 = arith.truncf %101 : vector<8x128xf32> to vector<8x128xbf16>
    %c0_54 = arith.constant 0 : index
    %c128_55 = arith.constant 128 : index
    %153 = vector.load %arg11[%c0_54, %c128_55] : memref<8x256xbf16, #tpu.memory_space<vmem>>, vector<8x128xbf16>
    tpu.vector_store %arg11[%c0_54, %c128_55], %152 {strides = array<i32>} : memref<8x256xbf16, #tpu.memory_space<vmem>>, vector<8x128xbf16>,
    %c0_56 = arith.constant 0 : index
    %c0_57 = arith.constant 0 : index
    %154 = vector.load %arg11[%c0_56, %c0_57] : memref<8x256xbf16, #tpu.memory_space<vmem>>, vector<8x256xbf16>
    %c0_58 = arith.constant 0 : index
    %c0_59 = arith.constant 0 : index
    %155 = vector.load %arg6[%c0_58, %c0_59] : memref<256x512xbf16, #tpu.memory_space<vmem>>, vector<256x512xbf16>
    %cst_60 = arith.constant dense<0.000000e+00> : vector<8x512xf32>
    %156 = tpu.matmul %154, %155, %cst_60 {dimension_numbers = #tpu.dot_dimension_numbers<[1], [0], [0], [1], [0, 0, 1, 1], [], []>} : vector<8x256xbf16>, vector<256x512xbf16>, vector<8x512xf32> -> vector<8x512xf32>
    %c0_61 = arith.constant 0 : index
    %c0_62 = arith.constant 0 : index
    %157 = vector.load %arg7[%c0_61, %c0_62] : memref<1x512xf32, #tpu.memory_space<vmem>>, vector<1x512xf32>
    %158 = vector.broadcast %157 : vector<1x512xf32> to vector<8x512xf32>
    %159 = arith.addf %156, %158 : vector<8x512xf32>
    %160 = vector.extract_strided_slice %159 {offsets = [0, 0], sizes = [8, 128], strides = [1, 1]} : vector<8x512xf32> to vector<8x128xf32>
    %161 = arith.negf %160 : vector<8x128xf32>
    %162 = math.exp %161 : vector<8x128xf32>
    %cst_63 = arith.constant 1.000000e+00 : f32
    %163 = vector.broadcast %cst_63 : f32 to vector<8x128xf32>
    %164 = arith.addf %163, %162 : vector<8x128xf32>
    %165 = arith.divf %163, %164 : vector<8x128xf32>
    %166 = vector.extract_strided_slice %159 {offsets = [0, 128], sizes = [8, 128], strides = [1, 1]} : vector<8x512xf32> to vector<8x128xf32>
    %167 = arith.negf %166 : vector<8x128xf32>
    %168 = math.exp %167 : vector<8x128xf32>
    %cst_64 = arith.constant 1.000000e+00 : f32
    %169 = vector.broadcast %cst_64 : f32 to vector<8x128xf32>
    %170 = arith.addf %169, %168 : vector<8x128xf32>
    %171 = arith.divf %169, %170 : vector<8x128xf32>
    %172 = vector.extract_strided_slice %159 {offsets = [0, 256], sizes = [8, 128], strides = [1, 1]} : vector<8x512xf32> to vector<8x128xf32>
    %173 = math.tanh %172 : vector<8x128xf32>
    %174 = vector.extract_strided_slice %159 {offsets = [0, 384], sizes = [8, 128], strides = [1, 1]} : vector<8x512xf32> to vector<8x128xf32>
    %175 = arith.negf %174 : vector<8x128xf32>
    %176 = math.exp %175 : vector<8x128xf32>
    %cst_65 = arith.constant 1.000000e+00 : f32
    %177 = vector.broadcast %cst_65 : f32 to vector<8x128xf32>
    %178 = arith.addf %177, %176 : vector<8x128xf32>
    %179 = arith.divf %177, %178 : vector<8x128xf32>
    %180 = arith.mulf %171, %104 : vector<8x128xf32>
    %181 = arith.mulf %165, %173 : vector<8x128xf32>
    %182 = arith.addf %180, %181 : vector<8x128xf32>
    %183 = math.tanh %182 : vector<8x128xf32>
    %184 = arith.mulf %179, %183 : vector<8x128xf32>
    %185 = vector.shape_cast %109 : vector<8x1xi1> to vector<8x1xi1>
    %186 = vector.broadcast %185 : vector<8x1xi1> to vector<8x128xi1>
    %187 = arith.select %186, %184, %101 : vector<8x128xi1>, vector<8x128xf32>
    %188 = vector.shape_cast %109 : vector<8x1xi1> to vector<8x1xi1>
    %189 = vector.broadcast %188 : vector<8x1xi1> to vector<8x128xi1>
    %190 = arith.select %189, %182, %104 : vector<8x128xi1>, vector<8x128xf32>
    %c2_i32 = arith.constant 2 : i32
    %c8_i32_66 = arith.constant 8 : i32
    %191 = arith.muli %arg0, %c8_i32_66 : i32
    %192 = arith.addi %191, %c2_i32 : i32
    %c0_67 = arith.constant 0 : index
    %c0_68 = arith.constant 0 : index
    %193 = vector.load %arg2[%c0_67, %c0_68] : memref<8x1xi32, #tpu.memory_space<vmem>>, vector<8x1xi32>
    %194 = vector.broadcast %192 : i32 to vector<8x1xi32>
    %195 = arith.cmpi slt, %194, %193 : vector<8x1xi32>
    %c8_i32_69 = arith.constant 8 : i32
    %196 = arith.muli %c2_i32, %c8_i32_69 : i32
    %197 = tpu.assume_multiple %196, 8 : i32
    %198 = arith.index_cast %197 : i32 to index
    %c0_70 = arith.constant 0 : index
    %199 = vector.load %arg10[%198, %c0_70] : memref<64x512xbf16, #tpu.memory_space<vmem>>, vector<8x512xbf16>
    %200 = arith.extf %199 : vector<8x512xbf16> to vector<8x512xf32>
    %201 = arith.truncf %146 : vector<8x128xf32> to vector<8x128xbf16>
    %c0_71 = arith.constant 0 : index
    %c0_72 = arith.constant 0 : index
    %202 = vector.load %arg4[%c0_71, %c0_72] : memref<128x512xbf16, #tpu.memory_space<vmem>>, vector<128x512xbf16>
    %cst_73 = arith.constant dense<0.000000e+00> : vector<8x512xf32>
    %203 = tpu.matmul %201, %202, %cst_73 {dimension_numbers = #tpu.dot_dimension_numbers<[1], [0], [0], [1], [0, 0, 1, 1], [], []>} : vector<8x128xbf16>, vector<128x512xbf16>, vector<8x512xf32> -> vector<8x512xf32>
    %204 = arith.addf %200, %203 : vector<8x512xf32>
    %205 = vector.extract_strided_slice %204 {offsets = [0, 0], sizes = [8, 128], strides = [1, 1]} : vector<8x512xf32> to vector<8x128xf32>
    %206 = arith.negf %205 : vector<8x128xf32>
    %207 = math.exp %206 : vector<8x128xf32>
    %cst_74 = arith.constant 1.000000e+00 : f32
    %208 = vector.broadcast %cst_74 : f32 to vector<8x128xf32>
    %209 = arith.addf %208, %207 : vector<8x128xf32>
    %210 = arith.divf %208, %209 : vector<8x128xf32>
    %211 = vector.extract_strided_slice %204 {offsets = [0, 128], sizes = [8, 128], strides = [1, 1]} : vector<8x512xf32> to vector<8x128xf32>
    %212 = arith.negf %211 : vector<8x128xf32>
    %213 = math.exp %212 : vector<8x128xf32>
    %cst_75 = arith.constant 1.000000e+00 : f32
    %214 = vector.broadcast %cst_75 : f32 to vector<8x128xf32>
    %215 = arith.addf %214, %213 : vector<8x128xf32>
    %216 = arith.divf %214, %215 : vector<8x128xf32>
    %217 = vector.extract_strided_slice %204 {offsets = [0, 256], sizes = [8, 128], strides = [1, 1]} : vector<8x512xf32> to vector<8x128xf32>
    %218 = math.tanh %217 : vector<8x128xf32>
    %219 = vector.extract_strided_slice %204 {offsets = [0, 384], sizes = [8, 128], strides = [1, 1]} : vector<8x512xf32> to vector<8x128xf32>
    %220 = arith.negf %219 : vector<8x128xf32>
    %221 = math.exp %220 : vector<8x128xf32>
    %cst_76 = arith.constant 1.000000e+00 : f32
    %222 = vector.broadcast %cst_76 : f32 to vector<8x128xf32>
    %223 = arith.addf %222, %221 : vector<8x128xf32>
    %224 = arith.divf %222, %223 : vector<8x128xf32>
    %225 = arith.mulf %216, %149 : vector<8x128xf32>
    %226 = arith.mulf %210, %218 : vector<8x128xf32>
    %227 = arith.addf %225, %226 : vector<8x128xf32>
    %228 = math.tanh %227 : vector<8x128xf32>
    %229 = arith.mulf %224, %228 : vector<8x128xf32>
    %230 = vector.shape_cast %195 : vector<8x1xi1> to vector<8x1xi1>
    %231 = vector.broadcast %230 : vector<8x1xi1> to vector<8x128xi1>
    %232 = arith.select %231, %229, %146 : vector<8x128xi1>, vector<8x128xf32>
    %233 = vector.shape_cast %195 : vector<8x1xi1> to vector<8x1xi1>
    %234 = vector.broadcast %233 : vector<8x1xi1> to vector<8x128xi1>
    %235 = arith.select %234, %227, %149 : vector<8x128xi1>, vector<8x128xf32>
    %236 = arith.truncf %232 : vector<8x128xf32> to vector<8x128xbf16>
    %c0_77 = arith.constant 0 : index
    %c0_78 = arith.constant 0 : index
    %237 = vector.load %arg11[%c0_77, %c0_78] : memref<8x256xbf16, #tpu.memory_space<vmem>>, vector<8x128xbf16>
    tpu.vector_store %arg11[%c0_77, %c0_78], %236 {strides = array<i32>} : memref<8x256xbf16, #tpu.memory_space<vmem>>, vector<8x128xbf16>,
    %238 = arith.truncf %187 : vector<8x128xf32> to vector<8x128xbf16>
    %c0_79 = arith.constant 0 : index
    %c128_80 = arith.constant 128 : index
    %239 = vector.load %arg11[%c0_79, %c128_80] : memref<8x256xbf16, #tpu.memory_space<vmem>>, vector<8x128xbf16>
    tpu.vector_store %arg11[%c0_79, %c128_80], %238 {strides = array<i32>} : memref<8x256xbf16, #tpu.memory_space<vmem>>, vector<8x128xbf16>,
    %c0_81 = arith.constant 0 : index
    %c0_82 = arith.constant 0 : index
    %240 = vector.load %arg11[%c0_81, %c0_82] : memref<8x256xbf16, #tpu.memory_space<vmem>>, vector<8x256xbf16>
    %c0_83 = arith.constant 0 : index
    %c0_84 = arith.constant 0 : index
    %241 = vector.load %arg6[%c0_83, %c0_84] : memref<256x512xbf16, #tpu.memory_space<vmem>>, vector<256x512xbf16>
    %cst_85 = arith.constant dense<0.000000e+00> : vector<8x512xf32>
    %242 = tpu.matmul %240, %241, %cst_85 {dimension_numbers = #tpu.dot_dimension_numbers<[1], [0], [0], [1], [0, 0, 1, 1], [], []>} : vector<8x256xbf16>, vector<256x512xbf16>, vector<8x512xf32> -> vector<8x512xf32>
    %c0_86 = arith.constant 0 : index
    %c0_87 = arith.constant 0 : index
    %243 = vector.load %arg7[%c0_86, %c0_87] : memref<1x512xf32, #tpu.memory_space<vmem>>, vector<1x512xf32>
    %244 = vector.broadcast %243 : vector<1x512xf32> to vector<8x512xf32>
    %245 = arith.addf %242, %244 : vector<8x512xf32>
    %246 = vector.extract_strided_slice %245 {offsets = [0, 0], sizes = [8, 128], strides = [1, 1]} : vector<8x512xf32> to vector<8x128xf32>
    %247 = arith.negf %246 : vector<8x128xf32>
    %248 = math.exp %247 : vector<8x128xf32>
    %cst_88 = arith.constant 1.000000e+00 : f32
    %249 = vector.broadcast %cst_88 : f32 to vector<8x128xf32>
    %250 = arith.addf %249, %248 : vector<8x128xf32>
    %251 = arith.divf %249, %250 : vector<8x128xf32>
    %252 = vector.extract_strided_slice %245 {offsets = [0, 128], sizes = [8, 128], strides = [1, 1]} : vector<8x512xf32> to vector<8x128xf32>
    %253 = arith.negf %252 : vector<8x128xf32>
    %254 = math.exp %253 : vector<8x128xf32>
    %cst_89 = arith.constant 1.000000e+00 : f32
    %255 = vector.broadcast %cst_89 : f32 to vector<8x128xf32>
    %256 = arith.addf %255, %254 : vector<8x128xf32>
    %257 = arith.divf %255, %256 : vector<8x128xf32>
    %258 = vector.extract_strided_slice %245 {offsets = [0, 256], sizes = [8, 128], strides = [1, 1]} : vector<8x512xf32> to vector<8x128xf32>
    %259 = math.tanh %258 : vector<8x128xf32>
    %260 = vector.extract_strided_slice %245 {offsets = [0, 384], sizes = [8, 128], strides = [1, 1]} : vector<8x512xf32> to vector<8x128xf32>
    %261 = arith.negf %260 : vector<8x128xf32>
    %262 = math.exp %261 : vector<8x128xf32>
    %cst_90 = arith.constant 1.000000e+00 : f32
    %263 = vector.broadcast %cst_90 : f32 to vector<8x128xf32>
    %264 = arith.addf %263, %262 : vector<8x128xf32>
    %265 = arith.divf %263, %264 : vector<8x128xf32>
    %266 = arith.mulf %257, %190 : vector<8x128xf32>
    %267 = arith.mulf %251, %259 : vector<8x128xf32>
    %268 = arith.addf %266, %267 : vector<8x128xf32>
    %269 = math.tanh %268 : vector<8x128xf32>
    %270 = arith.mulf %265, %269 : vector<8x128xf32>
    %271 = vector.shape_cast %195 : vector<8x1xi1> to vector<8x1xi1>
    %272 = vector.broadcast %271 : vector<8x1xi1> to vector<8x128xi1>
    %273 = arith.select %272, %270, %187 : vector<8x128xi1>, vector<8x128xf32>
    %274 = vector.shape_cast %195 : vector<8x1xi1> to vector<8x1xi1>
    %275 = vector.broadcast %274 : vector<8x1xi1> to vector<8x128xi1>
    %276 = arith.select %275, %268, %190 : vector<8x128xi1>, vector<8x128xf32>
    %c3_i32 = arith.constant 3 : i32
    %c8_i32_91 = arith.constant 8 : i32
    %277 = arith.muli %arg0, %c8_i32_91 : i32
    %278 = arith.addi %277, %c3_i32 : i32
    %c0_92 = arith.constant 0 : index
    %c0_93 = arith.constant 0 : index
    %279 = vector.load %arg2[%c0_92, %c0_93] : memref<8x1xi32, #tpu.memory_space<vmem>>, vector<8x1xi32>
    %280 = vector.broadcast %278 : i32 to vector<8x1xi32>
    %281 = arith.cmpi slt, %280, %279 : vector<8x1xi32>
    %c8_i32_94 = arith.constant 8 : i32
    %282 = arith.muli %c3_i32, %c8_i32_94 : i32
    %283 = tpu.assume_multiple %282, 8 : i32
    %284 = arith.index_cast %283 : i32 to index
    %c0_95 = arith.constant 0 : index
    %285 = vector.load %arg10[%284, %c0_95] : memref<64x512xbf16, #tpu.memory_space<vmem>>, vector<8x512xbf16>
    %286 = arith.extf %285 : vector<8x512xbf16> to vector<8x512xf32>
    %287 = arith.truncf %232 : vector<8x128xf32> to vector<8x128xbf16>
    %c0_96 = arith.constant 0 : index
    %c0_97 = arith.constant 0 : index
    %288 = vector.load %arg4[%c0_96, %c0_97] : memref<128x512xbf16, #tpu.memory_space<vmem>>, vector<128x512xbf16>
    %cst_98 = arith.constant dense<0.000000e+00> : vector<8x512xf32>
    %289 = tpu.matmul %287, %288, %cst_98 {dimension_numbers = #tpu.dot_dimension_numbers<[1], [0], [0], [1], [0, 0, 1, 1], [], []>} : vector<8x128xbf16>, vector<128x512xbf16>, vector<8x512xf32> -> vector<8x512xf32>
    %290 = arith.addf %286, %289 : vector<8x512xf32>
    %291 = vector.extract_strided_slice %290 {offsets = [0, 0], sizes = [8, 128], strides = [1, 1]} : vector<8x512xf32> to vector<8x128xf32>
    %292 = arith.negf %291 : vector<8x128xf32>
    %293 = math.exp %292 : vector<8x128xf32>
    %cst_99 = arith.constant 1.000000e+00 : f32
    %294 = vector.broadcast %cst_99 : f32 to vector<8x128xf32>
    %295 = arith.addf %294, %293 : vector<8x128xf32>
    %296 = arith.divf %294, %295 : vector<8x128xf32>
    %297 = vector.extract_strided_slice %290 {offsets = [0, 128], sizes = [8, 128], strides = [1, 1]} : vector<8x512xf32> to vector<8x128xf32>
    %298 = arith.negf %297 : vector<8x128xf32>
    %299 = math.exp %298 : vector<8x128xf32>
    %cst_100 = arith.constant 1.000000e+00 : f32
    %300 = vector.broadcast %cst_100 : f32 to vector<8x128xf32>
    %301 = arith.addf %300, %299 : vector<8x128xf32>
    %302 = arith.divf %300, %301 : vector<8x128xf32>
    %303 = vector.extract_strided_slice %290 {offsets = [0, 256], sizes = [8, 128], strides = [1, 1]} : vector<8x512xf32> to vector<8x128xf32>
    %304 = math.tanh %303 : vector<8x128xf32>
    %305 = vector.extract_strided_slice %290 {offsets = [0, 384], sizes = [8, 128], strides = [1, 1]} : vector<8x512xf32> to vector<8x128xf32>
    %306 = arith.negf %305 : vector<8x128xf32>
    %307 = math.exp %306 : vector<8x128xf32>
    %cst_101 = arith.constant 1.000000e+00 : f32
    %308 = vector.broadcast %cst_101 : f32 to vector<8x128xf32>
    %309 = arith.addf %308, %307 : vector<8x128xf32>
    %310 = arith.divf %308, %309 : vector<8x128xf32>
    %311 = arith.mulf %302, %235 : vector<8x128xf32>
    %312 = arith.mulf %296, %304 : vector<8x128xf32>
    %313 = arith.addf %311, %312 : vector<8x128xf32>
    %314 = math.tanh %313 : vector<8x128xf32>
    %315 = arith.mulf %310, %314 : vector<8x128xf32>
    %316 = vector.shape_cast %281 : vector<8x1xi1> to vector<8x1xi1>
    %317 = vector.broadcast %316 : vector<8x1xi1> to vector<8x128xi1>
    %318 = arith.select %317, %315, %232 : vector<8x128xi1>, vector<8x128xf32>
    %319 = vector.shape_cast %281 : vector<8x1xi1> to vector<8x1xi1>
    %320 = vector.broadcast %319 : vector<8x1xi1> to vector<8x128xi1>
    %321 = arith.select %320, %313, %235 : vector<8x128xi1>, vector<8x128xf32>
    %322 = arith.truncf %318 : vector<8x128xf32> to vector<8x128xbf16>
    %c0_102 = arith.constant 0 : index
    %c0_103 = arith.constant 0 : index
    %323 = vector.load %arg11[%c0_102, %c0_103] : memref<8x256xbf16, #tpu.memory_space<vmem>>, vector<8x128xbf16>
    tpu.vector_store %arg11[%c0_102, %c0_103], %322 {strides = array<i32>} : memref<8x256xbf16, #tpu.memory_space<vmem>>, vector<8x128xbf16>,
    %324 = arith.truncf %273 : vector<8x128xf32> to vector<8x128xbf16>
    %c0_104 = arith.constant 0 : index
    %c128_105 = arith.constant 128 : index
    %325 = vector.load %arg11[%c0_104, %c128_105] : memref<8x256xbf16, #tpu.memory_space<vmem>>, vector<8x128xbf16>
    tpu.vector_store %arg11[%c0_104, %c128_105], %324 {strides = array<i32>} : memref<8x256xbf16, #tpu.memory_space<vmem>>, vector<8x128xbf16>,
    %c0_106 = arith.constant 0 : index
    %c0_107 = arith.constant 0 : index
    %326 = vector.load %arg11[%c0_106, %c0_107] : memref<8x256xbf16, #tpu.memory_space<vmem>>, vector<8x256xbf16>
    %c0_108 = arith.constant 0 : index
    %c0_109 = arith.constant 0 : index
    %327 = vector.load %arg6[%c0_108, %c0_109] : memref<256x512xbf16, #tpu.memory_space<vmem>>, vector<256x512xbf16>
    %cst_110 = arith.constant dense<0.000000e+00> : vector<8x512xf32>
    %328 = tpu.matmul %326, %327, %cst_110 {dimension_numbers = #tpu.dot_dimension_numbers<[1], [0], [0], [1], [0, 0, 1, 1], [], []>} : vector<8x256xbf16>, vector<256x512xbf16>, vector<8x512xf32> -> vector<8x512xf32>
    %c0_111 = arith.constant 0 : index
    %c0_112 = arith.constant 0 : index
    %329 = vector.load %arg7[%c0_111, %c0_112] : memref<1x512xf32, #tpu.memory_space<vmem>>, vector<1x512xf32>
    %330 = vector.broadcast %329 : vector<1x512xf32> to vector<8x512xf32>
    %331 = arith.addf %328, %330 : vector<8x512xf32>
    %332 = vector.extract_strided_slice %331 {offsets = [0, 0], sizes = [8, 128], strides = [1, 1]} : vector<8x512xf32> to vector<8x128xf32>
    %333 = arith.negf %332 : vector<8x128xf32>
    %334 = math.exp %333 : vector<8x128xf32>
    %cst_113 = arith.constant 1.000000e+00 : f32
    %335 = vector.broadcast %cst_113 : f32 to vector<8x128xf32>
    %336 = arith.addf %335, %334 : vector<8x128xf32>
    %337 = arith.divf %335, %336 : vector<8x128xf32>
    %338 = vector.extract_strided_slice %331 {offsets = [0, 128], sizes = [8, 128], strides = [1, 1]} : vector<8x512xf32> to vector<8x128xf32>
    %339 = arith.negf %338 : vector<8x128xf32>
    %340 = math.exp %339 : vector<8x128xf32>
    %cst_114 = arith.constant 1.000000e+00 : f32
    %341 = vector.broadcast %cst_114 : f32 to vector<8x128xf32>
    %342 = arith.addf %341, %340 : vector<8x128xf32>
    %343 = arith.divf %341, %342 : vector<8x128xf32>
    %344 = vector.extract_strided_slice %331 {offsets = [0, 256], sizes = [8, 128], strides = [1, 1]} : vector<8x512xf32> to vector<8x128xf32>
    %345 = math.tanh %344 : vector<8x128xf32>
    %346 = vector.extract_strided_slice %331 {offsets = [0, 384], sizes = [8, 128], strides = [1, 1]} : vector<8x512xf32> to vector<8x128xf32>
    %347 = arith.negf %346 : vector<8x128xf32>
    %348 = math.exp %347 : vector<8x128xf32>
    %cst_115 = arith.constant 1.000000e+00 : f32
    %349 = vector.broadcast %cst_115 : f32 to vector<8x128xf32>
    %350 = arith.addf %349, %348 : vector<8x128xf32>
    %351 = arith.divf %349, %350 : vector<8x128xf32>
    %352 = arith.mulf %343, %276 : vector<8x128xf32>
    %353 = arith.mulf %337, %345 : vector<8x128xf32>
    %354 = arith.addf %352, %353 : vector<8x128xf32>
    %355 = math.tanh %354 : vector<8x128xf32>
    %356 = arith.mulf %351, %355 : vector<8x128xf32>
    %357 = vector.shape_cast %281 : vector<8x1xi1> to vector<8x1xi1>
    %358 = vector.broadcast %357 : vector<8x1xi1> to vector<8x128xi1>
    %359 = arith.select %358, %356, %273 : vector<8x128xi1>, vector<8x128xf32>
    %360 = vector.shape_cast %281 : vector<8x1xi1> to vector<8x1xi1>
    %361 = vector.broadcast %360 : vector<8x1xi1> to vector<8x128xi1>
    %362 = arith.select %361, %354, %276 : vector<8x128xi1>, vector<8x128xf32>
    %c4_i32 = arith.constant 4 : i32
    %c8_i32_116 = arith.constant 8 : i32
    %363 = arith.muli %arg0, %c8_i32_116 : i32
    %364 = arith.addi %363, %c4_i32 : i32
    %c0_117 = arith.constant 0 : index
    %c0_118 = arith.constant 0 : index
    %365 = vector.load %arg2[%c0_117, %c0_118] : memref<8x1xi32, #tpu.memory_space<vmem>>, vector<8x1xi32>
    %366 = vector.broadcast %364 : i32 to vector<8x1xi32>
    %367 = arith.cmpi slt, %366, %365 : vector<8x1xi32>
    %c8_i32_119 = arith.constant 8 : i32
    %368 = arith.muli %c4_i32, %c8_i32_119 : i32
    %369 = tpu.assume_multiple %368, 8 : i32
    %370 = arith.index_cast %369 : i32 to index
    %c0_120 = arith.constant 0 : index
    %371 = vector.load %arg10[%370, %c0_120] : memref<64x512xbf16, #tpu.memory_space<vmem>>, vector<8x512xbf16>
    %372 = arith.extf %371 : vector<8x512xbf16> to vector<8x512xf32>
    %373 = arith.truncf %318 : vector<8x128xf32> to vector<8x128xbf16>
    %c0_121 = arith.constant 0 : index
    %c0_122 = arith.constant 0 : index
    %374 = vector.load %arg4[%c0_121, %c0_122] : memref<128x512xbf16, #tpu.memory_space<vmem>>, vector<128x512xbf16>
    %cst_123 = arith.constant dense<0.000000e+00> : vector<8x512xf32>
    %375 = tpu.matmul %373, %374, %cst_123 {dimension_numbers = #tpu.dot_dimension_numbers<[1], [0], [0], [1], [0, 0, 1, 1], [], []>} : vector<8x128xbf16>, vector<128x512xbf16>, vector<8x512xf32> -> vector<8x512xf32>
    %376 = arith.addf %372, %375 : vector<8x512xf32>
    %377 = vector.extract_strided_slice %376 {offsets = [0, 0], sizes = [8, 128], strides = [1, 1]} : vector<8x512xf32> to vector<8x128xf32>
    %378 = arith.negf %377 : vector<8x128xf32>
    %379 = math.exp %378 : vector<8x128xf32>
    %cst_124 = arith.constant 1.000000e+00 : f32
    %380 = vector.broadcast %cst_124 : f32 to vector<8x128xf32>
    %381 = arith.addf %380, %379 : vector<8x128xf32>
    %382 = arith.divf %380, %381 : vector<8x128xf32>
    %383 = vector.extract_strided_slice %376 {offsets = [0, 128], sizes = [8, 128], strides = [1, 1]} : vector<8x512xf32> to vector<8x128xf32>
    %384 = arith.negf %383 : vector<8x128xf32>
    %385 = math.exp %384 : vector<8x128xf32>
    %cst_125 = arith.constant 1.000000e+00 : f32
    %386 = vector.broadcast %cst_125 : f32 to vector<8x128xf32>
    %387 = arith.addf %386, %385 : vector<8x128xf32>
    %388 = arith.divf %386, %387 : vector<8x128xf32>
    %389 = vector.extract_strided_slice %376 {offsets = [0, 256], sizes = [8, 128], strides = [1, 1]} : vector<8x512xf32> to vector<8x128xf32>
    %390 = math.tanh %389 : vector<8x128xf32>
    %391 = vector.extract_strided_slice %376 {offsets = [0, 384], sizes = [8, 128], strides = [1, 1]} : vector<8x512xf32> to vector<8x128xf32>
    %392 = arith.negf %391 : vector<8x128xf32>
    %393 = math.exp %392 : vector<8x128xf32>
    %cst_126 = arith.constant 1.000000e+00 : f32
    %394 = vector.broadcast %cst_126 : f32 to vector<8x128xf32>
    %395 = arith.addf %394, %393 : vector<8x128xf32>
    %396 = arith.divf %394, %395 : vector<8x128xf32>
    %397 = arith.mulf %388, %321 : vector<8x128xf32>
    %398 = arith.mulf %382, %390 : vector<8x128xf32>
    %399 = arith.addf %397, %398 : vector<8x128xf32>
    %400 = math.tanh %399 : vector<8x128xf32>
    %401 = arith.mulf %396, %400 : vector<8x128xf32>
    %402 = vector.shape_cast %367 : vector<8x1xi1> to vector<8x1xi1>
    %403 = vector.broadcast %402 : vector<8x1xi1> to vector<8x128xi1>
    %404 = arith.select %403, %401, %318 : vector<8x128xi1>, vector<8x128xf32>
    %405 = vector.shape_cast %367 : vector<8x1xi1> to vector<8x1xi1>
    %406 = vector.broadcast %405 : vector<8x1xi1> to vector<8x128xi1>
    %407 = arith.select %406, %399, %321 : vector<8x128xi1>, vector<8x128xf32>
    %408 = arith.truncf %404 : vector<8x128xf32> to vector<8x128xbf16>
    %c0_127 = arith.constant 0 : index
    %c0_128 = arith.constant 0 : index
    %409 = vector.load %arg11[%c0_127, %c0_128] : memref<8x256xbf16, #tpu.memory_space<vmem>>, vector<8x128xbf16>
    tpu.vector_store %arg11[%c0_127, %c0_128], %408 {strides = array<i32>} : memref<8x256xbf16, #tpu.memory_space<vmem>>, vector<8x128xbf16>,
    %410 = arith.truncf %359 : vector<8x128xf32> to vector<8x128xbf16>
    %c0_129 = arith.constant 0 : index
    %c128_130 = arith.constant 128 : index
    %411 = vector.load %arg11[%c0_129, %c128_130] : memref<8x256xbf16, #tpu.memory_space<vmem>>, vector<8x128xbf16>
    tpu.vector_store %arg11[%c0_129, %c128_130], %410 {strides = array<i32>} : memref<8x256xbf16, #tpu.memory_space<vmem>>, vector<8x128xbf16>,
    %c0_131 = arith.constant 0 : index
    %c0_132 = arith.constant 0 : index
    %412 = vector.load %arg11[%c0_131, %c0_132] : memref<8x256xbf16, #tpu.memory_space<vmem>>, vector<8x256xbf16>
    %c0_133 = arith.constant 0 : index
    %c0_134 = arith.constant 0 : index
    %413 = vector.load %arg6[%c0_133, %c0_134] : memref<256x512xbf16, #tpu.memory_space<vmem>>, vector<256x512xbf16>
    %cst_135 = arith.constant dense<0.000000e+00> : vector<8x512xf32>
    %414 = tpu.matmul %412, %413, %cst_135 {dimension_numbers = #tpu.dot_dimension_numbers<[1], [0], [0], [1], [0, 0, 1, 1], [], []>} : vector<8x256xbf16>, vector<256x512xbf16>, vector<8x512xf32> -> vector<8x512xf32>
    %c0_136 = arith.constant 0 : index
    %c0_137 = arith.constant 0 : index
    %415 = vector.load %arg7[%c0_136, %c0_137] : memref<1x512xf32, #tpu.memory_space<vmem>>, vector<1x512xf32>
    %416 = vector.broadcast %415 : vector<1x512xf32> to vector<8x512xf32>
    %417 = arith.addf %414, %416 : vector<8x512xf32>
    %418 = vector.extract_strided_slice %417 {offsets = [0, 0], sizes = [8, 128], strides = [1, 1]} : vector<8x512xf32> to vector<8x128xf32>
    %419 = arith.negf %418 : vector<8x128xf32>
    %420 = math.exp %419 : vector<8x128xf32>
    %cst_138 = arith.constant 1.000000e+00 : f32
    %421 = vector.broadcast %cst_138 : f32 to vector<8x128xf32>
    %422 = arith.addf %421, %420 : vector<8x128xf32>
    %423 = arith.divf %421, %422 : vector<8x128xf32>
    %424 = vector.extract_strided_slice %417 {offsets = [0, 128], sizes = [8, 128], strides = [1, 1]} : vector<8x512xf32> to vector<8x128xf32>
    %425 = arith.negf %424 : vector<8x128xf32>
    %426 = math.exp %425 : vector<8x128xf32>
    %cst_139 = arith.constant 1.000000e+00 : f32
    %427 = vector.broadcast %cst_139 : f32 to vector<8x128xf32>
    %428 = arith.addf %427, %426 : vector<8x128xf32>
    %429 = arith.divf %427, %428 : vector<8x128xf32>
    %430 = vector.extract_strided_slice %417 {offsets = [0, 256], sizes = [8, 128], strides = [1, 1]} : vector<8x512xf32> to vector<8x128xf32>
    %431 = math.tanh %430 : vector<8x128xf32>
    %432 = vector.extract_strided_slice %417 {offsets = [0, 384], sizes = [8, 128], strides = [1, 1]} : vector<8x512xf32> to vector<8x128xf32>
    %433 = arith.negf %432 : vector<8x128xf32>
    %434 = math.exp %433 : vector<8x128xf32>
    %cst_140 = arith.constant 1.000000e+00 : f32
    %435 = vector.broadcast %cst_140 : f32 to vector<8x128xf32>
    %436 = arith.addf %435, %434 : vector<8x128xf32>
    %437 = arith.divf %435, %436 : vector<8x128xf32>
    %438 = arith.mulf %429, %362 : vector<8x128xf32>
    %439 = arith.mulf %423, %431 : vector<8x128xf32>
    %440 = arith.addf %438, %439 : vector<8x128xf32>
    %441 = math.tanh %440 : vector<8x128xf32>
    %442 = arith.mulf %437, %441 : vector<8x128xf32>
    %443 = vector.shape_cast %367 : vector<8x1xi1> to vector<8x1xi1>
    %444 = vector.broadcast %443 : vector<8x1xi1> to vector<8x128xi1>
    %445 = arith.select %444, %442, %359 : vector<8x128xi1>, vector<8x128xf32>
    %446 = vector.shape_cast %367 : vector<8x1xi1> to vector<8x1xi1>
    %447 = vector.broadcast %446 : vector<8x1xi1> to vector<8x128xi1>
    %448 = arith.select %447, %440, %362 : vector<8x128xi1>, vector<8x128xf32>
    %c5_i32 = arith.constant 5 : i32
    %c8_i32_141 = arith.constant 8 : i32
    %449 = arith.muli %arg0, %c8_i32_141 : i32
    %450 = arith.addi %449, %c5_i32 : i32
    %c0_142 = arith.constant 0 : index
    %c0_143 = arith.constant 0 : index
    %451 = vector.load %arg2[%c0_142, %c0_143] : memref<8x1xi32, #tpu.memory_space<vmem>>, vector<8x1xi32>
    %452 = vector.broadcast %450 : i32 to vector<8x1xi32>
    %453 = arith.cmpi slt, %452, %451 : vector<8x1xi32>
    %c8_i32_144 = arith.constant 8 : i32
    %454 = arith.muli %c5_i32, %c8_i32_144 : i32
    %455 = tpu.assume_multiple %454, 8 : i32
    %456 = arith.index_cast %455 : i32 to index
    %c0_145 = arith.constant 0 : index
    %457 = vector.load %arg10[%456, %c0_145] : memref<64x512xbf16, #tpu.memory_space<vmem>>, vector<8x512xbf16>
    %458 = arith.extf %457 : vector<8x512xbf16> to vector<8x512xf32>
    %459 = arith.truncf %404 : vector<8x128xf32> to vector<8x128xbf16>
    %c0_146 = arith.constant 0 : index
    %c0_147 = arith.constant 0 : index
    %460 = vector.load %arg4[%c0_146, %c0_147] : memref<128x512xbf16, #tpu.memory_space<vmem>>, vector<128x512xbf16>
    %cst_148 = arith.constant dense<0.000000e+00> : vector<8x512xf32>
    %461 = tpu.matmul %459, %460, %cst_148 {dimension_numbers = #tpu.dot_dimension_numbers<[1], [0], [0], [1], [0, 0, 1, 1], [], []>} : vector<8x128xbf16>, vector<128x512xbf16>, vector<8x512xf32> -> vector<8x512xf32>
    %462 = arith.addf %458, %461 : vector<8x512xf32>
    %463 = vector.extract_strided_slice %462 {offsets = [0, 0], sizes = [8, 128], strides = [1, 1]} : vector<8x512xf32> to vector<8x128xf32>
    %464 = arith.negf %463 : vector<8x128xf32>
    %465 = math.exp %464 : vector<8x128xf32>
    %cst_149 = arith.constant 1.000000e+00 : f32
    %466 = vector.broadcast %cst_149 : f32 to vector<8x128xf32>
    %467 = arith.addf %466, %465 : vector<8x128xf32>
    %468 = arith.divf %466, %467 : vector<8x128xf32>
    %469 = vector.extract_strided_slice %462 {offsets = [0, 128], sizes = [8, 128], strides = [1, 1]} : vector<8x512xf32> to vector<8x128xf32>
    %470 = arith.negf %469 : vector<8x128xf32>
    %471 = math.exp %470 : vector<8x128xf32>
    %cst_150 = arith.constant 1.000000e+00 : f32
    %472 = vector.broadcast %cst_150 : f32 to vector<8x128xf32>
    %473 = arith.addf %472, %471 : vector<8x128xf32>
    %474 = arith.divf %472, %473 : vector<8x128xf32>
    %475 = vector.extract_strided_slice %462 {offsets = [0, 256], sizes = [8, 128], strides = [1, 1]} : vector<8x512xf32> to vector<8x128xf32>
    %476 = math.tanh %475 : vector<8x128xf32>
    %477 = vector.extract_strided_slice %462 {offsets = [0, 384], sizes = [8, 128], strides = [1, 1]} : vector<8x512xf32> to vector<8x128xf32>
    %478 = arith.negf %477 : vector<8x128xf32>
    %479 = math.exp %478 : vector<8x128xf32>
    %cst_151 = arith.constant 1.000000e+00 : f32
    %480 = vector.broadcast %cst_151 : f32 to vector<8x128xf32>
    %481 = arith.addf %480, %479 : vector<8x128xf32>
    %482 = arith.divf %480, %481 : vector<8x128xf32>
    %483 = arith.mulf %474, %407 : vector<8x128xf32>
    %484 = arith.mulf %468, %476 : vector<8x128xf32>
    %485 = arith.addf %483, %484 : vector<8x128xf32>
    %486 = math.tanh %485 : vector<8x128xf32>
    %487 = arith.mulf %482, %486 : vector<8x128xf32>
    %488 = vector.shape_cast %453 : vector<8x1xi1> to vector<8x1xi1>
    %489 = vector.broadcast %488 : vector<8x1xi1> to vector<8x128xi1>
    %490 = arith.select %489, %487, %404 : vector<8x128xi1>, vector<8x128xf32>
    %491 = vector.shape_cast %453 : vector<8x1xi1> to vector<8x1xi1>
    %492 = vector.broadcast %491 : vector<8x1xi1> to vector<8x128xi1>
    %493 = arith.select %492, %485, %407 : vector<8x128xi1>, vector<8x128xf32>
    %494 = arith.truncf %490 : vector<8x128xf32> to vector<8x128xbf16>
    %c0_152 = arith.constant 0 : index
    %c0_153 = arith.constant 0 : index
    %495 = vector.load %arg11[%c0_152, %c0_153] : memref<8x256xbf16, #tpu.memory_space<vmem>>, vector<8x128xbf16>
    tpu.vector_store %arg11[%c0_152, %c0_153], %494 {strides = array<i32>} : memref<8x256xbf16, #tpu.memory_space<vmem>>, vector<8x128xbf16>,
    %496 = arith.truncf %445 : vector<8x128xf32> to vector<8x128xbf16>
    %c0_154 = arith.constant 0 : index
    %c128_155 = arith.constant 128 : index
    %497 = vector.load %arg11[%c0_154, %c128_155] : memref<8x256xbf16, #tpu.memory_space<vmem>>, vector<8x128xbf16>
    tpu.vector_store %arg11[%c0_154, %c128_155], %496 {strides = array<i32>} : memref<8x256xbf16, #tpu.memory_space<vmem>>, vector<8x128xbf16>,
    %c0_156 = arith.constant 0 : index
    %c0_157 = arith.constant 0 : index
    %498 = vector.load %arg11[%c0_156, %c0_157] : memref<8x256xbf16, #tpu.memory_space<vmem>>, vector<8x256xbf16>
    %c0_158 = arith.constant 0 : index
    %c0_159 = arith.constant 0 : index
    %499 = vector.load %arg6[%c0_158, %c0_159] : memref<256x512xbf16, #tpu.memory_space<vmem>>, vector<256x512xbf16>
    %cst_160 = arith.constant dense<0.000000e+00> : vector<8x512xf32>
    %500 = tpu.matmul %498, %499, %cst_160 {dimension_numbers = #tpu.dot_dimension_numbers<[1], [0], [0], [1], [0, 0, 1, 1], [], []>} : vector<8x256xbf16>, vector<256x512xbf16>, vector<8x512xf32> -> vector<8x512xf32>
    %c0_161 = arith.constant 0 : index
    %c0_162 = arith.constant 0 : index
    %501 = vector.load %arg7[%c0_161, %c0_162] : memref<1x512xf32, #tpu.memory_space<vmem>>, vector<1x512xf32>
    %502 = vector.broadcast %501 : vector<1x512xf32> to vector<8x512xf32>
    %503 = arith.addf %500, %502 : vector<8x512xf32>
    %504 = vector.extract_strided_slice %503 {offsets = [0, 0], sizes = [8, 128], strides = [1, 1]} : vector<8x512xf32> to vector<8x128xf32>
    %505 = arith.negf %504 : vector<8x128xf32>
    %506 = math.exp %505 : vector<8x128xf32>
    %cst_163 = arith.constant 1.000000e+00 : f32
    %507 = vector.broadcast %cst_163 : f32 to vector<8x128xf32>
    %508 = arith.addf %507, %506 : vector<8x128xf32>
    %509 = arith.divf %507, %508 : vector<8x128xf32>
    %510 = vector.extract_strided_slice %503 {offsets = [0, 128], sizes = [8, 128], strides = [1, 1]} : vector<8x512xf32> to vector<8x128xf32>
    %511 = arith.negf %510 : vector<8x128xf32>
    %512 = math.exp %511 : vector<8x128xf32>
    %cst_164 = arith.constant 1.000000e+00 : f32
    %513 = vector.broadcast %cst_164 : f32 to vector<8x128xf32>
    %514 = arith.addf %513, %512 : vector<8x128xf32>
    %515 = arith.divf %513, %514 : vector<8x128xf32>
    %516 = vector.extract_strided_slice %503 {offsets = [0, 256], sizes = [8, 128], strides = [1, 1]} : vector<8x512xf32> to vector<8x128xf32>
    %517 = math.tanh %516 : vector<8x128xf32>
    %518 = vector.extract_strided_slice %503 {offsets = [0, 384], sizes = [8, 128], strides = [1, 1]} : vector<8x512xf32> to vector<8x128xf32>
    %519 = arith.negf %518 : vector<8x128xf32>
    %520 = math.exp %519 : vector<8x128xf32>
    %cst_165 = arith.constant 1.000000e+00 : f32
    %521 = vector.broadcast %cst_165 : f32 to vector<8x128xf32>
    %522 = arith.addf %521, %520 : vector<8x128xf32>
    %523 = arith.divf %521, %522 : vector<8x128xf32>
    %524 = arith.mulf %515, %448 : vector<8x128xf32>
    %525 = arith.mulf %509, %517 : vector<8x128xf32>
    %526 = arith.addf %524, %525 : vector<8x128xf32>
    %527 = math.tanh %526 : vector<8x128xf32>
    %528 = arith.mulf %523, %527 : vector<8x128xf32>
    %529 = vector.shape_cast %453 : vector<8x1xi1> to vector<8x1xi1>
    %530 = vector.broadcast %529 : vector<8x1xi1> to vector<8x128xi1>
    %531 = arith.select %530, %528, %445 : vector<8x128xi1>, vector<8x128xf32>
    %532 = vector.shape_cast %453 : vector<8x1xi1> to vector<8x1xi1>
    %533 = vector.broadcast %532 : vector<8x1xi1> to vector<8x128xi1>
    %534 = arith.select %533, %526, %448 : vector<8x128xi1>, vector<8x128xf32>
    %c6_i32 = arith.constant 6 : i32
    %c8_i32_166 = arith.constant 8 : i32
    %535 = arith.muli %arg0, %c8_i32_166 : i32
    %536 = arith.addi %535, %c6_i32 : i32
    %c0_167 = arith.constant 0 : index
    %c0_168 = arith.constant 0 : index
    %537 = vector.load %arg2[%c0_167, %c0_168] : memref<8x1xi32, #tpu.memory_space<vmem>>, vector<8x1xi32>
    %538 = vector.broadcast %536 : i32 to vector<8x1xi32>
    %539 = arith.cmpi slt, %538, %537 : vector<8x1xi32>
    %c8_i32_169 = arith.constant 8 : i32
    %540 = arith.muli %c6_i32, %c8_i32_169 : i32
    %541 = tpu.assume_multiple %540, 8 : i32
    %542 = arith.index_cast %541 : i32 to index
    %c0_170 = arith.constant 0 : index
    %543 = vector.load %arg10[%542, %c0_170] : memref<64x512xbf16, #tpu.memory_space<vmem>>, vector<8x512xbf16>
    %544 = arith.extf %543 : vector<8x512xbf16> to vector<8x512xf32>
    %545 = arith.truncf %490 : vector<8x128xf32> to vector<8x128xbf16>
    %c0_171 = arith.constant 0 : index
    %c0_172 = arith.constant 0 : index
    %546 = vector.load %arg4[%c0_171, %c0_172] : memref<128x512xbf16, #tpu.memory_space<vmem>>, vector<128x512xbf16>
    %cst_173 = arith.constant dense<0.000000e+00> : vector<8x512xf32>
    %547 = tpu.matmul %545, %546, %cst_173 {dimension_numbers = #tpu.dot_dimension_numbers<[1], [0], [0], [1], [0, 0, 1, 1], [], []>} : vector<8x128xbf16>, vector<128x512xbf16>, vector<8x512xf32> -> vector<8x512xf32>
    %548 = arith.addf %544, %547 : vector<8x512xf32>
    %549 = vector.extract_strided_slice %548 {offsets = [0, 0], sizes = [8, 128], strides = [1, 1]} : vector<8x512xf32> to vector<8x128xf32>
    %550 = arith.negf %549 : vector<8x128xf32>
    %551 = math.exp %550 : vector<8x128xf32>
    %cst_174 = arith.constant 1.000000e+00 : f32
    %552 = vector.broadcast %cst_174 : f32 to vector<8x128xf32>
    %553 = arith.addf %552, %551 : vector<8x128xf32>
    %554 = arith.divf %552, %553 : vector<8x128xf32>
    %555 = vector.extract_strided_slice %548 {offsets = [0, 128], sizes = [8, 128], strides = [1, 1]} : vector<8x512xf32> to vector<8x128xf32>
    %556 = arith.negf %555 : vector<8x128xf32>
    %557 = math.exp %556 : vector<8x128xf32>
    %cst_175 = arith.constant 1.000000e+00 : f32
    %558 = vector.broadcast %cst_175 : f32 to vector<8x128xf32>
    %559 = arith.addf %558, %557 : vector<8x128xf32>
    %560 = arith.divf %558, %559 : vector<8x128xf32>
    %561 = vector.extract_strided_slice %548 {offsets = [0, 256], sizes = [8, 128], strides = [1, 1]} : vector<8x512xf32> to vector<8x128xf32>
    %562 = math.tanh %561 : vector<8x128xf32>
    %563 = vector.extract_strided_slice %548 {offsets = [0, 384], sizes = [8, 128], strides = [1, 1]} : vector<8x512xf32> to vector<8x128xf32>
    %564 = arith.negf %563 : vector<8x128xf32>
    %565 = math.exp %564 : vector<8x128xf32>
    %cst_176 = arith.constant 1.000000e+00 : f32
    %566 = vector.broadcast %cst_176 : f32 to vector<8x128xf32>
    %567 = arith.addf %566, %565 : vector<8x128xf32>
    %568 = arith.divf %566, %567 : vector<8x128xf32>
    %569 = arith.mulf %560, %493 : vector<8x128xf32>
    %570 = arith.mulf %554, %562 : vector<8x128xf32>
    %571 = arith.addf %569, %570 : vector<8x128xf32>
    %572 = math.tanh %571 : vector<8x128xf32>
    %573 = arith.mulf %568, %572 : vector<8x128xf32>
    %574 = vector.shape_cast %539 : vector<8x1xi1> to vector<8x1xi1>
    %575 = vector.broadcast %574 : vector<8x1xi1> to vector<8x128xi1>
    %576 = arith.select %575, %573, %490 : vector<8x128xi1>, vector<8x128xf32>
    %577 = vector.shape_cast %539 : vector<8x1xi1> to vector<8x1xi1>
    %578 = vector.broadcast %577 : vector<8x1xi1> to vector<8x128xi1>
    %579 = arith.select %578, %571, %493 : vector<8x128xi1>, vector<8x128xf32>
    %580 = arith.truncf %576 : vector<8x128xf32> to vector<8x128xbf16>
    %c0_177 = arith.constant 0 : index
    %c0_178 = arith.constant 0 : index
    %581 = vector.load %arg11[%c0_177, %c0_178] : memref<8x256xbf16, #tpu.memory_space<vmem>>, vector<8x128xbf16>
    tpu.vector_store %arg11[%c0_177, %c0_178], %580 {strides = array<i32>} : memref<8x256xbf16, #tpu.memory_space<vmem>>, vector<8x128xbf16>,
    %582 = arith.truncf %531 : vector<8x128xf32> to vector<8x128xbf16>
    %c0_179 = arith.constant 0 : index
    %c128_180 = arith.constant 128 : index
    %583 = vector.load %arg11[%c0_179, %c128_180] : memref<8x256xbf16, #tpu.memory_space<vmem>>, vector<8x128xbf16>
    tpu.vector_store %arg11[%c0_179, %c128_180], %582 {strides = array<i32>} : memref<8x256xbf16, #tpu.memory_space<vmem>>, vector<8x128xbf16>,
    %c0_181 = arith.constant 0 : index
    %c0_182 = arith.constant 0 : index
    %584 = vector.load %arg11[%c0_181, %c0_182] : memref<8x256xbf16, #tpu.memory_space<vmem>>, vector<8x256xbf16>
    %c0_183 = arith.constant 0 : index
    %c0_184 = arith.constant 0 : index
    %585 = vector.load %arg6[%c0_183, %c0_184] : memref<256x512xbf16, #tpu.memory_space<vmem>>, vector<256x512xbf16>
    %cst_185 = arith.constant dense<0.000000e+00> : vector<8x512xf32>
    %586 = tpu.matmul %584, %585, %cst_185 {dimension_numbers = #tpu.dot_dimension_numbers<[1], [0], [0], [1], [0, 0, 1, 1], [], []>} : vector<8x256xbf16>, vector<256x512xbf16>, vector<8x512xf32> -> vector<8x512xf32>
    %c0_186 = arith.constant 0 : index
    %c0_187 = arith.constant 0 : index
    %587 = vector.load %arg7[%c0_186, %c0_187] : memref<1x512xf32, #tpu.memory_space<vmem>>, vector<1x512xf32>
    %588 = vector.broadcast %587 : vector<1x512xf32> to vector<8x512xf32>
    %589 = arith.addf %586, %588 : vector<8x512xf32>
    %590 = vector.extract_strided_slice %589 {offsets = [0, 0], sizes = [8, 128], strides = [1, 1]} : vector<8x512xf32> to vector<8x128xf32>
    %591 = arith.negf %590 : vector<8x128xf32>
    %592 = math.exp %591 : vector<8x128xf32>
    %cst_188 = arith.constant 1.000000e+00 : f32
    %593 = vector.broadcast %cst_188 : f32 to vector<8x128xf32>
    %594 = arith.addf %593, %592 : vector<8x128xf32>
    %595 = arith.divf %593, %594 : vector<8x128xf32>
    %596 = vector.extract_strided_slice %589 {offsets = [0, 128], sizes = [8, 128], strides = [1, 1]} : vector<8x512xf32> to vector<8x128xf32>
    %597 = arith.negf %596 : vector<8x128xf32>
    %598 = math.exp %597 : vector<8x128xf32>
    %cst_189 = arith.constant 1.000000e+00 : f32
    %599 = vector.broadcast %cst_189 : f32 to vector<8x128xf32>
    %600 = arith.addf %599, %598 : vector<8x128xf32>
    %601 = arith.divf %599, %600 : vector<8x128xf32>
    %602 = vector.extract_strided_slice %589 {offsets = [0, 256], sizes = [8, 128], strides = [1, 1]} : vector<8x512xf32> to vector<8x128xf32>
    %603 = math.tanh %602 : vector<8x128xf32>
    %604 = vector.extract_strided_slice %589 {offsets = [0, 384], sizes = [8, 128], strides = [1, 1]} : vector<8x512xf32> to vector<8x128xf32>
    %605 = arith.negf %604 : vector<8x128xf32>
    %606 = math.exp %605 : vector<8x128xf32>
    %cst_190 = arith.constant 1.000000e+00 : f32
    %607 = vector.broadcast %cst_190 : f32 to vector<8x128xf32>
    %608 = arith.addf %607, %606 : vector<8x128xf32>
    %609 = arith.divf %607, %608 : vector<8x128xf32>
    %610 = arith.mulf %601, %534 : vector<8x128xf32>
    %611 = arith.mulf %595, %603 : vector<8x128xf32>
    %612 = arith.addf %610, %611 : vector<8x128xf32>
    %613 = math.tanh %612 : vector<8x128xf32>
    %614 = arith.mulf %609, %613 : vector<8x128xf32>
    %615 = vector.shape_cast %539 : vector<8x1xi1> to vector<8x1xi1>
    %616 = vector.broadcast %615 : vector<8x1xi1> to vector<8x128xi1>
    %617 = arith.select %616, %614, %531 : vector<8x128xi1>, vector<8x128xf32>
    %618 = vector.shape_cast %539 : vector<8x1xi1> to vector<8x1xi1>
    %619 = vector.broadcast %618 : vector<8x1xi1> to vector<8x128xi1>
    %620 = arith.select %619, %612, %534 : vector<8x128xi1>, vector<8x128xf32>
    %c7_i32 = arith.constant 7 : i32
    %c8_i32_191 = arith.constant 8 : i32
    %621 = arith.muli %arg0, %c8_i32_191 : i32
    %622 = arith.addi %621, %c7_i32 : i32
    %c0_192 = arith.constant 0 : index
    %c0_193 = arith.constant 0 : index
    %623 = vector.load %arg2[%c0_192, %c0_193] : memref<8x1xi32, #tpu.memory_space<vmem>>, vector<8x1xi32>
    %624 = vector.broadcast %622 : i32 to vector<8x1xi32>
    %625 = arith.cmpi slt, %624, %623 : vector<8x1xi32>
    %c8_i32_194 = arith.constant 8 : i32
    %626 = arith.muli %c7_i32, %c8_i32_194 : i32
    %627 = tpu.assume_multiple %626, 8 : i32
    %628 = arith.index_cast %627 : i32 to index
    %c0_195 = arith.constant 0 : index
    %629 = vector.load %arg10[%628, %c0_195] : memref<64x512xbf16, #tpu.memory_space<vmem>>, vector<8x512xbf16>
    %630 = arith.extf %629 : vector<8x512xbf16> to vector<8x512xf32>
    %631 = arith.truncf %576 : vector<8x128xf32> to vector<8x128xbf16>
    %c0_196 = arith.constant 0 : index
    %c0_197 = arith.constant 0 : index
    %632 = vector.load %arg4[%c0_196, %c0_197] : memref<128x512xbf16, #tpu.memory_space<vmem>>, vector<128x512xbf16>
    %cst_198 = arith.constant dense<0.000000e+00> : vector<8x512xf32>
    %633 = tpu.matmul %631, %632, %cst_198 {dimension_numbers = #tpu.dot_dimension_numbers<[1], [0], [0], [1], [0, 0, 1, 1], [], []>} : vector<8x128xbf16>, vector<128x512xbf16>, vector<8x512xf32> -> vector<8x512xf32>
    %634 = arith.addf %630, %633 : vector<8x512xf32>
    %635 = vector.extract_strided_slice %634 {offsets = [0, 0], sizes = [8, 128], strides = [1, 1]} : vector<8x512xf32> to vector<8x128xf32>
    %636 = arith.negf %635 : vector<8x128xf32>
    %637 = math.exp %636 : vector<8x128xf32>
    %cst_199 = arith.constant 1.000000e+00 : f32
    %638 = vector.broadcast %cst_199 : f32 to vector<8x128xf32>
    %639 = arith.addf %638, %637 : vector<8x128xf32>
    %640 = arith.divf %638, %639 : vector<8x128xf32>
    %641 = vector.extract_strided_slice %634 {offsets = [0, 128], sizes = [8, 128], strides = [1, 1]} : vector<8x512xf32> to vector<8x128xf32>
    %642 = arith.negf %641 : vector<8x128xf32>
    %643 = math.exp %642 : vector<8x128xf32>
    %cst_200 = arith.constant 1.000000e+00 : f32
    %644 = vector.broadcast %cst_200 : f32 to vector<8x128xf32>
    %645 = arith.addf %644, %643 : vector<8x128xf32>
    %646 = arith.divf %644, %645 : vector<8x128xf32>
    %647 = vector.extract_strided_slice %634 {offsets = [0, 256], sizes = [8, 128], strides = [1, 1]} : vector<8x512xf32> to vector<8x128xf32>
    %648 = math.tanh %647 : vector<8x128xf32>
    %649 = vector.extract_strided_slice %634 {offsets = [0, 384], sizes = [8, 128], strides = [1, 1]} : vector<8x512xf32> to vector<8x128xf32>
    %650 = arith.negf %649 : vector<8x128xf32>
    %651 = math.exp %650 : vector<8x128xf32>
    %cst_201 = arith.constant 1.000000e+00 : f32
    %652 = vector.broadcast %cst_201 : f32 to vector<8x128xf32>
    %653 = arith.addf %652, %651 : vector<8x128xf32>
    %654 = arith.divf %652, %653 : vector<8x128xf32>
    %655 = arith.mulf %646, %579 : vector<8x128xf32>
    %656 = arith.mulf %640, %648 : vector<8x128xf32>
    %657 = arith.addf %655, %656 : vector<8x128xf32>
    %658 = math.tanh %657 : vector<8x128xf32>
    %659 = arith.mulf %654, %658 : vector<8x128xf32>
    %660 = vector.shape_cast %625 : vector<8x1xi1> to vector<8x1xi1>
    %661 = vector.broadcast %660 : vector<8x1xi1> to vector<8x128xi1>
    %662 = arith.select %661, %659, %576 : vector<8x128xi1>, vector<8x128xf32>
    %663 = vector.shape_cast %625 : vector<8x1xi1> to vector<8x1xi1>
    %664 = vector.broadcast %663 : vector<8x1xi1> to vector<8x128xi1>
    %665 = arith.select %664, %657, %579 : vector<8x128xi1>, vector<8x128xf32>
    %666 = arith.truncf %662 : vector<8x128xf32> to vector<8x128xbf16>
    %c0_202 = arith.constant 0 : index
    %c0_203 = arith.constant 0 : index
    %667 = vector.load %arg11[%c0_202, %c0_203] : memref<8x256xbf16, #tpu.memory_space<vmem>>, vector<8x128xbf16>
    tpu.vector_store %arg11[%c0_202, %c0_203], %666 {strides = array<i32>} : memref<8x256xbf16, #tpu.memory_space<vmem>>, vector<8x128xbf16>,
    %668 = arith.truncf %617 : vector<8x128xf32> to vector<8x128xbf16>
    %c0_204 = arith.constant 0 : index
    %c128_205 = arith.constant 128 : index
    %669 = vector.load %arg11[%c0_204, %c128_205] : memref<8x256xbf16, #tpu.memory_space<vmem>>, vector<8x128xbf16>
    tpu.vector_store %arg11[%c0_204, %c128_205], %668 {strides = array<i32>} : memref<8x256xbf16, #tpu.memory_space<vmem>>, vector<8x128xbf16>,
    %c0_206 = arith.constant 0 : index
    %c0_207 = arith.constant 0 : index
    %670 = vector.load %arg11[%c0_206, %c0_207] : memref<8x256xbf16, #tpu.memory_space<vmem>>, vector<8x256xbf16>
    %c0_208 = arith.constant 0 : index
    %c0_209 = arith.constant 0 : index
    %671 = vector.load %arg6[%c0_208, %c0_209] : memref<256x512xbf16, #tpu.memory_space<vmem>>, vector<256x512xbf16>
    %cst_210 = arith.constant dense<0.000000e+00> : vector<8x512xf32>
    %672 = tpu.matmul %670, %671, %cst_210 {dimension_numbers = #tpu.dot_dimension_numbers<[1], [0], [0], [1], [0, 0, 1, 1], [], []>} : vector<8x256xbf16>, vector<256x512xbf16>, vector<8x512xf32> -> vector<8x512xf32>
    %c0_211 = arith.constant 0 : index
    %c0_212 = arith.constant 0 : index
    %673 = vector.load %arg7[%c0_211, %c0_212] : memref<1x512xf32, #tpu.memory_space<vmem>>, vector<1x512xf32>
    %674 = vector.broadcast %673 : vector<1x512xf32> to vector<8x512xf32>
    %675 = arith.addf %672, %674 : vector<8x512xf32>
    %676 = vector.extract_strided_slice %675 {offsets = [0, 0], sizes = [8, 128], strides = [1, 1]} : vector<8x512xf32> to vector<8x128xf32>
    %677 = arith.negf %676 : vector<8x128xf32>
    %678 = math.exp %677 : vector<8x128xf32>
    %cst_213 = arith.constant 1.000000e+00 : f32
    %679 = vector.broadcast %cst_213 : f32 to vector<8x128xf32>
    %680 = arith.addf %679, %678 : vector<8x128xf32>
    %681 = arith.divf %679, %680 : vector<8x128xf32>
    %682 = vector.extract_strided_slice %675 {offsets = [0, 128], sizes = [8, 128], strides = [1, 1]} : vector<8x512xf32> to vector<8x128xf32>
    %683 = arith.negf %682 : vector<8x128xf32>
    %684 = math.exp %683 : vector<8x128xf32>
    %cst_214 = arith.constant 1.000000e+00 : f32
    %685 = vector.broadcast %cst_214 : f32 to vector<8x128xf32>
    %686 = arith.addf %685, %684 : vector<8x128xf32>
    %687 = arith.divf %685, %686 : vector<8x128xf32>
    %688 = vector.extract_strided_slice %675 {offsets = [0, 256], sizes = [8, 128], strides = [1, 1]} : vector<8x512xf32> to vector<8x128xf32>
    %689 = math.tanh %688 : vector<8x128xf32>
    %690 = vector.extract_strided_slice %675 {offsets = [0, 384], sizes = [8, 128], strides = [1, 1]} : vector<8x512xf32> to vector<8x128xf32>
    %691 = arith.negf %690 : vector<8x128xf32>
    %692 = math.exp %691 : vector<8x128xf32>
    %cst_215 = arith.constant 1.000000e+00 : f32
    %693 = vector.broadcast %cst_215 : f32 to vector<8x128xf32>
    %694 = arith.addf %693, %692 : vector<8x128xf32>
    %695 = arith.divf %693, %694 : vector<8x128xf32>
    %696 = arith.mulf %687, %620 : vector<8x128xf32>
    %697 = arith.mulf %681, %689 : vector<8x128xf32>
    %698 = arith.addf %696, %697 : vector<8x128xf32>
    %699 = math.tanh %698 : vector<8x128xf32>
    %700 = arith.mulf %695, %699 : vector<8x128xf32>
    %701 = vector.shape_cast %625 : vector<8x1xi1> to vector<8x1xi1>
    %702 = vector.broadcast %701 : vector<8x1xi1> to vector<8x128xi1>
    %703 = arith.select %702, %700, %617 : vector<8x128xi1>, vector<8x128xf32>
    %704 = vector.shape_cast %625 : vector<8x1xi1> to vector<8x1xi1>
    %705 = vector.broadcast %704 : vector<8x1xi1> to vector<8x128xi1>
    %706 = arith.select %705, %698, %620 : vector<8x128xi1>, vector<8x128xf32>
    %c8_i32_216 = arith.constant 8 : i32
    %c0_217 = arith.constant 0 : index
    %c0_218 = arith.constant 0 : index
    %c0_219 = arith.constant 0 : index
    %707 = vector.load %arg12[%c0_217, %c0_218, %c0_219] : memref<4x8x128xf32, #tpu.memory_space<vmem>>, vector<1x8x128xf32>
    %708 = vector.shape_cast %707 : vector<1x8x128xf32> to vector<8x128xf32>
    %709 = vector.shape_cast %662 : vector<8x128xf32> to vector<1x8x128xf32>
    tpu.vector_store %arg12[%c0_217, %c0_218, %c0_219], %709 {strides = array<i32>} : memref<4x8x128xf32, #tpu.memory_space<vmem>>, vector<1x8x128xf32>,
    %c1_220 = arith.constant 1 : index
    %c0_221 = arith.constant 0 : index
    %c0_222 = arith.constant 0 : index
    %710 = vector.load %arg12[%c1_220, %c0_221, %c0_222] : memref<4x8x128xf32, #tpu.memory_space<vmem>>, vector<1x8x128xf32>
    %711 = vector.shape_cast %710 : vector<1x8x128xf32> to vector<8x128xf32>
    %712 = vector.shape_cast %665 : vector<8x128xf32> to vector<1x8x128xf32>
    tpu.vector_store %arg12[%c1_220, %c0_221, %c0_222], %712 {strides = array<i32>} : memref<4x8x128xf32, #tpu.memory_space<vmem>>, vector<1x8x128xf32>,
    %c2_223 = arith.constant 2 : index
    %c0_224 = arith.constant 0 : index
    %c0_225 = arith.constant 0 : index
    %713 = vector.load %arg12[%c2_223, %c0_224, %c0_225] : memref<4x8x128xf32, #tpu.memory_space<vmem>>, vector<1x8x128xf32>
    %714 = vector.shape_cast %713 : vector<1x8x128xf32> to vector<8x128xf32>
    %715 = vector.shape_cast %703 : vector<8x128xf32> to vector<1x8x128xf32>
    tpu.vector_store %arg12[%c2_223, %c0_224, %c0_225], %715 {strides = array<i32>} : memref<4x8x128xf32, #tpu.memory_space<vmem>>, vector<1x8x128xf32>,
    %c3_226 = arith.constant 3 : index
    %c0_227 = arith.constant 0 : index
    %c0_228 = arith.constant 0 : index
    %716 = vector.load %arg12[%c3_226, %c0_227, %c0_228] : memref<4x8x128xf32, #tpu.memory_space<vmem>>, vector<1x8x128xf32>
    %717 = vector.shape_cast %716 : vector<1x8x128xf32> to vector<8x128xf32>
    %718 = vector.shape_cast %706 : vector<8x128xf32> to vector<1x8x128xf32>
    tpu.vector_store %arg12[%c3_226, %c0_227, %c0_228], %718 {strides = array<i32>} : memref<4x8x128xf32, #tpu.memory_space<vmem>>, vector<1x8x128xf32>,
    %c0_i32_229 = arith.constant 0 : i32
    %719 = arith.cmpi eq, %arg0, %c0_i32_229 : i32
    %720 = arith.extui %719 : i1 to i32
    %c0_i32_230 = arith.constant 0 : i32
    %721 = arith.cmpi ne, %720, %c0_i32_230 : i32
    scf.if %721 {
      %c0_231 = arith.constant 0 : index
      %c0_232 = arith.constant 0 : index
      %c0_233 = arith.constant 0 : index
      %722 = vector.load %arg8[%c0_231, %c0_232, %c0_233] : memref<2x8x128xf32, #tpu.memory_space<vmem>>, vector<1x8x128xf32>
      %723 = vector.shape_cast %722 : vector<1x8x128xf32> to vector<8x128xf32>
      %724 = vector.shape_cast %662 : vector<8x128xf32> to vector<1x8x128xf32>
      tpu.vector_store %arg8[%c0_231, %c0_232, %c0_233], %724 {strides = array<i32>} : memref<2x8x128xf32, #tpu.memory_space<vmem>>, vector<1x8x128xf32>,
      %c1_234 = arith.constant 1 : index
      %c0_235 = arith.constant 0 : index
      %c0_236 = arith.constant 0 : index
      %725 = vector.load %arg8[%c1_234, %c0_235, %c0_236] : memref<2x8x128xf32, #tpu.memory_space<vmem>>, vector<1x8x128xf32>
      %726 = vector.shape_cast %725 : vector<1x8x128xf32> to vector<8x128xf32>
      %727 = vector.shape_cast %703 : vector<8x128xf32> to vector<1x8x128xf32>
      tpu.vector_store %arg8[%c1_234, %c0_235, %c0_236], %727 {strides = array<i32>} : memref<2x8x128xf32, #tpu.memory_space<vmem>>, vector<1x8x128xf32>,
      %c0_237 = arith.constant 0 : index
      %c0_238 = arith.constant 0 : index
      %c0_239 = arith.constant 0 : index
      %728 = vector.load %arg9[%c0_237, %c0_238, %c0_239] : memref<2x8x128xf32, #tpu.memory_space<vmem>>, vector<1x8x128xf32>
      %729 = vector.shape_cast %728 : vector<1x8x128xf32> to vector<8x128xf32>
      %730 = vector.shape_cast %665 : vector<8x128xf32> to vector<1x8x128xf32>
      tpu.vector_store %arg9[%c0_237, %c0_238, %c0_239], %730 {strides = array<i32>} : memref<2x8x128xf32, #tpu.memory_space<vmem>>, vector<1x8x128xf32>,
      %c1_240 = arith.constant 1 : index
      %c0_241 = arith.constant 0 : index
      %c0_242 = arith.constant 0 : index
      %731 = vector.load %arg9[%c1_240, %c0_241, %c0_242] : memref<2x8x128xf32, #tpu.memory_space<vmem>>, vector<1x8x128xf32>
      %732 = vector.shape_cast %731 : vector<1x8x128xf32> to vector<8x128xf32>
      %733 = vector.shape_cast %706 : vector<8x128xf32> to vector<1x8x128xf32>
      tpu.vector_store %arg9[%c1_240, %c0_241, %c0_242], %733 {strides = array<i32>} : memref<2x8x128xf32, #tpu.memory_space<vmem>>, vector<1x8x128xf32>,
    } else {
    }
    return
  }
  func.func @transform_0(%arg0: i32) -> (i32, i32) {
    %c0_i32 = arith.constant 0 : i32
    %c0_i32_0 = arith.constant 0 : i32
    return %arg0, %c0_i32 : i32, i32
  }
  func.func @transform_1(%arg0: i32) -> (i32, i32) {
    %c0_i32 = arith.constant 0 : i32
    %c0_i32_0 = arith.constant 0 : i32
    %c0_i32_1 = arith.constant 0 : i32
    return %c0_i32, %c0_i32_0 : i32, i32
  }
  func.func @transform_2(%arg0: i32) -> (i32, i32) {
    %c0_i32 = arith.constant 0 : i32
    %c0_i32_0 = arith.constant 0 : i32
    %c0_i32_1 = arith.constant 0 : i32
    return %c0_i32, %c0_i32_0 : i32, i32
  }
  func.func @transform_3(%arg0: i32) -> (i32, i32) {
    %c0_i32 = arith.constant 0 : i32
    %c0_i32_0 = arith.constant 0 : i32
    %c0_i32_1 = arith.constant 0 : i32
    return %c0_i32, %c0_i32_0 : i32, i32
  }
  func.func @transform_4(%arg0: i32) -> (i32, i32) {
    %c0_i32 = arith.constant 0 : i32
    %c0_i32_0 = arith.constant 0 : i32
    %c0_i32_1 = arith.constant 0 : i32
    return %c0_i32, %c0_i32_0 : i32, i32
  }
  func.func @transform_5(%arg0: i32) -> (i32, i32) {
    %c0_i32 = arith.constant 0 : i32
    %c0_i32_0 = arith.constant 0 : i32
    %c0_i32_1 = arith.constant 0 : i32
    return %c0_i32, %c0_i32_0 : i32, i32
  }
  func.func @transform_6(%arg0: i32) -> (i32, i32) {
    %c0_i32 = arith.constant 0 : i32
    %c0_i32_0 = arith.constant 0 : i32
    %c0_i32_1 = arith.constant 0 : i32
    return %c0_i32, %c0_i32_0 : i32, i32
  }
  func.func @transform_7(%arg0: i32) -> (i32, i32, i32) {
    %c0_i32 = arith.constant 0 : i32
    %c0_i32_0 = arith.constant 0 : i32
    %c0_i32_1 = arith.constant 0 : i32
    %c0_i32_2 = arith.constant 0 : i32
    return %c0_i32, %c0_i32_0, %c0_i32_1 : i32, i32, i32
  }
  func.func @transform_8(%arg0: i32) -> (i32, i32, i32) {
    %c0_i32 = arith.constant 0 : i32
    %c0_i32_0 = arith.constant 0 : i32
    %c0_i32_1 = arith.constant 0 : i32
    %c0_i32_2 = arith.constant 0 : i32
    return %c0_i32, %c0_i32_0, %c0_i32_1 : i32, i32, i32
  }
}

module attributes {stable_mosaic.version = 11 : i64} {
  func.func @_decoder_kernel(%arg0: i32, %arg1: memref<5xi32, #tpu.memory_space<smem>>, %arg2: memref<6x8x1xi32, #tpu.memory_space<vmem>>, %arg3: memref<128x512xbf16, #tpu.memory_space<vmem>>, %arg4: memref<8x512xf32, #tpu.memory_space<vmem>>, %arg5: memref<8x512xf32, #tpu.memory_space<vmem>>, %arg6: memref<8x128xf32, #tpu.memory_space<vmem>>, %arg7: memref<8x128xf32, #tpu.memory_space<vmem>>, %arg8: memref<128x512xbf16, #tpu.memory_space<vmem>>, %arg9: memref<128x128xbf16, #tpu.memory_space<vmem>>, %arg10: memref<1x128xf32, #tpu.memory_space<vmem>>, %arg11: memref<5x8x128xf32, #tpu.memory_space<vmem>>, %arg12: memref<8x1xi32, #tpu.memory_space<vmem>>) attributes {dimension_semantics = [#tpu.dimension_semantics<arbitrary>], iteration_bounds = array<i64: 1>, scalar_prefetch = 1 : i64, scratch_operands = 1 : i64, tpu.core_type = #tpu.core_type<tc>, window_params = [{pipeline_mode = #tpu.pipeline_mode<synchronous>, transform_indices = @transform_0, window_bounds = array<i64: 6, 8, 1>}, {pipeline_mode = #tpu.pipeline_mode<synchronous>, transform_indices = @transform_1, window_bounds = array<i64: 128, 512>}, {pipeline_mode = #tpu.pipeline_mode<synchronous>, transform_indices = @transform_2, window_bounds = array<i64: 8, 512>}, {pipeline_mode = #tpu.pipeline_mode<synchronous>, transform_indices = @transform_3, window_bounds = array<i64: 8, 512>}, {pipeline_mode = #tpu.pipeline_mode<synchronous>, transform_indices = @transform_4, window_bounds = array<i64: 8, 128>}, {pipeline_mode = #tpu.pipeline_mode<synchronous>, transform_indices = @transform_5, window_bounds = array<i64: 8, 128>}, {pipeline_mode = #tpu.pipeline_mode<synchronous>, transform_indices = @transform_6, window_bounds = array<i64: 128, 512>}, {pipeline_mode = #tpu.pipeline_mode<synchronous>, transform_indices = @transform_7, window_bounds = array<i64: 128, 128>}, {pipeline_mode = #tpu.pipeline_mode<synchronous>, transform_indices = @transform_8, window_bounds = array<i64: 1, 128>}, {transform_indices = @transform_9, window_bounds = array<i64: 5, 8, 128>}]} {
    %c0_i32 = arith.constant 0 : i32
    %0 = arith.cmpi eq, %arg0, %c0_i32 : i32
    %1 = arith.extui %0 : i1 to i32
    %c0_i32_0 = arith.constant 0 : i32
    %2 = arith.cmpi ne, %1, %c0_i32_0 : i32
    scf.if %2 {
      %c0_178 = arith.constant 0 : index
      %c0_179 = arith.constant 0 : index
      %c0_180 = arith.constant 0 : index
      %476 = vector.load %arg2[%c0_178, %c0_179, %c0_180] : memref<6x8x1xi32, #tpu.memory_space<vmem>>, vector<1x8x1xi32>
      %477 = vector.shape_cast %476 : vector<1x8x1xi32> to vector<8x1xi32>
      %c0_181 = arith.constant 0 : index
      %c0_182 = arith.constant 0 : index
      %478 = vector.load %arg12[%c0_181, %c0_182] : memref<8x1xi32, #tpu.memory_space<vmem>>, vector<8x1xi32>
      tpu.vector_store %arg12[%c0_181, %c0_182], %477 {strides = array<i32>} : memref<8x1xi32, #tpu.memory_space<vmem>>, vector<8x1xi32>,
    } else {
    }
    %3 = tpu.iota {dimensions = array<i32: 1>} : vector<8x128xi32>
    %c0 = arith.constant 0 : index
    %c0_1 = arith.constant 0 : index
    %4 = vector.load %arg12[%c0, %c0_1] : memref<8x1xi32, #tpu.memory_space<vmem>>, vector<8x1xi32>
    %c0_i32_2 = arith.constant 0 : i32
    %c5_i32 = arith.constant 5 : i32
    %5 = arith.muli %arg0, %c5_i32 : i32
    %6 = arith.addi %5, %c0_i32_2 : i32
    %7 = vector.broadcast %4 : vector<8x1xi32> to vector<8x128xi32>
    %8 = arith.cmpi eq, %3, %7 : vector<8x128xi32>
    %9 = arith.extui %8 : vector<8x128xi1> to vector<8x128xi32>
    %10 = arith.sitofp %9 : vector<8x128xi32> to vector<8x128xf32>
    %11 = arith.truncf %10 : vector<8x128xf32> to vector<8x128xbf16>
    %c0_3 = arith.constant 0 : index
    %c0_4 = arith.constant 0 : index
    %12 = vector.load %arg3[%c0_3, %c0_4] : memref<128x512xbf16, #tpu.memory_space<vmem>>, vector<128x512xbf16>
    %cst = arith.constant dense<0.000000e+00> : vector<8x512xf32>
    %13 = tpu.matmul %11, %12, %cst {dimension_numbers = #tpu.dot_dimension_numbers<[1], [0], [0], [1], [0, 0, 1, 1], [], []>} : vector<8x128xbf16>, vector<128x512xbf16>, vector<8x512xf32> -> vector<8x512xf32>
    %c0_5 = arith.constant 0 : index
    %c0_6 = arith.constant 0 : index
    %14 = vector.load %arg4[%c0_5, %c0_6] : memref<8x512xf32, #tpu.memory_space<vmem>>, vector<8x512xf32>
    %15 = arith.addf %13, %14 : vector<8x512xf32>
    %c0_7 = arith.constant 0 : index
    %c0_8 = arith.constant 0 : index
    %16 = vector.load %arg6[%c0_7, %c0_8] : memref<8x128xf32, #tpu.memory_space<vmem>>, vector<8x128xf32>
    %17 = vector.extract_strided_slice %15 {offsets = [0, 0], sizes = [8, 128], strides = [1, 1]} : vector<8x512xf32> to vector<8x128xf32>
    %18 = arith.negf %17 : vector<8x128xf32>
    %19 = math.exp %18 : vector<8x128xf32>
    %cst_9 = arith.constant 1.000000e+00 : f32
    %20 = vector.broadcast %cst_9 : f32 to vector<8x128xf32>
    %21 = arith.addf %20, %19 : vector<8x128xf32>
    %22 = arith.divf %20, %21 : vector<8x128xf32>
    %23 = vector.extract_strided_slice %15 {offsets = [0, 128], sizes = [8, 128], strides = [1, 1]} : vector<8x512xf32> to vector<8x128xf32>
    %24 = arith.negf %23 : vector<8x128xf32>
    %25 = math.exp %24 : vector<8x128xf32>
    %cst_10 = arith.constant 1.000000e+00 : f32
    %26 = vector.broadcast %cst_10 : f32 to vector<8x128xf32>
    %27 = arith.addf %26, %25 : vector<8x128xf32>
    %28 = arith.divf %26, %27 : vector<8x128xf32>
    %29 = vector.extract_strided_slice %15 {offsets = [0, 256], sizes = [8, 128], strides = [1, 1]} : vector<8x512xf32> to vector<8x128xf32>
    %30 = math.tanh %29 : vector<8x128xf32>
    %31 = vector.extract_strided_slice %15 {offsets = [0, 384], sizes = [8, 128], strides = [1, 1]} : vector<8x512xf32> to vector<8x128xf32>
    %32 = arith.negf %31 : vector<8x128xf32>
    %33 = math.exp %32 : vector<8x128xf32>
    %cst_11 = arith.constant 1.000000e+00 : f32
    %34 = vector.broadcast %cst_11 : f32 to vector<8x128xf32>
    %35 = arith.addf %34, %33 : vector<8x128xf32>
    %36 = arith.divf %34, %35 : vector<8x128xf32>
    %37 = arith.mulf %28, %16 : vector<8x128xf32>
    %38 = arith.mulf %22, %30 : vector<8x128xf32>
    %39 = arith.addf %37, %38 : vector<8x128xf32>
    %40 = math.tanh %39 : vector<8x128xf32>
    %41 = arith.mulf %36, %40 : vector<8x128xf32>
    %42 = arith.truncf %41 : vector<8x128xf32> to vector<8x128xbf16>
    %c0_12 = arith.constant 0 : index
    %c0_13 = arith.constant 0 : index
    %43 = vector.load %arg8[%c0_12, %c0_13] : memref<128x512xbf16, #tpu.memory_space<vmem>>, vector<128x512xbf16>
    %cst_14 = arith.constant dense<0.000000e+00> : vector<8x512xf32>
    %44 = tpu.matmul %42, %43, %cst_14 {dimension_numbers = #tpu.dot_dimension_numbers<[1], [0], [0], [1], [0, 0, 1, 1], [], []>} : vector<8x128xbf16>, vector<128x512xbf16>, vector<8x512xf32> -> vector<8x512xf32>
    %c0_15 = arith.constant 0 : index
    %c0_16 = arith.constant 0 : index
    %45 = vector.load %arg5[%c0_15, %c0_16] : memref<8x512xf32, #tpu.memory_space<vmem>>, vector<8x512xf32>
    %46 = arith.addf %44, %45 : vector<8x512xf32>
    %c0_17 = arith.constant 0 : index
    %c0_18 = arith.constant 0 : index
    %47 = vector.load %arg7[%c0_17, %c0_18] : memref<8x128xf32, #tpu.memory_space<vmem>>, vector<8x128xf32>
    %48 = vector.extract_strided_slice %46 {offsets = [0, 0], sizes = [8, 128], strides = [1, 1]} : vector<8x512xf32> to vector<8x128xf32>
    %49 = arith.negf %48 : vector<8x128xf32>
    %50 = math.exp %49 : vector<8x128xf32>
    %cst_19 = arith.constant 1.000000e+00 : f32
    %51 = vector.broadcast %cst_19 : f32 to vector<8x128xf32>
    %52 = arith.addf %51, %50 : vector<8x128xf32>
    %53 = arith.divf %51, %52 : vector<8x128xf32>
    %54 = vector.extract_strided_slice %46 {offsets = [0, 128], sizes = [8, 128], strides = [1, 1]} : vector<8x512xf32> to vector<8x128xf32>
    %55 = arith.negf %54 : vector<8x128xf32>
    %56 = math.exp %55 : vector<8x128xf32>
    %cst_20 = arith.constant 1.000000e+00 : f32
    %57 = vector.broadcast %cst_20 : f32 to vector<8x128xf32>
    %58 = arith.addf %57, %56 : vector<8x128xf32>
    %59 = arith.divf %57, %58 : vector<8x128xf32>
    %60 = vector.extract_strided_slice %46 {offsets = [0, 256], sizes = [8, 128], strides = [1, 1]} : vector<8x512xf32> to vector<8x128xf32>
    %61 = math.tanh %60 : vector<8x128xf32>
    %62 = vector.extract_strided_slice %46 {offsets = [0, 384], sizes = [8, 128], strides = [1, 1]} : vector<8x512xf32> to vector<8x128xf32>
    %63 = arith.negf %62 : vector<8x128xf32>
    %64 = math.exp %63 : vector<8x128xf32>
    %cst_21 = arith.constant 1.000000e+00 : f32
    %65 = vector.broadcast %cst_21 : f32 to vector<8x128xf32>
    %66 = arith.addf %65, %64 : vector<8x128xf32>
    %67 = arith.divf %65, %66 : vector<8x128xf32>
    %68 = arith.mulf %59, %47 : vector<8x128xf32>
    %69 = arith.mulf %53, %61 : vector<8x128xf32>
    %70 = arith.addf %68, %69 : vector<8x128xf32>
    %71 = math.tanh %70 : vector<8x128xf32>
    %72 = arith.mulf %67, %71 : vector<8x128xf32>
    %73 = arith.truncf %72 : vector<8x128xf32> to vector<8x128xbf16>
    %c0_22 = arith.constant 0 : index
    %c0_23 = arith.constant 0 : index
    %74 = vector.load %arg9[%c0_22, %c0_23] : memref<128x128xbf16, #tpu.memory_space<vmem>>, vector<128x128xbf16>
    %cst_24 = arith.constant dense<0.000000e+00> : vector<8x128xf32>
    %75 = tpu.matmul %73, %74, %cst_24 {dimension_numbers = #tpu.dot_dimension_numbers<[1], [0], [0], [1], [0, 0, 1, 1], [], []>} : vector<8x128xbf16>, vector<128x128xbf16>, vector<8x128xf32> -> vector<8x128xf32>
    %c0_25 = arith.constant 0 : index
    %c0_26 = arith.constant 0 : index
    %76 = vector.load %arg10[%c0_25, %c0_26] : memref<1x128xf32, #tpu.memory_space<vmem>>, vector<1x128xf32>
    %77 = vector.broadcast %76 : vector<1x128xf32> to vector<8x128xf32>
    %78 = arith.addf %75, %77 : vector<8x128xf32>
    %79 = arith.index_cast %c0_i32_2 : i32 to index
    %c0_27 = arith.constant 0 : index
    %c0_28 = arith.constant 0 : index
    %80 = vector.load %arg11[%79, %c0_27, %c0_28] : memref<5x8x128xf32, #tpu.memory_space<vmem>>, vector<1x8x128xf32>
    %81 = vector.shape_cast %80 : vector<1x8x128xf32> to vector<8x128xf32>
    %82 = vector.shape_cast %78 : vector<8x128xf32> to vector<1x8x128xf32>
    tpu.vector_store %arg11[%79, %c0_27, %c0_28], %82 {strides = array<i32>} : memref<5x8x128xf32, #tpu.memory_space<vmem>>, vector<1x8x128xf32>,
    %cst_29 = arith.constant dense<0xFF800000> : vector<8xf32>
    %83 = vector.multi_reduction <maximumf>, %78, %cst_29 [1] : vector<8x128xf32> to vector<8xf32>
    %84 = vector.shape_cast %83 : vector<8xf32> to vector<8x1xf32>
    %85 = vector.broadcast %84 : vector<8x1xf32> to vector<8x128xf32>
    %86 = arith.cmpf oeq, %78, %85 : vector<8x128xf32>
    %c128_i32 = arith.constant 128 : i32
    %87 = vector.broadcast %c128_i32 : i32 to vector<8x128xi32>
    %88 = arith.select %86, %3, %87 : vector<8x128xi1>, vector<8x128xi32>
    %cst_30 = arith.constant dense<2147483647> : vector<8xi32>
    %89 = vector.multi_reduction <minsi>, %88, %cst_30 [1] : vector<8x128xi32> to vector<8xi32>
    %90 = vector.shape_cast %89 : vector<8xi32> to vector<8x1xi32>
    %c1_i32 = arith.constant 1 : i32
    %91 = arith.addi %6, %c1_i32 : i32
    %92 = arith.index_cast %91 : i32 to index
    %c0_31 = arith.constant 0 : index
    %c0_32 = arith.constant 0 : index
    %93 = vector.load %arg2[%92, %c0_31, %c0_32] : memref<6x8x1xi32, #tpu.memory_space<vmem>>, vector<1x8x1xi32>
    %94 = vector.shape_cast %93 : vector<1x8x1xi32> to vector<8x1xi32>
    %95 = arith.index_cast %6 : i32 to index
    %96 = memref.load %arg1[%95] : memref<5xi32, #tpu.memory_space<smem>>
    %c0_i32_33 = arith.constant 0 : i32
    %97 = arith.cmpi sgt, %96, %c0_i32_33 : i32
    %98 = arith.select %97, %94, %90 : vector<8x1xi32>
    %c1_i32_34 = arith.constant 1 : i32
    %c5_i32_35 = arith.constant 5 : i32
    %99 = arith.muli %arg0, %c5_i32_35 : i32
    %100 = arith.addi %99, %c1_i32_34 : i32
    %101 = vector.broadcast %98 : vector<8x1xi32> to vector<8x128xi32>
    %102 = arith.cmpi eq, %3, %101 : vector<8x128xi32>
    %103 = arith.extui %102 : vector<8x128xi1> to vector<8x128xi32>
    %104 = arith.sitofp %103 : vector<8x128xi32> to vector<8x128xf32>
    %105 = arith.truncf %104 : vector<8x128xf32> to vector<8x128xbf16>
    %c0_36 = arith.constant 0 : index
    %c0_37 = arith.constant 0 : index
    %106 = vector.load %arg3[%c0_36, %c0_37] : memref<128x512xbf16, #tpu.memory_space<vmem>>, vector<128x512xbf16>
    %cst_38 = arith.constant dense<0.000000e+00> : vector<8x512xf32>
    %107 = tpu.matmul %105, %106, %cst_38 {dimension_numbers = #tpu.dot_dimension_numbers<[1], [0], [0], [1], [0, 0, 1, 1], [], []>} : vector<8x128xbf16>, vector<128x512xbf16>, vector<8x512xf32> -> vector<8x512xf32>
    %c0_39 = arith.constant 0 : index
    %c0_40 = arith.constant 0 : index
    %108 = vector.load %arg4[%c0_39, %c0_40] : memref<8x512xf32, #tpu.memory_space<vmem>>, vector<8x512xf32>
    %109 = arith.addf %107, %108 : vector<8x512xf32>
    %c0_41 = arith.constant 0 : index
    %c0_42 = arith.constant 0 : index
    %110 = vector.load %arg6[%c0_41, %c0_42] : memref<8x128xf32, #tpu.memory_space<vmem>>, vector<8x128xf32>
    %111 = vector.extract_strided_slice %109 {offsets = [0, 0], sizes = [8, 128], strides = [1, 1]} : vector<8x512xf32> to vector<8x128xf32>
    %112 = arith.negf %111 : vector<8x128xf32>
    %113 = math.exp %112 : vector<8x128xf32>
    %cst_43 = arith.constant 1.000000e+00 : f32
    %114 = vector.broadcast %cst_43 : f32 to vector<8x128xf32>
    %115 = arith.addf %114, %113 : vector<8x128xf32>
    %116 = arith.divf %114, %115 : vector<8x128xf32>
    %117 = vector.extract_strided_slice %109 {offsets = [0, 128], sizes = [8, 128], strides = [1, 1]} : vector<8x512xf32> to vector<8x128xf32>
    %118 = arith.negf %117 : vector<8x128xf32>
    %119 = math.exp %118 : vector<8x128xf32>
    %cst_44 = arith.constant 1.000000e+00 : f32
    %120 = vector.broadcast %cst_44 : f32 to vector<8x128xf32>
    %121 = arith.addf %120, %119 : vector<8x128xf32>
    %122 = arith.divf %120, %121 : vector<8x128xf32>
    %123 = vector.extract_strided_slice %109 {offsets = [0, 256], sizes = [8, 128], strides = [1, 1]} : vector<8x512xf32> to vector<8x128xf32>
    %124 = math.tanh %123 : vector<8x128xf32>
    %125 = vector.extract_strided_slice %109 {offsets = [0, 384], sizes = [8, 128], strides = [1, 1]} : vector<8x512xf32> to vector<8x128xf32>
    %126 = arith.negf %125 : vector<8x128xf32>
    %127 = math.exp %126 : vector<8x128xf32>
    %cst_45 = arith.constant 1.000000e+00 : f32
    %128 = vector.broadcast %cst_45 : f32 to vector<8x128xf32>
    %129 = arith.addf %128, %127 : vector<8x128xf32>
    %130 = arith.divf %128, %129 : vector<8x128xf32>
    %131 = arith.mulf %122, %110 : vector<8x128xf32>
    %132 = arith.mulf %116, %124 : vector<8x128xf32>
    %133 = arith.addf %131, %132 : vector<8x128xf32>
    %134 = math.tanh %133 : vector<8x128xf32>
    %135 = arith.mulf %130, %134 : vector<8x128xf32>
    %136 = arith.truncf %135 : vector<8x128xf32> to vector<8x128xbf16>
    %c0_46 = arith.constant 0 : index
    %c0_47 = arith.constant 0 : index
    %137 = vector.load %arg8[%c0_46, %c0_47] : memref<128x512xbf16, #tpu.memory_space<vmem>>, vector<128x512xbf16>
    %cst_48 = arith.constant dense<0.000000e+00> : vector<8x512xf32>
    %138 = tpu.matmul %136, %137, %cst_48 {dimension_numbers = #tpu.dot_dimension_numbers<[1], [0], [0], [1], [0, 0, 1, 1], [], []>} : vector<8x128xbf16>, vector<128x512xbf16>, vector<8x512xf32> -> vector<8x512xf32>
    %c0_49 = arith.constant 0 : index
    %c0_50 = arith.constant 0 : index
    %139 = vector.load %arg5[%c0_49, %c0_50] : memref<8x512xf32, #tpu.memory_space<vmem>>, vector<8x512xf32>
    %140 = arith.addf %138, %139 : vector<8x512xf32>
    %c0_51 = arith.constant 0 : index
    %c0_52 = arith.constant 0 : index
    %141 = vector.load %arg7[%c0_51, %c0_52] : memref<8x128xf32, #tpu.memory_space<vmem>>, vector<8x128xf32>
    %142 = vector.extract_strided_slice %140 {offsets = [0, 0], sizes = [8, 128], strides = [1, 1]} : vector<8x512xf32> to vector<8x128xf32>
    %143 = arith.negf %142 : vector<8x128xf32>
    %144 = math.exp %143 : vector<8x128xf32>
    %cst_53 = arith.constant 1.000000e+00 : f32
    %145 = vector.broadcast %cst_53 : f32 to vector<8x128xf32>
    %146 = arith.addf %145, %144 : vector<8x128xf32>
    %147 = arith.divf %145, %146 : vector<8x128xf32>
    %148 = vector.extract_strided_slice %140 {offsets = [0, 128], sizes = [8, 128], strides = [1, 1]} : vector<8x512xf32> to vector<8x128xf32>
    %149 = arith.negf %148 : vector<8x128xf32>
    %150 = math.exp %149 : vector<8x128xf32>
    %cst_54 = arith.constant 1.000000e+00 : f32
    %151 = vector.broadcast %cst_54 : f32 to vector<8x128xf32>
    %152 = arith.addf %151, %150 : vector<8x128xf32>
    %153 = arith.divf %151, %152 : vector<8x128xf32>
    %154 = vector.extract_strided_slice %140 {offsets = [0, 256], sizes = [8, 128], strides = [1, 1]} : vector<8x512xf32> to vector<8x128xf32>
    %155 = math.tanh %154 : vector<8x128xf32>
    %156 = vector.extract_strided_slice %140 {offsets = [0, 384], sizes = [8, 128], strides = [1, 1]} : vector<8x512xf32> to vector<8x128xf32>
    %157 = arith.negf %156 : vector<8x128xf32>
    %158 = math.exp %157 : vector<8x128xf32>
    %cst_55 = arith.constant 1.000000e+00 : f32
    %159 = vector.broadcast %cst_55 : f32 to vector<8x128xf32>
    %160 = arith.addf %159, %158 : vector<8x128xf32>
    %161 = arith.divf %159, %160 : vector<8x128xf32>
    %162 = arith.mulf %153, %141 : vector<8x128xf32>
    %163 = arith.mulf %147, %155 : vector<8x128xf32>
    %164 = arith.addf %162, %163 : vector<8x128xf32>
    %165 = math.tanh %164 : vector<8x128xf32>
    %166 = arith.mulf %161, %165 : vector<8x128xf32>
    %167 = arith.truncf %166 : vector<8x128xf32> to vector<8x128xbf16>
    %c0_56 = arith.constant 0 : index
    %c0_57 = arith.constant 0 : index
    %168 = vector.load %arg9[%c0_56, %c0_57] : memref<128x128xbf16, #tpu.memory_space<vmem>>, vector<128x128xbf16>
    %cst_58 = arith.constant dense<0.000000e+00> : vector<8x128xf32>
    %169 = tpu.matmul %167, %168, %cst_58 {dimension_numbers = #tpu.dot_dimension_numbers<[1], [0], [0], [1], [0, 0, 1, 1], [], []>} : vector<8x128xbf16>, vector<128x128xbf16>, vector<8x128xf32> -> vector<8x128xf32>
    %c0_59 = arith.constant 0 : index
    %c0_60 = arith.constant 0 : index
    %170 = vector.load %arg10[%c0_59, %c0_60] : memref<1x128xf32, #tpu.memory_space<vmem>>, vector<1x128xf32>
    %171 = vector.broadcast %170 : vector<1x128xf32> to vector<8x128xf32>
    %172 = arith.addf %169, %171 : vector<8x128xf32>
    %173 = arith.index_cast %c1_i32_34 : i32 to index
    %c0_61 = arith.constant 0 : index
    %c0_62 = arith.constant 0 : index
    %174 = vector.load %arg11[%173, %c0_61, %c0_62] : memref<5x8x128xf32, #tpu.memory_space<vmem>>, vector<1x8x128xf32>
    %175 = vector.shape_cast %174 : vector<1x8x128xf32> to vector<8x128xf32>
    %176 = vector.shape_cast %172 : vector<8x128xf32> to vector<1x8x128xf32>
    tpu.vector_store %arg11[%173, %c0_61, %c0_62], %176 {strides = array<i32>} : memref<5x8x128xf32, #tpu.memory_space<vmem>>, vector<1x8x128xf32>,
    %cst_63 = arith.constant dense<0xFF800000> : vector<8xf32>
    %177 = vector.multi_reduction <maximumf>, %172, %cst_63 [1] : vector<8x128xf32> to vector<8xf32>
    %178 = vector.shape_cast %177 : vector<8xf32> to vector<8x1xf32>
    %179 = vector.broadcast %178 : vector<8x1xf32> to vector<8x128xf32>
    %180 = arith.cmpf oeq, %172, %179 : vector<8x128xf32>
    %c128_i32_64 = arith.constant 128 : i32
    %181 = vector.broadcast %c128_i32_64 : i32 to vector<8x128xi32>
    %182 = arith.select %180, %3, %181 : vector<8x128xi1>, vector<8x128xi32>
    %cst_65 = arith.constant dense<2147483647> : vector<8xi32>
    %183 = vector.multi_reduction <minsi>, %182, %cst_65 [1] : vector<8x128xi32> to vector<8xi32>
    %184 = vector.shape_cast %183 : vector<8xi32> to vector<8x1xi32>
    %c1_i32_66 = arith.constant 1 : i32
    %185 = arith.addi %100, %c1_i32_66 : i32
    %186 = arith.index_cast %185 : i32 to index
    %c0_67 = arith.constant 0 : index
    %c0_68 = arith.constant 0 : index
    %187 = vector.load %arg2[%186, %c0_67, %c0_68] : memref<6x8x1xi32, #tpu.memory_space<vmem>>, vector<1x8x1xi32>
    %188 = vector.shape_cast %187 : vector<1x8x1xi32> to vector<8x1xi32>
    %189 = arith.index_cast %100 : i32 to index
    %190 = memref.load %arg1[%189] : memref<5xi32, #tpu.memory_space<smem>>
    %c0_i32_69 = arith.constant 0 : i32
    %191 = arith.cmpi sgt, %190, %c0_i32_69 : i32
    %192 = arith.select %191, %188, %184 : vector<8x1xi32>
    %c2_i32 = arith.constant 2 : i32
    %c5_i32_70 = arith.constant 5 : i32
    %193 = arith.muli %arg0, %c5_i32_70 : i32
    %194 = arith.addi %193, %c2_i32 : i32
    %195 = vector.broadcast %192 : vector<8x1xi32> to vector<8x128xi32>
    %196 = arith.cmpi eq, %3, %195 : vector<8x128xi32>
    %197 = arith.extui %196 : vector<8x128xi1> to vector<8x128xi32>
    %198 = arith.sitofp %197 : vector<8x128xi32> to vector<8x128xf32>
    %199 = arith.truncf %198 : vector<8x128xf32> to vector<8x128xbf16>
    %c0_71 = arith.constant 0 : index
    %c0_72 = arith.constant 0 : index
    %200 = vector.load %arg3[%c0_71, %c0_72] : memref<128x512xbf16, #tpu.memory_space<vmem>>, vector<128x512xbf16>
    %cst_73 = arith.constant dense<0.000000e+00> : vector<8x512xf32>
    %201 = tpu.matmul %199, %200, %cst_73 {dimension_numbers = #tpu.dot_dimension_numbers<[1], [0], [0], [1], [0, 0, 1, 1], [], []>} : vector<8x128xbf16>, vector<128x512xbf16>, vector<8x512xf32> -> vector<8x512xf32>
    %c0_74 = arith.constant 0 : index
    %c0_75 = arith.constant 0 : index
    %202 = vector.load %arg4[%c0_74, %c0_75] : memref<8x512xf32, #tpu.memory_space<vmem>>, vector<8x512xf32>
    %203 = arith.addf %201, %202 : vector<8x512xf32>
    %c0_76 = arith.constant 0 : index
    %c0_77 = arith.constant 0 : index
    %204 = vector.load %arg6[%c0_76, %c0_77] : memref<8x128xf32, #tpu.memory_space<vmem>>, vector<8x128xf32>
    %205 = vector.extract_strided_slice %203 {offsets = [0, 0], sizes = [8, 128], strides = [1, 1]} : vector<8x512xf32> to vector<8x128xf32>
    %206 = arith.negf %205 : vector<8x128xf32>
    %207 = math.exp %206 : vector<8x128xf32>
    %cst_78 = arith.constant 1.000000e+00 : f32
    %208 = vector.broadcast %cst_78 : f32 to vector<8x128xf32>
    %209 = arith.addf %208, %207 : vector<8x128xf32>
    %210 = arith.divf %208, %209 : vector<8x128xf32>
    %211 = vector.extract_strided_slice %203 {offsets = [0, 128], sizes = [8, 128], strides = [1, 1]} : vector<8x512xf32> to vector<8x128xf32>
    %212 = arith.negf %211 : vector<8x128xf32>
    %213 = math.exp %212 : vector<8x128xf32>
    %cst_79 = arith.constant 1.000000e+00 : f32
    %214 = vector.broadcast %cst_79 : f32 to vector<8x128xf32>
    %215 = arith.addf %214, %213 : vector<8x128xf32>
    %216 = arith.divf %214, %215 : vector<8x128xf32>
    %217 = vector.extract_strided_slice %203 {offsets = [0, 256], sizes = [8, 128], strides = [1, 1]} : vector<8x512xf32> to vector<8x128xf32>
    %218 = math.tanh %217 : vector<8x128xf32>
    %219 = vector.extract_strided_slice %203 {offsets = [0, 384], sizes = [8, 128], strides = [1, 1]} : vector<8x512xf32> to vector<8x128xf32>
    %220 = arith.negf %219 : vector<8x128xf32>
    %221 = math.exp %220 : vector<8x128xf32>
    %cst_80 = arith.constant 1.000000e+00 : f32
    %222 = vector.broadcast %cst_80 : f32 to vector<8x128xf32>
    %223 = arith.addf %222, %221 : vector<8x128xf32>
    %224 = arith.divf %222, %223 : vector<8x128xf32>
    %225 = arith.mulf %216, %204 : vector<8x128xf32>
    %226 = arith.mulf %210, %218 : vector<8x128xf32>
    %227 = arith.addf %225, %226 : vector<8x128xf32>
    %228 = math.tanh %227 : vector<8x128xf32>
    %229 = arith.mulf %224, %228 : vector<8x128xf32>
    %230 = arith.truncf %229 : vector<8x128xf32> to vector<8x128xbf16>
    %c0_81 = arith.constant 0 : index
    %c0_82 = arith.constant 0 : index
    %231 = vector.load %arg8[%c0_81, %c0_82] : memref<128x512xbf16, #tpu.memory_space<vmem>>, vector<128x512xbf16>
    %cst_83 = arith.constant dense<0.000000e+00> : vector<8x512xf32>
    %232 = tpu.matmul %230, %231, %cst_83 {dimension_numbers = #tpu.dot_dimension_numbers<[1], [0], [0], [1], [0, 0, 1, 1], [], []>} : vector<8x128xbf16>, vector<128x512xbf16>, vector<8x512xf32> -> vector<8x512xf32>
    %c0_84 = arith.constant 0 : index
    %c0_85 = arith.constant 0 : index
    %233 = vector.load %arg5[%c0_84, %c0_85] : memref<8x512xf32, #tpu.memory_space<vmem>>, vector<8x512xf32>
    %234 = arith.addf %232, %233 : vector<8x512xf32>
    %c0_86 = arith.constant 0 : index
    %c0_87 = arith.constant 0 : index
    %235 = vector.load %arg7[%c0_86, %c0_87] : memref<8x128xf32, #tpu.memory_space<vmem>>, vector<8x128xf32>
    %236 = vector.extract_strided_slice %234 {offsets = [0, 0], sizes = [8, 128], strides = [1, 1]} : vector<8x512xf32> to vector<8x128xf32>
    %237 = arith.negf %236 : vector<8x128xf32>
    %238 = math.exp %237 : vector<8x128xf32>
    %cst_88 = arith.constant 1.000000e+00 : f32
    %239 = vector.broadcast %cst_88 : f32 to vector<8x128xf32>
    %240 = arith.addf %239, %238 : vector<8x128xf32>
    %241 = arith.divf %239, %240 : vector<8x128xf32>
    %242 = vector.extract_strided_slice %234 {offsets = [0, 128], sizes = [8, 128], strides = [1, 1]} : vector<8x512xf32> to vector<8x128xf32>
    %243 = arith.negf %242 : vector<8x128xf32>
    %244 = math.exp %243 : vector<8x128xf32>
    %cst_89 = arith.constant 1.000000e+00 : f32
    %245 = vector.broadcast %cst_89 : f32 to vector<8x128xf32>
    %246 = arith.addf %245, %244 : vector<8x128xf32>
    %247 = arith.divf %245, %246 : vector<8x128xf32>
    %248 = vector.extract_strided_slice %234 {offsets = [0, 256], sizes = [8, 128], strides = [1, 1]} : vector<8x512xf32> to vector<8x128xf32>
    %249 = math.tanh %248 : vector<8x128xf32>
    %250 = vector.extract_strided_slice %234 {offsets = [0, 384], sizes = [8, 128], strides = [1, 1]} : vector<8x512xf32> to vector<8x128xf32>
    %251 = arith.negf %250 : vector<8x128xf32>
    %252 = math.exp %251 : vector<8x128xf32>
    %cst_90 = arith.constant 1.000000e+00 : f32
    %253 = vector.broadcast %cst_90 : f32 to vector<8x128xf32>
    %254 = arith.addf %253, %252 : vector<8x128xf32>
    %255 = arith.divf %253, %254 : vector<8x128xf32>
    %256 = arith.mulf %247, %235 : vector<8x128xf32>
    %257 = arith.mulf %241, %249 : vector<8x128xf32>
    %258 = arith.addf %256, %257 : vector<8x128xf32>
    %259 = math.tanh %258 : vector<8x128xf32>
    %260 = arith.mulf %255, %259 : vector<8x128xf32>
    %261 = arith.truncf %260 : vector<8x128xf32> to vector<8x128xbf16>
    %c0_91 = arith.constant 0 : index
    %c0_92 = arith.constant 0 : index
    %262 = vector.load %arg9[%c0_91, %c0_92] : memref<128x128xbf16, #tpu.memory_space<vmem>>, vector<128x128xbf16>
    %cst_93 = arith.constant dense<0.000000e+00> : vector<8x128xf32>
    %263 = tpu.matmul %261, %262, %cst_93 {dimension_numbers = #tpu.dot_dimension_numbers<[1], [0], [0], [1], [0, 0, 1, 1], [], []>} : vector<8x128xbf16>, vector<128x128xbf16>, vector<8x128xf32> -> vector<8x128xf32>
    %c0_94 = arith.constant 0 : index
    %c0_95 = arith.constant 0 : index
    %264 = vector.load %arg10[%c0_94, %c0_95] : memref<1x128xf32, #tpu.memory_space<vmem>>, vector<1x128xf32>
    %265 = vector.broadcast %264 : vector<1x128xf32> to vector<8x128xf32>
    %266 = arith.addf %263, %265 : vector<8x128xf32>
    %267 = arith.index_cast %c2_i32 : i32 to index
    %c0_96 = arith.constant 0 : index
    %c0_97 = arith.constant 0 : index
    %268 = vector.load %arg11[%267, %c0_96, %c0_97] : memref<5x8x128xf32, #tpu.memory_space<vmem>>, vector<1x8x128xf32>
    %269 = vector.shape_cast %268 : vector<1x8x128xf32> to vector<8x128xf32>
    %270 = vector.shape_cast %266 : vector<8x128xf32> to vector<1x8x128xf32>
    tpu.vector_store %arg11[%267, %c0_96, %c0_97], %270 {strides = array<i32>} : memref<5x8x128xf32, #tpu.memory_space<vmem>>, vector<1x8x128xf32>,
    %cst_98 = arith.constant dense<0xFF800000> : vector<8xf32>
    %271 = vector.multi_reduction <maximumf>, %266, %cst_98 [1] : vector<8x128xf32> to vector<8xf32>
    %272 = vector.shape_cast %271 : vector<8xf32> to vector<8x1xf32>
    %273 = vector.broadcast %272 : vector<8x1xf32> to vector<8x128xf32>
    %274 = arith.cmpf oeq, %266, %273 : vector<8x128xf32>
    %c128_i32_99 = arith.constant 128 : i32
    %275 = vector.broadcast %c128_i32_99 : i32 to vector<8x128xi32>
    %276 = arith.select %274, %3, %275 : vector<8x128xi1>, vector<8x128xi32>
    %cst_100 = arith.constant dense<2147483647> : vector<8xi32>
    %277 = vector.multi_reduction <minsi>, %276, %cst_100 [1] : vector<8x128xi32> to vector<8xi32>
    %278 = vector.shape_cast %277 : vector<8xi32> to vector<8x1xi32>
    %c1_i32_101 = arith.constant 1 : i32
    %279 = arith.addi %194, %c1_i32_101 : i32
    %280 = arith.index_cast %279 : i32 to index
    %c0_102 = arith.constant 0 : index
    %c0_103 = arith.constant 0 : index
    %281 = vector.load %arg2[%280, %c0_102, %c0_103] : memref<6x8x1xi32, #tpu.memory_space<vmem>>, vector<1x8x1xi32>
    %282 = vector.shape_cast %281 : vector<1x8x1xi32> to vector<8x1xi32>
    %283 = arith.index_cast %194 : i32 to index
    %284 = memref.load %arg1[%283] : memref<5xi32, #tpu.memory_space<smem>>
    %c0_i32_104 = arith.constant 0 : i32
    %285 = arith.cmpi sgt, %284, %c0_i32_104 : i32
    %286 = arith.select %285, %282, %278 : vector<8x1xi32>
    %c3_i32 = arith.constant 3 : i32
    %c5_i32_105 = arith.constant 5 : i32
    %287 = arith.muli %arg0, %c5_i32_105 : i32
    %288 = arith.addi %287, %c3_i32 : i32
    %289 = vector.broadcast %286 : vector<8x1xi32> to vector<8x128xi32>
    %290 = arith.cmpi eq, %3, %289 : vector<8x128xi32>
    %291 = arith.extui %290 : vector<8x128xi1> to vector<8x128xi32>
    %292 = arith.sitofp %291 : vector<8x128xi32> to vector<8x128xf32>
    %293 = arith.truncf %292 : vector<8x128xf32> to vector<8x128xbf16>
    %c0_106 = arith.constant 0 : index
    %c0_107 = arith.constant 0 : index
    %294 = vector.load %arg3[%c0_106, %c0_107] : memref<128x512xbf16, #tpu.memory_space<vmem>>, vector<128x512xbf16>
    %cst_108 = arith.constant dense<0.000000e+00> : vector<8x512xf32>
    %295 = tpu.matmul %293, %294, %cst_108 {dimension_numbers = #tpu.dot_dimension_numbers<[1], [0], [0], [1], [0, 0, 1, 1], [], []>} : vector<8x128xbf16>, vector<128x512xbf16>, vector<8x512xf32> -> vector<8x512xf32>
    %c0_109 = arith.constant 0 : index
    %c0_110 = arith.constant 0 : index
    %296 = vector.load %arg4[%c0_109, %c0_110] : memref<8x512xf32, #tpu.memory_space<vmem>>, vector<8x512xf32>
    %297 = arith.addf %295, %296 : vector<8x512xf32>
    %c0_111 = arith.constant 0 : index
    %c0_112 = arith.constant 0 : index
    %298 = vector.load %arg6[%c0_111, %c0_112] : memref<8x128xf32, #tpu.memory_space<vmem>>, vector<8x128xf32>
    %299 = vector.extract_strided_slice %297 {offsets = [0, 0], sizes = [8, 128], strides = [1, 1]} : vector<8x512xf32> to vector<8x128xf32>
    %300 = arith.negf %299 : vector<8x128xf32>
    %301 = math.exp %300 : vector<8x128xf32>
    %cst_113 = arith.constant 1.000000e+00 : f32
    %302 = vector.broadcast %cst_113 : f32 to vector<8x128xf32>
    %303 = arith.addf %302, %301 : vector<8x128xf32>
    %304 = arith.divf %302, %303 : vector<8x128xf32>
    %305 = vector.extract_strided_slice %297 {offsets = [0, 128], sizes = [8, 128], strides = [1, 1]} : vector<8x512xf32> to vector<8x128xf32>
    %306 = arith.negf %305 : vector<8x128xf32>
    %307 = math.exp %306 : vector<8x128xf32>
    %cst_114 = arith.constant 1.000000e+00 : f32
    %308 = vector.broadcast %cst_114 : f32 to vector<8x128xf32>
    %309 = arith.addf %308, %307 : vector<8x128xf32>
    %310 = arith.divf %308, %309 : vector<8x128xf32>
    %311 = vector.extract_strided_slice %297 {offsets = [0, 256], sizes = [8, 128], strides = [1, 1]} : vector<8x512xf32> to vector<8x128xf32>
    %312 = math.tanh %311 : vector<8x128xf32>
    %313 = vector.extract_strided_slice %297 {offsets = [0, 384], sizes = [8, 128], strides = [1, 1]} : vector<8x512xf32> to vector<8x128xf32>
    %314 = arith.negf %313 : vector<8x128xf32>
    %315 = math.exp %314 : vector<8x128xf32>
    %cst_115 = arith.constant 1.000000e+00 : f32
    %316 = vector.broadcast %cst_115 : f32 to vector<8x128xf32>
    %317 = arith.addf %316, %315 : vector<8x128xf32>
    %318 = arith.divf %316, %317 : vector<8x128xf32>
    %319 = arith.mulf %310, %298 : vector<8x128xf32>
    %320 = arith.mulf %304, %312 : vector<8x128xf32>
    %321 = arith.addf %319, %320 : vector<8x128xf32>
    %322 = math.tanh %321 : vector<8x128xf32>
    %323 = arith.mulf %318, %322 : vector<8x128xf32>
    %324 = arith.truncf %323 : vector<8x128xf32> to vector<8x128xbf16>
    %c0_116 = arith.constant 0 : index
    %c0_117 = arith.constant 0 : index
    %325 = vector.load %arg8[%c0_116, %c0_117] : memref<128x512xbf16, #tpu.memory_space<vmem>>, vector<128x512xbf16>
    %cst_118 = arith.constant dense<0.000000e+00> : vector<8x512xf32>
    %326 = tpu.matmul %324, %325, %cst_118 {dimension_numbers = #tpu.dot_dimension_numbers<[1], [0], [0], [1], [0, 0, 1, 1], [], []>} : vector<8x128xbf16>, vector<128x512xbf16>, vector<8x512xf32> -> vector<8x512xf32>
    %c0_119 = arith.constant 0 : index
    %c0_120 = arith.constant 0 : index
    %327 = vector.load %arg5[%c0_119, %c0_120] : memref<8x512xf32, #tpu.memory_space<vmem>>, vector<8x512xf32>
    %328 = arith.addf %326, %327 : vector<8x512xf32>
    %c0_121 = arith.constant 0 : index
    %c0_122 = arith.constant 0 : index
    %329 = vector.load %arg7[%c0_121, %c0_122] : memref<8x128xf32, #tpu.memory_space<vmem>>, vector<8x128xf32>
    %330 = vector.extract_strided_slice %328 {offsets = [0, 0], sizes = [8, 128], strides = [1, 1]} : vector<8x512xf32> to vector<8x128xf32>
    %331 = arith.negf %330 : vector<8x128xf32>
    %332 = math.exp %331 : vector<8x128xf32>
    %cst_123 = arith.constant 1.000000e+00 : f32
    %333 = vector.broadcast %cst_123 : f32 to vector<8x128xf32>
    %334 = arith.addf %333, %332 : vector<8x128xf32>
    %335 = arith.divf %333, %334 : vector<8x128xf32>
    %336 = vector.extract_strided_slice %328 {offsets = [0, 128], sizes = [8, 128], strides = [1, 1]} : vector<8x512xf32> to vector<8x128xf32>
    %337 = arith.negf %336 : vector<8x128xf32>
    %338 = math.exp %337 : vector<8x128xf32>
    %cst_124 = arith.constant 1.000000e+00 : f32
    %339 = vector.broadcast %cst_124 : f32 to vector<8x128xf32>
    %340 = arith.addf %339, %338 : vector<8x128xf32>
    %341 = arith.divf %339, %340 : vector<8x128xf32>
    %342 = vector.extract_strided_slice %328 {offsets = [0, 256], sizes = [8, 128], strides = [1, 1]} : vector<8x512xf32> to vector<8x128xf32>
    %343 = math.tanh %342 : vector<8x128xf32>
    %344 = vector.extract_strided_slice %328 {offsets = [0, 384], sizes = [8, 128], strides = [1, 1]} : vector<8x512xf32> to vector<8x128xf32>
    %345 = arith.negf %344 : vector<8x128xf32>
    %346 = math.exp %345 : vector<8x128xf32>
    %cst_125 = arith.constant 1.000000e+00 : f32
    %347 = vector.broadcast %cst_125 : f32 to vector<8x128xf32>
    %348 = arith.addf %347, %346 : vector<8x128xf32>
    %349 = arith.divf %347, %348 : vector<8x128xf32>
    %350 = arith.mulf %341, %329 : vector<8x128xf32>
    %351 = arith.mulf %335, %343 : vector<8x128xf32>
    %352 = arith.addf %350, %351 : vector<8x128xf32>
    %353 = math.tanh %352 : vector<8x128xf32>
    %354 = arith.mulf %349, %353 : vector<8x128xf32>
    %355 = arith.truncf %354 : vector<8x128xf32> to vector<8x128xbf16>
    %c0_126 = arith.constant 0 : index
    %c0_127 = arith.constant 0 : index
    %356 = vector.load %arg9[%c0_126, %c0_127] : memref<128x128xbf16, #tpu.memory_space<vmem>>, vector<128x128xbf16>
    %cst_128 = arith.constant dense<0.000000e+00> : vector<8x128xf32>
    %357 = tpu.matmul %355, %356, %cst_128 {dimension_numbers = #tpu.dot_dimension_numbers<[1], [0], [0], [1], [0, 0, 1, 1], [], []>} : vector<8x128xbf16>, vector<128x128xbf16>, vector<8x128xf32> -> vector<8x128xf32>
    %c0_129 = arith.constant 0 : index
    %c0_130 = arith.constant 0 : index
    %358 = vector.load %arg10[%c0_129, %c0_130] : memref<1x128xf32, #tpu.memory_space<vmem>>, vector<1x128xf32>
    %359 = vector.broadcast %358 : vector<1x128xf32> to vector<8x128xf32>
    %360 = arith.addf %357, %359 : vector<8x128xf32>
    %361 = arith.index_cast %c3_i32 : i32 to index
    %c0_131 = arith.constant 0 : index
    %c0_132 = arith.constant 0 : index
    %362 = vector.load %arg11[%361, %c0_131, %c0_132] : memref<5x8x128xf32, #tpu.memory_space<vmem>>, vector<1x8x128xf32>
    %363 = vector.shape_cast %362 : vector<1x8x128xf32> to vector<8x128xf32>
    %364 = vector.shape_cast %360 : vector<8x128xf32> to vector<1x8x128xf32>
    tpu.vector_store %arg11[%361, %c0_131, %c0_132], %364 {strides = array<i32>} : memref<5x8x128xf32, #tpu.memory_space<vmem>>, vector<1x8x128xf32>,
    %cst_133 = arith.constant dense<0xFF800000> : vector<8xf32>
    %365 = vector.multi_reduction <maximumf>, %360, %cst_133 [1] : vector<8x128xf32> to vector<8xf32>
    %366 = vector.shape_cast %365 : vector<8xf32> to vector<8x1xf32>
    %367 = vector.broadcast %366 : vector<8x1xf32> to vector<8x128xf32>
    %368 = arith.cmpf oeq, %360, %367 : vector<8x128xf32>
    %c128_i32_134 = arith.constant 128 : i32
    %369 = vector.broadcast %c128_i32_134 : i32 to vector<8x128xi32>
    %370 = arith.select %368, %3, %369 : vector<8x128xi1>, vector<8x128xi32>
    %cst_135 = arith.constant dense<2147483647> : vector<8xi32>
    %371 = vector.multi_reduction <minsi>, %370, %cst_135 [1] : vector<8x128xi32> to vector<8xi32>
    %372 = vector.shape_cast %371 : vector<8xi32> to vector<8x1xi32>
    %c1_i32_136 = arith.constant 1 : i32
    %373 = arith.addi %288, %c1_i32_136 : i32
    %374 = arith.index_cast %373 : i32 to index
    %c0_137 = arith.constant 0 : index
    %c0_138 = arith.constant 0 : index
    %375 = vector.load %arg2[%374, %c0_137, %c0_138] : memref<6x8x1xi32, #tpu.memory_space<vmem>>, vector<1x8x1xi32>
    %376 = vector.shape_cast %375 : vector<1x8x1xi32> to vector<8x1xi32>
    %377 = arith.index_cast %288 : i32 to index
    %378 = memref.load %arg1[%377] : memref<5xi32, #tpu.memory_space<smem>>
    %c0_i32_139 = arith.constant 0 : i32
    %379 = arith.cmpi sgt, %378, %c0_i32_139 : i32
    %380 = arith.select %379, %376, %372 : vector<8x1xi32>
    %c4_i32 = arith.constant 4 : i32
    %c5_i32_140 = arith.constant 5 : i32
    %381 = arith.muli %arg0, %c5_i32_140 : i32
    %382 = arith.addi %381, %c4_i32 : i32
    %383 = vector.broadcast %380 : vector<8x1xi32> to vector<8x128xi32>
    %384 = arith.cmpi eq, %3, %383 : vector<8x128xi32>
    %385 = arith.extui %384 : vector<8x128xi1> to vector<8x128xi32>
    %386 = arith.sitofp %385 : vector<8x128xi32> to vector<8x128xf32>
    %387 = arith.truncf %386 : vector<8x128xf32> to vector<8x128xbf16>
    %c0_141 = arith.constant 0 : index
    %c0_142 = arith.constant 0 : index
    %388 = vector.load %arg3[%c0_141, %c0_142] : memref<128x512xbf16, #tpu.memory_space<vmem>>, vector<128x512xbf16>
    %cst_143 = arith.constant dense<0.000000e+00> : vector<8x512xf32>
    %389 = tpu.matmul %387, %388, %cst_143 {dimension_numbers = #tpu.dot_dimension_numbers<[1], [0], [0], [1], [0, 0, 1, 1], [], []>} : vector<8x128xbf16>, vector<128x512xbf16>, vector<8x512xf32> -> vector<8x512xf32>
    %c0_144 = arith.constant 0 : index
    %c0_145 = arith.constant 0 : index
    %390 = vector.load %arg4[%c0_144, %c0_145] : memref<8x512xf32, #tpu.memory_space<vmem>>, vector<8x512xf32>
    %391 = arith.addf %389, %390 : vector<8x512xf32>
    %c0_146 = arith.constant 0 : index
    %c0_147 = arith.constant 0 : index
    %392 = vector.load %arg6[%c0_146, %c0_147] : memref<8x128xf32, #tpu.memory_space<vmem>>, vector<8x128xf32>
    %393 = vector.extract_strided_slice %391 {offsets = [0, 0], sizes = [8, 128], strides = [1, 1]} : vector<8x512xf32> to vector<8x128xf32>
    %394 = arith.negf %393 : vector<8x128xf32>
    %395 = math.exp %394 : vector<8x128xf32>
    %cst_148 = arith.constant 1.000000e+00 : f32
    %396 = vector.broadcast %cst_148 : f32 to vector<8x128xf32>
    %397 = arith.addf %396, %395 : vector<8x128xf32>
    %398 = arith.divf %396, %397 : vector<8x128xf32>
    %399 = vector.extract_strided_slice %391 {offsets = [0, 128], sizes = [8, 128], strides = [1, 1]} : vector<8x512xf32> to vector<8x128xf32>
    %400 = arith.negf %399 : vector<8x128xf32>
    %401 = math.exp %400 : vector<8x128xf32>
    %cst_149 = arith.constant 1.000000e+00 : f32
    %402 = vector.broadcast %cst_149 : f32 to vector<8x128xf32>
    %403 = arith.addf %402, %401 : vector<8x128xf32>
    %404 = arith.divf %402, %403 : vector<8x128xf32>
    %405 = vector.extract_strided_slice %391 {offsets = [0, 256], sizes = [8, 128], strides = [1, 1]} : vector<8x512xf32> to vector<8x128xf32>
    %406 = math.tanh %405 : vector<8x128xf32>
    %407 = vector.extract_strided_slice %391 {offsets = [0, 384], sizes = [8, 128], strides = [1, 1]} : vector<8x512xf32> to vector<8x128xf32>
    %408 = arith.negf %407 : vector<8x128xf32>
    %409 = math.exp %408 : vector<8x128xf32>
    %cst_150 = arith.constant 1.000000e+00 : f32
    %410 = vector.broadcast %cst_150 : f32 to vector<8x128xf32>
    %411 = arith.addf %410, %409 : vector<8x128xf32>
    %412 = arith.divf %410, %411 : vector<8x128xf32>
    %413 = arith.mulf %404, %392 : vector<8x128xf32>
    %414 = arith.mulf %398, %406 : vector<8x128xf32>
    %415 = arith.addf %413, %414 : vector<8x128xf32>
    %416 = math.tanh %415 : vector<8x128xf32>
    %417 = arith.mulf %412, %416 : vector<8x128xf32>
    %418 = arith.truncf %417 : vector<8x128xf32> to vector<8x128xbf16>
    %c0_151 = arith.constant 0 : index
    %c0_152 = arith.constant 0 : index
    %419 = vector.load %arg8[%c0_151, %c0_152] : memref<128x512xbf16, #tpu.memory_space<vmem>>, vector<128x512xbf16>
    %cst_153 = arith.constant dense<0.000000e+00> : vector<8x512xf32>
    %420 = tpu.matmul %418, %419, %cst_153 {dimension_numbers = #tpu.dot_dimension_numbers<[1], [0], [0], [1], [0, 0, 1, 1], [], []>} : vector<8x128xbf16>, vector<128x512xbf16>, vector<8x512xf32> -> vector<8x512xf32>
    %c0_154 = arith.constant 0 : index
    %c0_155 = arith.constant 0 : index
    %421 = vector.load %arg5[%c0_154, %c0_155] : memref<8x512xf32, #tpu.memory_space<vmem>>, vector<8x512xf32>
    %422 = arith.addf %420, %421 : vector<8x512xf32>
    %c0_156 = arith.constant 0 : index
    %c0_157 = arith.constant 0 : index
    %423 = vector.load %arg7[%c0_156, %c0_157] : memref<8x128xf32, #tpu.memory_space<vmem>>, vector<8x128xf32>
    %424 = vector.extract_strided_slice %422 {offsets = [0, 0], sizes = [8, 128], strides = [1, 1]} : vector<8x512xf32> to vector<8x128xf32>
    %425 = arith.negf %424 : vector<8x128xf32>
    %426 = math.exp %425 : vector<8x128xf32>
    %cst_158 = arith.constant 1.000000e+00 : f32
    %427 = vector.broadcast %cst_158 : f32 to vector<8x128xf32>
    %428 = arith.addf %427, %426 : vector<8x128xf32>
    %429 = arith.divf %427, %428 : vector<8x128xf32>
    %430 = vector.extract_strided_slice %422 {offsets = [0, 128], sizes = [8, 128], strides = [1, 1]} : vector<8x512xf32> to vector<8x128xf32>
    %431 = arith.negf %430 : vector<8x128xf32>
    %432 = math.exp %431 : vector<8x128xf32>
    %cst_159 = arith.constant 1.000000e+00 : f32
    %433 = vector.broadcast %cst_159 : f32 to vector<8x128xf32>
    %434 = arith.addf %433, %432 : vector<8x128xf32>
    %435 = arith.divf %433, %434 : vector<8x128xf32>
    %436 = vector.extract_strided_slice %422 {offsets = [0, 256], sizes = [8, 128], strides = [1, 1]} : vector<8x512xf32> to vector<8x128xf32>
    %437 = math.tanh %436 : vector<8x128xf32>
    %438 = vector.extract_strided_slice %422 {offsets = [0, 384], sizes = [8, 128], strides = [1, 1]} : vector<8x512xf32> to vector<8x128xf32>
    %439 = arith.negf %438 : vector<8x128xf32>
    %440 = math.exp %439 : vector<8x128xf32>
    %cst_160 = arith.constant 1.000000e+00 : f32
    %441 = vector.broadcast %cst_160 : f32 to vector<8x128xf32>
    %442 = arith.addf %441, %440 : vector<8x128xf32>
    %443 = arith.divf %441, %442 : vector<8x128xf32>
    %444 = arith.mulf %435, %423 : vector<8x128xf32>
    %445 = arith.mulf %429, %437 : vector<8x128xf32>
    %446 = arith.addf %444, %445 : vector<8x128xf32>
    %447 = math.tanh %446 : vector<8x128xf32>
    %448 = arith.mulf %443, %447 : vector<8x128xf32>
    %449 = arith.truncf %448 : vector<8x128xf32> to vector<8x128xbf16>
    %c0_161 = arith.constant 0 : index
    %c0_162 = arith.constant 0 : index
    %450 = vector.load %arg9[%c0_161, %c0_162] : memref<128x128xbf16, #tpu.memory_space<vmem>>, vector<128x128xbf16>
    %cst_163 = arith.constant dense<0.000000e+00> : vector<8x128xf32>
    %451 = tpu.matmul %449, %450, %cst_163 {dimension_numbers = #tpu.dot_dimension_numbers<[1], [0], [0], [1], [0, 0, 1, 1], [], []>} : vector<8x128xbf16>, vector<128x128xbf16>, vector<8x128xf32> -> vector<8x128xf32>
    %c0_164 = arith.constant 0 : index
    %c0_165 = arith.constant 0 : index
    %452 = vector.load %arg10[%c0_164, %c0_165] : memref<1x128xf32, #tpu.memory_space<vmem>>, vector<1x128xf32>
    %453 = vector.broadcast %452 : vector<1x128xf32> to vector<8x128xf32>
    %454 = arith.addf %451, %453 : vector<8x128xf32>
    %455 = arith.index_cast %c4_i32 : i32 to index
    %c0_166 = arith.constant 0 : index
    %c0_167 = arith.constant 0 : index
    %456 = vector.load %arg11[%455, %c0_166, %c0_167] : memref<5x8x128xf32, #tpu.memory_space<vmem>>, vector<1x8x128xf32>
    %457 = vector.shape_cast %456 : vector<1x8x128xf32> to vector<8x128xf32>
    %458 = vector.shape_cast %454 : vector<8x128xf32> to vector<1x8x128xf32>
    tpu.vector_store %arg11[%455, %c0_166, %c0_167], %458 {strides = array<i32>} : memref<5x8x128xf32, #tpu.memory_space<vmem>>, vector<1x8x128xf32>,
    %cst_168 = arith.constant dense<0xFF800000> : vector<8xf32>
    %459 = vector.multi_reduction <maximumf>, %454, %cst_168 [1] : vector<8x128xf32> to vector<8xf32>
    %460 = vector.shape_cast %459 : vector<8xf32> to vector<8x1xf32>
    %461 = vector.broadcast %460 : vector<8x1xf32> to vector<8x128xf32>
    %462 = arith.cmpf oeq, %454, %461 : vector<8x128xf32>
    %c128_i32_169 = arith.constant 128 : i32
    %463 = vector.broadcast %c128_i32_169 : i32 to vector<8x128xi32>
    %464 = arith.select %462, %3, %463 : vector<8x128xi1>, vector<8x128xi32>
    %cst_170 = arith.constant dense<2147483647> : vector<8xi32>
    %465 = vector.multi_reduction <minsi>, %464, %cst_170 [1] : vector<8x128xi32> to vector<8xi32>
    %466 = vector.shape_cast %465 : vector<8xi32> to vector<8x1xi32>
    %c1_i32_171 = arith.constant 1 : i32
    %467 = arith.addi %382, %c1_i32_171 : i32
    %468 = arith.index_cast %467 : i32 to index
    %c0_172 = arith.constant 0 : index
    %c0_173 = arith.constant 0 : index
    %469 = vector.load %arg2[%468, %c0_172, %c0_173] : memref<6x8x1xi32, #tpu.memory_space<vmem>>, vector<1x8x1xi32>
    %470 = vector.shape_cast %469 : vector<1x8x1xi32> to vector<8x1xi32>
    %471 = arith.index_cast %382 : i32 to index
    %472 = memref.load %arg1[%471] : memref<5xi32, #tpu.memory_space<smem>>
    %c0_i32_174 = arith.constant 0 : i32
    %473 = arith.cmpi sgt, %472, %c0_i32_174 : i32
    %474 = arith.select %473, %470, %466 : vector<8x1xi32>
    %c5_i32_175 = arith.constant 5 : i32
    %c0_176 = arith.constant 0 : index
    %c0_177 = arith.constant 0 : index
    %475 = vector.load %arg12[%c0_176, %c0_177] : memref<8x1xi32, #tpu.memory_space<vmem>>, vector<8x1xi32>
    tpu.vector_store %arg12[%c0_176, %c0_177], %474 {strides = array<i32>} : memref<8x1xi32, #tpu.memory_space<vmem>>, vector<8x1xi32>,
    return
  }
  func.func @transform_0(%arg0: i32, %arg1: memref<5xi32, #tpu.memory_space<smem>>) -> (i32, i32, i32) {
    %c0_i32 = arith.constant 0 : i32
    %c0_i32_0 = arith.constant 0 : i32
    %c0_i32_1 = arith.constant 0 : i32
    %c0_i32_2 = arith.constant 0 : i32
    return %c0_i32, %c0_i32_0, %c0_i32_1 : i32, i32, i32
  }
  func.func @transform_1(%arg0: i32, %arg1: memref<5xi32, #tpu.memory_space<smem>>) -> (i32, i32) {
    %c0_i32 = arith.constant 0 : i32
    %c0_i32_0 = arith.constant 0 : i32
    %c0_i32_1 = arith.constant 0 : i32
    return %c0_i32, %c0_i32_0 : i32, i32
  }
  func.func @transform_2(%arg0: i32, %arg1: memref<5xi32, #tpu.memory_space<smem>>) -> (i32, i32) {
    %c0_i32 = arith.constant 0 : i32
    %c0_i32_0 = arith.constant 0 : i32
    %c0_i32_1 = arith.constant 0 : i32
    return %c0_i32, %c0_i32_0 : i32, i32
  }
  func.func @transform_3(%arg0: i32, %arg1: memref<5xi32, #tpu.memory_space<smem>>) -> (i32, i32) {
    %c0_i32 = arith.constant 0 : i32
    %c0_i32_0 = arith.constant 0 : i32
    %c0_i32_1 = arith.constant 0 : i32
    return %c0_i32, %c0_i32_0 : i32, i32
  }
  func.func @transform_4(%arg0: i32, %arg1: memref<5xi32, #tpu.memory_space<smem>>) -> (i32, i32) {
    %c0_i32 = arith.constant 0 : i32
    %c0_i32_0 = arith.constant 0 : i32
    %c0_i32_1 = arith.constant 0 : i32
    return %c0_i32, %c0_i32_0 : i32, i32
  }
  func.func @transform_5(%arg0: i32, %arg1: memref<5xi32, #tpu.memory_space<smem>>) -> (i32, i32) {
    %c0_i32 = arith.constant 0 : i32
    %c0_i32_0 = arith.constant 0 : i32
    %c0_i32_1 = arith.constant 0 : i32
    return %c0_i32, %c0_i32_0 : i32, i32
  }
  func.func @transform_6(%arg0: i32, %arg1: memref<5xi32, #tpu.memory_space<smem>>) -> (i32, i32) {
    %c0_i32 = arith.constant 0 : i32
    %c0_i32_0 = arith.constant 0 : i32
    %c0_i32_1 = arith.constant 0 : i32
    return %c0_i32, %c0_i32_0 : i32, i32
  }
  func.func @transform_7(%arg0: i32, %arg1: memref<5xi32, #tpu.memory_space<smem>>) -> (i32, i32) {
    %c0_i32 = arith.constant 0 : i32
    %c0_i32_0 = arith.constant 0 : i32
    %c0_i32_1 = arith.constant 0 : i32
    return %c0_i32, %c0_i32_0 : i32, i32
  }
  func.func @transform_8(%arg0: i32, %arg1: memref<5xi32, #tpu.memory_space<smem>>) -> (i32, i32) {
    %c0_i32 = arith.constant 0 : i32
    %c0_i32_0 = arith.constant 0 : i32
    %c0_i32_1 = arith.constant 0 : i32
    return %c0_i32, %c0_i32_0 : i32, i32
  }
  func.func @transform_9(%arg0: i32, %arg1: memref<5xi32, #tpu.memory_space<smem>>) -> (i32, i32, i32) {
    %c0_i32 = arith.constant 0 : i32
    %c0_i32_0 = arith.constant 0 : i32
    %c0_i32_1 = arith.constant 0 : i32
    return %arg0, %c0_i32, %c0_i32_0 : i32, i32, i32
  }
}

</mosaic_0001>

<llo_original>
// kernel: seq2seq_forward.3
$region0: #{seq2seq_forward.3}
  #allocation0 [shape = 'u32[]', space=smem, size = 0x4, offset = 0x4, fixed_abs, tag = 'smem constant byte address 0x4 - core index']
  #allocation1 [shape = 'u32[72,128]{1,0:T(1,128)}', space=vmem, size = 0x9000, scoped, tag = 'internal scratch']
  #allocation2 [shape = 's32[8,1]{1,0:T(8,128)}', space=vmem, size = 0x1000, scoped, tag = 'scratch operand']
  #allocation3 [shape = 's32[1]{0}', space=sflag, size = 0x4, scoped, tag = 'scoped memory for seq2seq_forward.3']
  #allocation4 [shape = 'u8[512]{0}', space=smem, size = 0x200, scoped, tag = 'prefetched SMEM operand 0']
  %s0 = inlined_call_operand.vmem [shape: s32[5], index: 0, kind: input, shape index: {}]
  %s1 = inlined_call_operand.vmem [shape: s32[6,8,1], index: 1, kind: input, shape index: {}]
  %s2 = inlined_call_operand.vmem [shape: bf16[128,512], index: 2, kind: input, shape index: {}]
  %s3 = inlined_call_operand.vmem [shape: f32[8,512], index: 3, kind: input, shape index: {}]
  %s4 = inlined_call_operand.vmem [shape: f32[8,512], index: 4, kind: input, shape index: {}]
  %s5 = inlined_call_operand.vmem [shape: f32[8,128], index: 5, kind: input, shape index: {}]
  %s6 = inlined_call_operand.vmem [shape: f32[8,128], index: 6, kind: input, shape index: {}]
  %s7 = inlined_call_operand.vmem [shape: bf16[128,512], index: 7, kind: input, shape index: {}]
  %s8 = inlined_call_operand.vmem [shape: bf16[128,128], index: 8, kind: input, shape index: {}]
  %s9 = inlined_call_operand.vmem [shape: f32[1,128], index: 9, kind: input, shape index: {}]
  %s10 = inlined_call_operand.vmem [shape: f32[5,8,128], index: 10, kind: output, shape index: {}]
  %s11 = sld [smem:[#allocation0]]
  $region50: #{seq2seq_forward.3} parent=0
    _
  %s13 = ssub.s32 1, %s11
  %s14 = scalar_select 0, %s13, %s11
  %s16 = sshll.u32 %s0, 4
  %s17 = int_to_ptr.vmem [resolvable:$true] %s16
  %19 = dma.vmem_to_smem %s17, 16, [#allocation4], [#allocation3]
  %21 = dma.done [#allocation3], 16
  %22 = sfence
  // Predicated region
  $region2: #{seq2seq_forward.3} parent=0 // pred_check
    _
  $region3: #{seq2seq_forward.3} parent=0 // pred_check_branch
    %24 = sbr.rel (0) target = $region5
  $region4: #{seq2seq_forward.3} parent=0 // pred_region
    _
  $region5: #{seq2seq_forward.3} parent=0 // pred_fallthru
    _
  // Predicated region
  $region6: #{seq2seq_forward.3} parent=0 // pred_check
    _
  $region7: #{seq2seq_forward.3} parent=0 // pred_check_branch
    %26 = sbr.rel (0) target = $region9
  $region8: #{seq2seq_forward.3} parent=0 // pred_region
    _
  $region9: #{seq2seq_forward.3} parent=0 // pred_fallthru
    _
  // Predicated region
  $region10: #{seq2seq_forward.3} parent=0 // pred_check
    _
  $region11: #{seq2seq_forward.3} parent=0 // pred_check_branch
    %28 = sbr.rel (0) target = $region13
  $region12: #{seq2seq_forward.3} parent=0 // pred_region
    _
  $region13: #{seq2seq_forward.3} parent=0 // pred_fallthru
    _
  // Predicated region
  $region14: #{seq2seq_forward.3} parent=0 // pred_check
    _
  $region15: #{seq2seq_forward.3} parent=0 // pred_check_branch
    %30 = sbr.rel (0) target = $region17
  $region16: #{seq2seq_forward.3} parent=0 // pred_region
    _
  $region17: #{seq2seq_forward.3} parent=0 // pred_fallthru
    _
  // Predicated region
  $region18: #{seq2seq_forward.3} parent=0 // pred_check
    _
  $region19: #{seq2seq_forward.3} parent=0 // pred_check_branch
    %32 = sbr.rel (0) target = $region21
  $region20: #{seq2seq_forward.3} parent=0 // pred_region
    _
  $region21: #{seq2seq_forward.3} parent=0 // pred_fallthru
    _
  // Predicated region
  $region22: #{seq2seq_forward.3} parent=0 // pred_check
    _
  $region23: #{seq2seq_forward.3} parent=0 // pred_check_branch
    %34 = sbr.rel (0) target = $region25
  $region24: #{seq2seq_forward.3} parent=0 // pred_region
    _
  $region25: #{seq2seq_forward.3} parent=0 // pred_fallthru
    _
  // Predicated region
  $region26: #{seq2seq_forward.3} parent=0 // pred_check
    _
  $region27: #{seq2seq_forward.3} parent=0 // pred_check_branch
    %36 = sbr.rel (0) target = $region29
  $region28: #{seq2seq_forward.3} parent=0 // pred_region
    _
  $region29: #{seq2seq_forward.3} parent=0 // pred_fallthru
    _
  // Predicated region
  $region30: #{seq2seq_forward.3} parent=0 // pred_check
    _
  $region31: #{seq2seq_forward.3} parent=0 // pred_check_branch
    %38 = sbr.rel (0) target = $region33
  $region32: #{seq2seq_forward.3} parent=0 // pred_region
    _
  $region33: #{seq2seq_forward.3} parent=0 // pred_fallthru
    _
  // Predicated region
  $region34: #{seq2seq_forward.3} parent=0 // pred_check
    _
  $region35: #{seq2seq_forward.3} parent=0 // pred_check_branch
    %40 = sbr.rel (0) target = $region37
  $region36: #{seq2seq_forward.3} parent=0 // pred_region
    _
  $region37: #{seq2seq_forward.3} parent=0 // pred_fallthru
    _
  %p41 = scmp.eq.s32.totalorder 0, 0
  // Predicated region
  $region38: #{seq2seq_forward.3} parent=0 // pred_check
    %p42 = pneg %p41
  $region39: #{seq2seq_forward.3} parent=0 // pred_check_branch
    %44 = sbr.rel (%p42) target = $region41
  $region40: #{seq2seq_forward.3} parent=0 // pred_region
    %v45 = vld [vmem:[%s1] sm:$0xff]
    %vm46 = vcmask 7168
    %47 = vst.msk [vmem:[#allocation2] sm:$0xff] %vm46, %v45
  $region41: #{seq2seq_forward.3} parent=0 // pred_fallthru
    _
  %v48 = vlaneseq
  %v49 = vand.u32 %v48, 127
  %v50 = vld [vmem:[#allocation2] sm:$0xff]
  %s51 = smul.u32 0, 5
  %52 = vset.pattern.permute.xlu0 0
  %53 = vperm.xlu0 %52, %v50
  %v54 = vpop.permute.xlu0 %53
  %vm55 = vcmp.eq.s32.totalorder %v49, %v54
  %v56 = vsel %vm55, 1, 0
  %v57 = vcvt.s32.f32 %v56
  %v58 = vpack.c.bf16 %v57, %v57
  %v59 = vld [vmem:[%s2] sm:$0xff]
  %v60 = vld [vmem:[%s2 + $0x8] sm:$0xff]
  %v61 = vld [vmem:[%s2 + $0x10] sm:$0xff]
  %v62 = vld [vmem:[%s2 + $0x18] sm:$0xff]
  %v63 = vld [vmem:[%s2 + $0x20] sm:$0xff]
  %v64 = vld [vmem:[%s2 + $0x28] sm:$0xff]
  %v65 = vld [vmem:[%s2 + $0x30] sm:$0xff]
  %v66 = vld [vmem:[%s2 + $0x38] sm:$0xff]
  %v67 = vld [vmem:[%s2 + $0x40] sm:$0xff]
  %v68 = vld [vmem:[%s2 + $0x48] sm:$0xff]
  %v69 = vld [vmem:[%s2 + $0x50] sm:$0xff]
  %v70 = vld [vmem:[%s2 + $0x58] sm:$0xff]
  %v71 = vld [vmem:[%s2 + $0x60] sm:$0xff]
  %v72 = vld [vmem:[%s2 + $0x68] sm:$0xff]
  %v73 = vld [vmem:[%s2 + $0x70] sm:$0xff]
  %v74 = vld [vmem:[%s2 + $0x78] sm:$0xff]
  %v75 = vld [vmem:[%s2 + $0x80] sm:$0xff]
  %v76 = vld [vmem:[%s2 + $0x88] sm:$0xff]
  %v77 = vld [vmem:[%s2 + $0x90] sm:$0xff]
  %v78 = vld [vmem:[%s2 + $0x98] sm:$0xff]
  %v79 = vld [vmem:[%s2 + $0xa0] sm:$0xff]
  %v80 = vld [vmem:[%s2 + $0xa8] sm:$0xff]
  %v81 = vld [vmem:[%s2 + $0xb0] sm:$0xff]
  %v82 = vld [vmem:[%s2 + $0xb8] sm:$0xff]
  %v83 = vld [vmem:[%s2 + $0xc0] sm:$0xff]
  %v84 = vld [vmem:[%s2 + $0xc8] sm:$0xff]
  %v85 = vld [vmem:[%s2 + $0xd0] sm:$0xff]
  %v86 = vld [vmem:[%s2 + $0xd8] sm:$0xff]
  %v87 = vld [vmem:[%s2 + $0xe0] sm:$0xff]
  %v88 = vld [vmem:[%s2 + $0xe8] sm:$0xff]
  %v89 = vld [vmem:[%s2 + $0xf0] sm:$0xff]
  %v90 = vld [vmem:[%s2 + $0xf8] sm:$0xff]
  %v91 = vld [vmem:[%s3] sm:$0xff]
  %v92 = vld [vmem:[%s3 + $0x8] sm:$0xff]
  %v93 = vld [vmem:[%s3 + $0x10] sm:$0xff]
  %v94 = vld [vmem:[%s3 + $0x18] sm:$0xff]
  %v127 = vunpack.c.l.b16 %v59
  %v128 = vunpack.c.h.b16 %v59
  %v129 = vunpack.c.l.b16 %v60
  %v130 = vunpack.c.h.b16 %v60
  %v131 = vunpack.c.l.b16 %v61
  %v132 = vunpack.c.h.b16 %v61
  %v133 = vunpack.c.l.b16 %v62
  %v134 = vunpack.c.h.b16 %v62
  %v135 = vunpack.c.l.b16 %v63
  %v136 = vunpack.c.h.b16 %v63
  %v137 = vunpack.c.l.b16 %v64
  %v138 = vunpack.c.h.b16 %v64
  %v139 = vunpack.c.l.b16 %v65
  %v140 = vunpack.c.h.b16 %v65
  %v141 = vunpack.c.l.b16 %v66
  %v142 = vunpack.c.h.b16 %v66
  %v143 = vunpack.c.l.b16 %v67
  %v144 = vunpack.c.h.b16 %v67
  %v145 = vunpack.c.l.b16 %v68
  %v146 = vunpack.c.h.b16 %v68
  %v147 = vunpack.c.l.b16 %v69
  %v148 = vunpack.c.h.b16 %v69
  %v149 = vunpack.c.l.b16 %v70
  %v150 = vunpack.c.h.b16 %v70
  %v151 = vunpack.c.l.b16 %v71
  %v152 = vunpack.c.h.b16 %v71
  %v153 = vunpack.c.l.b16 %v72
  %v154 = vunpack.c.h.b16 %v72
  %v155 = vunpack.c.l.b16 %v73
  %v156 = vunpack.c.h.b16 %v73
  %v157 = vunpack.c.l.b16 %v74
  %v158 = vunpack.c.h.b16 %v74
  %v159 = vunpack.c.l.b16 %v75
  %v160 = vunpack.c.h.b16 %v75
  %v161 = vunpack.c.l.b16 %v76
  %v162 = vunpack.c.h.b16 %v76
  %v163 = vunpack.c.l.b16 %v77
  %v164 = vunpack.c.h.b16 %v77
  %v165 = vunpack.c.l.b16 %v78
  %v166 = vunpack.c.h.b16 %v78
  %v167 = vunpack.c.l.b16 %v79
  %v168 = vunpack.c.h.b16 %v79
  %v169 = vunpack.c.l.b16 %v80
  %v170 = vunpack.c.h.b16 %v80
  %v171 = vunpack.c.l.b16 %v81
  %v172 = vunpack.c.h.b16 %v81
  %v173 = vunpack.c.l.b16 %v82
  %v174 = vunpack.c.h.b16 %v82
  %v175 = vunpack.c.l.b16 %v83
  %v176 = vunpack.c.h.b16 %v83
  %v177 = vunpack.c.l.b16 %v84
  %v178 = vunpack.c.h.b16 %v84
  %v179 = vunpack.c.l.b16 %v85
  %v180 = vunpack.c.h.b16 %v85
  %v181 = vunpack.c.l.b16 %v86
  %v182 = vunpack.c.h.b16 %v86
  %v183 = vunpack.c.l.b16 %v87
  %v184 = vunpack.c.h.b16 %v87
  %v185 = vunpack.c.l.b16 %v88
  %v186 = vunpack.c.h.b16 %v88
  %v187 = vunpack.c.l.b16 %v89
  %v188 = vunpack.c.h.b16 %v89
  %v189 = vunpack.c.l.b16 %v90
  %v190 = vunpack.c.h.b16 %v90
  %v191 = vpack.c.b16 %v131, %v127
  %v192 = vpack.c.b16 %v132, %v128
  %v193 = vpack.c.b16 %v133, %v129
  %v194 = vpack.c.b16 %v134, %v130
  %v195 = vpack.c.b16 %v139, %v135
  %v196 = vpack.c.b16 %v140, %v136
  %v197 = vpack.c.b16 %v141, %v137
  %v198 = vpack.c.b16 %v142, %v138
  %v199 = vpack.c.b16 %v147, %v143
  %v200 = vpack.c.b16 %v148, %v144
  %v201 = vpack.c.b16 %v149, %v145
  %v202 = vpack.c.b16 %v150, %v146
  %v203 = vpack.c.b16 %v155, %v151
  %v204 = vpack.c.b16 %v156, %v152
  %v205 = vpack.c.b16 %v157, %v153
  %v206 = vpack.c.b16 %v158, %v154
  %v207 = vpack.c.b16 %v163, %v159
  %v208 = vpack.c.b16 %v164, %v160
  %v209 = vpack.c.b16 %v165, %v161
  %v210 = vpack.c.b16 %v166, %v162
  %v211 = vpack.c.b16 %v171, %v167
  %v212 = vpack.c.b16 %v172, %v168
  %v213 = vpack.c.b16 %v173, %v169
  %v214 = vpack.c.b16 %v174, %v170
  %v215 = vpack.c.b16 %v179, %v175
  %v216 = vpack.c.b16 %v180, %v176
  %v217 = vpack.c.b16 %v181, %v177
  %v218 = vpack.c.b16 %v182, %v178
  %v219 = vpack.c.b16 %v187, %v183
  %v220 = vpack.c.b16 %v188, %v184
  %v221 = vpack.c.b16 %v189, %v185
  %v222 = vpack.c.b16 %v190, %v186
  %255 = vmatpush.bf16.msra.mxu0 %v219
  %256 = vmatpush.bf16.msra.mxu0 %v215
  %257 = vmatpush.bf16.msra.mxu0 %v211
  %258 = vmatpush.bf16.msra.mxu0 %v207
  %259 = vmatpush.bf16.msra.mxu0 %v203
  %260 = vmatpush.bf16.msra.mxu0 %v199
  %261 = vmatpush.bf16.msra.mxu0 %v195
  %262 = vmatpush.bf16.msra.mxu0 %v191
  %263 = vmatmul.bf16.gmra.mxu0 %v58
  %v264 = vpop.f32.mrf.mxu0
  %v265 = vadd.f32 %v91, %v264
  %v266 = vpop.f32.mrf.mxu0
  %267 = vdwg.mxu0
  %268 = vmatpush.bf16.msra.mxu0 %v220
  %269 = vmatpush.bf16.msra.mxu0 %v216
  %270 = vmatpush.bf16.msra.mxu0 %v212
  %271 = vmatpush.bf16.msra.mxu0 %v208
  %272 = vmatpush.bf16.msra.mxu0 %v204
  %273 = vmatpush.bf16.msra.mxu0 %v200
  %274 = vmatpush.bf16.msra.mxu0 %v196
  %275 = vmatpush.bf16.msra.mxu0 %v192
  %276 = vmatmul.bf16.gmra.mxu0 %v58
  %v277 = vpop.f32.mrf.mxu0
  %v278 = vadd.f32 %v92, %v277
  %v279 = vpop.f32.mrf.mxu0
  %280 = vdwg.mxu0
  %281 = vmatpush.bf16.msra.mxu0 %v221
  %282 = vmatpush.bf16.msra.mxu0 %v217
  %283 = vmatpush.bf16.msra.mxu0 %v213
  %284 = vmatpush.bf16.msra.mxu0 %v209
  %285 = vmatpush.bf16.msra.mxu0 %v205
  %286 = vmatpush.bf16.msra.mxu0 %v201
  %287 = vmatpush.bf16.msra.mxu0 %v197
  %288 = vmatpush.bf16.msra.mxu0 %v193
  %289 = vmatmul.bf16.gmra.mxu0 %v58
  %v290 = vpop.f32.mrf.mxu0
  %v291 = vadd.f32 %v93, %v290
  %v292 = vpop.f32.mrf.mxu0
  %293 = vdwg.mxu0
  %294 = vmatpush.bf16.msra.mxu0 %v222
  %295 = vmatpush.bf16.msra.mxu0 %v218
  %296 = vmatpush.bf16.msra.mxu0 %v214
  %297 = vmatpush.bf16.msra.mxu0 %v210
  %298 = vmatpush.bf16.msra.mxu0 %v206
  %299 = vmatpush.bf16.msra.mxu0 %v202
  %300 = vmatpush.bf16.msra.mxu0 %v198
  %301 = vmatpush.bf16.msra.mxu0 %v194
  %302 = vmatmul.bf16.gmra.mxu0 %v58
  %v303 = vpop.f32.mrf.mxu0
  %v304 = vadd.f32 %v94, %v303
  %v305 = vpop.f32.mrf.mxu0
  %306 = vdwg.mxu0
  %v307 = vld [vmem:[%s5] sm:$0xff]
  %v308 = vxor.u32 %v265, 2147483648
  %v309 = vmul.f32 %v308, 1.442695
  %v310 = vpow.pop %v309
  %v311 = vadd.f32 %v310, 1.0
  %v312 = vrcp.pop %v311
  %v313 = vmul.f32 %v311, %v312
  %v314 = vsub.f32 1.0, %v313
  %v315 = vmul.f32 %v312, %v314
  %v316 = vadd.f32 %v312, %v315
  %vm317 = vweird.f32 %v311
  %vm318 = vweird.f32 %v312
  %vm319 = vmor %vm317, %vm318
  %v320 = vsel %vm319, %v312, %v316
  %v321 = vand.u32 2147483647, %v311
  %vm322 = vcmp.eq.f32.partialorder %v321, 8.507059e+37
  %v323 = vand.u32 %v311, 2147483648
  %v324 = vor.u32 1.1754944e-38, %v323
  %v325 = vsel %vm322, %v324, %v320
  %v326 = vmul.f32 1.0, %v325
  %v327 = vxor.u32 %v278, 2147483648
  %v328 = vmul.f32 %v327, 1.442695
  %v329 = vpow.pop %v328
  %v330 = vadd.f32 %v329, 1.0
  %v331 = vrcp.pop %v330
  %v332 = vmul.f32 %v330, %v331
  %v333 = vsub.f32 1.0, %v332
  %v334 = vmul.f32 %v331, %v333
  %v335 = vadd.f32 %v331, %v334
  %vm336 = vweird.f32 %v330
  %vm337 = vweird.f32 %v331
  %vm338 = vmor %vm336, %vm337
  %v339 = vsel %vm338, %v331, %v335
  %v340 = vand.u32 2147483647, %v330
  %vm341 = vcmp.eq.f32.partialorder %v340, 8.507059e+37
  %v342 = vand.u32 %v330, 2147483648
  %v343 = vor.u32 1.1754944e-38, %v342
  %v344 = vsel %vm341, %v343, %v339
  %v345 = vmul.f32 1.0, %v344
  %v346 = vtanh.pop %v291
  %v347 = vxor.u32 %v304, 2147483648
  %v348 = vmul.f32 %v347, 1.442695
  %v349 = vpow.pop %v348
  %v350 = vadd.f32 %v349, 1.0
  %v351 = vrcp.pop %v350
  %v352 = vmul.f32 %v350, %v351
  %v353 = vsub.f32 1.0, %v352
  %v354 = vmul.f32 %v351, %v353
  %v355 = vadd.f32 %v351, %v354
  %vm356 = vweird.f32 %v350
  %vm357 = vweird.f32 %v351
  %vm358 = vmor %vm356, %vm357
  %v359 = vsel %vm358, %v351, %v355
  %v360 = vand.u32 2147483647, %v350
  %vm361 = vcmp.eq.f32.partialorder %v360, 8.507059e+37
  %v362 = vand.u32 %v350, 2147483648
  %v363 = vor.u32 1.1754944e-38, %v362
  %v364 = vsel %vm361, %v363, %v359
  %v365 = vmul.f32 1.0, %v364
  %v366 = vmul.f32 %v345, %v307
  %v367 = vmul.f32 %v326, %v346
  %v368 = vadd.f32 %v366, %v367
  %v369 = vtanh.pop %v368
  %v370 = vmul.f32 %v365, %v369
  %v371 = vpack.c.bf16 %v370, %v370
  %v372 = vld [vmem:[%s7] sm:$0xff]
  %v373 = vld [vmem:[%s7 + $0x8] sm:$0xff]
  %v374 = vld [vmem:[%s7 + $0x10] sm:$0xff]
  %v375 = vld [vmem:[%s7 + $0x18] sm:$0xff]
  %v376 = vld [vmem:[%s7 + $0x20] sm:$0xff]
  %v377 = vld [vmem:[%s7 + $0x28] sm:$0xff]
  %v378 = vld [vmem:[%s7 + $0x30] sm:$0xff]
  %v379 = vld [vmem:[%s7 + $0x38] sm:$0xff]
  %v380 = vld [vmem:[%s7 + $0x40] sm:$0xff]
  %v381 = vld [vmem:[%s7 + $0x48] sm:$0xff]
  %v382 = vld [vmem:[%s7 + $0x50] sm:$0xff]
  %v383 = vld [vmem:[%s7 + $0x58] sm:$0xff]
  %v384 = vld [vmem:[%s7 + $0x60] sm:$0xff]
  %v385 = vld [vmem:[%s7 + $0x68] sm:$0xff]
  %v386 = vld [vmem:[%s7 + $0x70] sm:$0xff]
  %v387 = vld [vmem:[%s7 + $0x78] sm:$0xff]
  %v388 = vld [vmem:[%s7 + $0x80] sm:$0xff]
  %v389 = vld [vmem:[%s7 + $0x88] sm:$0xff]
  %v390 = vld [vmem:[%s7 + $0x90] sm:$0xff]
  %v391 = vld [vmem:[%s7 + $0x98] sm:$0xff]
  %v392 = vld [vmem:[%s7 + $0xa0] sm:$0xff]
  %v393 = vld [vmem:[%s7 + $0xa8] sm:$0xff]
  %v394 = vld [vmem:[%s7 + $0xb0] sm:$0xff]
  %v395 = vld [vmem:[%s7 + $0xb8] sm:$0xff]
  %v396 = vld [vmem:[%s7 + $0xc0] sm:$0xff]
  %v397 = vld [vmem:[%s7 + $0xc8] sm:$0xff]
  %v398 = vld [vmem:[%s7 + $0xd0] sm:$0xff]
  %v399 = vld [vmem:[%s7 + $0xd8] sm:$0xff]
  %v400 = vld [vmem:[%s7 + $0xe0] sm:$0xff]
  %v401 = vld [vmem:[%s7 + $0xe8] sm:$0xff]
  %v402 = vld [vmem:[%s7 + $0xf0] sm:$0xff]
  %v403 = vld [vmem:[%s7 + $0xf8] sm:$0xff]
  %v404 = vld [vmem:[%s4] sm:$0xff]
  %v405 = vld [vmem:[%s4 + $0x8] sm:$0xff]
  %v406 = vld [vmem:[%s4 + $0x10] sm:$0xff]
  %v407 = vld [vmem:[%s4 + $0x18] sm:$0xff]
  %v440 = vunpack.c.l.b16 %v372
  %v441 = vunpack.c.h.b16 %v372
  %v442 = vunpack.c.l.b16 %v373
  %v443 = vunpack.c.h.b16 %v373
  %v444 = vunpack.c.l.b16 %v374
  %v445 = vunpack.c.h.b16 %v374
  %v446 = vunpack.c.l.b16 %v375
  %v447 = vunpack.c.h.b16 %v375
  %v448 = vunpack.c.l.b16 %v376
  %v449 = vunpack.c.h.b16 %v376
  %v450 = vunpack.c.l.b16 %v377
  %v451 = vunpack.c.h.b16 %v377
  %v452 = vunpack.c.l.b16 %v378
  %v453 = vunpack.c.h.b16 %v378
  %v454 = vunpack.c.l.b16 %v379
  %v455 = vunpack.c.h.b16 %v379
  %v456 = vunpack.c.l.b16 %v380
  %v457 = vunpack.c.h.b16 %v380
  %v458 = vunpack.c.l.b16 %v381
  %v459 = vunpack.c.h.b16 %v381
  %v460 = vunpack.c.l.b16 %v382
  %v461 = vunpack.c.h.b16 %v382
  %v462 = vunpack.c.l.b16 %v383
  %v463 = vunpack.c.h.b16 %v383
  %v464 = vunpack.c.l.b16 %v384
  %v465 = vunpack.c.h.b16 %v384
  %v466 = vunpack.c.l.b16 %v385
  %v467 = vunpack.c.h.b16 %v385
  %v468 = vunpack.c.l.b16 %v386
  %v469 = vunpack.c.h.b16 %v386
  %v470 = vunpack.c.l.b16 %v387
  %v471 = vunpack.c.h.b16 %v387
  %v472 = vunpack.c.l.b16 %v388
  %v473 = vunpack.c.h.b16 %v388
  %v474 = vunpack.c.l.b16 %v389
  %v475 = vunpack.c.h.b16 %v389
  %v476 = vunpack.c.l.b16 %v390
  %v477 = vunpack.c.h.b16 %v390
  %v478 = vunpack.c.l.b16 %v391
  %v479 = vunpack.c.h.b16 %v391
  %v480 = vunpack.c.l.b16 %v392
  %v481 = vunpack.c.h.b16 %v392
  %v482 = vunpack.c.l.b16 %v393
  %v483 = vunpack.c.h.b16 %v393
  %v484 = vunpack.c.l.b16 %v394
  %v485 = vunpack.c.h.b16 %v394
  %v486 = vunpack.c.l.b16 %v395
  %v487 = vunpack.c.h.b16 %v395
  %v488 = vunpack.c.l.b16 %v396
  %v489 = vunpack.c.h.b16 %v396
  %v490 = vunpack.c.l.b16 %v397
  %v491 = vunpack.c.h.b16 %v397
  %v492 = vunpack.c.l.b16 %v398
  %v493 = vunpack.c.h.b16 %v398
  %v494 = vunpack.c.l.b16 %v399
  %v495 = vunpack.c.h.b16 %v399
  %v496 = vunpack.c.l.b16 %v400
  %v497 = vunpack.c.h.b16 %v400
  %v498 = vunpack.c.l.b16 %v401
  %v499 = vunpack.c.h.b16 %v401
  %v500 = vunpack.c.l.b16 %v402
  %v501 = vunpack.c.h.b16 %v402
  %v502 = vunpack.c.l.b16 %v403
  %v503 = vunpack.c.h.b16 %v403
  %v504 = vpack.c.b16 %v444, %v440
  %v505 = vpack.c.b16 %v445, %v441
  %v506 = vpack.c.b16 %v446, %v442
  %v507 = vpack.c.b16 %v447, %v443
  %v508 = vpack.c.b16 %v452, %v448
  %v509 = vpack.c.b16 %v453, %v449
  %v510 = vpack.c.b16 %v454, %v450
  %v511 = vpack.c.b16 %v455, %v451
  %v512 = vpack.c.b16 %v460, %v456
  %v513 = vpack.c.b16 %v461, %v457
  %v514 = vpack.c.b16 %v462, %v458
  %v515 = vpack.c.b16 %v463, %v459
  %v516 = vpack.c.b16 %v468, %v464
  %v517 = vpack.c.b16 %v469, %v465
  %v518 = vpack.c.b16 %v470, %v466
  %v519 = vpack.c.b16 %v471, %v467
  %v520 = vpack.c.b16 %v476, %v472
  %v521 = vpack.c.b16 %v477, %v473
  %v522 = vpack.c.b16 %v478, %v474
  %v523 = vpack.c.b16 %v479, %v475
  %v524 = vpack.c.b16 %v484, %v480
  %v525 = vpack.c.b16 %v485, %v481
  %v526 = vpack.c.b16 %v486, %v482
  %v527 = vpack.c.b16 %v487, %v483
  %v528 = vpack.c.b16 %v492, %v488
  %v529 = vpack.c.b16 %v493, %v489
  %v530 = vpack.c.b16 %v494, %v490
  %v531 = vpack.c.b16 %v495, %v491
  %v532 = vpack.c.b16 %v500, %v496
  %v533 = vpack.c.b16 %v501, %v497
  %v534 = vpack.c.b16 %v502, %v498
  %v535 = vpack.c.b16 %v503, %v499
  %568 = vmatpush.bf16.msra.mxu0 %v532
  %569 = vmatpush.bf16.msra.mxu0 %v528
  %570 = vmatpush.bf16.msra.mxu0 %v524
  %571 = vmatpush.bf16.msra.mxu0 %v520
  %572 = vmatpush.bf16.msra.mxu0 %v516
  %573 = vmatpush.bf16.msra.mxu0 %v512
  %574 = vmatpush.bf16.msra.mxu0 %v508
  %575 = vmatpush.bf16.msra.mxu0 %v504
  %576 = vmatmul.bf16.gmra.mxu0 %v371
  %v577 = vpop.f32.mrf.mxu0
  %v578 = vadd.f32 %v404, %v577
  %v579 = vpop.f32.mrf.mxu0
  %580 = vdwg.mxu0
  %581 = vmatpush.bf16.msra.mxu0 %v533
  %582 = vmatpush.bf16.msra.mxu0 %v529
  %583 = vmatpush.bf16.msra.mxu0 %v525
  %584 = vmatpush.bf16.msra.mxu0 %v521
  %585 = vmatpush.bf16.msra.mxu0 %v517
  %586 = vmatpush.bf16.msra.mxu0 %v513
  %587 = vmatpush.bf16.msra.mxu0 %v509
  %588 = vmatpush.bf16.msra.mxu0 %v505
  %589 = vmatmul.bf16.gmra.mxu0 %v371
  %v590 = vpop.f32.mrf.mxu0
  %v591 = vadd.f32 %v405, %v590
  %v592 = vpop.f32.mrf.mxu0
  %593 = vdwg.mxu0
  %594 = vmatpush.bf16.msra.mxu0 %v534
  %595 = vmatpush.bf16.msra.mxu0 %v530
  %596 = vmatpush.bf16.msra.mxu0 %v526
  %597 = vmatpush.bf16.msra.mxu0 %v522
  %598 = vmatpush.bf16.msra.mxu0 %v518
  %599 = vmatpush.bf16.msra.mxu0 %v514
  %600 = vmatpush.bf16.msra.mxu0 %v510
  %601 = vmatpush.bf16.msra.mxu0 %v506
  %602 = vmatmul.bf16.gmra.mxu0 %v371
  %v603 = vpop.f32.mrf.mxu0
  %v604 = vadd.f32 %v406, %v603
  %v605 = vpop.f32.mrf.mxu0
  %606 = vdwg.mxu0
  %607 = vmatpush.bf16.msra.mxu0 %v535
  %608 = vmatpush.bf16.msra.mxu0 %v531
  %609 = vmatpush.bf16.msra.mxu0 %v527
  %610 = vmatpush.bf16.msra.mxu0 %v523
  %611 = vmatpush.bf16.msra.mxu0 %v519
  %612 = vmatpush.bf16.msra.mxu0 %v515
  %613 = vmatpush.bf16.msra.mxu0 %v511
  %614 = vmatpush.bf16.msra.mxu0 %v507
  %615 = vmatmul.bf16.gmra.mxu0 %v371
  %v616 = vpop.f32.mrf.mxu0
  %v617 = vadd.f32 %v407, %v616
  %v618 = vpop.f32.mrf.mxu0
  %619 = vdwg.mxu0
  %v620 = vld [vmem:[%s6] sm:$0xff]
  %v621 = vxor.u32 %v578, 2147483648
  %v622 = vmul.f32 %v621, 1.442695
  %v623 = vpow.pop %v622
  %v624 = vadd.f32 %v623, 1.0
  %v625 = vrcp.pop %v624
  %v626 = vmul.f32 %v624, %v625
  %v627 = vsub.f32 1.0, %v626
  %v628 = vmul.f32 %v625, %v627
  %v629 = vadd.f32 %v625, %v628
  %vm630 = vweird.f32 %v624
  %vm631 = vweird.f32 %v625
  %vm632 = vmor %vm630, %vm631
  %v633 = vsel %vm632, %v625, %v629
  %v634 = vand.u32 2147483647, %v624
  %vm635 = vcmp.eq.f32.partialorder %v634, 8.507059e+37
  %v636 = vand.u32 %v624, 2147483648
  %v637 = vor.u32 1.1754944e-38, %v636
  %v638 = vsel %vm635, %v637, %v633
  %v639 = vmul.f32 1.0, %v638
  %v640 = vxor.u32 %v591, 2147483648
  %v641 = vmul.f32 %v640, 1.442695
  %v642 = vpow.pop %v641
  %v643 = vadd.f32 %v642, 1.0
  %v644 = vrcp.pop %v643
  %v645 = vmul.f32 %v643, %v644
  %v646 = vsub.f32 1.0, %v645
  %v647 = vmul.f32 %v644, %v646
  %v648 = vadd.f32 %v644, %v647
  %vm649 = vweird.f32 %v643
  %vm650 = vweird.f32 %v644
  %vm651 = vmor %vm649, %vm650
  %v652 = vsel %vm651, %v644, %v648
  %v653 = vand.u32 2147483647, %v643
  %vm654 = vcmp.eq.f32.partialorder %v653, 8.507059e+37
  %v655 = vand.u32 %v643, 2147483648
  %v656 = vor.u32 1.1754944e-38, %v655
  %v657 = vsel %vm654, %v656, %v652
  %v658 = vmul.f32 1.0, %v657
  %v659 = vtanh.pop %v604
  %v660 = vxor.u32 %v617, 2147483648
  %v661 = vmul.f32 %v660, 1.442695
  %v662 = vpow.pop %v661
  %v663 = vadd.f32 %v662, 1.0
  %v664 = vrcp.pop %v663
  %v665 = vmul.f32 %v663, %v664
  %v666 = vsub.f32 1.0, %v665
  %v667 = vmul.f32 %v664, %v666
  %v668 = vadd.f32 %v664, %v667
  %vm669 = vweird.f32 %v663
  %vm670 = vweird.f32 %v664
  %vm671 = vmor %vm669, %vm670
  %v672 = vsel %vm671, %v664, %v668
  %v673 = vand.u32 2147483647, %v663
  %vm674 = vcmp.eq.f32.partialorder %v673, 8.507059e+37
  %v675 = vand.u32 %v663, 2147483648
  %v676 = vor.u32 1.1754944e-38, %v675
  %v677 = vsel %vm674, %v676, %v672
  %v678 = vmul.f32 1.0, %v677
  %v679 = vmul.f32 %v658, %v620
  %v680 = vmul.f32 %v639, %v659
  %v681 = vadd.f32 %v679, %v680
  %v682 = vtanh.pop %v681
  %v683 = vmul.f32 %v678, %v682
  %v684 = vpack.c.bf16 %v683, %v683
  %v685 = vld [vmem:[%s8] sm:$0xf]
  %v686 = vld [vmem:[%s8 + $0x4] sm:$0xf]
  %v687 = vld [vmem:[%s8 + $0x8] sm:$0xf]
  %v688 = vld [vmem:[%s8 + $0xc] sm:$0xf]
  %v689 = vld [vmem:[%s8 + $0x10] sm:$0xf]
  %v690 = vld [vmem:[%s8 + $0x14] sm:$0xf]
  %v691 = vld [vmem:[%s8 + $0x18] sm:$0xf]
  %v692 = vld [vmem:[%s8 + $0x1c] sm:$0xf]
  %v693 = vld [vmem:[%s8 + $0x20] sm:$0xf]
  %v694 = vld [vmem:[%s8 + $0x24] sm:$0xf]
  %v695 = vld [vmem:[%s8 + $0x28] sm:$0xf]
  %v696 = vld [vmem:[%s8 + $0x2c] sm:$0xf]
  %v697 = vld [vmem:[%s8 + $0x30] sm:$0xf]
  %v698 = vld [vmem:[%s8 + $0x34] sm:$0xf]
  %v699 = vld [vmem:[%s8 + $0x38] sm:$0xf]
  %v700 = vld [vmem:[%s8 + $0x3c] sm:$0xf]
  %v701 = vld [vmem:[%s9] sm:$0x1]
  %v703 = vperm.slane %v701, 0
  %v721 = vunpack.c.l.b16 %v685
  %v722 = vunpack.c.l.b16 %v686
  %v723 = vunpack.c.l.b16 %v687
  %v724 = vunpack.c.l.b16 %v688
  %v725 = vunpack.c.l.b16 %v689
  %v726 = vunpack.c.l.b16 %v690
  %v727 = vunpack.c.l.b16 %v691
  %v728 = vunpack.c.l.b16 %v692
  %v729 = vunpack.c.l.b16 %v693
  %v730 = vunpack.c.l.b16 %v694
  %v731 = vunpack.c.l.b16 %v695
  %v732 = vunpack.c.l.b16 %v696
  %v733 = vunpack.c.l.b16 %v697
  %v734 = vunpack.c.l.b16 %v698
  %v735 = vunpack.c.l.b16 %v699
  %v736 = vunpack.c.l.b16 %v700
  %v737 = vpack.c.b16 %v722, %v721
  %v738 = vpack.c.b16 %v724, %v723
  %v739 = vpack.c.b16 %v726, %v725
  %v740 = vpack.c.b16 %v728, %v727
  %v741 = vpack.c.b16 %v730, %v729
  %v742 = vpack.c.b16 %v732, %v731
  %v743 = vpack.c.b16 %v734, %v733
  %v744 = vpack.c.b16 %v736, %v735
  %753 = vmatpush.bf16.msra.mxu0 %v744
  %754 = vmatpush.bf16.msra.mxu0 %v743
  %755 = vmatpush.bf16.msra.mxu0 %v742
  %756 = vmatpush.bf16.msra.mxu0 %v741
  %757 = vmatpush.bf16.msra.mxu0 %v740
  %758 = vmatpush.bf16.msra.mxu0 %v739
  %759 = vmatpush.bf16.msra.mxu0 %v738
  %760 = vmatpush.bf16.msra.mxu0 %v737
  %761 = vmatmul.bf16.gmra.mxu0 %v684
  %v762 = vpop.f32.mrf.mxu0
  %v763 = vadd.f32 %v703, %v762
  %v764 = vpop.f32.mrf.mxu0
  %765 = vdwg.mxu0
  %766 = vst [vmem:[%s10] sm:$0xff] %v763
  %767 = vmax.xlane.f32.xlu0 %v763
  %v768 = vpop.xlane.xlu0 %767
  %vm769 = vcmp.eq.f32.partialorder %v763, %v768
  %v770 = vsel %vm769, %v49, 128
  %v771 = vand.u32 %v770, 65535
  %v772 = vshra.s32 %v770, 16
  %v773 = vcvt.s32.f32 %v771
  %v774 = vcvt.s32.f32 %v772
  %775 = vmin.xlane.f32.xlu0 %v774
  %v776 = vpop.xlane.xlu0 %775
  %vm777 = vcmp.eq.f32.partialorder %v774, %v776
  %v778 = vsel %vm777, %v773, inf
  %779 = vmin.xlane.f32.xlu0 %v778
  %v780 = vpop.xlane.xlu0 %779
  %v781 = vcvt.f32.s32 %v780
  %v782 = vcvt.f32.s32 %v776
  %v783 = vshll.u32 %v782, 16
  %v784 = vadd.s32 %v783, %v781
  %s785 = sadd.s32 %s51, 1
  %s786 = smul.u32 %s785, 8
  %s787 = scalar_lea.vmem %s1, %s786
  %v788 = vld [vmem:[%s787] sm:$0xff]
  %s789 = sld [smem:[#allocation4 + %s51]]
  %p790 = scmp.gt.s32.totalorder %s789, 0
  %s791 = scalar_select %p790, 1, 0
  %v792 = vstv %s791
  %vm793 = vcmp.eq.s32.totalorder %v792, 1
  %v794 = vsel %vm793, %v788, %v784
  %795 = vset.pattern.permute.xlu0 0
  %796 = vperm.xlu0 %795, %v794
  %v797 = vpop.permute.xlu0 %796
  %vm798 = vcmp.eq.s32.totalorder %v49, %v797
  %v799 = vsel %vm798, 1, 0
  %v800 = vcvt.s32.f32 %v799
  %v801 = vpack.c.bf16 %v800, %v800
  %v802 = vld [vmem:[%s2] sm:$0xff]
  %v803 = vld [vmem:[%s2 + $0x8] sm:$0xff]
  %v804 = vld [vmem:[%s2 + $0x10] sm:$0xff]
  %v805 = vld [vmem:[%s2 + $0x18] sm:$0xff]
  %v806 = vld [vmem:[%s2 + $0x20] sm:$0xff]
  %v807 = vld [vmem:[%s2 + $0x28] sm:$0xff]
  %v808 = vld [vmem:[%s2 + $0x30] sm:$0xff]
  %v809 = vld [vmem:[%s2 + $0x38] sm:$0xff]
  %v810 = vld [vmem:[%s2 + $0x40] sm:$0xff]
  %v811 = vld [vmem:[%s2 + $0x48] sm:$0xff]
  %v812 = vld [vmem:[%s2 + $0x50] sm:$0xff]
  %v813 = vld [vmem:[%s2 + $0x58] sm:$0xff]
  %v814 = vld [vmem:[%s2 + $0x60] sm:$0xff]
  %v815 = vld [vmem:[%s2 + $0x68] sm:$0xff]
  %v816 = vld [vmem:[%s2 + $0x70] sm:$0xff]
  %v817 = vld [vmem:[%s2 + $0x78] sm:$0xff]
  %v818 = vld [vmem:[%s2 + $0x80] sm:$0xff]
  %v819 = vld [vmem:[%s2 + $0x88] sm:$0xff]
  %v820 = vld [vmem:[%s2 + $0x90] sm:$0xff]
  %v821 = vld [vmem:[%s2 + $0x98] sm:$0xff]
  %v822 = vld [vmem:[%s2 + $0xa0] sm:$0xff]
  %v823 = vld [vmem:[%s2 + $0xa8] sm:$0xff]
  %v824 = vld [vmem:[%s2 + $0xb0] sm:$0xff]
  %v825 = vld [vmem:[%s2 + $0xb8] sm:$0xff]
  %v826 = vld [vmem:[%s2 + $0xc0] sm:$0xff]
  %v827 = vld [vmem:[%s2 + $0xc8] sm:$0xff]
  %v828 = vld [vmem:[%s2 + $0xd0] sm:$0xff]
  %v829 = vld [vmem:[%s2 + $0xd8] sm:$0xff]
  %v830 = vld [vmem:[%s2 + $0xe0] sm:$0xff]
  %v831 = vld [vmem:[%s2 + $0xe8] sm:$0xff]
  %v832 = vld [vmem:[%s2 + $0xf0] sm:$0xff]
  %v833 = vld [vmem:[%s2 + $0xf8] sm:$0xff]
  %v834 = vld [vmem:[%s3] sm:$0xff]
  %v835 = vld [vmem:[%s3 + $0x8] sm:$0xff]
  %v836 = vld [vmem:[%s3 + $0x10] sm:$0xff]
  %v837 = vld [vmem:[%s3 + $0x18] sm:$0xff]
  %v870 = vunpack.c.l.b16 %v802
  %v871 = vunpack.c.h.b16 %v802
  %v872 = vunpack.c.l.b16 %v803
  %v873 = vunpack.c.h.b16 %v803
  %v874 = vunpack.c.l.b16 %v804
  %v875 = vunpack.c.h.b16 %v804
  %v876 = vunpack.c.l.b16 %v805
  %v877 = vunpack.c.h.b16 %v805
  %v878 = vunpack.c.l.b16 %v806
  %v879 = vunpack.c.h.b16 %v806
  %v880 = vunpack.c.l.b16 %v807
  %v881 = vunpack.c.h.b16 %v807
  %v882 = vunpack.c.l.b16 %v808
  %v883 = vunpack.c.h.b16 %v808
  %v884 = vunpack.c.l.b16 %v809
  %v885 = vunpack.c.h.b16 %v809
  %v886 = vunpack.c.l.b16 %v810
  %v887 = vunpack.c.h.b16 %v810
  %v888 = vunpack.c.l.b16 %v811
  %v889 = vunpack.c.h.b16 %v811
  %v890 = vunpack.c.l.b16 %v812
  %v891 = vunpack.c.h.b16 %v812
  %v892 = vunpack.c.l.b16 %v813
  %v893 = vunpack.c.h.b16 %v813
  %v894 = vunpack.c.l.b16 %v814
  %v895 = vunpack.c.h.b16 %v814
  %v896 = vunpack.c.l.b16 %v815
  %v897 = vunpack.c.h.b16 %v815
  %v898 = vunpack.c.l.b16 %v816
  %v899 = vunpack.c.h.b16 %v816
  %v900 = vunpack.c.l.b16 %v817
  %v901 = vunpack.c.h.b16 %v817
  %v902 = vunpack.c.l.b16 %v818
  %v903 = vunpack.c.h.b16 %v818
  %v904 = vunpack.c.l.b16 %v819
  %v905 = vunpack.c.h.b16 %v819
  %v906 = vunpack.c.l.b16 %v820
  %v907 = vunpack.c.h.b16 %v820
  %v908 = vunpack.c.l.b16 %v821
  %v909 = vunpack.c.h.b16 %v821
  %v910 = vunpack.c.l.b16 %v822
  %v911 = vunpack.c.h.b16 %v822
  %v912 = vunpack.c.l.b16 %v823
  %v913 = vunpack.c.h.b16 %v823
  %v914 = vunpack.c.l.b16 %v824
  %v915 = vunpack.c.h.b16 %v824
  %v916 = vunpack.c.l.b16 %v825
  %v917 = vunpack.c.h.b16 %v825
  %v918 = vunpack.c.l.b16 %v826
  %v919 = vunpack.c.h.b16 %v826
  %v920 = vunpack.c.l.b16 %v827
  %v921 = vunpack.c.h.b16 %v827
  %v922 = vunpack.c.l.b16 %v828
  %v923 = vunpack.c.h.b16 %v828
  %v924 = vunpack.c.l.b16 %v829
  %v925 = vunpack.c.h.b16 %v829
  %v926 = vunpack.c.l.b16 %v830
  %v927 = vunpack.c.h.b16 %v830
  %v928 = vunpack.c.l.b16 %v831
  %v929 = vunpack.c.h.b16 %v831
  %v930 = vunpack.c.l.b16 %v832
  %v931 = vunpack.c.h.b16 %v832
  %v932 = vunpack.c.l.b16 %v833
  %v933 = vunpack.c.h.b16 %v833
  %v934 = vpack.c.b16 %v874, %v870
  %v935 = vpack.c.b16 %v875, %v871
  %v936 = vpack.c.b16 %v876, %v872
  %v937 = vpack.c.b16 %v877, %v873
  %v938 = vpack.c.b16 %v882, %v878
  %v939 = vpack.c.b16 %v883, %v879
  %v940 = vpack.c.b16 %v884, %v880
  %v941 = vpack.c.b16 %v885, %v881
  %v942 = vpack.c.b16 %v890, %v886
  %v943 = vpack.c.b16 %v891, %v887
  %v944 = vpack.c.b16 %v892, %v888
  %v945 = vpack.c.b16 %v893, %v889
  %v946 = vpack.c.b16 %v898, %v894
  %v947 = vpack.c.b16 %v899, %v895
  %v948 = vpack.c.b16 %v900, %v896
  %v949 = vpack.c.b16 %v901, %v897
  %v950 = vpack.c.b16 %v906, %v902
  %v951 = vpack.c.b16 %v907, %v903
  %v952 = vpack.c.b16 %v908, %v904
  %v953 = vpack.c.b16 %v909, %v905
  %v954 = vpack.c.b16 %v914, %v910
  %v955 = vpack.c.b16 %v915, %v911
  %v956 = vpack.c.b16 %v916, %v912
  %v957 = vpack.c.b16 %v917, %v913
  %v958 = vpack.c.b16 %v922, %v918
  %v959 = vpack.c.b16 %v923, %v919
  %v960 = vpack.c.b16 %v924, %v920
  %v961 = vpack.c.b16 %v925, %v921
  %v962 = vpack.c.b16 %v930, %v926
  %v963 = vpack.c.b16 %v931, %v927
  %v964 = vpack.c.b16 %v932, %v928
  %v965 = vpack.c.b16 %v933, %v929
  %998 = vmatpush.bf16.msra.mxu0 %v962
  %999 = vmatpush.bf16.msra.mxu0 %v958
  %1000 = vmatpush.bf16.msra.mxu0 %v954
  %1001 = vmatpush.bf16.msra.mxu0 %v950
  %1002 = vmatpush.bf16.msra.mxu0 %v946
  %1003 = vmatpush.bf16.msra.mxu0 %v942
  %1004 = vmatpush.bf16.msra.mxu0 %v938
  %1005 = vmatpush.bf16.msra.mxu0 %v934
  %1006 = vmatmul.bf16.gmra.mxu0 %v801
  %v1007 = vpop.f32.mrf.mxu0
  %v1008 = vadd.f32 %v834, %v1007
  %v1009 = vpop.f32.mrf.mxu0
  %1010 = vdwg.mxu0
  %1011 = vmatpush.bf16.msra.mxu0 %v963
  %1012 = vmatpush.bf16.msra.mxu0 %v959
  %1013 = vmatpush.bf16.msra.mxu0 %v955
  %1014 = vmatpush.bf16.msra.mxu0 %v951
  %1015 = vmatpush.bf16.msra.mxu0 %v947
  %1016 = vmatpush.bf16.msra.mxu0 %v943
  %1017 = vmatpush.bf16.msra.mxu0 %v939
  %1018 = vmatpush.bf16.msra.mxu0 %v935
  %1019 = vmatmul.bf16.gmra.mxu0 %v801
  %v1020 = vpop.f32.mrf.mxu0
  %v1021 = vadd.f32 %v835, %v1020
  %v1022 = vpop.f32.mrf.mxu0
  %1023 = vdwg.mxu0
  %1024 = vmatpush.bf16.msra.mxu0 %v964
  %1025 = vmatpush.bf16.msra.mxu0 %v960
  %1026 = vmatpush.bf16.msra.mxu0 %v956
  %1027 = vmatpush.bf16.msra.mxu0 %v952
  %1028 = vmatpush.bf16.msra.mxu0 %v948
  %1029 = vmatpush.bf16.msra.mxu0 %v944
  %1030 = vmatpush.bf16.msra.mxu0 %v940
  %1031 = vmatpush.bf16.msra.mxu0 %v936
  %1032 = vmatmul.bf16.gmra.mxu0 %v801
  %v1033 = vpop.f32.mrf.mxu0
  %v1034 = vadd.f32 %v836, %v1033
  %v1035 = vpop.f32.mrf.mxu0
  %1036 = vdwg.mxu0
  %1037 = vmatpush.bf16.msra.mxu0 %v965
  %1038 = vmatpush.bf16.msra.mxu0 %v961
  %1039 = vmatpush.bf16.msra.mxu0 %v957
  %1040 = vmatpush.bf16.msra.mxu0 %v953
  %1041 = vmatpush.bf16.msra.mxu0 %v949
  %1042 = vmatpush.bf16.msra.mxu0 %v945
  %1043 = vmatpush.bf16.msra.mxu0 %v941
  %1044 = vmatpush.bf16.msra.mxu0 %v937
  %1045 = vmatmul.bf16.gmra.mxu0 %v801
  %v1046 = vpop.f32.mrf.mxu0
  %v1047 = vadd.f32 %v837, %v1046
  %v1048 = vpop.f32.mrf.mxu0
  %1049 = vdwg.mxu0
  %v1050 = vld [vmem:[%s5] sm:$0xff]
  %v1051 = vxor.u32 %v1008, 2147483648
  %v1052 = vmul.f32 %v1051, 1.442695
  %v1053 = vpow.pop %v1052
  %v1054 = vadd.f32 %v1053, 1.0
  %v1055 = vrcp.pop %v1054
  %v1056 = vmul.f32 %v1054, %v1055
  %v1057 = vsub.f32 1.0, %v1056
  %v1058 = vmul.f32 %v1055, %v1057
  %v1059 = vadd.f32 %v1055, %v1058
  %vm1060 = vweird.f32 %v1054
  %vm1061 = vweird.f32 %v1055
  %vm1062 = vmor %vm1060, %vm1061
  %v1063 = vsel %vm1062, %v1055, %v1059
  %v1064 = vand.u32 2147483647, %v1054
  %vm1065 = vcmp.eq.f32.partialorder %v1064, 8.507059e+37
  %v1066 = vand.u32 %v1054, 2147483648
  %v1067 = vor.u32 1.1754944e-38, %v1066
  %v1068 = vsel %vm1065, %v1067, %v1063
  %v1069 = vmul.f32 1.0, %v1068
  %v1070 = vxor.u32 %v1021, 2147483648
  %v1071 = vmul.f32 %v1070, 1.442695
  %v1072 = vpow.pop %v1071
  %v1073 = vadd.f32 %v1072, 1.0
  %v1074 = vrcp.pop %v1073
  %v1075 = vmul.f32 %v1073, %v1074
  %v1076 = vsub.f32 1.0, %v1075
  %v1077 = vmul.f32 %v1074, %v1076
  %v1078 = vadd.f32 %v1074, %v1077
  %vm1079 = vweird.f32 %v1073
  %vm1080 = vweird.f32 %v1074
  %vm1081 = vmor %vm1079, %vm1080
  %v1082 = vsel %vm1081, %v1074, %v1078
  %v1083 = vand.u32 2147483647, %v1073
  %vm1084 = vcmp.eq.f32.partialorder %v1083, 8.507059e+37
  %v1085 = vand.u32 %v1073, 2147483648
  %v1086 = vor.u32 1.1754944e-38, %v1085
  %v1087 = vsel %vm1084, %v1086, %v1082
  %v1088 = vmul.f32 1.0, %v1087
  %v1089 = vtanh.pop %v1034
  %v1090 = vxor.u32 %v1047, 2147483648
  %v1091 = vmul.f32 %v1090, 1.442695
  %v1092 = vpow.pop %v1091
  %v1093 = vadd.f32 %v1092, 1.0
  %v1094 = vrcp.pop %v1093
  %v1095 = vmul.f32 %v1093, %v1094
  %v1096 = vsub.f32 1.0, %v1095
  %v1097 = vmul.f32 %v1094, %v1096
  %v1098 = vadd.f32 %v1094, %v1097
  %vm1099 = vweird.f32 %v1093
  %vm1100 = vweird.f32 %v1094
  %vm1101 = vmor %vm1099, %vm1100
  %v1102 = vsel %vm1101, %v1094, %v1098
  %v1103 = vand.u32 2147483647, %v1093
  %vm1104 = vcmp.eq.f32.partialorder %v1103, 8.507059e+37
  %v1105 = vand.u32 %v1093, 2147483648
  %v1106 = vor.u32 1.1754944e-38, %v1105
  %v1107 = vsel %vm1104, %v1106, %v1102
  %v1108 = vmul.f32 1.0, %v1107
  %v1109 = vmul.f32 %v1088, %v1050
  %v1110 = vmul.f32 %v1069, %v1089
  %v1111 = vadd.f32 %v1109, %v1110
  %v1112 = vtanh.pop %v1111
  %v1113 = vmul.f32 %v1108, %v1112
  %v1114 = vpack.c.bf16 %v1113, %v1113
  %v1115 = vld [vmem:[%s7] sm:$0xff]
  %v1116 = vld [vmem:[%s7 + $0x8] sm:$0xff]
  %v1117 = vld [vmem:[%s7 + $0x10] sm:$0xff]
  %v1118 = vld [vmem:[%s7 + $0x18] sm:$0xff]
  %v1119 = vld [vmem:[%s7 + $0x20] sm:$0xff]
  %v1120 = vld [vmem:[%s7 + $0x28] sm:$0xff]
  %v1121 = vld [vmem:[%s7 + $0x30] sm:$0xff]
  %v1122 = vld [vmem:[%s7 + $0x38] sm:$0xff]
  %v1123 = vld [vmem:[%s7 + $0x40] sm:$0xff]
  %v1124 = vld [vmem:[%s7 + $0x48] sm:$0xff]
  %v1125 = vld [vmem:[%s7 + $0x50] sm:$0xff]
  %v1126 = vld [vmem:[%s7 + $0x58] sm:$0xff]
  %v1127 = vld [vmem:[%s7 + $0x60] sm:$0xff]
  %v1128 = vld [vmem:[%s7 + $0x68] sm:$0xff]
  %v1129 = vld [vmem:[%s7 + $0x70] sm:$0xff]
  %v1130 = vld [vmem:[%s7 + $0x78] sm:$0xff]
  %v1131 = vld [vmem:[%s7 + $0x80] sm:$0xff]
  %v1132 = vld [vmem:[%s7 + $0x88] sm:$0xff]
  %v1133 = vld [vmem:[%s7 + $0x90] sm:$0xff]
  %v1134 = vld [vmem:[%s7 + $0x98] sm:$0xff]
  %v1135 = vld [vmem:[%s7 + $0xa0] sm:$0xff]
  %v1136 = vld [vmem:[%s7 + $0xa8] sm:$0xff]
  %v1137 = vld [vmem:[%s7 + $0xb0] sm:$0xff]
  %v1138 = vld [vmem:[%s7 + $0xb8] sm:$0xff]
  %v1139 = vld [vmem:[%s7 + $0xc0] sm:$0xff]
  %v1140 = vld [vmem:[%s7 + $0xc8] sm:$0xff]
  %v1141 = vld [vmem:[%s7 + $0xd0] sm:$0xff]
  %v1142 = vld [vmem:[%s7 + $0xd8] sm:$0xff]
  %v1143 = vld [vmem:[%s7 + $0xe0] sm:$0xff]
  %v1144 = vld [vmem:[%s7 + $0xe8] sm:$0xff]
  %v1145 = vld [vmem:[%s7 + $0xf0] sm:$0xff]
  %v1146 = vld [vmem:[%s7 + $0xf8] sm:$0xff]
  %v1147 = vld [vmem:[%s4] sm:$0xff]
  %v1148 = vld [vmem:[%s4 + $0x8] sm:$0xff]
  %v1149 = vld [vmem:[%s4 + $0x10] sm:$0xff]
  %v1150 = vld [vmem:[%s4 + $0x18] sm:$0xff]
  %v1183 = vunpack.c.l.b16 %v1115
  %v1184 = vunpack.c.h.b16 %v1115
  %v1185 = vunpack.c.l.b16 %v1116
  %v1186 = vunpack.c.h.b16 %v1116
  %v1187 = vunpack.c.l.b16 %v1117
  %v1188 = vunpack.c.h.b16 %v1117
  %v1189 = vunpack.c.l.b16 %v1118
  %v1190 = vunpack.c.h.b16 %v1118
  %v1191 = vunpack.c.l.b16 %v1119
  %v1192 = vunpack.c.h.b16 %v1119
  %v1193 = vunpack.c.l.b16 %v1120
  %v1194 = vunpack.c.h.b16 %v1120
  %v1195 = vunpack.c.l.b16 %v1121
  %v1196 = vunpack.c.h.b16 %v1121
  %v1197 = vunpack.c.l.b16 %v1122
  %v1198 = vunpack.c.h.b16 %v1122
  %v1199 = vunpack.c.l.b16 %v1123
  %v1200 = vunpack.c.h.b16 %v1123
  %v1201 = vunpack.c.l.b16 %v1124
  %v1202 = vunpack.c.h.b16 %v1124
  %v1203 = vunpack.c.l.b16 %v1125
  %v1204 = vunpack.c.h.b16 %v1125
  %v1205 = vunpack.c.l.b16 %v1126
  %v1206 = vunpack.c.h.b16 %v1126
  %v1207 = vunpack.c.l.b16 %v1127
  %v1208 = vunpack.c.h.b16 %v1127
  %v1209 = vunpack.c.l.b16 %v1128
  %v1210 = vunpack.c.h.b16 %v1128
  %v1211 = vunpack.c.l.b16 %v1129
  %v1212 = vunpack.c.h.b16 %v1129
  %v1213 = vunpack.c.l.b16 %v1130
  %v1214 = vunpack.c.h.b16 %v1130
  %v1215 = vunpack.c.l.b16 %v1131
  %v1216 = vunpack.c.h.b16 %v1131
  %v1217 = vunpack.c.l.b16 %v1132
  %v1218 = vunpack.c.h.b16 %v1132
  %v1219 = vunpack.c.l.b16 %v1133
  %v1220 = vunpack.c.h.b16 %v1133
  %v1221 = vunpack.c.l.b16 %v1134
  %v1222 = vunpack.c.h.b16 %v1134
  %v1223 = vunpack.c.l.b16 %v1135
  %v1224 = vunpack.c.h.b16 %v1135
  %v1225 = vunpack.c.l.b16 %v1136
  %v1226 = vunpack.c.h.b16 %v1136
  %v1227 = vunpack.c.l.b16 %v1137
  %v1228 = vunpack.c.h.b16 %v1137
  %v1229 = vunpack.c.l.b16 %v1138
  %v1230 = vunpack.c.h.b16 %v1138
  %v1231 = vunpack.c.l.b16 %v1139
  %v1232 = vunpack.c.h.b16 %v1139
  %v1233 = vunpack.c.l.b16 %v1140
  %v1234 = vunpack.c.h.b16 %v1140
  %v1235 = vunpack.c.l.b16 %v1141
  %v1236 = vunpack.c.h.b16 %v1141
  %v1237 = vunpack.c.l.b16 %v1142
  %v1238 = vunpack.c.h.b16 %v1142
  %v1239 = vunpack.c.l.b16 %v1143
  %v1240 = vunpack.c.h.b16 %v1143
  %v1241 = vunpack.c.l.b16 %v1144
  %v1242 = vunpack.c.h.b16 %v1144
  %v1243 = vunpack.c.l.b16 %v1145
  %v1244 = vunpack.c.h.b16 %v1145
  %v1245 = vunpack.c.l.b16 %v1146
  %v1246 = vunpack.c.h.b16 %v1146
  %v1247 = vpack.c.b16 %v1187, %v1183
  %v1248 = vpack.c.b16 %v1188, %v1184
  %v1249 = vpack.c.b16 %v1189, %v1185
  %v1250 = vpack.c.b16 %v1190, %v1186
  %v1251 = vpack.c.b16 %v1195, %v1191
  %v1252 = vpack.c.b16 %v1196, %v1192
  %v1253 = vpack.c.b16 %v1197, %v1193
  %v1254 = vpack.c.b16 %v1198, %v1194
  %v1255 = vpack.c.b16 %v1203, %v1199
  %v1256 = vpack.c.b16 %v1204, %v1200
  %v1257 = vpack.c.b16 %v1205, %v1201
  %v1258 = vpack.c.b16 %v1206, %v1202
  %v1259 = vpack.c.b16 %v1211, %v1207
  %v1260 = vpack.c.b16 %v1212, %v1208
  %v1261 = vpack.c.b16 %v1213, %v1209
  %v1262 = vpack.c.b16 %v1214, %v1210
  %v1263 = vpack.c.b16 %v1219, %v1215
  %v1264 = vpack.c.b16 %v1220, %v1216
  %v1265 = vpack.c.b16 %v1221, %v1217
  %v1266 = vpack.c.b16 %v1222, %v1218
  %v1267 = vpack.c.b16 %v1227, %v1223
  %v1268 = vpack.c.b16 %v1228, %v1224
  %v1269 = vpack.c.b16 %v1229, %v1225
  %v1270 = vpack.c.b16 %v1230, %v1226
  %v1271 = vpack.c.b16 %v1235, %v1231
  %v1272 = vpack.c.b16 %v1236, %v1232
  %v1273 = vpack.c.b16 %v1237, %v1233
  %v1274 = vpack.c.b16 %v1238, %v1234
  %v1275 = vpack.c.b16 %v1243, %v1239
  %v1276 = vpack.c.b16 %v1244, %v1240
  %v1277 = vpack.c.b16 %v1245, %v1241
  %v1278 = vpack.c.b16 %v1246, %v1242
  %1311 = vmatpush.bf16.msra.mxu0 %v1275
  %1312 = vmatpush.bf16.msra.mxu0 %v1271
  %1313 = vmatpush.bf16.msra.mxu0 %v1267
  %1314 = vmatpush.bf16.msra.mxu0 %v1263
  %1315 = vmatpush.bf16.msra.mxu0 %v1259
  %1316 = vmatpush.bf16.msra.mxu0 %v1255
  %1317 = vmatpush.bf16.msra.mxu0 %v1251
  %1318 = vmatpush.bf16.msra.mxu0 %v1247
  %1319 = vmatmul.bf16.gmra.mxu0 %v1114
  %v1320 = vpop.f32.mrf.mxu0
  %v1321 = vadd.f32 %v1147, %v1320
  %v1322 = vpop.f32.mrf.mxu0
  %1323 = vdwg.mxu0
  %1324 = vmatpush.bf16.msra.mxu0 %v1276
  %1325 = vmatpush.bf16.msra.mxu0 %v1272
  %1326 = vmatpush.bf16.msra.mxu0 %v1268
  %1327 = vmatpush.bf16.msra.mxu0 %v1264
  %1328 = vmatpush.bf16.msra.mxu0 %v1260
  %1329 = vmatpush.bf16.msra.mxu0 %v1256
  %1330 = vmatpush.bf16.msra.mxu0 %v1252
  %1331 = vmatpush.bf16.msra.mxu0 %v1248
  %1332 = vmatmul.bf16.gmra.mxu0 %v1114
  %v1333 = vpop.f32.mrf.mxu0
  %v1334 = vadd.f32 %v1148, %v1333
  %v1335 = vpop.f32.mrf.mxu0
  %1336 = vdwg.mxu0
  %1337 = vmatpush.bf16.msra.mxu0 %v1277
  %1338 = vmatpush.bf16.msra.mxu0 %v1273
  %1339 = vmatpush.bf16.msra.mxu0 %v1269
  %1340 = vmatpush.bf16.msra.mxu0 %v1265
  %1341 = vmatpush.bf16.msra.mxu0 %v1261
  %1342 = vmatpush.bf16.msra.mxu0 %v1257
  %1343 = vmatpush.bf16.msra.mxu0 %v1253
  %1344 = vmatpush.bf16.msra.mxu0 %v1249
  %1345 = vmatmul.bf16.gmra.mxu0 %v1114
  %v1346 = vpop.f32.mrf.mxu0
  %v1347 = vadd.f32 %v1149, %v1346
  %v1348 = vpop.f32.mrf.mxu0
  %1349 = vdwg.mxu0
  %1350 = vmatpush.bf16.msra.mxu0 %v1278
  %1351 = vmatpush.bf16.msra.mxu0 %v1274
  %1352 = vmatpush.bf16.msra.mxu0 %v1270
  %1353 = vmatpush.bf16.msra.mxu0 %v1266
  %1354 = vmatpush.bf16.msra.mxu0 %v1262
  %1355 = vmatpush.bf16.msra.mxu0 %v1258
  %1356 = vmatpush.bf16.msra.mxu0 %v1254
  %1357 = vmatpush.bf16.msra.mxu0 %v1250
  %1358 = vmatmul.bf16.gmra.mxu0 %v1114
  %v1359 = vpop.f32.mrf.mxu0
  %v1360 = vadd.f32 %v1150, %v1359
  %v1361 = vpop.f32.mrf.mxu0
  %1362 = vdwg.mxu0
  %v1363 = vld [vmem:[%s6] sm:$0xff]
  %v1364 = vxor.u32 %v1321, 2147483648
  %v1365 = vmul.f32 %v1364, 1.442695
  %v1366 = vpow.pop %v1365
  %v1367 = vadd.f32 %v1366, 1.0
  %v1368 = vrcp.pop %v1367
  %v1369 = vmul.f32 %v1367, %v1368
  %v1370 = vsub.f32 1.0, %v1369
  %v1371 = vmul.f32 %v1368, %v1370
  %v1372 = vadd.f32 %v1368, %v1371
  %vm1373 = vweird.f32 %v1367
  %vm1374 = vweird.f32 %v1368
  %vm1375 = vmor %vm1373, %vm1374
  %v1376 = vsel %vm1375, %v1368, %v1372
  %v1377 = vand.u32 2147483647, %v1367
  %vm1378 = vcmp.eq.f32.partialorder %v1377, 8.507059e+37
  %v1379 = vand.u32 %v1367, 2147483648
  %v1380 = vor.u32 1.1754944e-38, %v1379
  %v1381 = vsel %vm1378, %v1380, %v1376
  %v1382 = vmul.f32 1.0, %v1381
  %v1383 = vxor.u32 %v1334, 2147483648
  %v1384 = vmul.f32 %v1383, 1.442695
  %v1385 = vpow.pop %v1384
  %v1386 = vadd.f32 %v1385, 1.0
  %v1387 = vrcp.pop %v1386
  %v1388 = vmul.f32 %v1386, %v1387
  %v1389 = vsub.f32 1.0, %v1388
  %v1390 = vmul.f32 %v1387, %v1389
  %v1391 = vadd.f32 %v1387, %v1390
  %vm1392 = vweird.f32 %v1386
  %vm1393 = vweird.f32 %v1387
  %vm1394 = vmor %vm1392, %vm1393
  %v1395 = vsel %vm1394, %v1387, %v1391
  %v1396 = vand.u32 2147483647, %v1386
  %vm1397 = vcmp.eq.f32.partialorder %v1396, 8.507059e+37
  %v1398 = vand.u32 %v1386, 2147483648
  %v1399 = vor.u32 1.1754944e-38, %v1398
  %v1400 = vsel %vm1397, %v1399, %v1395
  %v1401 = vmul.f32 1.0, %v1400
  %v1402 = vtanh.pop %v1347
  %v1403 = vxor.u32 %v1360, 2147483648
  %v1404 = vmul.f32 %v1403, 1.442695
  %v1405 = vpow.pop %v1404
  %v1406 = vadd.f32 %v1405, 1.0
  %v1407 = vrcp.pop %v1406
  %v1408 = vmul.f32 %v1406, %v1407
  %v1409 = vsub.f32 1.0, %v1408
  %v1410 = vmul.f32 %v1407, %v1409
  %v1411 = vadd.f32 %v1407, %v1410
  %vm1412 = vweird.f32 %v1406
  %vm1413 = vweird.f32 %v1407
  %vm1414 = vmor %vm1412, %vm1413
  %v1415 = vsel %vm1414, %v1407, %v1411
  %v1416 = vand.u32 2147483647, %v1406
  %vm1417 = vcmp.eq.f32.partialorder %v1416, 8.507059e+37
  %v1418 = vand.u32 %v1406, 2147483648
  %v1419 = vor.u32 1.1754944e-38, %v1418
  %v1420 = vsel %vm1417, %v1419, %v1415
  %v1421 = vmul.f32 1.0, %v1420
  %v1422 = vmul.f32 %v1401, %v1363
  %v1423 = vmul.f32 %v1382, %v1402
  %v1424 = vadd.f32 %v1422, %v1423
  %v1425 = vtanh.pop %v1424
  %v1426 = vmul.f32 %v1421, %v1425
  %v1427 = vpack.c.bf16 %v1426, %v1426
  %v1428 = vld [vmem:[%s8] sm:$0xf]
  %v1429 = vld [vmem:[%s8 + $0x4] sm:$0xf]
  %v1430 = vld [vmem:[%s8 + $0x8] sm:$0xf]
  %v1431 = vld [vmem:[%s8 + $0xc] sm:$0xf]
  %v1432 = vld [vmem:[%s8 + $0x10] sm:$0xf]
  %v1433 = vld [vmem:[%s8 + $0x14] sm:$0xf]
  %v1434 = vld [vmem:[%s8 + $0x18] sm:$0xf]
  %v1435 = vld [vmem:[%s8 + $0x1c] sm:$0xf]
  %v1436 = vld [vmem:[%s8 + $0x20] sm:$0xf]
  %v1437 = vld [vmem:[%s8 + $0x24] sm:$0xf]
  %v1438 = vld [vmem:[%s8 + $0x28] sm:$0xf]
  %v1439 = vld [vmem:[%s8 + $0x2c] sm:$0xf]
  %v1440 = vld [vmem:[%s8 + $0x30] sm:$0xf]
  %v1441 = vld [vmem:[%s8 + $0x34] sm:$0xf]
  %v1442 = vld [vmem:[%s8 + $0x38] sm:$0xf]
  %v1443 = vld [vmem:[%s8 + $0x3c] sm:$0xf]
  %v1444 = vld [vmem:[%s9] sm:$0x1]
  %v1446 = vperm.slane %v1444, 0
  %v1464 = vunpack.c.l.b16 %v1428
  %v1465 = vunpack.c.l.b16 %v1429
  %v1466 = vunpack.c.l.b16 %v1430
  %v1467 = vunpack.c.l.b16 %v1431
  %v1468 = vunpack.c.l.b16 %v1432
  %v1469 = vunpack.c.l.b16 %v1433
  %v1470 = vunpack.c.l.b16 %v1434
  %v1471 = vunpack.c.l.b16 %v1435
  %v1472 = vunpack.c.l.b16 %v1436
  %v1473 = vunpack.c.l.b16 %v1437
  %v1474 = vunpack.c.l.b16 %v1438
  %v1475 = vunpack.c.l.b16 %v1439
  %v1476 = vunpack.c.l.b16 %v1440
  %v1477 = vunpack.c.l.b16 %v1441
  %v1478 = vunpack.c.l.b16 %v1442
  %v1479 = vunpack.c.l.b16 %v1443
  %v1480 = vpack.c.b16 %v1465, %v1464
  %v1481 = vpack.c.b16 %v1467, %v1466
  %v1482 = vpack.c.b16 %v1469, %v1468
  %v1483 = vpack.c.b16 %v1471, %v1470
  %v1484 = vpack.c.b16 %v1473, %v1472
  %v1485 = vpack.c.b16 %v1475, %v1474
  %v1486 = vpack.c.b16 %v1477, %v1476
  %v1487 = vpack.c.b16 %v1479, %v1478
  %1496 = vmatpush.bf16.msra.mxu0 %v1487
  %1497 = vmatpush.bf16.msra.mxu0 %v1486
  %1498 = vmatpush.bf16.msra.mxu0 %v1485
  %1499 = vmatpush.bf16.msra.mxu0 %v1484
  %1500 = vmatpush.bf16.msra.mxu0 %v1483
  %1501 = vmatpush.bf16.msra.mxu0 %v1482
  %1502 = vmatpush.bf16.msra.mxu0 %v1481
  %1503 = vmatpush.bf16.msra.mxu0 %v1480
  %1504 = vmatmul.bf16.gmra.mxu0 %v1427
  %v1505 = vpop.f32.mrf.mxu0
  %v1506 = vadd.f32 %v1446, %v1505
  %v1507 = vpop.f32.mrf.mxu0
  %1508 = vdwg.mxu0
  %s1509 = scalar_lea.vmem %s10, 8
  %1510 = vst [vmem:[%s1509] sm:$0xff] %v1506
  %1511 = vmax.xlane.f32.xlu0 %v1506
  %v1512 = vpop.xlane.xlu0 %1511
  %vm1513 = vcmp.eq.f32.partialorder %v1506, %v1512
  %v1514 = vsel %vm1513, %v49, 128
  %v1515 = vand.u32 %v1514, 65535
  %v1516 = vshra.s32 %v1514, 16
  %v1517 = vcvt.s32.f32 %v1515
  %v1518 = vcvt.s32.f32 %v1516
  %1519 = vmin.xlane.f32.xlu0 %v1518
  %v1520 = vpop.xlane.xlu0 %1519
  %vm1521 = vcmp.eq.f32.partialorder %v1518, %v1520
  %v1522 = vsel %vm1521, %v1517, inf
  %1523 = vmin.xlane.f32.xlu0 %v1522
  %v1524 = vpop.xlane.xlu0 %1523
  %v1525 = vcvt.f32.s32 %v1524
  %v1526 = vcvt.f32.s32 %v1520
  %v1527 = vshll.u32 %v1526, 16
  %v1528 = vadd.s32 %v1527, %v1525
  %s1529 = sadd.s32 %s51, 2
  %s1530 = smul.u32 %s1529, 8
  %s1531 = scalar_lea.vmem %s1, %s1530
  %v1532 = vld [vmem:[%s1531] sm:$0xff]
  %s1533 = sld [smem:[#allocation4 + %s785]]
  %p1534 = scmp.gt.s32.totalorder %s1533, 0
  %s1535 = scalar_select %p1534, 1, 0
  %v1536 = vstv %s1535
  %vm1537 = vcmp.eq.s32.totalorder %v1536, 1
  %v1538 = vsel %vm1537, %v1532, %v1528
  %1539 = vset.pattern.permute.xlu0 0
  %1540 = vperm.xlu0 %1539, %v1538
  %v1541 = vpop.permute.xlu0 %1540
  %vm1542 = vcmp.eq.s32.totalorder %v49, %v1541
  %v1543 = vsel %vm1542, 1, 0
  %v1544 = vcvt.s32.f32 %v1543
  %v1545 = vpack.c.bf16 %v1544, %v1544
  %v1546 = vld [vmem:[%s2] sm:$0xff]
  %v1547 = vld [vmem:[%s2 + $0x8] sm:$0xff]
  %v1548 = vld [vmem:[%s2 + $0x10] sm:$0xff]
  %v1549 = vld [vmem:[%s2 + $0x18] sm:$0xff]
  %v1550 = vld [vmem:[%s2 + $0x20] sm:$0xff]
  %v1551 = vld [vmem:[%s2 + $0x28] sm:$0xff]
  %v1552 = vld [vmem:[%s2 + $0x30] sm:$0xff]
  %v1553 = vld [vmem:[%s2 + $0x38] sm:$0xff]
  %v1554 = vld [vmem:[%s2 + $0x40] sm:$0xff]
  %v1555 = vld [vmem:[%s2 + $0x48] sm:$0xff]
  %v1556 = vld [vmem:[%s2 + $0x50] sm:$0xff]
  %v1557 = vld [vmem:[%s2 + $0x58] sm:$0xff]
  %v1558 = vld [vmem:[%s2 + $0x60] sm:$0xff]
  %v1559 = vld [vmem:[%s2 + $0x68] sm:$0xff]
  %v1560 = vld [vmem:[%s2 + $0x70] sm:$0xff]
  %v1561 = vld [vmem:[%s2 + $0x78] sm:$0xff]
  %v1562 = vld [vmem:[%s2 + $0x80] sm:$0xff]
  %v1563 = vld [vmem:[%s2 + $0x88] sm:$0xff]
  %v1564 = vld [vmem:[%s2 + $0x90] sm:$0xff]
  %v1565 = vld [vmem:[%s2 + $0x98] sm:$0xff]
  %v1566 = vld [vmem:[%s2 + $0xa0] sm:$0xff]
  %v1567 = vld [vmem:[%s2 + $0xa8] sm:$0xff]
  %v1568 = vld [vmem:[%s2 + $0xb0] sm:$0xff]
  %v1569 = vld [vmem:[%s2 + $0xb8] sm:$0xff]
  %v1570 = vld [vmem:[%s2 + $0xc0] sm:$0xff]
  %v1571 = vld [vmem:[%s2 + $0xc8] sm:$0xff]
  %v1572 = vld [vmem:[%s2 + $0xd0] sm:$0xff]
  %v1573 = vld [vmem:[%s2 + $0xd8] sm:$0xff]
  %v1574 = vld [vmem:[%s2 + $0xe0] sm:$0xff]
  %v1575 = vld [vmem:[%s2 + $0xe8] sm:$0xff]
  %v1576 = vld [vmem:[%s2 + $0xf0] sm:$0xff]
  %v1577 = vld [vmem:[%s2 + $0xf8] sm:$0xff]
  %v1578 = vld [vmem:[%s3] sm:$0xff]
  %v1579 = vld [vmem:[%s3 + $0x8] sm:$0xff]
  %v1580 = vld [vmem:[%s3 + $0x10] sm:$0xff]
  %v1581 = vld [vmem:[%s3 + $0x18] sm:$0xff]
  %v1614 = vunpack.c.l.b16 %v1546
  %v1615 = vunpack.c.h.b16 %v1546
  %v1616 = vunpack.c.l.b16 %v1547
  %v1617 = vunpack.c.h.b16 %v1547
  %v1618 = vunpack.c.l.b16 %v1548
  %v1619 = vunpack.c.h.b16 %v1548
  %v1620 = vunpack.c.l.b16 %v1549
  %v1621 = vunpack.c.h.b16 %v1549
  %v1622 = vunpack.c.l.b16 %v1550
  %v1623 = vunpack.c.h.b16 %v1550
  %v1624 = vunpack.c.l.b16 %v1551
  %v1625 = vunpack.c.h.b16 %v1551
  %v1626 = vunpack.c.l.b16 %v1552
  %v1627 = vunpack.c.h.b16 %v1552
  %v1628 = vunpack.c.l.b16 %v1553
  %v1629 = vunpack.c.h.b16 %v1553
  %v1630 = vunpack.c.l.b16 %v1554
  %v1631 = vunpack.c.h.b16 %v1554
  %v1632 = vunpack.c.l.b16 %v1555
  %v1633 = vunpack.c.h.b16 %v1555
  %v1634 = vunpack.c.l.b16 %v1556
  %v1635 = vunpack.c.h.b16 %v1556
  %v1636 = vunpack.c.l.b16 %v1557
  %v1637 = vunpack.c.h.b16 %v1557
  %v1638 = vunpack.c.l.b16 %v1558
  %v1639 = vunpack.c.h.b16 %v1558
  %v1640 = vunpack.c.l.b16 %v1559
  %v1641 = vunpack.c.h.b16 %v1559
  %v1642 = vunpack.c.l.b16 %v1560
  %v1643 = vunpack.c.h.b16 %v1560
  %v1644 = vunpack.c.l.b16 %v1561
  %v1645 = vunpack.c.h.b16 %v1561
  %v1646 = vunpack.c.l.b16 %v1562
  %v1647 = vunpack.c.h.b16 %v1562
  %v1648 = vunpack.c.l.b16 %v1563
  %v1649 = vunpack.c.h.b16 %v1563
  %v1650 = vunpack.c.l.b16 %v1564
  %v1651 = vunpack.c.h.b16 %v1564
  %v1652 = vunpack.c.l.b16 %v1565
  %v1653 = vunpack.c.h.b16 %v1565
  %v1654 = vunpack.c.l.b16 %v1566
  %v1655 = vunpack.c.h.b16 %v1566
  %v1656 = vunpack.c.l.b16 %v1567
  %v1657 = vunpack.c.h.b16 %v1567
  %v1658 = vunpack.c.l.b16 %v1568
  %v1659 = vunpack.c.h.b16 %v1568
  %v1660 = vunpack.c.l.b16 %v1569
  %v1661 = vunpack.c.h.b16 %v1569
  %v1662 = vunpack.c.l.b16 %v1570
  %v1663 = vunpack.c.h.b16 %v1570
  %v1664 = vunpack.c.l.b16 %v1571
  %v1665 = vunpack.c.h.b16 %v1571
  %v1666 = vunpack.c.l.b16 %v1572
  %v1667 = vunpack.c.h.b16 %v1572
  %v1668 = vunpack.c.l.b16 %v1573
  %v1669 = vunpack.c.h.b16 %v1573
  %v1670 = vunpack.c.l.b16 %v1574
  %v1671 = vunpack.c.h.b16 %v1574
  %v1672 = vunpack.c.l.b16 %v1575
  %v1673 = vunpack.c.h.b16 %v1575
  %v1674 = vunpack.c.l.b16 %v1576
  %v1675 = vunpack.c.h.b16 %v1576
  %v1676 = vunpack.c.l.b16 %v1577
  %v1677 = vunpack.c.h.b16 %v1577
  %v1678 = vpack.c.b16 %v1618, %v1614
  %v1679 = vpack.c.b16 %v1619, %v1615
  %v1680 = vpack.c.b16 %v1620, %v1616
  %v1681 = vpack.c.b16 %v1621, %v1617
  %v1682 = vpack.c.b16 %v1626, %v1622
  %v1683 = vpack.c.b16 %v1627, %v1623
  %v1684 = vpack.c.b16 %v1628, %v1624
  %v1685 = vpack.c.b16 %v1629, %v1625
  %v1686 = vpack.c.b16 %v1634, %v1630
  %v1687 = vpack.c.b16 %v1635, %v1631
  %v1688 = vpack.c.b16 %v1636, %v1632
  %v1689 = vpack.c.b16 %v1637, %v1633
  %v1690 = vpack.c.b16 %v1642, %v1638
  %v1691 = vpack.c.b16 %v1643, %v1639
  %v1692 = vpack.c.b16 %v1644, %v1640
  %v1693 = vpack.c.b16 %v1645, %v1641
  %v1694 = vpack.c.b16 %v1650, %v1646
  %v1695 = vpack.c.b16 %v1651, %v1647
  %v1696 = vpack.c.b16 %v1652, %v1648
  %v1697 = vpack.c.b16 %v1653, %v1649
  %v1698 = vpack.c.b16 %v1658, %v1654
  %v1699 = vpack.c.b16 %v1659, %v1655
  %v1700 = vpack.c.b16 %v1660, %v1656
  %v1701 = vpack.c.b16 %v1661, %v1657
  %v1702 = vpack.c.b16 %v1666, %v1662
  %v1703 = vpack.c.b16 %v1667, %v1663
  %v1704 = vpack.c.b16 %v1668, %v1664
  %v1705 = vpack.c.b16 %v1669, %v1665
  %v1706 = vpack.c.b16 %v1674, %v1670
  %v1707 = vpack.c.b16 %v1675, %v1671
  %v1708 = vpack.c.b16 %v1676, %v1672
  %v1709 = vpack.c.b16 %v1677, %v1673
  %1742 = vmatpush.bf16.msra.mxu0 %v1706
  %1743 = vmatpush.bf16.msra.mxu0 %v1702
  %1744 = vmatpush.bf16.msra.mxu0 %v1698
  %1745 = vmatpush.bf16.msra.mxu0 %v1694
  %1746 = vmatpush.bf16.msra.mxu0 %v1690
  %1747 = vmatpush.bf16.msra.mxu0 %v1686
  %1748 = vmatpush.bf16.msra.mxu0 %v1682
  %1749 = vmatpush.bf16.msra.mxu0 %v1678
  %1750 = vmatmul.bf16.gmra.mxu0 %v1545
  %v1751 = vpop.f32.mrf.mxu0
  %v1752 = vadd.f32 %v1578, %v1751
  %v1753 = vpop.f32.mrf.mxu0
  %1754 = vdwg.mxu0
  %1755 = vmatpush.bf16.msra.mxu0 %v1707
  %1756 = vmatpush.bf16.msra.mxu0 %v1703
  %1757 = vmatpush.bf16.msra.mxu0 %v1699
  %1758 = vmatpush.bf16.msra.mxu0 %v1695
  %1759 = vmatpush.bf16.msra.mxu0 %v1691
  %1760 = vmatpush.bf16.msra.mxu0 %v1687
  %1761 = vmatpush.bf16.msra.mxu0 %v1683
  %1762 = vmatpush.bf16.msra.mxu0 %v1679
  %1763 = vmatmul.bf16.gmra.mxu0 %v1545
  %v1764 = vpop.f32.mrf.mxu0
  %v1765 = vadd.f32 %v1579, %v1764
  %v1766 = vpop.f32.mrf.mxu0
  %1767 = vdwg.mxu0
  %1768 = vmatpush.bf16.msra.mxu0 %v1708
  %1769 = vmatpush.bf16.msra.mxu0 %v1704
  %1770 = vmatpush.bf16.msra.mxu0 %v1700
  %1771 = vmatpush.bf16.msra.mxu0 %v1696
  %1772 = vmatpush.bf16.msra.mxu0 %v1692
  %1773 = vmatpush.bf16.msra.mxu0 %v1688
  %1774 = vmatpush.bf16.msra.mxu0 %v1684
  %1775 = vmatpush.bf16.msra.mxu0 %v1680
  %1776 = vmatmul.bf16.gmra.mxu0 %v1545
  %v1777 = vpop.f32.mrf.mxu0
  %v1778 = vadd.f32 %v1580, %v1777
  %v1779 = vpop.f32.mrf.mxu0
  %1780 = vdwg.mxu0
  %1781 = vmatpush.bf16.msra.mxu0 %v1709
  %1782 = vmatpush.bf16.msra.mxu0 %v1705
  %1783 = vmatpush.bf16.msra.mxu0 %v1701
  %1784 = vmatpush.bf16.msra.mxu0 %v1697
  %1785 = vmatpush.bf16.msra.mxu0 %v1693
  %1786 = vmatpush.bf16.msra.mxu0 %v1689
  %1787 = vmatpush.bf16.msra.mxu0 %v1685
  %1788 = vmatpush.bf16.msra.mxu0 %v1681
  %1789 = vmatmul.bf16.gmra.mxu0 %v1545
  %v1790 = vpop.f32.mrf.mxu0
  %v1791 = vadd.f32 %v1581, %v1790
  %v1792 = vpop.f32.mrf.mxu0
  %1793 = vdwg.mxu0
  %v1794 = vld [vmem:[%s5] sm:$0xff]
  %v1795 = vxor.u32 %v1752, 2147483648
  %v1796 = vmul.f32 %v1795, 1.442695
  %v1797 = vpow.pop %v1796
  %v1798 = vadd.f32 %v1797, 1.0
  %v1799 = vrcp.pop %v1798
  %v1800 = vmul.f32 %v1798, %v1799
  %v1801 = vsub.f32 1.0, %v1800
  %v1802 = vmul.f32 %v1799, %v1801
  %v1803 = vadd.f32 %v1799, %v1802
  %vm1804 = vweird.f32 %v1798
  %vm1805 = vweird.f32 %v1799
  %vm1806 = vmor %vm1804, %vm1805
  %v1807 = vsel %vm1806, %v1799, %v1803
  %v1808 = vand.u32 2147483647, %v1798
  %vm1809 = vcmp.eq.f32.partialorder %v1808, 8.507059e+37
  %v1810 = vand.u32 %v1798, 2147483648
  %v1811 = vor.u32 1.1754944e-38, %v1810
  %v1812 = vsel %vm1809, %v1811, %v1807
  %v1813 = vmul.f32 1.0, %v1812
  %v1814 = vxor.u32 %v1765, 2147483648
  %v1815 = vmul.f32 %v1814, 1.442695
  %v1816 = vpow.pop %v1815
  %v1817 = vadd.f32 %v1816, 1.0
  %v1818 = vrcp.pop %v1817
  %v1819 = vmul.f32 %v1817, %v1818
  %v1820 = vsub.f32 1.0, %v1819
  %v1821 = vmul.f32 %v1818, %v1820
  %v1822 = vadd.f32 %v1818, %v1821
  %vm1823 = vweird.f32 %v1817
  %vm1824 = vweird.f32 %v1818
  %vm1825 = vmor %vm1823, %vm1824
  %v1826 = vsel %vm1825, %v1818, %v1822
  %v1827 = vand.u32 2147483647, %v1817
  %vm1828 = vcmp.eq.f32.partialorder %v1827, 8.507059e+37
  %v1829 = vand.u32 %v1817, 2147483648
  %v1830 = vor.u32 1.1754944e-38, %v1829
  %v1831 = vsel %vm1828, %v1830, %v1826
  %v1832 = vmul.f32 1.0, %v1831
  %v1833 = vtanh.pop %v1778
  %v1834 = vxor.u32 %v1791, 2147483648
  %v1835 = vmul.f32 %v1834, 1.442695
  %v1836 = vpow.pop %v1835
  %v1837 = vadd.f32 %v1836, 1.0
  %v1838 = vrcp.pop %v1837
  %v1839 = vmul.f32 %v1837, %v1838
  %v1840 = vsub.f32 1.0, %v1839
  %v1841 = vmul.f32 %v1838, %v1840
  %v1842 = vadd.f32 %v1838, %v1841
  %vm1843 = vweird.f32 %v1837
  %vm1844 = vweird.f32 %v1838
  %vm1845 = vmor %vm1843, %vm1844
  %v1846 = vsel %vm1845, %v1838, %v1842
  %v1847 = vand.u32 2147483647, %v1837
  %vm1848 = vcmp.eq.f32.partialorder %v1847, 8.507059e+37
  %v1849 = vand.u32 %v1837, 2147483648
  %v1850 = vor.u32 1.1754944e-38, %v1849
  %v1851 = vsel %vm1848, %v1850, %v1846
  %v1852 = vmul.f32 1.0, %v1851
  %v1853 = vmul.f32 %v1832, %v1794
  %v1854 = vmul.f32 %v1813, %v1833
  %v1855 = vadd.f32 %v1853, %v1854
  %v1856 = vtanh.pop %v1855
  %v1857 = vmul.f32 %v1852, %v1856
  %v1858 = vpack.c.bf16 %v1857, %v1857
  %v1859 = vld [vmem:[%s7] sm:$0xff]
  %v1860 = vld [vmem:[%s7 + $0x8] sm:$0xff]
  %v1861 = vld [vmem:[%s7 + $0x10] sm:$0xff]
  %v1862 = vld [vmem:[%s7 + $0x18] sm:$0xff]
  %v1863 = vld [vmem:[%s7 + $0x20] sm:$0xff]
  %v1864 = vld [vmem:[%s7 + $0x28] sm:$0xff]
  %v1865 = vld [vmem:[%s7 + $0x30] sm:$0xff]
  %v1866 = vld [vmem:[%s7 + $0x38] sm:$0xff]
  %v1867 = vld [vmem:[%s7 + $0x40] sm:$0xff]
  %v1868 = vld [vmem:[%s7 + $0x48] sm:$0xff]
  %v1869 = vld [vmem:[%s7 + $0x50] sm:$0xff]
  %v1870 = vld [vmem:[%s7 + $0x58] sm:$0xff]
  %v1871 = vld [vmem:[%s7 + $0x60] sm:$0xff]
  %v1872 = vld [vmem:[%s7 + $0x68] sm:$0xff]
  %v1873 = vld [vmem:[%s7 + $0x70] sm:$0xff]
  %v1874 = vld [vmem:[%s7 + $0x78] sm:$0xff]
  %v1875 = vld [vmem:[%s7 + $0x80] sm:$0xff]
  %v1876 = vld [vmem:[%s7 + $0x88] sm:$0xff]
  %v1877 = vld [vmem:[%s7 + $0x90] sm:$0xff]
  %v1878 = vld [vmem:[%s7 + $0x98] sm:$0xff]
  %v1879 = vld [vmem:[%s7 + $0xa0] sm:$0xff]
  %v1880 = vld [vmem:[%s7 + $0xa8] sm:$0xff]
  %v1881 = vld [vmem:[%s7 + $0xb0] sm:$0xff]
  %v1882 = vld [vmem:[%s7 + $0xb8] sm:$0xff]
  %v1883 = vld [vmem:[%s7 + $0xc0] sm:$0xff]
  %v1884 = vld [vmem:[%s7 + $0xc8] sm:$0xff]
  %v1885 = vld [vmem:[%s7 + $0xd0] sm:$0xff]
  %v1886 = vld [vmem:[%s7 + $0xd8] sm:$0xff]
  %v1887 = vld [vmem:[%s7 + $0xe0] sm:$0xff]
  %v1888 = vld [vmem:[%s7 + $0xe8] sm:$0xff]
  %v1889 = vld [vmem:[%s7 + $0xf0] sm:$0xff]
  %v1890 = vld [vmem:[%s7 + $0xf8] sm:$0xff]
  %v1891 = vld [vmem:[%s4] sm:$0xff]
  %v1892 = vld [vmem:[%s4 + $0x8] sm:$0xff]
  %v1893 = vld [vmem:[%s4 + $0x10] sm:$0xff]
  %v1894 = vld [vmem:[%s4 + $0x18] sm:$0xff]
  %v1927 = vunpack.c.l.b16 %v1859
  %v1928 = vunpack.c.h.b16 %v1859
  %v1929 = vunpack.c.l.b16 %v1860
  %v1930 = vunpack.c.h.b16 %v1860
  %v1931 = vunpack.c.l.b16 %v1861
  %v1932 = vunpack.c.h.b16 %v1861
  %v1933 = vunpack.c.l.b16 %v1862
  %v1934 = vunpack.c.h.b16 %v1862
  %v1935 = vunpack.c.l.b16 %v1863
  %v1936 = vunpack.c.h.b16 %v1863
  %v1937 = vunpack.c.l.b16 %v1864
  %v1938 = vunpack.c.h.b16 %v1864
  %v1939 = vunpack.c.l.b16 %v1865
  %v1940 = vunpack.c.h.b16 %v1865
  %v1941 = vunpack.c.l.b16 %v1866
  %v1942 = vunpack.c.h.b16 %v1866
  %v1943 = vunpack.c.l.b16 %v1867
  %v1944 = vunpack.c.h.b16 %v1867
  %v1945 = vunpack.c.l.b16 %v1868
  %v1946 = vunpack.c.h.b16 %v1868
  %v1947 = vunpack.c.l.b16 %v1869
  %v1948 = vunpack.c.h.b16 %v1869
  %v1949 = vunpack.c.l.b16 %v1870
  %v1950 = vunpack.c.h.b16 %v1870
  %v1951 = vunpack.c.l.b16 %v1871
  %v1952 = vunpack.c.h.b16 %v1871
  %v1953 = vunpack.c.l.b16 %v1872
  %v1954 = vunpack.c.h.b16 %v1872
  %v1955 = vunpack.c.l.b16 %v1873
  %v1956 = vunpack.c.h.b16 %v1873
  %v1957 = vunpack.c.l.b16 %v1874
  %v1958 = vunpack.c.h.b16 %v1874
  %v1959 = vunpack.c.l.b16 %v1875
  %v1960 = vunpack.c.h.b16 %v1875
  %v1961 = vunpack.c.l.b16 %v1876
  %v1962 = vunpack.c.h.b16 %v1876
  %v1963 = vunpack.c.l.b16 %v1877
  %v1964 = vunpack.c.h.b16 %v1877
  %v1965 = vunpack.c.l.b16 %v1878
  %v1966 = vunpack.c.h.b16 %v1878
  %v1967 = vunpack.c.l.b16 %v1879
  %v1968 = vunpack.c.h.b16 %v1879
  %v1969 = vunpack.c.l.b16 %v1880
  %v1970 = vunpack.c.h.b16 %v1880
  %v1971 = vunpack.c.l.b16 %v1881
  %v1972 = vunpack.c.h.b16 %v1881
  %v1973 = vunpack.c.l.b16 %v1882
  %v1974 = vunpack.c.h.b16 %v1882
  %v1975 = vunpack.c.l.b16 %v1883
  %v1976 = vunpack.c.h.b16 %v1883
  %v1977 = vunpack.c.l.b16 %v1884
  %v1978 = vunpack.c.h.b16 %v1884
  %v1979 = vunpack.c.l.b16 %v1885
  %v1980 = vunpack.c.h.b16 %v1885
  %v1981 = vunpack.c.l.b16 %v1886
  %v1982 = vunpack.c.h.b16 %v1886
  %v1983 = vunpack.c.l.b16 %v1887
  %v1984 = vunpack.c.h.b16 %v1887
  %v1985 = vunpack.c.l.b16 %v1888
  %v1986 = vunpack.c.h.b16 %v1888
  %v1987 = vunpack.c.l.b16 %v1889
  %v1988 = vunpack.c.h.b16 %v1889
  %v1989 = vunpack.c.l.b16 %v1890
  %v1990 = vunpack.c.h.b16 %v1890
  %v1991 = vpack.c.b16 %v1931, %v1927
  %v1992 = vpack.c.b16 %v1932, %v1928
  %v1993 = vpack.c.b16 %v1933, %v1929
  %v1994 = vpack.c.b16 %v1934, %v1930
  %v1995 = vpack.c.b16 %v1939, %v1935
  %v1996 = vpack.c.b16 %v1940, %v1936
  %v1997 = vpack.c.b16 %v1941, %v1937
  %v1998 = vpack.c.b16 %v1942, %v1938
  %v1999 = vpack.c.b16 %v1947, %v1943
  %v2000 = vpack.c.b16 %v1948, %v1944
  %v2001 = vpack.c.b16 %v1949, %v1945
  %v2002 = vpack.c.b16 %v1950, %v1946
  %v2003 = vpack.c.b16 %v1955, %v1951
  %v2004 = vpack.c.b16 %v1956, %v1952
  %v2005 = vpack.c.b16 %v1957, %v1953
  %v2006 = vpack.c.b16 %v1958, %v1954
  %v2007 = vpack.c.b16 %v1963, %v1959
  %v2008 = vpack.c.b16 %v1964, %v1960
  %v2009 = vpack.c.b16 %v1965, %v1961
  %v2010 = vpack.c.b16 %v1966, %v1962
  %v2011 = vpack.c.b16 %v1971, %v1967
  %v2012 = vpack.c.b16 %v1972, %v1968
  %v2013 = vpack.c.b16 %v1973, %v1969
  %v2014 = vpack.c.b16 %v1974, %v1970
  %v2015 = vpack.c.b16 %v1979, %v1975
  %v2016 = vpack.c.b16 %v1980, %v1976
  %v2017 = vpack.c.b16 %v1981, %v1977
  %v2018 = vpack.c.b16 %v1982, %v1978
  %v2019 = vpack.c.b16 %v1987, %v1983
  %v2020 = vpack.c.b16 %v1988, %v1984
  %v2021 = vpack.c.b16 %v1989, %v1985
  %v2022 = vpack.c.b16 %v1990, %v1986
  %2055 = vmatpush.bf16.msra.mxu0 %v2019
  %2056 = vmatpush.bf16.msra.mxu0 %v2015
  %2057 = vmatpush.bf16.msra.mxu0 %v2011
  %2058 = vmatpush.bf16.msra.mxu0 %v2007
  %2059 = vmatpush.bf16.msra.mxu0 %v2003
  %2060 = vmatpush.bf16.msra.mxu0 %v1999
  %2061 = vmatpush.bf16.msra.mxu0 %v1995
  %2062 = vmatpush.bf16.msra.mxu0 %v1991
  %2063 = vmatmul.bf16.gmra.mxu0 %v1858
  %v2064 = vpop.f32.mrf.mxu0
  %v2065 = vadd.f32 %v1891, %v2064
  %v2066 = vpop.f32.mrf.mxu0
  %2067 = vdwg.mxu0
  %2068 = vmatpush.bf16.msra.mxu0 %v2020
  %2069 = vmatpush.bf16.msra.mxu0 %v2016
  %2070 = vmatpush.bf16.msra.mxu0 %v2012
  %2071 = vmatpush.bf16.msra.mxu0 %v2008
  %2072 = vmatpush.bf16.msra.mxu0 %v2004
  %2073 = vmatpush.bf16.msra.mxu0 %v2000
  %2074 = vmatpush.bf16.msra.mxu0 %v1996
  %2075 = vmatpush.bf16.msra.mxu0 %v1992
  %2076 = vmatmul.bf16.gmra.mxu0 %v1858
  %v2077 = vpop.f32.mrf.mxu0
  %v2078 = vadd.f32 %v1892, %v2077
  %v2079 = vpop.f32.mrf.mxu0
  %2080 = vdwg.mxu0
  %2081 = vmatpush.bf16.msra.mxu0 %v2021
  %2082 = vmatpush.bf16.msra.mxu0 %v2017
  %2083 = vmatpush.bf16.msra.mxu0 %v2013
  %2084 = vmatpush.bf16.msra.mxu0 %v2009
  %2085 = vmatpush.bf16.msra.mxu0 %v2005
  %2086 = vmatpush.bf16.msra.mxu0 %v2001
  %2087 = vmatpush.bf16.msra.mxu0 %v1997
  %2088 = vmatpush.bf16.msra.mxu0 %v1993
  %2089 = vmatmul.bf16.gmra.mxu0 %v1858
  %v2090 = vpop.f32.mrf.mxu0
  %v2091 = vadd.f32 %v1893, %v2090
  %v2092 = vpop.f32.mrf.mxu0
  %2093 = vdwg.mxu0
  %2094 = vmatpush.bf16.msra.mxu0 %v2022
  %2095 = vmatpush.bf16.msra.mxu0 %v2018
  %2096 = vmatpush.bf16.msra.mxu0 %v2014
  %2097 = vmatpush.bf16.msra.mxu0 %v2010
  %2098 = vmatpush.bf16.msra.mxu0 %v2006
  %2099 = vmatpush.bf16.msra.mxu0 %v2002
  %2100 = vmatpush.bf16.msra.mxu0 %v1998
  %2101 = vmatpush.bf16.msra.mxu0 %v1994
  %2102 = vmatmul.bf16.gmra.mxu0 %v1858
  %v2103 = vpop.f32.mrf.mxu0
  %v2104 = vadd.f32 %v1894, %v2103
  %v2105 = vpop.f32.mrf.mxu0
  %2106 = vdwg.mxu0
  %v2107 = vld [vmem:[%s6] sm:$0xff]
  %v2108 = vxor.u32 %v2065, 2147483648
  %v2109 = vmul.f32 %v2108, 1.442695
  %v2110 = vpow.pop %v2109
  %v2111 = vadd.f32 %v2110, 1.0
  %v2112 = vrcp.pop %v2111
  %v2113 = vmul.f32 %v2111, %v2112
  %v2114 = vsub.f32 1.0, %v2113
  %v2115 = vmul.f32 %v2112, %v2114
  %v2116 = vadd.f32 %v2112, %v2115
  %vm2117 = vweird.f32 %v2111
  %vm2118 = vweird.f32 %v2112
  %vm2119 = vmor %vm2117, %vm2118
  %v2120 = vsel %vm2119, %v2112, %v2116
  %v2121 = vand.u32 2147483647, %v2111
  %vm2122 = vcmp.eq.f32.partialorder %v2121, 8.507059e+37
  %v2123 = vand.u32 %v2111, 2147483648
  %v2124 = vor.u32 1.1754944e-38, %v2123
  %v2125 = vsel %vm2122, %v2124, %v2120
  %v2126 = vmul.f32 1.0, %v2125
  %v2127 = vxor.u32 %v2078, 2147483648
  %v2128 = vmul.f32 %v2127, 1.442695
  %v2129 = vpow.pop %v2128
  %v2130 = vadd.f32 %v2129, 1.0
  %v2131 = vrcp.pop %v2130
  %v2132 = vmul.f32 %v2130, %v2131
  %v2133 = vsub.f32 1.0, %v2132
  %v2134 = vmul.f32 %v2131, %v2133
  %v2135 = vadd.f32 %v2131, %v2134
  %vm2136 = vweird.f32 %v2130
  %vm2137 = vweird.f32 %v2131
  %vm2138 = vmor %vm2136, %vm2137
  %v2139 = vsel %vm2138, %v2131, %v2135
  %v2140 = vand.u32 2147483647, %v2130
  %vm2141 = vcmp.eq.f32.partialorder %v2140, 8.507059e+37
  %v2142 = vand.u32 %v2130, 2147483648
  %v2143 = vor.u32 1.1754944e-38, %v2142
  %v2144 = vsel %vm2141, %v2143, %v2139
  %v2145 = vmul.f32 1.0, %v2144
  %v2146 = vtanh.pop %v2091
  %v2147 = vxor.u32 %v2104, 2147483648
  %v2148 = vmul.f32 %v2147, 1.442695
  %v2149 = vpow.pop %v2148
  %v2150 = vadd.f32 %v2149, 1.0
  %v2151 = vrcp.pop %v2150
  %v2152 = vmul.f32 %v2150, %v2151
  %v2153 = vsub.f32 1.0, %v2152
  %v2154 = vmul.f32 %v2151, %v2153
  %v2155 = vadd.f32 %v2151, %v2154
  %vm2156 = vweird.f32 %v2150
  %vm2157 = vweird.f32 %v2151
  %vm2158 = vmor %vm2156, %vm2157
  %v2159 = vsel %vm2158, %v2151, %v2155
  %v2160 = vand.u32 2147483647, %v2150
  %vm2161 = vcmp.eq.f32.partialorder %v2160, 8.507059e+37
  %v2162 = vand.u32 %v2150, 2147483648
  %v2163 = vor.u32 1.1754944e-38, %v2162
  %v2164 = vsel %vm2161, %v2163, %v2159
  %v2165 = vmul.f32 1.0, %v2164
  %v2166 = vmul.f32 %v2145, %v2107
  %v2167 = vmul.f32 %v2126, %v2146
  %v2168 = vadd.f32 %v2166, %v2167
  %v2169 = vtanh.pop %v2168
  %v2170 = vmul.f32 %v2165, %v2169
  %v2171 = vpack.c.bf16 %v2170, %v2170
  %v2172 = vld [vmem:[%s8] sm:$0xf]
  %v2173 = vld [vmem:[%s8 + $0x4] sm:$0xf]
  %v2174 = vld [vmem:[%s8 + $0x8] sm:$0xf]
  %v2175 = vld [vmem:[%s8 + $0xc] sm:$0xf]
  %v2176 = vld [vmem:[%s8 + $0x10] sm:$0xf]
  %v2177 = vld [vmem:[%s8 + $0x14] sm:$0xf]
  %v2178 = vld [vmem:[%s8 + $0x18] sm:$0xf]
  %v2179 = vld [vmem:[%s8 + $0x1c] sm:$0xf]
  %v2180 = vld [vmem:[%s8 + $0x20] sm:$0xf]
  %v2181 = vld [vmem:[%s8 + $0x24] sm:$0xf]
  %v2182 = vld [vmem:[%s8 + $0x28] sm:$0xf]
  %v2183 = vld [vmem:[%s8 + $0x2c] sm:$0xf]
  %v2184 = vld [vmem:[%s8 + $0x30] sm:$0xf]
  %v2185 = vld [vmem:[%s8 + $0x34] sm:$0xf]
  %v2186 = vld [vmem:[%s8 + $0x38] sm:$0xf]
  %v2187 = vld [vmem:[%s8 + $0x3c] sm:$0xf]
  %v2188 = vld [vmem:[%s9] sm:$0x1]
  %v2190 = vperm.slane %v2188, 0
  %v2208 = vunpack.c.l.b16 %v2172
  %v2209 = vunpack.c.l.b16 %v2173
  %v2210 = vunpack.c.l.b16 %v2174
  %v2211 = vunpack.c.l.b16 %v2175
  %v2212 = vunpack.c.l.b16 %v2176
  %v2213 = vunpack.c.l.b16 %v2177
  %v2214 = vunpack.c.l.b16 %v2178
  %v2215 = vunpack.c.l.b16 %v2179
  %v2216 = vunpack.c.l.b16 %v2180
  %v2217 = vunpack.c.l.b16 %v2181
  %v2218 = vunpack.c.l.b16 %v2182
  %v2219 = vunpack.c.l.b16 %v2183
  %v2220 = vunpack.c.l.b16 %v2184
  %v2221 = vunpack.c.l.b16 %v2185
  %v2222 = vunpack.c.l.b16 %v2186
  %v2223 = vunpack.c.l.b16 %v2187
  %v2224 = vpack.c.b16 %v2209, %v2208
  %v2225 = vpack.c.b16 %v2211, %v2210
  %v2226 = vpack.c.b16 %v2213, %v2212
  %v2227 = vpack.c.b16 %v2215, %v2214
  %v2228 = vpack.c.b16 %v2217, %v2216
  %v2229 = vpack.c.b16 %v2219, %v2218
  %v2230 = vpack.c.b16 %v2221, %v2220
  %v2231 = vpack.c.b16 %v2223, %v2222
  %2240 = vmatpush.bf16.msra.mxu0 %v2231
  %2241 = vmatpush.bf16.msra.mxu0 %v2230
  %2242 = vmatpush.bf16.msra.mxu0 %v2229
  %2243 = vmatpush.bf16.msra.mxu0 %v2228
  %2244 = vmatpush.bf16.msra.mxu0 %v2227
  %2245 = vmatpush.bf16.msra.mxu0 %v2226
  %2246 = vmatpush.bf16.msra.mxu0 %v2225
  %2247 = vmatpush.bf16.msra.mxu0 %v2224
  %2248 = vmatmul.bf16.gmra.mxu0 %v2171
  %v2249 = vpop.f32.mrf.mxu0
  %v2250 = vadd.f32 %v2190, %v2249
  %v2251 = vpop.f32.mrf.mxu0
  %2252 = vdwg.mxu0
  %s2253 = scalar_lea.vmem %s10, 16
  %2254 = vst [vmem:[%s2253] sm:$0xff] %v2250
  %2255 = vmax.xlane.f32.xlu0 %v2250
  %v2256 = vpop.xlane.xlu0 %2255
  %vm2257 = vcmp.eq.f32.partialorder %v2250, %v2256
  %v2258 = vsel %vm2257, %v49, 128
  %v2259 = vand.u32 %v2258, 65535
  %v2260 = vshra.s32 %v2258, 16
  %v2261 = vcvt.s32.f32 %v2259
  %v2262 = vcvt.s32.f32 %v2260
  %2263 = vmin.xlane.f32.xlu0 %v2262
  %v2264 = vpop.xlane.xlu0 %2263
  %vm2265 = vcmp.eq.f32.partialorder %v2262, %v2264
  %v2266 = vsel %vm2265, %v2261, inf
  %2267 = vmin.xlane.f32.xlu0 %v2266
  %v2268 = vpop.xlane.xlu0 %2267
  %v2269 = vcvt.f32.s32 %v2268
  %v2270 = vcvt.f32.s32 %v2264
  %v2271 = vshll.u32 %v2270, 16
  %v2272 = vadd.s32 %v2271, %v2269
  %s2273 = sadd.s32 %s51, 3
  %s2274 = smul.u32 %s2273, 8
  %s2275 = scalar_lea.vmem %s1, %s2274
  %v2276 = vld [vmem:[%s2275] sm:$0xff]
  %s2277 = sld [smem:[#allocation4 + %s1529]]
  %p2278 = scmp.gt.s32.totalorder %s2277, 0
  %s2279 = scalar_select %p2278, 1, 0
  %v2280 = vstv %s2279
  %vm2281 = vcmp.eq.s32.totalorder %v2280, 1
  %v2282 = vsel %vm2281, %v2276, %v2272
  %2283 = vset.pattern.permute.xlu0 0
  %2284 = vperm.xlu0 %2283, %v2282
  %v2285 = vpop.permute.xlu0 %2284
  %vm2286 = vcmp.eq.s32.totalorder %v49, %v2285
  %v2287 = vsel %vm2286, 1, 0
  %v2288 = vcvt.s32.f32 %v2287
  %v2289 = vpack.c.bf16 %v2288, %v2288
  %v2290 = vld [vmem:[%s2] sm:$0xff]
  %v2291 = vld [vmem:[%s2 + $0x8] sm:$0xff]
  %v2292 = vld [vmem:[%s2 + $0x10] sm:$0xff]
  %v2293 = vld [vmem:[%s2 + $0x18] sm:$0xff]
  %v2294 = vld [vmem:[%s2 + $0x20] sm:$0xff]
  %v2295 = vld [vmem:[%s2 + $0x28] sm:$0xff]
  %v2296 = vld [vmem:[%s2 + $0x30] sm:$0xff]
  %v2297 = vld [vmem:[%s2 + $0x38] sm:$0xff]
  %v2298 = vld [vmem:[%s2 + $0x40] sm:$0xff]
  %v2299 = vld [vmem:[%s2 + $0x48] sm:$0xff]
  %v2300 = vld [vmem:[%s2 + $0x50] sm:$0xff]
  %v2301 = vld [vmem:[%s2 + $0x58] sm:$0xff]
  %v2302 = vld [vmem:[%s2 + $0x60] sm:$0xff]
  %v2303 = vld [vmem:[%s2 + $0x68] sm:$0xff]
  %v2304 = vld [vmem:[%s2 + $0x70] sm:$0xff]
  %v2305 = vld [vmem:[%s2 + $0x78] sm:$0xff]
  %v2306 = vld [vmem:[%s2 + $0x80] sm:$0xff]
  %v2307 = vld [vmem:[%s2 + $0x88] sm:$0xff]
  %v2308 = vld [vmem:[%s2 + $0x90] sm:$0xff]
  %v2309 = vld [vmem:[%s2 + $0x98] sm:$0xff]
  %v2310 = vld [vmem:[%s2 + $0xa0] sm:$0xff]
  %v2311 = vld [vmem:[%s2 + $0xa8] sm:$0xff]
  %v2312 = vld [vmem:[%s2 + $0xb0] sm:$0xff]
  %v2313 = vld [vmem:[%s2 + $0xb8] sm:$0xff]
  %v2314 = vld [vmem:[%s2 + $0xc0] sm:$0xff]
  %v2315 = vld [vmem:[%s2 + $0xc8] sm:$0xff]
  %v2316 = vld [vmem:[%s2 + $0xd0] sm:$0xff]
  %v2317 = vld [vmem:[%s2 + $0xd8] sm:$0xff]
  %v2318 = vld [vmem:[%s2 + $0xe0] sm:$0xff]
  %v2319 = vld [vmem:[%s2 + $0xe8] sm:$0xff]
  %v2320 = vld [vmem:[%s2 + $0xf0] sm:$0xff]
  %v2321 = vld [vmem:[%s2 + $0xf8] sm:$0xff]
  %v2322 = vld [vmem:[%s3] sm:$0xff]
  %v2323 = vld [vmem:[%s3 + $0x8] sm:$0xff]
  %v2324 = vld [vmem:[%s3 + $0x10] sm:$0xff]
  %v2325 = vld [vmem:[%s3 + $0x18] sm:$0xff]
  %v2358 = vunpack.c.l.b16 %v2290
  %v2359 = vunpack.c.h.b16 %v2290
  %v2360 = vunpack.c.l.b16 %v2291
  %v2361 = vunpack.c.h.b16 %v2291
  %v2362 = vunpack.c.l.b16 %v2292
  %v2363 = vunpack.c.h.b16 %v2292
  %v2364 = vunpack.c.l.b16 %v2293
  %v2365 = vunpack.c.h.b16 %v2293
  %v2366 = vunpack.c.l.b16 %v2294
  %v2367 = vunpack.c.h.b16 %v2294
  %v2368 = vunpack.c.l.b16 %v2295
  %v2369 = vunpack.c.h.b16 %v2295
  %v2370 = vunpack.c.l.b16 %v2296
  %v2371 = vunpack.c.h.b16 %v2296
  %v2372 = vunpack.c.l.b16 %v2297
  %v2373 = vunpack.c.h.b16 %v2297
  %v2374 = vunpack.c.l.b16 %v2298
  %v2375 = vunpack.c.h.b16 %v2298
  %v2376 = vunpack.c.l.b16 %v2299
  %v2377 = vunpack.c.h.b16 %v2299
  %v2378 = vunpack.c.l.b16 %v2300
  %v2379 = vunpack.c.h.b16 %v2300
  %v2380 = vunpack.c.l.b16 %v2301
  %v2381 = vunpack.c.h.b16 %v2301
  %v2382 = vunpack.c.l.b16 %v2302
  %v2383 = vunpack.c.h.b16 %v2302
  %v2384 = vunpack.c.l.b16 %v2303
  %v2385 = vunpack.c.h.b16 %v2303
  %v2386 = vunpack.c.l.b16 %v2304
  %v2387 = vunpack.c.h.b16 %v2304
  %v2388 = vunpack.c.l.b16 %v2305
  %v2389 = vunpack.c.h.b16 %v2305
  %v2390 = vunpack.c.l.b16 %v2306
  %v2391 = vunpack.c.h.b16 %v2306
  %v2392 = vunpack.c.l.b16 %v2307
  %v2393 = vunpack.c.h.b16 %v2307
  %v2394 = vunpack.c.l.b16 %v2308
  %v2395 = vunpack.c.h.b16 %v2308
  %v2396 = vunpack.c.l.b16 %v2309
  %v2397 = vunpack.c.h.b16 %v2309
  %v2398 = vunpack.c.l.b16 %v2310
  %v2399 = vunpack.c.h.b16 %v2310
  %v2400 = vunpack.c.l.b16 %v2311
  %v2401 = vunpack.c.h.b16 %v2311
  %v2402 = vunpack.c.l.b16 %v2312
  %v2403 = vunpack.c.h.b16 %v2312
  %v2404 = vunpack.c.l.b16 %v2313
  %v2405 = vunpack.c.h.b16 %v2313
  %v2406 = vunpack.c.l.b16 %v2314
  %v2407 = vunpack.c.h.b16 %v2314
  %v2408 = vunpack.c.l.b16 %v2315
  %v2409 = vunpack.c.h.b16 %v2315
  %v2410 = vunpack.c.l.b16 %v2316
  %v2411 = vunpack.c.h.b16 %v2316
  %v2412 = vunpack.c.l.b16 %v2317
  %v2413 = vunpack.c.h.b16 %v2317
  %v2414 = vunpack.c.l.b16 %v2318
  %v2415 = vunpack.c.h.b16 %v2318
  %v2416 = vunpack.c.l.b16 %v2319
  %v2417 = vunpack.c.h.b16 %v2319
  %v2418 = vunpack.c.l.b16 %v2320
  %v2419 = vunpack.c.h.b16 %v2320
  %v2420 = vunpack.c.l.b16 %v2321
  %v2421 = vunpack.c.h.b16 %v2321
  %v2422 = vpack.c.b16 %v2362, %v2358
  %v2423 = vpack.c.b16 %v2363, %v2359
  %v2424 = vpack.c.b16 %v2364, %v2360
  %v2425 = vpack.c.b16 %v2365, %v2361
  %v2426 = vpack.c.b16 %v2370, %v2366
  %v2427 = vpack.c.b16 %v2371, %v2367
  %v2428 = vpack.c.b16 %v2372, %v2368
  %v2429 = vpack.c.b16 %v2373, %v2369
  %v2430 = vpack.c.b16 %v2378, %v2374
  %v2431 = vpack.c.b16 %v2379, %v2375
  %v2432 = vpack.c.b16 %v2380, %v2376
  %v2433 = vpack.c.b16 %v2381, %v2377
  %v2434 = vpack.c.b16 %v2386, %v2382
  %v2435 = vpack.c.b16 %v2387, %v2383
  %v2436 = vpack.c.b16 %v2388, %v2384
  %v2437 = vpack.c.b16 %v2389, %v2385
  %v2438 = vpack.c.b16 %v2394, %v2390
  %v2439 = vpack.c.b16 %v2395, %v2391
  %v2440 = vpack.c.b16 %v2396, %v2392
  %v2441 = vpack.c.b16 %v2397, %v2393
  %v2442 = vpack.c.b16 %v2402, %v2398
  %v2443 = vpack.c.b16 %v2403, %v2399
  %v2444 = vpack.c.b16 %v2404, %v2400
  %v2445 = vpack.c.b16 %v2405, %v2401
  %v2446 = vpack.c.b16 %v2410, %v2406
  %v2447 = vpack.c.b16 %v2411, %v2407
  %v2448 = vpack.c.b16 %v2412, %v2408
  %v2449 = vpack.c.b16 %v2413, %v2409
  %v2450 = vpack.c.b16 %v2418, %v2414
  %v2451 = vpack.c.b16 %v2419, %v2415
  %v2452 = vpack.c.b16 %v2420, %v2416
  %v2453 = vpack.c.b16 %v2421, %v2417
  %2486 = vmatpush.bf16.msra.mxu0 %v2450
  %2487 = vmatpush.bf16.msra.mxu0 %v2446
  %2488 = vmatpush.bf16.msra.mxu0 %v2442
  %2489 = vmatpush.bf16.msra.mxu0 %v2438
  %2490 = vmatpush.bf16.msra.mxu0 %v2434
  %2491 = vmatpush.bf16.msra.mxu0 %v2430
  %2492 = vmatpush.bf16.msra.mxu0 %v2426
  %2493 = vmatpush.bf16.msra.mxu0 %v2422
  %2494 = vmatmul.bf16.gmra.mxu0 %v2289
  %v2495 = vpop.f32.mrf.mxu0
  %v2496 = vadd.f32 %v2322, %v2495
  %v2497 = vpop.f32.mrf.mxu0
  %2498 = vdwg.mxu0
  %2499 = vmatpush.bf16.msra.mxu0 %v2451
  %2500 = vmatpush.bf16.msra.mxu0 %v2447
  %2501 = vmatpush.bf16.msra.mxu0 %v2443
  %2502 = vmatpush.bf16.msra.mxu0 %v2439
  %2503 = vmatpush.bf16.msra.mxu0 %v2435
  %2504 = vmatpush.bf16.msra.mxu0 %v2431
  %2505 = vmatpush.bf16.msra.mxu0 %v2427
  %2506 = vmatpush.bf16.msra.mxu0 %v2423
  %2507 = vmatmul.bf16.gmra.mxu0 %v2289
  %v2508 = vpop.f32.mrf.mxu0
  %v2509 = vadd.f32 %v2323, %v2508
  %v2510 = vpop.f32.mrf.mxu0
  %2511 = vdwg.mxu0
  %2512 = vmatpush.bf16.msra.mxu0 %v2452
  %2513 = vmatpush.bf16.msra.mxu0 %v2448
  %2514 = vmatpush.bf16.msra.mxu0 %v2444
  %2515 = vmatpush.bf16.msra.mxu0 %v2440
  %2516 = vmatpush.bf16.msra.mxu0 %v2436
  %2517 = vmatpush.bf16.msra.mxu0 %v2432
  %2518 = vmatpush.bf16.msra.mxu0 %v2428
  %2519 = vmatpush.bf16.msra.mxu0 %v2424
  %2520 = vmatmul.bf16.gmra.mxu0 %v2289
  %v2521 = vpop.f32.mrf.mxu0
  %v2522 = vadd.f32 %v2324, %v2521
  %v2523 = vpop.f32.mrf.mxu0
  %2524 = vdwg.mxu0
  %2525 = vmatpush.bf16.msra.mxu0 %v2453
  %2526 = vmatpush.bf16.msra.mxu0 %v2449
  %2527 = vmatpush.bf16.msra.mxu0 %v2445
  %2528 = vmatpush.bf16.msra.mxu0 %v2441
  %2529 = vmatpush.bf16.msra.mxu0 %v2437
  %2530 = vmatpush.bf16.msra.mxu0 %v2433
  %2531 = vmatpush.bf16.msra.mxu0 %v2429
  %2532 = vmatpush.bf16.msra.mxu0 %v2425
  %2533 = vmatmul.bf16.gmra.mxu0 %v2289
  %v2534 = vpop.f32.mrf.mxu0
  %v2535 = vadd.f32 %v2325, %v2534
  %v2536 = vpop.f32.mrf.mxu0
  %2537 = vdwg.mxu0
  %v2538 = vld [vmem:[%s5] sm:$0xff]
  %v2539 = vxor.u32 %v2496, 2147483648
  %v2540 = vmul.f32 %v2539, 1.442695
  %v2541 = vpow.pop %v2540
  %v2542 = vadd.f32 %v2541, 1.0
  %v2543 = vrcp.pop %v2542
  %v2544 = vmul.f32 %v2542, %v2543
  %v2545 = vsub.f32 1.0, %v2544
  %v2546 = vmul.f32 %v2543, %v2545
  %v2547 = vadd.f32 %v2543, %v2546
  %vm2548 = vweird.f32 %v2542
  %vm2549 = vweird.f32 %v2543
  %vm2550 = vmor %vm2548, %vm2549
  %v2551 = vsel %vm2550, %v2543, %v2547
  %v2552 = vand.u32 2147483647, %v2542
  %vm2553 = vcmp.eq.f32.partialorder %v2552, 8.507059e+37
  %v2554 = vand.u32 %v2542, 2147483648
  %v2555 = vor.u32 1.1754944e-38, %v2554
  %v2556 = vsel %vm2553, %v2555, %v2551
  %v2557 = vmul.f32 1.0, %v2556
  %v2558 = vxor.u32 %v2509, 2147483648
  %v2559 = vmul.f32 %v2558, 1.442695
  %v2560 = vpow.pop %v2559
  %v2561 = vadd.f32 %v2560, 1.0
  %v2562 = vrcp.pop %v2561
  %v2563 = vmul.f32 %v2561, %v2562
  %v2564 = vsub.f32 1.0, %v2563
  %v2565 = vmul.f32 %v2562, %v2564
  %v2566 = vadd.f32 %v2562, %v2565
  %vm2567 = vweird.f32 %v2561
  %vm2568 = vweird.f32 %v2562
  %vm2569 = vmor %vm2567, %vm2568
  %v2570 = vsel %vm2569, %v2562, %v2566
  %v2571 = vand.u32 2147483647, %v2561
  %vm2572 = vcmp.eq.f32.partialorder %v2571, 8.507059e+37
  %v2573 = vand.u32 %v2561, 2147483648
  %v2574 = vor.u32 1.1754944e-38, %v2573
  %v2575 = vsel %vm2572, %v2574, %v2570
  %v2576 = vmul.f32 1.0, %v2575
  %v2577 = vtanh.pop %v2522
  %v2578 = vxor.u32 %v2535, 2147483648
  %v2579 = vmul.f32 %v2578, 1.442695
  %v2580 = vpow.pop %v2579
  %v2581 = vadd.f32 %v2580, 1.0
  %v2582 = vrcp.pop %v2581
  %v2583 = vmul.f32 %v2581, %v2582
  %v2584 = vsub.f32 1.0, %v2583
  %v2585 = vmul.f32 %v2582, %v2584
  %v2586 = vadd.f32 %v2582, %v2585
  %vm2587 = vweird.f32 %v2581
  %vm2588 = vweird.f32 %v2582
  %vm2589 = vmor %vm2587, %vm2588
  %v2590 = vsel %vm2589, %v2582, %v2586
  %v2591 = vand.u32 2147483647, %v2581
  %vm2592 = vcmp.eq.f32.partialorder %v2591, 8.507059e+37
  %v2593 = vand.u32 %v2581, 2147483648
  %v2594 = vor.u32 1.1754944e-38, %v2593
  %v2595 = vsel %vm2592, %v2594, %v2590
  %v2596 = vmul.f32 1.0, %v2595
  %v2597 = vmul.f32 %v2576, %v2538
  %v2598 = vmul.f32 %v2557, %v2577
  %v2599 = vadd.f32 %v2597, %v2598
  %v2600 = vtanh.pop %v2599
  %v2601 = vmul.f32 %v2596, %v2600
  %v2602 = vpack.c.bf16 %v2601, %v2601
  %v2603 = vld [vmem:[%s7] sm:$0xff]
  %v2604 = vld [vmem:[%s7 + $0x8] sm:$0xff]
  %v2605 = vld [vmem:[%s7 + $0x10] sm:$0xff]
  %v2606 = vld [vmem:[%s7 + $0x18] sm:$0xff]
  %v2607 = vld [vmem:[%s7 + $0x20] sm:$0xff]
  %v2608 = vld [vmem:[%s7 + $0x28] sm:$0xff]
  %v2609 = vld [vmem:[%s7 + $0x30] sm:$0xff]
  %v2610 = vld [vmem:[%s7 + $0x38] sm:$0xff]
  %v2611 = vld [vmem:[%s7 + $0x40] sm:$0xff]
  %v2612 = vld [vmem:[%s7 + $0x48] sm:$0xff]
  %v2613 = vld [vmem:[%s7 + $0x50] sm:$0xff]
  %v2614 = vld [vmem:[%s7 + $0x58] sm:$0xff]
  %v2615 = vld [vmem:[%s7 + $0x60] sm:$0xff]
  %v2616 = vld [vmem:[%s7 + $0x68] sm:$0xff]
  %v2617 = vld [vmem:[%s7 + $0x70] sm:$0xff]
  %v2618 = vld [vmem:[%s7 + $0x78] sm:$0xff]
  %v2619 = vld [vmem:[%s7 + $0x80] sm:$0xff]
  %v2620 = vld [vmem:[%s7 + $0x88] sm:$0xff]
  %v2621 = vld [vmem:[%s7 + $0x90] sm:$0xff]
  %v2622 = vld [vmem:[%s7 + $0x98] sm:$0xff]
  %v2623 = vld [vmem:[%s7 + $0xa0] sm:$0xff]
  %v2624 = vld [vmem:[%s7 + $0xa8] sm:$0xff]
  %v2625 = vld [vmem:[%s7 + $0xb0] sm:$0xff]
  %v2626 = vld [vmem:[%s7 + $0xb8] sm:$0xff]
  %v2627 = vld [vmem:[%s7 + $0xc0] sm:$0xff]
  %v2628 = vld [vmem:[%s7 + $0xc8] sm:$0xff]
  %v2629 = vld [vmem:[%s7 + $0xd0] sm:$0xff]
  %v2630 = vld [vmem:[%s7 + $0xd8] sm:$0xff]
  %v2631 = vld [vmem:[%s7 + $0xe0] sm:$0xff]
  %v2632 = vld [vmem:[%s7 + $0xe8] sm:$0xff]
  %v2633 = vld [vmem:[%s7 + $0xf0] sm:$0xff]
  %v2634 = vld [vmem:[%s7 + $0xf8] sm:$0xff]
  %v2635 = vld [vmem:[%s4] sm:$0xff]
  %v2636 = vld [vmem:[%s4 + $0x8] sm:$0xff]
  %v2637 = vld [vmem:[%s4 + $0x10] sm:$0xff]
  %v2638 = vld [vmem:[%s4 + $0x18] sm:$0xff]
  %v2671 = vunpack.c.l.b16 %v2603
  %v2672 = vunpack.c.h.b16 %v2603
  %v2673 = vunpack.c.l.b16 %v2604
  %v2674 = vunpack.c.h.b16 %v2604
  %v2675 = vunpack.c.l.b16 %v2605
  %v2676 = vunpack.c.h.b16 %v2605
  %v2677 = vunpack.c.l.b16 %v2606
  %v2678 = vunpack.c.h.b16 %v2606
  %v2679 = vunpack.c.l.b16 %v2607
  %v2680 = vunpack.c.h.b16 %v2607
  %v2681 = vunpack.c.l.b16 %v2608
  %v2682 = vunpack.c.h.b16 %v2608
  %v2683 = vunpack.c.l.b16 %v2609
  %v2684 = vunpack.c.h.b16 %v2609
  %v2685 = vunpack.c.l.b16 %v2610
  %v2686 = vunpack.c.h.b16 %v2610
  %v2687 = vunpack.c.l.b16 %v2611
  %v2688 = vunpack.c.h.b16 %v2611
  %v2689 = vunpack.c.l.b16 %v2612
  %v2690 = vunpack.c.h.b16 %v2612
  %v2691 = vunpack.c.l.b16 %v2613
  %v2692 = vunpack.c.h.b16 %v2613
  %v2693 = vunpack.c.l.b16 %v2614
  %v2694 = vunpack.c.h.b16 %v2614
  %v2695 = vunpack.c.l.b16 %v2615
  %v2696 = vunpack.c.h.b16 %v2615
  %v2697 = vunpack.c.l.b16 %v2616
  %v2698 = vunpack.c.h.b16 %v2616
  %v2699 = vunpack.c.l.b16 %v2617
  %v2700 = vunpack.c.h.b16 %v2617
  %v2701 = vunpack.c.l.b16 %v2618
  %v2702 = vunpack.c.h.b16 %v2618
  %v2703 = vunpack.c.l.b16 %v2619
  %v2704 = vunpack.c.h.b16 %v2619
  %v2705 = vunpack.c.l.b16 %v2620
  %v2706 = vunpack.c.h.b16 %v2620
  %v2707 = vunpack.c.l.b16 %v2621
  %v2708 = vunpack.c.h.b16 %v2621
  %v2709 = vunpack.c.l.b16 %v2622
  %v2710 = vunpack.c.h.b16 %v2622
  %v2711 = vunpack.c.l.b16 %v2623
  %v2712 = vunpack.c.h.b16 %v2623
  %v2713 = vunpack.c.l.b16 %v2624
  %v2714 = vunpack.c.h.b16 %v2624
  %v2715 = vunpack.c.l.b16 %v2625
  %v2716 = vunpack.c.h.b16 %v2625
  %v2717 = vunpack.c.l.b16 %v2626
  %v2718 = vunpack.c.h.b16 %v2626
  %v2719 = vunpack.c.l.b16 %v2627
  %v2720 = vunpack.c.h.b16 %v2627
  %v2721 = vunpack.c.l.b16 %v2628
  %v2722 = vunpack.c.h.b16 %v2628
  %v2723 = vunpack.c.l.b16 %v2629
  %v2724 = vunpack.c.h.b16 %v2629
  %v2725 = vunpack.c.l.b16 %v2630
  %v2726 = vunpack.c.h.b16 %v2630
  %v2727 = vunpack.c.l.b16 %v2631
  %v2728 = vunpack.c.h.b16 %v2631
  %v2729 = vunpack.c.l.b16 %v2632
  %v2730 = vunpack.c.h.b16 %v2632
  %v2731 = vunpack.c.l.b16 %v2633
  %v2732 = vunpack.c.h.b16 %v2633
  %v2733 = vunpack.c.l.b16 %v2634
  %v2734 = vunpack.c.h.b16 %v2634
  %v2735 = vpack.c.b16 %v2675, %v2671
  %v2736 = vpack.c.b16 %v2676, %v2672
  %v2737 = vpack.c.b16 %v2677, %v2673
  %v2738 = vpack.c.b16 %v2678, %v2674
  %v2739 = vpack.c.b16 %v2683, %v2679
  %v2740 = vpack.c.b16 %v2684, %v2680
  %v2741 = vpack.c.b16 %v2685, %v2681
  %v2742 = vpack.c.b16 %v2686, %v2682
  %v2743 = vpack.c.b16 %v2691, %v2687
  %v2744 = vpack.c.b16 %v2692, %v2688
  %v2745 = vpack.c.b16 %v2693, %v2689
  %v2746 = vpack.c.b16 %v2694, %v2690
  %v2747 = vpack.c.b16 %v2699, %v2695
  %v2748 = vpack.c.b16 %v2700, %v2696
  %v2749 = vpack.c.b16 %v2701, %v2697
  %v2750 = vpack.c.b16 %v2702, %v2698
  %v2751 = vpack.c.b16 %v2707, %v2703
  %v2752 = vpack.c.b16 %v2708, %v2704
  %v2753 = vpack.c.b16 %v2709, %v2705
  %v2754 = vpack.c.b16 %v2710, %v2706
  %v2755 = vpack.c.b16 %v2715, %v2711
  %v2756 = vpack.c.b16 %v2716, %v2712
  %v2757 = vpack.c.b16 %v2717, %v2713
  %v2758 = vpack.c.b16 %v2718, %v2714
  %v2759 = vpack.c.b16 %v2723, %v2719
  %v2760 = vpack.c.b16 %v2724, %v2720
  %v2761 = vpack.c.b16 %v2725, %v2721
  %v2762 = vpack.c.b16 %v2726, %v2722
  %v2763 = vpack.c.b16 %v2731, %v2727
  %v2764 = vpack.c.b16 %v2732, %v2728
  %v2765 = vpack.c.b16 %v2733, %v2729
  %v2766 = vpack.c.b16 %v2734, %v2730
  %2799 = vmatpush.bf16.msra.mxu0 %v2763
  %2800 = vmatpush.bf16.msra.mxu0 %v2759
  %2801 = vmatpush.bf16.msra.mxu0 %v2755
  %2802 = vmatpush.bf16.msra.mxu0 %v2751
  %2803 = vmatpush.bf16.msra.mxu0 %v2747
  %2804 = vmatpush.bf16.msra.mxu0 %v2743
  %2805 = vmatpush.bf16.msra.mxu0 %v2739
  %2806 = vmatpush.bf16.msra.mxu0 %v2735
  %2807 = vmatmul.bf16.gmra.mxu0 %v2602
  %v2808 = vpop.f32.mrf.mxu0
  %v2809 = vadd.f32 %v2635, %v2808
  %v2810 = vpop.f32.mrf.mxu0
  %2811 = vdwg.mxu0
  %2812 = vmatpush.bf16.msra.mxu0 %v2764
  %2813 = vmatpush.bf16.msra.mxu0 %v2760
  %2814 = vmatpush.bf16.msra.mxu0 %v2756
  %2815 = vmatpush.bf16.msra.mxu0 %v2752
  %2816 = vmatpush.bf16.msra.mxu0 %v2748
  %2817 = vmatpush.bf16.msra.mxu0 %v2744
  %2818 = vmatpush.bf16.msra.mxu0 %v2740
  %2819 = vmatpush.bf16.msra.mxu0 %v2736
  %2820 = vmatmul.bf16.gmra.mxu0 %v2602
  %v2821 = vpop.f32.mrf.mxu0
  %v2822 = vadd.f32 %v2636, %v2821
  %v2823 = vpop.f32.mrf.mxu0
  %2824 = vdwg.mxu0
  %2825 = vmatpush.bf16.msra.mxu0 %v2765
  %2826 = vmatpush.bf16.msra.mxu0 %v2761
  %2827 = vmatpush.bf16.msra.mxu0 %v2757
  %2828 = vmatpush.bf16.msra.mxu0 %v2753
  %2829 = vmatpush.bf16.msra.mxu0 %v2749
  %2830 = vmatpush.bf16.msra.mxu0 %v2745
  %2831 = vmatpush.bf16.msra.mxu0 %v2741
  %2832 = vmatpush.bf16.msra.mxu0 %v2737
  %2833 = vmatmul.bf16.gmra.mxu0 %v2602
  %v2834 = vpop.f32.mrf.mxu0
  %v2835 = vadd.f32 %v2637, %v2834
  %v2836 = vpop.f32.mrf.mxu0
  %2837 = vdwg.mxu0
  %2838 = vmatpush.bf16.msra.mxu0 %v2766
  %2839 = vmatpush.bf16.msra.mxu0 %v2762
  %2840 = vmatpush.bf16.msra.mxu0 %v2758
  %2841 = vmatpush.bf16.msra.mxu0 %v2754
  %2842 = vmatpush.bf16.msra.mxu0 %v2750
  %2843 = vmatpush.bf16.msra.mxu0 %v2746
  %2844 = vmatpush.bf16.msra.mxu0 %v2742
  %2845 = vmatpush.bf16.msra.mxu0 %v2738
  %2846 = vmatmul.bf16.gmra.mxu0 %v2602
  %v2847 = vpop.f32.mrf.mxu0
  %v2848 = vadd.f32 %v2638, %v2847
  %v2849 = vpop.f32.mrf.mxu0
  %2850 = vdwg.mxu0
  %v2851 = vld [vmem:[%s6] sm:$0xff]
  %v2852 = vxor.u32 %v2809, 2147483648
  %v2853 = vmul.f32 %v2852, 1.442695
  %v2854 = vpow.pop %v2853
  %v2855 = vadd.f32 %v2854, 1.0
  %v2856 = vrcp.pop %v2855
  %v2857 = vmul.f32 %v2855, %v2856
  %v2858 = vsub.f32 1.0, %v2857
  %v2859 = vmul.f32 %v2856, %v2858
  %v2860 = vadd.f32 %v2856, %v2859
  %vm2861 = vweird.f32 %v2855
  %vm2862 = vweird.f32 %v2856
  %vm2863 = vmor %vm2861, %vm2862
  %v2864 = vsel %vm2863, %v2856, %v2860
  %v2865 = vand.u32 2147483647, %v2855
  %vm2866 = vcmp.eq.f32.partialorder %v2865, 8.507059e+37
  %v2867 = vand.u32 %v2855, 2147483648
  %v2868 = vor.u32 1.1754944e-38, %v2867
  %v2869 = vsel %vm2866, %v2868, %v2864
  %v2870 = vmul.f32 1.0, %v2869
  %v2871 = vxor.u32 %v2822, 2147483648
  %v2872 = vmul.f32 %v2871, 1.442695
  %v2873 = vpow.pop %v2872
  %v2874 = vadd.f32 %v2873, 1.0
  %v2875 = vrcp.pop %v2874
  %v2876 = vmul.f32 %v2874, %v2875
  %v2877 = vsub.f32 1.0, %v2876
  %v2878 = vmul.f32 %v2875, %v2877
  %v2879 = vadd.f32 %v2875, %v2878
  %vm2880 = vweird.f32 %v2874
  %vm2881 = vweird.f32 %v2875
  %vm2882 = vmor %vm2880, %vm2881
  %v2883 = vsel %vm2882, %v2875, %v2879
  %v2884 = vand.u32 2147483647, %v2874
  %vm2885 = vcmp.eq.f32.partialorder %v2884, 8.507059e+37
  %v2886 = vand.u32 %v2874, 2147483648
  %v2887 = vor.u32 1.1754944e-38, %v2886
  %v2888 = vsel %vm2885, %v2887, %v2883
  %v2889 = vmul.f32 1.0, %v2888
  %v2890 = vtanh.pop %v2835
  %v2891 = vxor.u32 %v2848, 2147483648
  %v2892 = vmul.f32 %v2891, 1.442695
  %v2893 = vpow.pop %v2892
  %v2894 = vadd.f32 %v2893, 1.0
  %v2895 = vrcp.pop %v2894
  %v2896 = vmul.f32 %v2894, %v2895
  %v2897 = vsub.f32 1.0, %v2896
  %v2898 = vmul.f32 %v2895, %v2897
  %v2899 = vadd.f32 %v2895, %v2898
  %vm2900 = vweird.f32 %v2894
  %vm2901 = vweird.f32 %v2895
  %vm2902 = vmor %vm2900, %vm2901
  %v2903 = vsel %vm2902, %v2895, %v2899
  %v2904 = vand.u32 2147483647, %v2894
  %vm2905 = vcmp.eq.f32.partialorder %v2904, 8.507059e+37
  %v2906 = vand.u32 %v2894, 2147483648
  %v2907 = vor.u32 1.1754944e-38, %v2906
  %v2908 = vsel %vm2905, %v2907, %v2903
  %v2909 = vmul.f32 1.0, %v2908
  %v2910 = vmul.f32 %v2889, %v2851
  %v2911 = vmul.f32 %v2870, %v2890
  %v2912 = vadd.f32 %v2910, %v2911
  %v2913 = vtanh.pop %v2912
  %v2914 = vmul.f32 %v2909, %v2913
  %v2915 = vpack.c.bf16 %v2914, %v2914
  %v2916 = vld [vmem:[%s8] sm:$0xf]
  %v2917 = vld [vmem:[%s8 + $0x4] sm:$0xf]
  %v2918 = vld [vmem:[%s8 + $0x8] sm:$0xf]
  %v2919 = vld [vmem:[%s8 + $0xc] sm:$0xf]
  %v2920 = vld [vmem:[%s8 + $0x10] sm:$0xf]
  %v2921 = vld [vmem:[%s8 + $0x14] sm:$0xf]
  %v2922 = vld [vmem:[%s8 + $0x18] sm:$0xf]
  %v2923 = vld [vmem:[%s8 + $0x1c] sm:$0xf]
  %v2924 = vld [vmem:[%s8 + $0x20] sm:$0xf]
  %v2925 = vld [vmem:[%s8 + $0x24] sm:$0xf]
  %v2926 = vld [vmem:[%s8 + $0x28] sm:$0xf]
  %v2927 = vld [vmem:[%s8 + $0x2c] sm:$0xf]
  %v2928 = vld [vmem:[%s8 + $0x30] sm:$0xf]
  %v2929 = vld [vmem:[%s8 + $0x34] sm:$0xf]
  %v2930 = vld [vmem:[%s8 + $0x38] sm:$0xf]
  %v2931 = vld [vmem:[%s8 + $0x3c] sm:$0xf]
  %v2932 = vld [vmem:[%s9] sm:$0x1]
  %v2934 = vperm.slane %v2932, 0
  %v2952 = vunpack.c.l.b16 %v2916
  %v2953 = vunpack.c.l.b16 %v2917
  %v2954 = vunpack.c.l.b16 %v2918
  %v2955 = vunpack.c.l.b16 %v2919
  %v2956 = vunpack.c.l.b16 %v2920
  %v2957 = vunpack.c.l.b16 %v2921
  %v2958 = vunpack.c.l.b16 %v2922
  %v2959 = vunpack.c.l.b16 %v2923
  %v2960 = vunpack.c.l.b16 %v2924
  %v2961 = vunpack.c.l.b16 %v2925
  %v2962 = vunpack.c.l.b16 %v2926
  %v2963 = vunpack.c.l.b16 %v2927
  %v2964 = vunpack.c.l.b16 %v2928
  %v2965 = vunpack.c.l.b16 %v2929
  %v2966 = vunpack.c.l.b16 %v2930
  %v2967 = vunpack.c.l.b16 %v2931
  %v2968 = vpack.c.b16 %v2953, %v2952
  %v2969 = vpack.c.b16 %v2955, %v2954
  %v2970 = vpack.c.b16 %v2957, %v2956
  %v2971 = vpack.c.b16 %v2959, %v2958
  %v2972 = vpack.c.b16 %v2961, %v2960
  %v2973 = vpack.c.b16 %v2963, %v2962
  %v2974 = vpack.c.b16 %v2965, %v2964
  %v2975 = vpack.c.b16 %v2967, %v2966
  %2984 = vmatpush.bf16.msra.mxu0 %v2975
  %2985 = vmatpush.bf16.msra.mxu0 %v2974
  %2986 = vmatpush.bf16.msra.mxu0 %v2973
  %2987 = vmatpush.bf16.msra.mxu0 %v2972
  %2988 = vmatpush.bf16.msra.mxu0 %v2971
  %2989 = vmatpush.bf16.msra.mxu0 %v2970
  %2990 = vmatpush.bf16.msra.mxu0 %v2969
  %2991 = vmatpush.bf16.msra.mxu0 %v2968
  %2992 = vmatmul.bf16.gmra.mxu0 %v2915
  %v2993 = vpop.f32.mrf.mxu0
  %v2994 = vadd.f32 %v2934, %v2993
  %v2995 = vpop.f32.mrf.mxu0
  %2996 = vdwg.mxu0
  %s2997 = scalar_lea.vmem %s10, 24
  %2998 = vst [vmem:[%s2997] sm:$0xff] %v2994
  %2999 = vmax.xlane.f32.xlu0 %v2994
  %v3000 = vpop.xlane.xlu0 %2999
  %vm3001 = vcmp.eq.f32.partialorder %v2994, %v3000
  %v3002 = vsel %vm3001, %v49, 128
  %v3003 = vand.u32 %v3002, 65535
  %v3004 = vshra.s32 %v3002, 16
  %v3005 = vcvt.s32.f32 %v3003
  %v3006 = vcvt.s32.f32 %v3004
  %3007 = vmin.xlane.f32.xlu0 %v3006
  %v3008 = vpop.xlane.xlu0 %3007
  %vm3009 = vcmp.eq.f32.partialorder %v3006, %v3008
  %v3010 = vsel %vm3009, %v3005, inf
  %3011 = vmin.xlane.f32.xlu0 %v3010
  %v3012 = vpop.xlane.xlu0 %3011
  %v3013 = vcvt.f32.s32 %v3012
  %v3014 = vcvt.f32.s32 %v3008
  %v3015 = vshll.u32 %v3014, 16
  %v3016 = vadd.s32 %v3015, %v3013
  %s3017 = sadd.s32 %s51, 4
  %s3018 = smul.u32 %s3017, 8
  %s3019 = scalar_lea.vmem %s1, %s3018
  %v3020 = vld [vmem:[%s3019] sm:$0xff]
  %s3021 = sld [smem:[#allocation4 + %s2273]]
  %p3022 = scmp.gt.s32.totalorder %s3021, 0
  %s3023 = scalar_select %p3022, 1, 0
  %v3024 = vstv %s3023
  %vm3025 = vcmp.eq.s32.totalorder %v3024, 1
  %v3026 = vsel %vm3025, %v3020, %v3016
  %3027 = vset.pattern.permute.xlu0 0
  %3028 = vperm.xlu0 %3027, %v3026
  %v3029 = vpop.permute.xlu0 %3028
  %vm3030 = vcmp.eq.s32.totalorder %v49, %v3029
  %v3031 = vsel %vm3030, 1, 0
  %v3032 = vcvt.s32.f32 %v3031
  %v3033 = vpack.c.bf16 %v3032, %v3032
  %v3034 = vld [vmem:[%s2] sm:$0xff]
  %v3035 = vld [vmem:[%s2 + $0x8] sm:$0xff]
  %v3036 = vld [vmem:[%s2 + $0x10] sm:$0xff]
  %v3037 = vld [vmem:[%s2 + $0x18] sm:$0xff]
  %v3038 = vld [vmem:[%s2 + $0x20] sm:$0xff]
  %v3039 = vld [vmem:[%s2 + $0x28] sm:$0xff]
  %v3040 = vld [vmem:[%s2 + $0x30] sm:$0xff]
  %v3041 = vld [vmem:[%s2 + $0x38] sm:$0xff]
  %v3042 = vld [vmem:[%s2 + $0x40] sm:$0xff]
  %v3043 = vld [vmem:[%s2 + $0x48] sm:$0xff]
  %v3044 = vld [vmem:[%s2 + $0x50] sm:$0xff]
  %v3045 = vld [vmem:[%s2 + $0x58] sm:$0xff]
  %v3046 = vld [vmem:[%s2 + $0x60] sm:$0xff]
  %v3047 = vld [vmem:[%s2 + $0x68] sm:$0xff]
  %v3048 = vld [vmem:[%s2 + $0x70] sm:$0xff]
  %v3049 = vld [vmem:[%s2 + $0x78] sm:$0xff]
  %v3050 = vld [vmem:[%s2 + $0x80] sm:$0xff]
  %v3051 = vld [vmem:[%s2 + $0x88] sm:$0xff]
  %v3052 = vld [vmem:[%s2 + $0x90] sm:$0xff]
  %v3053 = vld [vmem:[%s2 + $0x98] sm:$0xff]
  %v3054 = vld [vmem:[%s2 + $0xa0] sm:$0xff]
  %v3055 = vld [vmem:[%s2 + $0xa8] sm:$0xff]
  %v3056 = vld [vmem:[%s2 + $0xb0] sm:$0xff]
  %v3057 = vld [vmem:[%s2 + $0xb8] sm:$0xff]
  %v3058 = vld [vmem:[%s2 + $0xc0] sm:$0xff]
  %v3059 = vld [vmem:[%s2 + $0xc8] sm:$0xff]
  %v3060 = vld [vmem:[%s2 + $0xd0] sm:$0xff]
  %v3061 = vld [vmem:[%s2 + $0xd8] sm:$0xff]
  %v3062 = vld [vmem:[%s2 + $0xe0] sm:$0xff]
  %v3063 = vld [vmem:[%s2 + $0xe8] sm:$0xff]
  %v3064 = vld [vmem:[%s2 + $0xf0] sm:$0xff]
  %v3065 = vld [vmem:[%s2 + $0xf8] sm:$0xff]
  %v3066 = vld [vmem:[%s3] sm:$0xff]
  %v3067 = vld [vmem:[%s3 + $0x8] sm:$0xff]
  %v3068 = vld [vmem:[%s3 + $0x10] sm:$0xff]
  %v3069 = vld [vmem:[%s3 + $0x18] sm:$0xff]
  %v3102 = vunpack.c.l.b16 %v3034
  %v3103 = vunpack.c.h.b16 %v3034
  %v3104 = vunpack.c.l.b16 %v3035
  %v3105 = vunpack.c.h.b16 %v3035
  %v3106 = vunpack.c.l.b16 %v3036
  %v3107 = vunpack.c.h.b16 %v3036
  %v3108 = vunpack.c.l.b16 %v3037
  %v3109 = vunpack.c.h.b16 %v3037
  %v3110 = vunpack.c.l.b16 %v3038
  %v3111 = vunpack.c.h.b16 %v3038
  %v3112 = vunpack.c.l.b16 %v3039
  %v3113 = vunpack.c.h.b16 %v3039
  %v3114 = vunpack.c.l.b16 %v3040
  %v3115 = vunpack.c.h.b16 %v3040
  %v3116 = vunpack.c.l.b16 %v3041
  %v3117 = vunpack.c.h.b16 %v3041
  %v3118 = vunpack.c.l.b16 %v3042
  %v3119 = vunpack.c.h.b16 %v3042
  %v3120 = vunpack.c.l.b16 %v3043
  %v3121 = vunpack.c.h.b16 %v3043
  %v3122 = vunpack.c.l.b16 %v3044
  %v3123 = vunpack.c.h.b16 %v3044
  %v3124 = vunpack.c.l.b16 %v3045
  %v3125 = vunpack.c.h.b16 %v3045
  %v3126 = vunpack.c.l.b16 %v3046
  %v3127 = vunpack.c.h.b16 %v3046
  %v3128 = vunpack.c.l.b16 %v3047
  %v3129 = vunpack.c.h.b16 %v3047
  %v3130 = vunpack.c.l.b16 %v3048
  %v3131 = vunpack.c.h.b16 %v3048
  %v3132 = vunpack.c.l.b16 %v3049
  %v3133 = vunpack.c.h.b16 %v3049
  %v3134 = vunpack.c.l.b16 %v3050
  %v3135 = vunpack.c.h.b16 %v3050
  %v3136 = vunpack.c.l.b16 %v3051
  %v3137 = vunpack.c.h.b16 %v3051
  %v3138 = vunpack.c.l.b16 %v3052
  %v3139 = vunpack.c.h.b16 %v3052
  %v3140 = vunpack.c.l.b16 %v3053
  %v3141 = vunpack.c.h.b16 %v3053
  %v3142 = vunpack.c.l.b16 %v3054
  %v3143 = vunpack.c.h.b16 %v3054
  %v3144 = vunpack.c.l.b16 %v3055
  %v3145 = vunpack.c.h.b16 %v3055
  %v3146 = vunpack.c.l.b16 %v3056
  %v3147 = vunpack.c.h.b16 %v3056
  %v3148 = vunpack.c.l.b16 %v3057
  %v3149 = vunpack.c.h.b16 %v3057
  %v3150 = vunpack.c.l.b16 %v3058
  %v3151 = vunpack.c.h.b16 %v3058
  %v3152 = vunpack.c.l.b16 %v3059
  %v3153 = vunpack.c.h.b16 %v3059
  %v3154 = vunpack.c.l.b16 %v3060
  %v3155 = vunpack.c.h.b16 %v3060
  %v3156 = vunpack.c.l.b16 %v3061
  %v3157 = vunpack.c.h.b16 %v3061
  %v3158 = vunpack.c.l.b16 %v3062
  %v3159 = vunpack.c.h.b16 %v3062
  %v3160 = vunpack.c.l.b16 %v3063
  %v3161 = vunpack.c.h.b16 %v3063
  %v3162 = vunpack.c.l.b16 %v3064
  %v3163 = vunpack.c.h.b16 %v3064
  %v3164 = vunpack.c.l.b16 %v3065
  %v3165 = vunpack.c.h.b16 %v3065
  %v3166 = vpack.c.b16 %v3106, %v3102
  %v3167 = vpack.c.b16 %v3107, %v3103
  %v3168 = vpack.c.b16 %v3108, %v3104
  %v3169 = vpack.c.b16 %v3109, %v3105
  %v3170 = vpack.c.b16 %v3114, %v3110
  %v3171 = vpack.c.b16 %v3115, %v3111
  %v3172 = vpack.c.b16 %v3116, %v3112
  %v3173 = vpack.c.b16 %v3117, %v3113
  %v3174 = vpack.c.b16 %v3122, %v3118
  %v3175 = vpack.c.b16 %v3123, %v3119
  %v3176 = vpack.c.b16 %v3124, %v3120
  %v3177 = vpack.c.b16 %v3125, %v3121
  %v3178 = vpack.c.b16 %v3130, %v3126
  %v3179 = vpack.c.b16 %v3131, %v3127
  %v3180 = vpack.c.b16 %v3132, %v3128
  %v3181 = vpack.c.b16 %v3133, %v3129
  %v3182 = vpack.c.b16 %v3138, %v3134
  %v3183 = vpack.c.b16 %v3139, %v3135
  %v3184 = vpack.c.b16 %v3140, %v3136
  %v3185 = vpack.c.b16 %v3141, %v3137
  %v3186 = vpack.c.b16 %v3146, %v3142
  %v3187 = vpack.c.b16 %v3147, %v3143
  %v3188 = vpack.c.b16 %v3148, %v3144
  %v3189 = vpack.c.b16 %v3149, %v3145
  %v3190 = vpack.c.b16 %v3154, %v3150
  %v3191 = vpack.c.b16 %v3155, %v3151
  %v3192 = vpack.c.b16 %v3156, %v3152
  %v3193 = vpack.c.b16 %v3157, %v3153
  %v3194 = vpack.c.b16 %v3162, %v3158
  %v3195 = vpack.c.b16 %v3163, %v3159
  %v3196 = vpack.c.b16 %v3164, %v3160
  %v3197 = vpack.c.b16 %v3165, %v3161
  %3230 = vmatpush.bf16.msra.mxu0 %v3194
  %3231 = vmatpush.bf16.msra.mxu0 %v3190
  %3232 = vmatpush.bf16.msra.mxu0 %v3186
  %3233 = vmatpush.bf16.msra.mxu0 %v3182
  %3234 = vmatpush.bf16.msra.mxu0 %v3178
  %3235 = vmatpush.bf16.msra.mxu0 %v3174
  %3236 = vmatpush.bf16.msra.mxu0 %v3170
  %3237 = vmatpush.bf16.msra.mxu0 %v3166
  %3238 = vmatmul.bf16.gmra.mxu0 %v3033
  %v3239 = vpop.f32.mrf.mxu0
  %v3240 = vadd.f32 %v3066, %v3239
  %v3241 = vpop.f32.mrf.mxu0
  %3242 = vdwg.mxu0
  %3243 = vmatpush.bf16.msra.mxu0 %v3195
  %3244 = vmatpush.bf16.msra.mxu0 %v3191
  %3245 = vmatpush.bf16.msra.mxu0 %v3187
  %3246 = vmatpush.bf16.msra.mxu0 %v3183
  %3247 = vmatpush.bf16.msra.mxu0 %v3179
  %3248 = vmatpush.bf16.msra.mxu0 %v3175
  %3249 = vmatpush.bf16.msra.mxu0 %v3171
  %3250 = vmatpush.bf16.msra.mxu0 %v3167
  %3251 = vmatmul.bf16.gmra.mxu0 %v3033
  %v3252 = vpop.f32.mrf.mxu0
  %v3253 = vadd.f32 %v3067, %v3252
  %v3254 = vpop.f32.mrf.mxu0
  %3255 = vdwg.mxu0
  %3256 = vmatpush.bf16.msra.mxu0 %v3196
  %3257 = vmatpush.bf16.msra.mxu0 %v3192
  %3258 = vmatpush.bf16.msra.mxu0 %v3188
  %3259 = vmatpush.bf16.msra.mxu0 %v3184
  %3260 = vmatpush.bf16.msra.mxu0 %v3180
  %3261 = vmatpush.bf16.msra.mxu0 %v3176
  %3262 = vmatpush.bf16.msra.mxu0 %v3172
  %3263 = vmatpush.bf16.msra.mxu0 %v3168
  %3264 = vmatmul.bf16.gmra.mxu0 %v3033
  %v3265 = vpop.f32.mrf.mxu0
  %v3266 = vadd.f32 %v3068, %v3265
  %v3267 = vpop.f32.mrf.mxu0
  %3268 = vdwg.mxu0
  %3269 = vmatpush.bf16.msra.mxu0 %v3197
  %3270 = vmatpush.bf16.msra.mxu0 %v3193
  %3271 = vmatpush.bf16.msra.mxu0 %v3189
  %3272 = vmatpush.bf16.msra.mxu0 %v3185
  %3273 = vmatpush.bf16.msra.mxu0 %v3181
  %3274 = vmatpush.bf16.msra.mxu0 %v3177
  %3275 = vmatpush.bf16.msra.mxu0 %v3173
  %3276 = vmatpush.bf16.msra.mxu0 %v3169
  %3277 = vmatmul.bf16.gmra.mxu0 %v3033
  %v3278 = vpop.f32.mrf.mxu0
  %v3279 = vadd.f32 %v3069, %v3278
  %v3280 = vpop.f32.mrf.mxu0
  %3281 = vdwg.mxu0
  %v3282 = vld [vmem:[%s5] sm:$0xff]
  %v3283 = vxor.u32 %v3240, 2147483648
  %v3284 = vmul.f32 %v3283, 1.442695
  %v3285 = vpow.pop %v3284
  %v3286 = vadd.f32 %v3285, 1.0
  %v3287 = vrcp.pop %v3286
  %v3288 = vmul.f32 %v3286, %v3287
  %v3289 = vsub.f32 1.0, %v3288
  %v3290 = vmul.f32 %v3287, %v3289
  %v3291 = vadd.f32 %v3287, %v3290
  %vm3292 = vweird.f32 %v3286
  %vm3293 = vweird.f32 %v3287
  %vm3294 = vmor %vm3292, %vm3293
  %v3295 = vsel %vm3294, %v3287, %v3291
  %v3296 = vand.u32 2147483647, %v3286
  %vm3297 = vcmp.eq.f32.partialorder %v3296, 8.507059e+37
  %v3298 = vand.u32 %v3286, 2147483648
  %v3299 = vor.u32 1.1754944e-38, %v3298
  %v3300 = vsel %vm3297, %v3299, %v3295
  %v3301 = vmul.f32 1.0, %v3300
  %v3302 = vxor.u32 %v3253, 2147483648
  %v3303 = vmul.f32 %v3302, 1.442695
  %v3304 = vpow.pop %v3303
  %v3305 = vadd.f32 %v3304, 1.0
  %v3306 = vrcp.pop %v3305
  %v3307 = vmul.f32 %v3305, %v3306
  %v3308 = vsub.f32 1.0, %v3307
  %v3309 = vmul.f32 %v3306, %v3308
  %v3310 = vadd.f32 %v3306, %v3309
  %vm3311 = vweird.f32 %v3305
  %vm3312 = vweird.f32 %v3306
  %vm3313 = vmor %vm3311, %vm3312
  %v3314 = vsel %vm3313, %v3306, %v3310
  %v3315 = vand.u32 2147483647, %v3305
  %vm3316 = vcmp.eq.f32.partialorder %v3315, 8.507059e+37
  %v3317 = vand.u32 %v3305, 2147483648
  %v3318 = vor.u32 1.1754944e-38, %v3317
  %v3319 = vsel %vm3316, %v3318, %v3314
  %v3320 = vmul.f32 1.0, %v3319
  %v3321 = vtanh.pop %v3266
  %v3322 = vxor.u32 %v3279, 2147483648
  %v3323 = vmul.f32 %v3322, 1.442695
  %v3324 = vpow.pop %v3323
  %v3325 = vadd.f32 %v3324, 1.0
  %v3326 = vrcp.pop %v3325
  %v3327 = vmul.f32 %v3325, %v3326
  %v3328 = vsub.f32 1.0, %v3327
  %v3329 = vmul.f32 %v3326, %v3328
  %v3330 = vadd.f32 %v3326, %v3329
  %vm3331 = vweird.f32 %v3325
  %vm3332 = vweird.f32 %v3326
  %vm3333 = vmor %vm3331, %vm3332
  %v3334 = vsel %vm3333, %v3326, %v3330
  %v3335 = vand.u32 2147483647, %v3325
  %vm3336 = vcmp.eq.f32.partialorder %v3335, 8.507059e+37
  %v3337 = vand.u32 %v3325, 2147483648
  %v3338 = vor.u32 1.1754944e-38, %v3337
  %v3339 = vsel %vm3336, %v3338, %v3334
  %v3340 = vmul.f32 1.0, %v3339
  %v3341 = vmul.f32 %v3320, %v3282
  %v3342 = vmul.f32 %v3301, %v3321
  %v3343 = vadd.f32 %v3341, %v3342
  %v3344 = vtanh.pop %v3343
  %v3345 = vmul.f32 %v3340, %v3344
  %v3346 = vpack.c.bf16 %v3345, %v3345
  %v3347 = vld [vmem:[%s7] sm:$0xff]
  %v3348 = vld [vmem:[%s7 + $0x8] sm:$0xff]
  %v3349 = vld [vmem:[%s7 + $0x10] sm:$0xff]
  %v3350 = vld [vmem:[%s7 + $0x18] sm:$0xff]
  %v3351 = vld [vmem:[%s7 + $0x20] sm:$0xff]
  %v3352 = vld [vmem:[%s7 + $0x28] sm:$0xff]
  %v3353 = vld [vmem:[%s7 + $0x30] sm:$0xff]
  %v3354 = vld [vmem:[%s7 + $0x38] sm:$0xff]
  %v3355 = vld [vmem:[%s7 + $0x40] sm:$0xff]
  %v3356 = vld [vmem:[%s7 + $0x48] sm:$0xff]
  %v3357 = vld [vmem:[%s7 + $0x50] sm:$0xff]
  %v3358 = vld [vmem:[%s7 + $0x58] sm:$0xff]
  %v3359 = vld [vmem:[%s7 + $0x60] sm:$0xff]
  %v3360 = vld [vmem:[%s7 + $0x68] sm:$0xff]
  %v3361 = vld [vmem:[%s7 + $0x70] sm:$0xff]
  %v3362 = vld [vmem:[%s7 + $0x78] sm:$0xff]
  %v3363 = vld [vmem:[%s7 + $0x80] sm:$0xff]
  %v3364 = vld [vmem:[%s7 + $0x88] sm:$0xff]
  %v3365 = vld [vmem:[%s7 + $0x90] sm:$0xff]
  %v3366 = vld [vmem:[%s7 + $0x98] sm:$0xff]
  %v3367 = vld [vmem:[%s7 + $0xa0] sm:$0xff]
  %v3368 = vld [vmem:[%s7 + $0xa8] sm:$0xff]
  %v3369 = vld [vmem:[%s7 + $0xb0] sm:$0xff]
  %v3370 = vld [vmem:[%s7 + $0xb8] sm:$0xff]
  %v3371 = vld [vmem:[%s7 + $0xc0] sm:$0xff]
  %v3372 = vld [vmem:[%s7 + $0xc8] sm:$0xff]
  %v3373 = vld [vmem:[%s7 + $0xd0] sm:$0xff]
  %v3374 = vld [vmem:[%s7 + $0xd8] sm:$0xff]
  %v3375 = vld [vmem:[%s7 + $0xe0] sm:$0xff]
  %v3376 = vld [vmem:[%s7 + $0xe8] sm:$0xff]
  %v3377 = vld [vmem:[%s7 + $0xf0] sm:$0xff]
  %v3378 = vld [vmem:[%s7 + $0xf8] sm:$0xff]
  %v3379 = vld [vmem:[%s4] sm:$0xff]
  %v3380 = vld [vmem:[%s4 + $0x8] sm:$0xff]
  %v3381 = vld [vmem:[%s4 + $0x10] sm:$0xff]
  %v3382 = vld [vmem:[%s4 + $0x18] sm:$0xff]
  %v3415 = vunpack.c.l.b16 %v3347
  %v3416 = vunpack.c.h.b16 %v3347
  %v3417 = vunpack.c.l.b16 %v3348
  %v3418 = vunpack.c.h.b16 %v3348
  %v3419 = vunpack.c.l.b16 %v3349
  %v3420 = vunpack.c.h.b16 %v3349
  %v3421 = vunpack.c.l.b16 %v3350
  %v3422 = vunpack.c.h.b16 %v3350
  %v3423 = vunpack.c.l.b16 %v3351
  %v3424 = vunpack.c.h.b16 %v3351
  %v3425 = vunpack.c.l.b16 %v3352
  %v3426 = vunpack.c.h.b16 %v3352
  %v3427 = vunpack.c.l.b16 %v3353
  %v3428 = vunpack.c.h.b16 %v3353
  %v3429 = vunpack.c.l.b16 %v3354
  %v3430 = vunpack.c.h.b16 %v3354
  %v3431 = vunpack.c.l.b16 %v3355
  %v3432 = vunpack.c.h.b16 %v3355
  %v3433 = vunpack.c.l.b16 %v3356
  %v3434 = vunpack.c.h.b16 %v3356
  %v3435 = vunpack.c.l.b16 %v3357
  %v3436 = vunpack.c.h.b16 %v3357
  %v3437 = vunpack.c.l.b16 %v3358
  %v3438 = vunpack.c.h.b16 %v3358
  %v3439 = vunpack.c.l.b16 %v3359
  %v3440 = vunpack.c.h.b16 %v3359
  %v3441 = vunpack.c.l.b16 %v3360
  %v3442 = vunpack.c.h.b16 %v3360
  %v3443 = vunpack.c.l.b16 %v3361
  %v3444 = vunpack.c.h.b16 %v3361
  %v3445 = vunpack.c.l.b16 %v3362
  %v3446 = vunpack.c.h.b16 %v3362
  %v3447 = vunpack.c.l.b16 %v3363
  %v3448 = vunpack.c.h.b16 %v3363
  %v3449 = vunpack.c.l.b16 %v3364
  %v3450 = vunpack.c.h.b16 %v3364
  %v3451 = vunpack.c.l.b16 %v3365
  %v3452 = vunpack.c.h.b16 %v3365
  %v3453 = vunpack.c.l.b16 %v3366
  %v3454 = vunpack.c.h.b16 %v3366
  %v3455 = vunpack.c.l.b16 %v3367
  %v3456 = vunpack.c.h.b16 %v3367
  %v3457 = vunpack.c.l.b16 %v3368
  %v3458 = vunpack.c.h.b16 %v3368
  %v3459 = vunpack.c.l.b16 %v3369
  %v3460 = vunpack.c.h.b16 %v3369
  %v3461 = vunpack.c.l.b16 %v3370
  %v3462 = vunpack.c.h.b16 %v3370
  %v3463 = vunpack.c.l.b16 %v3371
  %v3464 = vunpack.c.h.b16 %v3371
  %v3465 = vunpack.c.l.b16 %v3372
  %v3466 = vunpack.c.h.b16 %v3372
  %v3467 = vunpack.c.l.b16 %v3373
  %v3468 = vunpack.c.h.b16 %v3373
  %v3469 = vunpack.c.l.b16 %v3374
  %v3470 = vunpack.c.h.b16 %v3374
  %v3471 = vunpack.c.l.b16 %v3375
  %v3472 = vunpack.c.h.b16 %v3375
  %v3473 = vunpack.c.l.b16 %v3376
  %v3474 = vunpack.c.h.b16 %v3376
  %v3475 = vunpack.c.l.b16 %v3377
  %v3476 = vunpack.c.h.b16 %v3377
  %v3477 = vunpack.c.l.b16 %v3378
  %v3478 = vunpack.c.h.b16 %v3378
  %v3479 = vpack.c.b16 %v3419, %v3415
  %v3480 = vpack.c.b16 %v3420, %v3416
  %v3481 = vpack.c.b16 %v3421, %v3417
  %v3482 = vpack.c.b16 %v3422, %v3418
  %v3483 = vpack.c.b16 %v3427, %v3423
  %v3484 = vpack.c.b16 %v3428, %v3424
  %v3485 = vpack.c.b16 %v3429, %v3425
  %v3486 = vpack.c.b16 %v3430, %v3426
  %v3487 = vpack.c.b16 %v3435, %v3431
  %v3488 = vpack.c.b16 %v3436, %v3432
  %v3489 = vpack.c.b16 %v3437, %v3433
  %v3490 = vpack.c.b16 %v3438, %v3434
  %v3491 = vpack.c.b16 %v3443, %v3439
  %v3492 = vpack.c.b16 %v3444, %v3440
  %v3493 = vpack.c.b16 %v3445, %v3441
  %v3494 = vpack.c.b16 %v3446, %v3442
  %v3495 = vpack.c.b16 %v3451, %v3447
  %v3496 = vpack.c.b16 %v3452, %v3448
  %v3497 = vpack.c.b16 %v3453, %v3449
  %v3498 = vpack.c.b16 %v3454, %v3450
  %v3499 = vpack.c.b16 %v3459, %v3455
  %v3500 = vpack.c.b16 %v3460, %v3456
  %v3501 = vpack.c.b16 %v3461, %v3457
  %v3502 = vpack.c.b16 %v3462, %v3458
  %v3503 = vpack.c.b16 %v3467, %v3463
  %v3504 = vpack.c.b16 %v3468, %v3464
  %v3505 = vpack.c.b16 %v3469, %v3465
  %v3506 = vpack.c.b16 %v3470, %v3466
  %v3507 = vpack.c.b16 %v3475, %v3471
  %v3508 = vpack.c.b16 %v3476, %v3472
  %v3509 = vpack.c.b16 %v3477, %v3473
  %v3510 = vpack.c.b16 %v3478, %v3474
  %3543 = vmatpush.bf16.msra.mxu0 %v3507
  %3544 = vmatpush.bf16.msra.mxu0 %v3503
  %3545 = vmatpush.bf16.msra.mxu0 %v3499
  %3546 = vmatpush.bf16.msra.mxu0 %v3495
  %3547 = vmatpush.bf16.msra.mxu0 %v3491
  %3548 = vmatpush.bf16.msra.mxu0 %v3487
  %3549 = vmatpush.bf16.msra.mxu0 %v3483
  %3550 = vmatpush.bf16.msra.mxu0 %v3479
  %3551 = vmatmul.bf16.gmra.mxu0 %v3346
  %v3552 = vpop.f32.mrf.mxu0
  %v3553 = vadd.f32 %v3379, %v3552
  %v3554 = vpop.f32.mrf.mxu0
  %3555 = vdwg.mxu0
  %3556 = vmatpush.bf16.msra.mxu0 %v3508
  %3557 = vmatpush.bf16.msra.mxu0 %v3504
  %3558 = vmatpush.bf16.msra.mxu0 %v3500
  %3559 = vmatpush.bf16.msra.mxu0 %v3496
  %3560 = vmatpush.bf16.msra.mxu0 %v3492
  %3561 = vmatpush.bf16.msra.mxu0 %v3488
  %3562 = vmatpush.bf16.msra.mxu0 %v3484
  %3563 = vmatpush.bf16.msra.mxu0 %v3480
  %3564 = vmatmul.bf16.gmra.mxu0 %v3346
  %v3565 = vpop.f32.mrf.mxu0
  %v3566 = vadd.f32 %v3380, %v3565
  %v3567 = vpop.f32.mrf.mxu0
  %3568 = vdwg.mxu0
  %3569 = vmatpush.bf16.msra.mxu0 %v3509
  %3570 = vmatpush.bf16.msra.mxu0 %v3505
  %3571 = vmatpush.bf16.msra.mxu0 %v3501
  %3572 = vmatpush.bf16.msra.mxu0 %v3497
  %3573 = vmatpush.bf16.msra.mxu0 %v3493
  %3574 = vmatpush.bf16.msra.mxu0 %v3489
  %3575 = vmatpush.bf16.msra.mxu0 %v3485
  %3576 = vmatpush.bf16.msra.mxu0 %v3481
  %3577 = vmatmul.bf16.gmra.mxu0 %v3346
  %v3578 = vpop.f32.mrf.mxu0
  %v3579 = vadd.f32 %v3381, %v3578
  %v3580 = vpop.f32.mrf.mxu0
  %3581 = vdwg.mxu0
  %3582 = vmatpush.bf16.msra.mxu0 %v3510
  %3583 = vmatpush.bf16.msra.mxu0 %v3506
  %3584 = vmatpush.bf16.msra.mxu0 %v3502
  %3585 = vmatpush.bf16.msra.mxu0 %v3498
  %3586 = vmatpush.bf16.msra.mxu0 %v3494
  %3587 = vmatpush.bf16.msra.mxu0 %v3490
  %3588 = vmatpush.bf16.msra.mxu0 %v3486
  %3589 = vmatpush.bf16.msra.mxu0 %v3482
  %3590 = vmatmul.bf16.gmra.mxu0 %v3346
  %v3591 = vpop.f32.mrf.mxu0
  %v3592 = vadd.f32 %v3382, %v3591
  %v3593 = vpop.f32.mrf.mxu0
  %3594 = vdwg.mxu0
  %v3595 = vld [vmem:[%s6] sm:$0xff]
  %v3596 = vxor.u32 %v3553, 2147483648
  %v3597 = vmul.f32 %v3596, 1.442695
  %v3598 = vpow.pop %v3597
  %v3599 = vadd.f32 %v3598, 1.0
  %v3600 = vrcp.pop %v3599
  %v3601 = vmul.f32 %v3599, %v3600
  %v3602 = vsub.f32 1.0, %v3601
  %v3603 = vmul.f32 %v3600, %v3602
  %v3604 = vadd.f32 %v3600, %v3603
  %vm3605 = vweird.f32 %v3599
  %vm3606 = vweird.f32 %v3600
  %vm3607 = vmor %vm3605, %vm3606
  %v3608 = vsel %vm3607, %v3600, %v3604
  %v3609 = vand.u32 2147483647, %v3599
  %vm3610 = vcmp.eq.f32.partialorder %v3609, 8.507059e+37
  %v3611 = vand.u32 %v3599, 2147483648
  %v3612 = vor.u32 1.1754944e-38, %v3611
  %v3613 = vsel %vm3610, %v3612, %v3608
  %v3614 = vmul.f32 1.0, %v3613
  %v3615 = vxor.u32 %v3566, 2147483648
  %v3616 = vmul.f32 %v3615, 1.442695
  %v3617 = vpow.pop %v3616
  %v3618 = vadd.f32 %v3617, 1.0
  %v3619 = vrcp.pop %v3618
  %v3620 = vmul.f32 %v3618, %v3619
  %v3621 = vsub.f32 1.0, %v3620
  %v3622 = vmul.f32 %v3619, %v3621
  %v3623 = vadd.f32 %v3619, %v3622
  %vm3624 = vweird.f32 %v3618
  %vm3625 = vweird.f32 %v3619
  %vm3626 = vmor %vm3624, %vm3625
  %v3627 = vsel %vm3626, %v3619, %v3623
  %v3628 = vand.u32 2147483647, %v3618
  %vm3629 = vcmp.eq.f32.partialorder %v3628, 8.507059e+37
  %v3630 = vand.u32 %v3618, 2147483648
  %v3631 = vor.u32 1.1754944e-38, %v3630
  %v3632 = vsel %vm3629, %v3631, %v3627
  %v3633 = vmul.f32 1.0, %v3632
  %v3634 = vtanh.pop %v3579
  %v3635 = vxor.u32 %v3592, 2147483648
  %v3636 = vmul.f32 %v3635, 1.442695
  %v3637 = vpow.pop %v3636
  %v3638 = vadd.f32 %v3637, 1.0
  %v3639 = vrcp.pop %v3638
  %v3640 = vmul.f32 %v3638, %v3639
  %v3641 = vsub.f32 1.0, %v3640
  %v3642 = vmul.f32 %v3639, %v3641
  %v3643 = vadd.f32 %v3639, %v3642
  %vm3644 = vweird.f32 %v3638
  %vm3645 = vweird.f32 %v3639
  %vm3646 = vmor %vm3644, %vm3645
  %v3647 = vsel %vm3646, %v3639, %v3643
  %v3648 = vand.u32 2147483647, %v3638
  %vm3649 = vcmp.eq.f32.partialorder %v3648, 8.507059e+37
  %v3650 = vand.u32 %v3638, 2147483648
  %v3651 = vor.u32 1.1754944e-38, %v3650
  %v3652 = vsel %vm3649, %v3651, %v3647
  %v3653 = vmul.f32 1.0, %v3652
  %v3654 = vmul.f32 %v3633, %v3595
  %v3655 = vmul.f32 %v3614, %v3634
  %v3656 = vadd.f32 %v3654, %v3655
  %v3657 = vtanh.pop %v3656
  %v3658 = vmul.f32 %v3653, %v3657
  %v3659 = vpack.c.bf16 %v3658, %v3658
  %v3660 = vld [vmem:[%s8] sm:$0xf]
  %v3661 = vld [vmem:[%s8 + $0x4] sm:$0xf]
  %v3662 = vld [vmem:[%s8 + $0x8] sm:$0xf]
  %v3663 = vld [vmem:[%s8 + $0xc] sm:$0xf]
  %v3664 = vld [vmem:[%s8 + $0x10] sm:$0xf]
  %v3665 = vld [vmem:[%s8 + $0x14] sm:$0xf]
  %v3666 = vld [vmem:[%s8 + $0x18] sm:$0xf]
  %v3667 = vld [vmem:[%s8 + $0x1c] sm:$0xf]
  %v3668 = vld [vmem:[%s8 + $0x20] sm:$0xf]
  %v3669 = vld [vmem:[%s8 + $0x24] sm:$0xf]
  %v3670 = vld [vmem:[%s8 + $0x28] sm:$0xf]
  %v3671 = vld [vmem:[%s8 + $0x2c] sm:$0xf]
  %v3672 = vld [vmem:[%s8 + $0x30] sm:$0xf]
  %v3673 = vld [vmem:[%s8 + $0x34] sm:$0xf]
  %v3674 = vld [vmem:[%s8 + $0x38] sm:$0xf]
  %v3675 = vld [vmem:[%s8 + $0x3c] sm:$0xf]
  %v3676 = vld [vmem:[%s9] sm:$0x1]
  %v3678 = vperm.slane %v3676, 0
  %v3696 = vunpack.c.l.b16 %v3660
  %v3697 = vunpack.c.l.b16 %v3661
  %v3698 = vunpack.c.l.b16 %v3662
  %v3699 = vunpack.c.l.b16 %v3663
  %v3700 = vunpack.c.l.b16 %v3664
  %v3701 = vunpack.c.l.b16 %v3665
  %v3702 = vunpack.c.l.b16 %v3666
  %v3703 = vunpack.c.l.b16 %v3667
  %v3704 = vunpack.c.l.b16 %v3668
  %v3705 = vunpack.c.l.b16 %v3669
  %v3706 = vunpack.c.l.b16 %v3670
  %v3707 = vunpack.c.l.b16 %v3671
  %v3708 = vunpack.c.l.b16 %v3672
  %v3709 = vunpack.c.l.b16 %v3673
  %v3710 = vunpack.c.l.b16 %v3674
  %v3711 = vunpack.c.l.b16 %v3675
  %v3712 = vpack.c.b16 %v3697, %v3696
  %v3713 = vpack.c.b16 %v3699, %v3698
  %v3714 = vpack.c.b16 %v3701, %v3700
  %v3715 = vpack.c.b16 %v3703, %v3702
  %v3716 = vpack.c.b16 %v3705, %v3704
  %v3717 = vpack.c.b16 %v3707, %v3706
  %v3718 = vpack.c.b16 %v3709, %v3708
  %v3719 = vpack.c.b16 %v3711, %v3710
  %3728 = vmatpush.bf16.msra.mxu0 %v3719
  %3729 = vmatpush.bf16.msra.mxu0 %v3718
  %3730 = vmatpush.bf16.msra.mxu0 %v3717
  %3731 = vmatpush.bf16.msra.mxu0 %v3716
  %3732 = vmatpush.bf16.msra.mxu0 %v3715
  %3733 = vmatpush.bf16.msra.mxu0 %v3714
  %3734 = vmatpush.bf16.msra.mxu0 %v3713
  %3735 = vmatpush.bf16.msra.mxu0 %v3712
  %3736 = vmatmul.bf16.gmra.mxu0 %v3659
  %v3737 = vpop.f32.mrf.mxu0
  %v3738 = vadd.f32 %v3678, %v3737
  %v3739 = vpop.f32.mrf.mxu0
  %3740 = vdwg.mxu0
  %s3741 = scalar_lea.vmem %s10, 32
  %3742 = vst [vmem:[%s3741] sm:$0xff] %v3738
  %3743 = vmax.xlane.f32.xlu0 %v3738
  %v3744 = vpop.xlane.xlu0 %3743
  %vm3745 = vcmp.eq.f32.partialorder %v3738, %v3744
  %v3746 = vsel %vm3745, %v49, 128
  %v3747 = vand.u32 %v3746, 65535
  %v3748 = vshra.s32 %v3746, 16
  %v3749 = vcvt.s32.f32 %v3747
  %v3750 = vcvt.s32.f32 %v3748
  %3751 = vmin.xlane.f32.xlu0 %v3750
  %v3752 = vpop.xlane.xlu0 %3751
  %vm3753 = vcmp.eq.f32.partialorder %v3750, %v3752
  %v3754 = vsel %vm3753, %v3749, inf
  %3755 = vmin.xlane.f32.xlu0 %v3754
  %v3756 = vpop.xlane.xlu0 %3755
  %v3757 = vcvt.f32.s32 %v3756
  %v3758 = vcvt.f32.s32 %v3752
  %v3759 = vshll.u32 %v3758, 16
  %v3760 = vadd.s32 %v3759, %v3757
  %s3761 = sadd.s32 %s51, 5
  %s3762 = smul.u32 %s3761, 8
  %s3763 = scalar_lea.vmem %s1, %s3762
  %v3764 = vld [vmem:[%s3763] sm:$0xff]
  %s3765 = sld [smem:[#allocation4 + %s3017]]
  %p3766 = scmp.gt.s32.totalorder %s3765, 0
  %s3767 = scalar_select %p3766, 1, 0
  %v3768 = vstv %s3767
  %vm3769 = vcmp.eq.s32.totalorder %v3768, 1
  %v3770 = vsel %vm3769, %v3764, %v3760
  %vm3771 = vcmask 7168
  %3772 = vst.msk [vmem:[#allocation2] sm:$0xff] %vm3771, %v3770
  // Predicated region
  $region42: #{seq2seq_forward.3} parent=0 // pred_check
    _
  $region43: #{seq2seq_forward.3} parent=0 // pred_check_branch
    %3774 = sbr.rel (0) target = $region45
  $region44: #{seq2seq_forward.3} parent=0 // pred_region
    _
  $region45: #{seq2seq_forward.3} parent=0 // pred_fallthru
    _
  // Predicated region
  $region46: #{seq2seq_forward.3} parent=0 // pred_check
    _
  $region47: #{seq2seq_forward.3} parent=0 // pred_check_branch
    %3776 = sbr.rel (0) target = $region49
  $region48: #{seq2seq_forward.3} parent=0 // pred_region
    _
  $region49: #{seq2seq_forward.3} parent=0 // pred_fallthru
    _

// kernel: seq2seq_forward.2
$region0: #{seq2seq_forward.2}
  #allocation0 [shape = 'u32[]', space=smem, size = 0x4, offset = 0x4, fixed_abs, tag = 'smem constant byte address 0x4 - core index']
  #allocation1 [shape = 'u32[72,128]{1,0:T(1,128)}', space=vmem, size = 0x9000, scoped, tag = 'internal scratch']
  #allocation2 [shape = 'bf16[64,512]{1,0:T(8,128)(2,1)}', space=vmem, size = 0x10000, scoped, tag = 'scratch operand']
  #allocation3 [shape = 'bf16[8,256]{1,0:T(8,128)(2,1)}', space=vmem, size = 0x1000, scoped, tag = 'scratch operand']
  #allocation4 [shape = 'f32[4,8,128]{2,1,0:T(8,128)}', space=vmem, size = 0x4000, scoped, tag = 'scratch operand']
  %s0 = inlined_call_operand.vmem [shape: bf16[64,64], index: 0, kind: input, shape index: {}]
  %s1 = inlined_call_operand.vmem [shape: s32[8,1], index: 1, kind: input, shape index: {}]
  %s2 = inlined_call_operand.vmem [shape: bf16[64,512], index: 2, kind: input, shape index: {}]
  %s3 = inlined_call_operand.vmem [shape: bf16[128,512], index: 3, kind: input, shape index: {}]
  %s4 = inlined_call_operand.vmem [shape: f32[1,512], index: 4, kind: input, shape index: {}]
  %s5 = inlined_call_operand.vmem [shape: bf16[256,512], index: 5, kind: input, shape index: {}]
  %s6 = inlined_call_operand.vmem [shape: f32[1,512], index: 6, kind: input, shape index: {}]
  %s7 = inlined_call_operand.vmem [shape: f32[2,8,128], index: 7, kind: output, shape index: {0}]
  %s8 = inlined_call_operand.vmem [shape: f32[2,8,128], index: 8, kind: output, shape index: {1}]
  %9 = xla_tuple %s7, %s8
  %s10 = sld [smem:[#allocation0]]
  $region54: #{seq2seq_forward.2} parent=0
    _
  %s12 = ssub.s32 1, %s10
  %s13 = scalar_select 0, %s12, %s10
  // Predicated region
  $region2: #{seq2seq_forward.2} parent=0 // pred_check
    _
  $region3: #{seq2seq_forward.2} parent=0 // pred_check_branch
    %15 = sbr.rel (0) target = $region5
  $region4: #{seq2seq_forward.2} parent=0 // pred_region
    _
  $region5: #{seq2seq_forward.2} parent=0 // pred_fallthru
    _
  // Predicated region
  $region6: #{seq2seq_forward.2} parent=0 // pred_check
    _
  $region7: #{seq2seq_forward.2} parent=0 // pred_check_branch
    %17 = sbr.rel (0) target = $region9
  $region8: #{seq2seq_forward.2} parent=0 // pred_region
    _
  $region9: #{seq2seq_forward.2} parent=0 // pred_fallthru
    _
  // Predicated region
  $region10: #{seq2seq_forward.2} parent=0 // pred_check
    _
  $region11: #{seq2seq_forward.2} parent=0 // pred_check_branch
    %19 = sbr.rel (0) target = $region13
  $region12: #{seq2seq_forward.2} parent=0 // pred_region
    _
  $region13: #{seq2seq_forward.2} parent=0 // pred_fallthru
    _
  // Predicated region
  $region14: #{seq2seq_forward.2} parent=0 // pred_check
    _
  $region15: #{seq2seq_forward.2} parent=0 // pred_check_branch
    %21 = sbr.rel (0) target = $region17
  $region16: #{seq2seq_forward.2} parent=0 // pred_region
    _
  $region17: #{seq2seq_forward.2} parent=0 // pred_fallthru
    _
  // Predicated region
  $region18: #{seq2seq_forward.2} parent=0 // pred_check
    _
  $region19: #{seq2seq_forward.2} parent=0 // pred_check_branch
    %23 = sbr.rel (0) target = $region21
  $region20: #{seq2seq_forward.2} parent=0 // pred_region
    _
  $region21: #{seq2seq_forward.2} parent=0 // pred_fallthru
    _
  // Predicated region
  $region22: #{seq2seq_forward.2} parent=0 // pred_check
    _
  $region23: #{seq2seq_forward.2} parent=0 // pred_check_branch
    %25 = sbr.rel (0) target = $region25
  $region24: #{seq2seq_forward.2} parent=0 // pred_region
    _
  $region25: #{seq2seq_forward.2} parent=0 // pred_fallthru
    _
  // Predicated region
  $region26: #{seq2seq_forward.2} parent=0 // pred_check
    _
  $region27: #{seq2seq_forward.2} parent=0 // pred_check_branch
    %27 = sbr.rel (0) target = $region29
  $region28: #{seq2seq_forward.2} parent=0 // pred_region
    _
  $region29: #{seq2seq_forward.2} parent=0 // pred_fallthru
    _
  %p29 = scmp.eq.s32.totalorder 0, 0
  // Predicated region
  $region30: #{seq2seq_forward.2} parent=0 // pred_check
    %p30 = pneg %p29
  $region31: #{seq2seq_forward.2} parent=0 // pred_check_branch
    %32 = sbr.rel (%p30) target = $region33
  $region32: #{seq2seq_forward.2} parent=0 // pred_region
    %33 = vst [vmem:[#allocation4] sm:$0xff] 0.0
    %34 = vst [vmem:[#allocation4 + $0x8] sm:$0xff] 0.0
    %35 = vst [vmem:[#allocation4 + $0x10] sm:$0xff] 0.0
    %36 = vst [vmem:[#allocation4 + $0x18] sm:$0xff] 0.0
  $region33: #{seq2seq_forward.2} parent=0 // pred_fallthru
    _
  %v37 = vld [vmem:[%s0] sm:$0xf]
  %v38 = vld [vmem:[%s0 + $0x4] sm:$0xf]
  %v39 = vld [vmem:[%s0 + $0x8] sm:$0xf]
  %v40 = vld [vmem:[%s0 + $0xc] sm:$0xf]
  %v41 = vld [vmem:[%s0 + $0x10] sm:$0xf]
  %v42 = vld [vmem:[%s0 + $0x14] sm:$0xf]
  %v43 = vld [vmem:[%s0 + $0x18] sm:$0xf]
  %v44 = vld [vmem:[%s0 + $0x1c] sm:$0xf]
  %v45 = vld [vmem:[%s2] sm:$0xff]
  %v46 = vld [vmem:[%s2 + $0x8] sm:$0xff]
  %v47 = vld [vmem:[%s2 + $0x10] sm:$0xff]
  %v48 = vld [vmem:[%s2 + $0x18] sm:$0xff]
  %v49 = vld [vmem:[%s2 + $0x20] sm:$0xff]
  %v50 = vld [vmem:[%s2 + $0x28] sm:$0xff]
  %v51 = vld [vmem:[%s2 + $0x30] sm:$0xff]
  %v52 = vld [vmem:[%s2 + $0x38] sm:$0xff]
  %v53 = vld [vmem:[%s2 + $0x40] sm:$0xff]
  %v54 = vld [vmem:[%s2 + $0x48] sm:$0xff]
  %v55 = vld [vmem:[%s2 + $0x50] sm:$0xff]
  %v56 = vld [vmem:[%s2 + $0x58] sm:$0xff]
  %v57 = vld [vmem:[%s2 + $0x60] sm:$0xff]
  %v58 = vld [vmem:[%s2 + $0x68] sm:$0xff]
  %v59 = vld [vmem:[%s2 + $0x70] sm:$0xff]
  %v60 = vld [vmem:[%s2 + $0x78] sm:$0xff]
  %v61 = vld [vmem:[%s4] sm:$0xf]
  %v63 = vperm.slane %v61, 0
  %v64 = vperm.slane %v61, 1
  %v65 = vperm.slane %v61, 2
  %v66 = vperm.slane %v61, 3
  %v79 = vunpack.c.l.b16 %v37
  %v80 = vunpack.c.l.b16 %v38
  %v81 = vunpack.c.l.b16 %v39
  %v82 = vunpack.c.l.b16 %v40
  %v83 = vunpack.c.l.b16 %v41
  %v84 = vunpack.c.l.b16 %v42
  %v85 = vunpack.c.l.b16 %v43
  %v86 = vunpack.c.l.b16 %v44
  %v87 = vpack.c.b16 %v80, %v79
  %v88 = vpack.c.b16 %v82, %v81
  %v89 = vpack.c.b16 %v84, %v83
  %v90 = vpack.c.b16 %v86, %v85
  %v107 = vunpack.c.l.b16 %v45
  %v108 = vunpack.c.h.b16 %v45
  %v109 = vunpack.c.l.b16 %v46
  %v110 = vunpack.c.h.b16 %v46
  %v111 = vunpack.c.l.b16 %v47
  %v112 = vunpack.c.h.b16 %v47
  %v113 = vunpack.c.l.b16 %v48
  %v114 = vunpack.c.h.b16 %v48
  %v115 = vunpack.c.l.b16 %v49
  %v116 = vunpack.c.h.b16 %v49
  %v117 = vunpack.c.l.b16 %v50
  %v118 = vunpack.c.h.b16 %v50
  %v119 = vunpack.c.l.b16 %v51
  %v120 = vunpack.c.h.b16 %v51
  %v121 = vunpack.c.l.b16 %v52
  %v122 = vunpack.c.h.b16 %v52
  %v123 = vunpack.c.l.b16 %v53
  %v124 = vunpack.c.h.b16 %v53
  %v125 = vunpack.c.l.b16 %v54
  %v126 = vunpack.c.h.b16 %v54
  %v127 = vunpack.c.l.b16 %v55
  %v128 = vunpack.c.h.b16 %v55
  %v129 = vunpack.c.l.b16 %v56
  %v130 = vunpack.c.h.b16 %v56
  %v131 = vunpack.c.l.b16 %v57
  %v132 = vunpack.c.h.b16 %v57
  %v133 = vunpack.c.l.b16 %v58
  %v134 = vunpack.c.h.b16 %v58
  %v135 = vunpack.c.l.b16 %v59
  %v136 = vunpack.c.h.b16 %v59
  %v137 = vunpack.c.l.b16 %v60
  %v138 = vunpack.c.h.b16 %v60
  %v139 = vpack.c.b16 %v111, %v107
  %v140 = vpack.c.b16 %v112, %v108
  %v141 = vpack.c.b16 %v113, %v109
  %v142 = vpack.c.b16 %v114, %v110
  %v143 = vpack.c.b16 %v119, %v115
  %v144 = vpack.c.b16 %v120, %v116
  %v145 = vpack.c.b16 %v121, %v117
  %v146 = vpack.c.b16 %v122, %v118
  %v147 = vpack.c.b16 %v127, %v123
  %v148 = vpack.c.b16 %v128, %v124
  %v149 = vpack.c.b16 %v129, %v125
  %v150 = vpack.c.b16 %v130, %v126
  %v151 = vpack.c.b16 %v135, %v131
  %v152 = vpack.c.b16 %v136, %v132
  %v153 = vpack.c.b16 %v137, %v133
  %v154 = vpack.c.b16 %v138, %v134
  %vm171 = vcmask 523264
  %v173 = vsel %vm171, %v87, 0
  %v176 = vsel %vm171, %v88, 0
  %v179 = vsel %vm171, %v89, 0
  %v182 = vsel %vm171, %v90, 0
  %184 = vmatpush.bf16.msra.mxu0 0
  %185 = vmatpush.bf16.msra.mxu0 0
  %186 = vmatpush.bf16.msra.mxu0 0
  %187 = vmatpush.bf16.msra.mxu0 0
  %188 = vmatpush.bf16.msra.mxu0 %v151
  %189 = vmatpush.bf16.msra.mxu0 %v147
  %190 = vmatpush.bf16.msra.mxu0 %v143
  %191 = vmatpush.bf16.msra.mxu0 %v139
  %192 = vmatmul.bf16.gmra.mxu0 %v173
  %v193 = vpop.f32.mrf.mxu0
  %v194 = vadd.f32 %v63, %v193
  %v195 = vpop.f32.mrf.mxu0
  %v196 = vadd.f32 %v63, %v195
  %197 = vmatmul.bf16.gmra.mxu0 %v176
  %v198 = vpop.f32.mrf.mxu0
  %v199 = vadd.f32 %v63, %v198
  %v200 = vpop.f32.mrf.mxu0
  %v201 = vadd.f32 %v63, %v200
  %202 = vmatmul.bf16.gmra.mxu0 %v179
  %v203 = vpop.f32.mrf.mxu0
  %v204 = vadd.f32 %v63, %v203
  %v205 = vpop.f32.mrf.mxu0
  %v206 = vadd.f32 %v63, %v205
  %207 = vmatmul.bf16.gmra.mxu0 %v182
  %v208 = vpop.f32.mrf.mxu0
  %v209 = vadd.f32 %v63, %v208
  %v210 = vpop.f32.mrf.mxu0
  %v211 = vadd.f32 %v63, %v210
  %212 = vdwg.mxu0
  %213 = vmatpush.bf16.msra.mxu0 0
  %214 = vmatpush.bf16.msra.mxu0 0
  %215 = vmatpush.bf16.msra.mxu0 0
  %216 = vmatpush.bf16.msra.mxu0 0
  %217 = vmatpush.bf16.msra.mxu0 %v152
  %218 = vmatpush.bf16.msra.mxu0 %v148
  %219 = vmatpush.bf16.msra.mxu0 %v144
  %220 = vmatpush.bf16.msra.mxu0 %v140
  %221 = vmatmul.bf16.gmra.mxu0 %v173
  %v222 = vpop.f32.mrf.mxu0
  %v223 = vadd.f32 %v64, %v222
  %v224 = vpop.f32.mrf.mxu0
  %v225 = vadd.f32 %v64, %v224
  %226 = vmatmul.bf16.gmra.mxu0 %v176
  %v227 = vpop.f32.mrf.mxu0
  %v228 = vadd.f32 %v64, %v227
  %v229 = vpop.f32.mrf.mxu0
  %v230 = vadd.f32 %v64, %v229
  %231 = vmatmul.bf16.gmra.mxu0 %v179
  %v232 = vpop.f32.mrf.mxu0
  %v233 = vadd.f32 %v64, %v232
  %v234 = vpop.f32.mrf.mxu0
  %v235 = vadd.f32 %v64, %v234
  %236 = vmatmul.bf16.gmra.mxu0 %v182
  %v237 = vpop.f32.mrf.mxu0
  %v238 = vadd.f32 %v64, %v237
  %v239 = vpop.f32.mrf.mxu0
  %v240 = vadd.f32 %v64, %v239
  %241 = vdwg.mxu0
  %242 = vmatpush.bf16.msra.mxu0 0
  %243 = vmatpush.bf16.msra.mxu0 0
  %244 = vmatpush.bf16.msra.mxu0 0
  %245 = vmatpush.bf16.msra.mxu0 0
  %246 = vmatpush.bf16.msra.mxu0 %v153
  %247 = vmatpush.bf16.msra.mxu0 %v149
  %248 = vmatpush.bf16.msra.mxu0 %v145
  %249 = vmatpush.bf16.msra.mxu0 %v141
  %250 = vmatmul.bf16.gmra.mxu0 %v173
  %v251 = vpop.f32.mrf.mxu0
  %v252 = vadd.f32 %v65, %v251
  %v253 = vpop.f32.mrf.mxu0
  %v254 = vadd.f32 %v65, %v253
  %255 = vmatmul.bf16.gmra.mxu0 %v176
  %v256 = vpop.f32.mrf.mxu0
  %v257 = vadd.f32 %v65, %v256
  %v258 = vpop.f32.mrf.mxu0
  %v259 = vadd.f32 %v65, %v258
  %260 = vmatmul.bf16.gmra.mxu0 %v179
  %v261 = vpop.f32.mrf.mxu0
  %v262 = vadd.f32 %v65, %v261
  %v263 = vpop.f32.mrf.mxu0
  %v264 = vadd.f32 %v65, %v263
  %265 = vmatmul.bf16.gmra.mxu0 %v182
  %v266 = vpop.f32.mrf.mxu0
  %v267 = vadd.f32 %v65, %v266
  %v268 = vpop.f32.mrf.mxu0
  %v269 = vadd.f32 %v65, %v268
  %270 = vdwg.mxu0
  %271 = vmatpush.bf16.msra.mxu0 0
  %272 = vmatpush.bf16.msra.mxu0 0
  %273 = vmatpush.bf16.msra.mxu0 0
  %274 = vmatpush.bf16.msra.mxu0 0
  %275 = vmatpush.bf16.msra.mxu0 %v154
  %276 = vmatpush.bf16.msra.mxu0 %v150
  %277 = vmatpush.bf16.msra.mxu0 %v146
  %278 = vmatpush.bf16.msra.mxu0 %v142
  %279 = vmatmul.bf16.gmra.mxu0 %v173
  %v280 = vpop.f32.mrf.mxu0
  %v281 = vadd.f32 %v66, %v280
  %v282 = vpop.f32.mrf.mxu0
  %v283 = vadd.f32 %v66, %v282
  %284 = vmatmul.bf16.gmra.mxu0 %v176
  %v285 = vpop.f32.mrf.mxu0
  %v286 = vadd.f32 %v66, %v285
  %v287 = vpop.f32.mrf.mxu0
  %v288 = vadd.f32 %v66, %v287
  %289 = vmatmul.bf16.gmra.mxu0 %v179
  %v290 = vpop.f32.mrf.mxu0
  %v291 = vadd.f32 %v66, %v290
  %v292 = vpop.f32.mrf.mxu0
  %v293 = vadd.f32 %v66, %v292
  %294 = vmatmul.bf16.gmra.mxu0 %v182
  %v295 = vpop.f32.mrf.mxu0
  %v296 = vadd.f32 %v66, %v295
  %v297 = vpop.f32.mrf.mxu0
  %v298 = vadd.f32 %v66, %v297
  %299 = vdwg.mxu0
  %v300 = vpack.c.bf16 %v223, %v194
  %v301 = vpack.c.bf16 %v281, %v252
  %v302 = vpack.c.bf16 %v225, %v196
  %v303 = vpack.c.bf16 %v283, %v254
  %v304 = vpack.c.bf16 %v228, %v199
  %v305 = vpack.c.bf16 %v286, %v257
  %v306 = vpack.c.bf16 %v230, %v201
  %v307 = vpack.c.bf16 %v288, %v259
  %v308 = vpack.c.bf16 %v233, %v204
  %v309 = vpack.c.bf16 %v291, %v262
  %v310 = vpack.c.bf16 %v235, %v206
  %v311 = vpack.c.bf16 %v293, %v264
  %v312 = vpack.c.bf16 %v238, %v209
  %v313 = vpack.c.bf16 %v296, %v267
  %v314 = vpack.c.bf16 %v240, %v211
  %v315 = vpack.c.bf16 %v298, %v269
  %316 = vst [vmem:[#allocation2] sm:$0xff] %v300
  %317 = vst [vmem:[#allocation2 + $0x8] sm:$0xff] %v301
  %318 = vst [vmem:[#allocation2 + $0x10] sm:$0xff] %v302
  %319 = vst [vmem:[#allocation2 + $0x18] sm:$0xff] %v303
  %320 = vst [vmem:[#allocation2 + $0x20] sm:$0xff] %v304
  %321 = vst [vmem:[#allocation2 + $0x28] sm:$0xff] %v305
  %322 = vst [vmem:[#allocation2 + $0x30] sm:$0xff] %v306
  %323 = vst [vmem:[#allocation2 + $0x38] sm:$0xff] %v307
  %324 = vst [vmem:[#allocation2 + $0x40] sm:$0xff] %v308
  %325 = vst [vmem:[#allocation2 + $0x48] sm:$0xff] %v309
  %326 = vst [vmem:[#allocation2 + $0x50] sm:$0xff] %v310
  %327 = vst [vmem:[#allocation2 + $0x58] sm:$0xff] %v311
  %328 = vst [vmem:[#allocation2 + $0x60] sm:$0xff] %v312
  %329 = vst [vmem:[#allocation2 + $0x68] sm:$0xff] %v313
  %330 = vst [vmem:[#allocation2 + $0x70] sm:$0xff] %v314
  %331 = vst [vmem:[#allocation2 + $0x78] sm:$0xff] %v315
  %v332 = vld [vmem:[#allocation4] sm:$0xff]
  %s333 = scalar_lea.vmem [#allocation4], 8
  %v334 = vld [vmem:[%s333] sm:$0xff]
  %s335 = scalar_lea.vmem [#allocation4], 16
  %v336 = vld [vmem:[%s335] sm:$0xff]
  %s337 = scalar_lea.vmem [#allocation4], 24
  %v338 = vld [vmem:[%s337] sm:$0xff]
  %s339 = smul.u32 0, 8
  %v340 = vld [vmem:[%s1] sm:$0xff]
  %v341 = vstv %s339
  %vm342 = vcmp.lt.s32.totalorder %v341, %v340
  %s343 = smul.u32 0, 4
  %s344 = smul.addr %s343, 4
  %s345 = scalar_lea.vmem [#allocation2], %s344
  %v346 = vld [vmem:[%s345] sm:$0xff]
  %v347 = vld [vmem:[%s345 + $0x8] sm:$0xff]
  %v348 = vunpack.c.l.bf16 %v346
  %v349 = vunpack.c.h.bf16 %v346
  %v350 = vunpack.c.l.bf16 %v347
  %v351 = vunpack.c.h.bf16 %v347
  %v352 = vpack.c.bf16 %v332, %v332
  %v353 = vld [vmem:[%s3] sm:$0xff]
  %v354 = vld [vmem:[%s3 + $0x8] sm:$0xff]
  %v355 = vld [vmem:[%s3 + $0x10] sm:$0xff]
  %v356 = vld [vmem:[%s3 + $0x18] sm:$0xff]
  %v357 = vld [vmem:[%s3 + $0x20] sm:$0xff]
  %v358 = vld [vmem:[%s3 + $0x28] sm:$0xff]
  %v359 = vld [vmem:[%s3 + $0x30] sm:$0xff]
  %v360 = vld [vmem:[%s3 + $0x38] sm:$0xff]
  %v361 = vld [vmem:[%s3 + $0x40] sm:$0xff]
  %v362 = vld [vmem:[%s3 + $0x48] sm:$0xff]
  %v363 = vld [vmem:[%s3 + $0x50] sm:$0xff]
  %v364 = vld [vmem:[%s3 + $0x58] sm:$0xff]
  %v365 = vld [vmem:[%s3 + $0x60] sm:$0xff]
  %v366 = vld [vmem:[%s3 + $0x68] sm:$0xff]
  %v367 = vld [vmem:[%s3 + $0x70] sm:$0xff]
  %v368 = vld [vmem:[%s3 + $0x78] sm:$0xff]
  %v369 = vld [vmem:[%s3 + $0x80] sm:$0xff]
  %v370 = vld [vmem:[%s3 + $0x88] sm:$0xff]
  %v371 = vld [vmem:[%s3 + $0x90] sm:$0xff]
  %v372 = vld [vmem:[%s3 + $0x98] sm:$0xff]
  %v373 = vld [vmem:[%s3 + $0xa0] sm:$0xff]
  %v374 = vld [vmem:[%s3 + $0xa8] sm:$0xff]
  %v375 = vld [vmem:[%s3 + $0xb0] sm:$0xff]
  %v376 = vld [vmem:[%s3 + $0xb8] sm:$0xff]
  %v377 = vld [vmem:[%s3 + $0xc0] sm:$0xff]
  %v378 = vld [vmem:[%s3 + $0xc8] sm:$0xff]
  %v379 = vld [vmem:[%s3 + $0xd0] sm:$0xff]
  %v380 = vld [vmem:[%s3 + $0xd8] sm:$0xff]
  %v381 = vld [vmem:[%s3 + $0xe0] sm:$0xff]
  %v382 = vld [vmem:[%s3 + $0xe8] sm:$0xff]
  %v383 = vld [vmem:[%s3 + $0xf0] sm:$0xff]
  %v384 = vld [vmem:[%s3 + $0xf8] sm:$0xff]
  %v417 = vunpack.c.l.b16 %v353
  %v418 = vunpack.c.h.b16 %v353
  %v419 = vunpack.c.l.b16 %v354
  %v420 = vunpack.c.h.b16 %v354
  %v421 = vunpack.c.l.b16 %v355
  %v422 = vunpack.c.h.b16 %v355
  %v423 = vunpack.c.l.b16 %v356
  %v424 = vunpack.c.h.b16 %v356
  %v425 = vunpack.c.l.b16 %v357
  %v426 = vunpack.c.h.b16 %v357
  %v427 = vunpack.c.l.b16 %v358
  %v428 = vunpack.c.h.b16 %v358
  %v429 = vunpack.c.l.b16 %v359
  %v430 = vunpack.c.h.b16 %v359
  %v431 = vunpack.c.l.b16 %v360
  %v432 = vunpack.c.h.b16 %v360
  %v433 = vunpack.c.l.b16 %v361
  %v434 = vunpack.c.h.b16 %v361
  %v435 = vunpack.c.l.b16 %v362
  %v436 = vunpack.c.h.b16 %v362
  %v437 = vunpack.c.l.b16 %v363
  %v438 = vunpack.c.h.b16 %v363
  %v439 = vunpack.c.l.b16 %v364
  %v440 = vunpack.c.h.b16 %v364
  %v441 = vunpack.c.l.b16 %v365
  %v442 = vunpack.c.h.b16 %v365
  %v443 = vunpack.c.l.b16 %v366
  %v444 = vunpack.c.h.b16 %v366
  %v445 = vunpack.c.l.b16 %v367
  %v446 = vunpack.c.h.b16 %v367
  %v447 = vunpack.c.l.b16 %v368
  %v448 = vunpack.c.h.b16 %v368
  %v449 = vunpack.c.l.b16 %v369
  %v450 = vunpack.c.h.b16 %v369
  %v451 = vunpack.c.l.b16 %v370
  %v452 = vunpack.c.h.b16 %v370
  %v453 = vunpack.c.l.b16 %v371
  %v454 = vunpack.c.h.b16 %v371
  %v455 = vunpack.c.l.b16 %v372
  %v456 = vunpack.c.h.b16 %v372
  %v457 = vunpack.c.l.b16 %v373
  %v458 = vunpack.c.h.b16 %v373
  %v459 = vunpack.c.l.b16 %v374
  %v460 = vunpack.c.h.b16 %v374
  %v461 = vunpack.c.l.b16 %v375
  %v462 = vunpack.c.h.b16 %v375
  %v463 = vunpack.c.l.b16 %v376
  %v464 = vunpack.c.h.b16 %v376
  %v465 = vunpack.c.l.b16 %v377
  %v466 = vunpack.c.h.b16 %v377
  %v467 = vunpack.c.l.b16 %v378
  %v468 = vunpack.c.h.b16 %v378
  %v469 = vunpack.c.l.b16 %v379
  %v470 = vunpack.c.h.b16 %v379
  %v471 = vunpack.c.l.b16 %v380
  %v472 = vunpack.c.h.b16 %v380
  %v473 = vunpack.c.l.b16 %v381
  %v474 = vunpack.c.h.b16 %v381
  %v475 = vunpack.c.l.b16 %v382
  %v476 = vunpack.c.h.b16 %v382
  %v477 = vunpack.c.l.b16 %v383
  %v478 = vunpack.c.h.b16 %v383
  %v479 = vunpack.c.l.b16 %v384
  %v480 = vunpack.c.h.b16 %v384
  %v481 = vpack.c.b16 %v421, %v417
  %v482 = vpack.c.b16 %v422, %v418
  %v483 = vpack.c.b16 %v423, %v419
  %v484 = vpack.c.b16 %v424, %v420
  %v485 = vpack.c.b16 %v429, %v425
  %v486 = vpack.c.b16 %v430, %v426
  %v487 = vpack.c.b16 %v431, %v427
  %v488 = vpack.c.b16 %v432, %v428
  %v489 = vpack.c.b16 %v437, %v433
  %v490 = vpack.c.b16 %v438, %v434
  %v491 = vpack.c.b16 %v439, %v435
  %v492 = vpack.c.b16 %v440, %v436
  %v493 = vpack.c.b16 %v445, %v441
  %v494 = vpack.c.b16 %v446, %v442
  %v495 = vpack.c.b16 %v447, %v443
  %v496 = vpack.c.b16 %v448, %v444
  %v497 = vpack.c.b16 %v453, %v449
  %v498 = vpack.c.b16 %v454, %v450
  %v499 = vpack.c.b16 %v455, %v451
  %v500 = vpack.c.b16 %v456, %v452
  %v501 = vpack.c.b16 %v461, %v457
  %v502 = vpack.c.b16 %v462, %v458
  %v503 = vpack.c.b16 %v463, %v459
  %v504 = vpack.c.b16 %v464, %v460
  %v505 = vpack.c.b16 %v469, %v465
  %v506 = vpack.c.b16 %v470, %v466
  %v507 = vpack.c.b16 %v471, %v467
  %v508 = vpack.c.b16 %v472, %v468
  %v509 = vpack.c.b16 %v477, %v473
  %v510 = vpack.c.b16 %v478, %v474
  %v511 = vpack.c.b16 %v479, %v475
  %v512 = vpack.c.b16 %v480, %v476
  %545 = vmatpush.bf16.msra.mxu0 %v509
  %546 = vmatpush.bf16.msra.mxu0 %v505
  %547 = vmatpush.bf16.msra.mxu0 %v501
  %548 = vmatpush.bf16.msra.mxu0 %v497
  %549 = vmatpush.bf16.msra.mxu0 %v493
  %550 = vmatpush.bf16.msra.mxu0 %v489
  %551 = vmatpush.bf16.msra.mxu0 %v485
  %552 = vmatpush.bf16.msra.mxu0 %v481
  %553 = vmatmul.bf16.gmra.mxu0 %v352
  %v554 = vpop.f32.mrf.mxu0
  %v555 = vadd.f32 0.0, %v554
  %v556 = vpop.f32.mrf.mxu0
  %557 = vdwg.mxu0
  %558 = vmatpush.bf16.msra.mxu0 %v510
  %559 = vmatpush.bf16.msra.mxu0 %v506
  %560 = vmatpush.bf16.msra.mxu0 %v502
  %561 = vmatpush.bf16.msra.mxu0 %v498
  %562 = vmatpush.bf16.msra.mxu0 %v494
  %563 = vmatpush.bf16.msra.mxu0 %v490
  %564 = vmatpush.bf16.msra.mxu0 %v486
  %565 = vmatpush.bf16.msra.mxu0 %v482
  %566 = vmatmul.bf16.gmra.mxu0 %v352
  %v567 = vpop.f32.mrf.mxu0
  %v568 = vadd.f32 0.0, %v567
  %v569 = vpop.f32.mrf.mxu0
  %570 = vdwg.mxu0
  %571 = vmatpush.bf16.msra.mxu0 %v511
  %572 = vmatpush.bf16.msra.mxu0 %v507
  %573 = vmatpush.bf16.msra.mxu0 %v503
  %574 = vmatpush.bf16.msra.mxu0 %v499
  %575 = vmatpush.bf16.msra.mxu0 %v495
  %576 = vmatpush.bf16.msra.mxu0 %v491
  %577 = vmatpush.bf16.msra.mxu0 %v487
  %578 = vmatpush.bf16.msra.mxu0 %v483
  %579 = vmatmul.bf16.gmra.mxu0 %v352
  %v580 = vpop.f32.mrf.mxu0
  %v581 = vadd.f32 0.0, %v580
  %v582 = vpop.f32.mrf.mxu0
  %583 = vdwg.mxu0
  %584 = vmatpush.bf16.msra.mxu0 %v512
  %585 = vmatpush.bf16.msra.mxu0 %v508
  %586 = vmatpush.bf16.msra.mxu0 %v504
  %587 = vmatpush.bf16.msra.mxu0 %v500
  %588 = vmatpush.bf16.msra.mxu0 %v496
  %589 = vmatpush.bf16.msra.mxu0 %v492
  %590 = vmatpush.bf16.msra.mxu0 %v488
  %591 = vmatpush.bf16.msra.mxu0 %v484
  %592 = vmatmul.bf16.gmra.mxu0 %v352
  %v593 = vpop.f32.mrf.mxu0
  %v594 = vadd.f32 0.0, %v593
  %v595 = vpop.f32.mrf.mxu0
  %596 = vdwg.mxu0
  %v597 = vadd.f32 %v348, %v555
  %v598 = vadd.f32 %v349, %v568
  %v599 = vadd.f32 %v350, %v581
  %v600 = vadd.f32 %v351, %v594
  %v601 = vxor.u32 %v597, 2147483648
  %v602 = vmul.f32 %v601, 1.442695
  %v603 = vpow.pop %v602
  %v604 = vadd.f32 %v603, 1.0
  %v605 = vrcp.pop %v604
  %v606 = vmul.f32 %v604, %v605
  %v607 = vsub.f32 1.0, %v606
  %v608 = vmul.f32 %v605, %v607
  %v609 = vadd.f32 %v605, %v608
  %vm610 = vweird.f32 %v604
  %vm611 = vweird.f32 %v605
  %vm612 = vmor %vm610, %vm611
  %v613 = vsel %vm612, %v605, %v609
  %v614 = vand.u32 2147483647, %v604
  %vm615 = vcmp.eq.f32.partialorder %v614, 8.507059e+37
  %v616 = vand.u32 %v604, 2147483648
  %v617 = vor.u32 1.1754944e-38, %v616
  %v618 = vsel %vm615, %v617, %v613
  %v619 = vmul.f32 1.0, %v618
  %v620 = vxor.u32 %v598, 2147483648
  %v621 = vmul.f32 %v620, 1.442695
  %v622 = vpow.pop %v621
  %v623 = vadd.f32 %v622, 1.0
  %v624 = vrcp.pop %v623
  %v625 = vmul.f32 %v623, %v624
  %v626 = vsub.f32 1.0, %v625
  %v627 = vmul.f32 %v624, %v626
  %v628 = vadd.f32 %v624, %v627
  %vm629 = vweird.f32 %v623
  %vm630 = vweird.f32 %v624
  %vm631 = vmor %vm629, %vm630
  %v632 = vsel %vm631, %v624, %v628
  %v633 = vand.u32 2147483647, %v623
  %vm634 = vcmp.eq.f32.partialorder %v633, 8.507059e+37
  %v635 = vand.u32 %v623, 2147483648
  %v636 = vor.u32 1.1754944e-38, %v635
  %v637 = vsel %vm634, %v636, %v632
  %v638 = vmul.f32 1.0, %v637
  %v639 = vtanh.pop %v599
  %v640 = vxor.u32 %v600, 2147483648
  %v641 = vmul.f32 %v640, 1.442695
  %v642 = vpow.pop %v641
  %v643 = vadd.f32 %v642, 1.0
  %v644 = vrcp.pop %v643
  %v645 = vmul.f32 %v643, %v644
  %v646 = vsub.f32 1.0, %v645
  %v647 = vmul.f32 %v644, %v646
  %v648 = vadd.f32 %v644, %v647
  %vm649 = vweird.f32 %v643
  %vm650 = vweird.f32 %v644
  %vm651 = vmor %vm649, %vm650
  %v652 = vsel %vm651, %v644, %v648
  %v653 = vand.u32 2147483647, %v643
  %vm654 = vcmp.eq.f32.partialorder %v653, 8.507059e+37
  %v655 = vand.u32 %v643, 2147483648
  %v656 = vor.u32 1.1754944e-38, %v655
  %v657 = vsel %vm654, %v656, %v652
  %v658 = vmul.f32 1.0, %v657
  %v659 = vmul.f32 %v638, %v334
  %v660 = vmul.f32 %v619, %v639
  %v661 = vadd.f32 %v659, %v660
  %v662 = vtanh.pop %v661
  %v663 = vmul.f32 %v658, %v662
  %v664 = vsel %vm342, 1, 0
  %665 = vset.pattern.permute.xlu0 0
  %666 = vperm.xlu0 %665, %v664
  %v667 = vpop.permute.xlu0 %666
  %vm668 = vcmp.eq.s32.totalorder %v667, 1
  %v669 = vsel %vm668, %v663, %v332
  %v670 = vsel %vm668, %v661, %v334
  %v671 = vpack.c.bf16 %v669, %v669
  %672 = vst [vmem:[#allocation3] sm:$0xf] %v671
  %v673 = vpack.c.bf16 %v336, %v336
  %674 = vst [vmem:[#allocation3 + $0x4] sm:$0xf] %v673
  %v675 = vld [vmem:[#allocation3] sm:$0xff]
  %v676 = vld [vmem:[%s5] sm:$0xff]
  %v677 = vld [vmem:[%s5 + $0x8] sm:$0xff]
  %v678 = vld [vmem:[%s5 + $0x10] sm:$0xff]
  %v679 = vld [vmem:[%s5 + $0x18] sm:$0xff]
  %v680 = vld [vmem:[%s5 + $0x20] sm:$0xff]
  %v681 = vld [vmem:[%s5 + $0x28] sm:$0xff]
  %v682 = vld [vmem:[%s5 + $0x30] sm:$0xff]
  %v683 = vld [vmem:[%s5 + $0x38] sm:$0xff]
  %v684 = vld [vmem:[%s5 + $0x40] sm:$0xff]
  %v685 = vld [vmem:[%s5 + $0x48] sm:$0xff]
  %v686 = vld [vmem:[%s5 + $0x50] sm:$0xff]
  %v687 = vld [vmem:[%s5 + $0x58] sm:$0xff]
  %v688 = vld [vmem:[%s5 + $0x60] sm:$0xff]
  %v689 = vld [vmem:[%s5 + $0x68] sm:$0xff]
  %v690 = vld [vmem:[%s5 + $0x70] sm:$0xff]
  %v691 = vld [vmem:[%s5 + $0x78] sm:$0xff]
  %v692 = vld [vmem:[%s5 + $0x80] sm:$0xff]
  %v693 = vld [vmem:[%s5 + $0x88] sm:$0xff]
  %v694 = vld [vmem:[%s5 + $0x90] sm:$0xff]
  %v695 = vld [vmem:[%s5 + $0x98] sm:$0xff]
  %v696 = vld [vmem:[%s5 + $0xa0] sm:$0xff]
  %v697 = vld [vmem:[%s5 + $0xa8] sm:$0xff]
  %v698 = vld [vmem:[%s5 + $0xb0] sm:$0xff]
  %v699 = vld [vmem:[%s5 + $0xb8] sm:$0xff]
  %v700 = vld [vmem:[%s5 + $0xc0] sm:$0xff]
  %v701 = vld [vmem:[%s5 + $0xc8] sm:$0xff]
  %v702 = vld [vmem:[%s5 + $0xd0] sm:$0xff]
  %v703 = vld [vmem:[%s5 + $0xd8] sm:$0xff]
  %v704 = vld [vmem:[%s5 + $0xe0] sm:$0xff]
  %v705 = vld [vmem:[%s5 + $0xe8] sm:$0xff]
  %v706 = vld [vmem:[%s5 + $0xf0] sm:$0xff]
  %v707 = vld [vmem:[%s5 + $0xf8] sm:$0xff]
  %v708 = vld [vmem:[%s5 + $0x100] sm:$0xff]
  %v709 = vld [vmem:[%s5 + $0x108] sm:$0xff]
  %v710 = vld [vmem:[%s5 + $0x110] sm:$0xff]
  %v711 = vld [vmem:[%s5 + $0x118] sm:$0xff]
  %v712 = vld [vmem:[%s5 + $0x120] sm:$0xff]
  %v713 = vld [vmem:[%s5 + $0x128] sm:$0xff]
  %v714 = vld [vmem:[%s5 + $0x130] sm:$0xff]
  %v715 = vld [vmem:[%s5 + $0x138] sm:$0xff]
  %v716 = vld [vmem:[%s5 + $0x140] sm:$0xff]
  %v717 = vld [vmem:[%s5 + $0x148] sm:$0xff]
  %v718 = vld [vmem:[%s5 + $0x150] sm:$0xff]
  %v719 = vld [vmem:[%s5 + $0x158] sm:$0xff]
  %v720 = vld [vmem:[%s5 + $0x160] sm:$0xff]
  %v721 = vld [vmem:[%s5 + $0x168] sm:$0xff]
  %v722 = vld [vmem:[%s5 + $0x170] sm:$0xff]
  %v723 = vld [vmem:[%s5 + $0x178] sm:$0xff]
  %v724 = vld [vmem:[%s5 + $0x180] sm:$0xff]
  %v725 = vld [vmem:[%s5 + $0x188] sm:$0xff]
  %v726 = vld [vmem:[%s5 + $0x190] sm:$0xff]
  %v727 = vld [vmem:[%s5 + $0x198] sm:$0xff]
  %v728 = vld [vmem:[%s5 + $0x1a0] sm:$0xff]
  %v729 = vld [vmem:[%s5 + $0x1a8] sm:$0xff]
  %v730 = vld [vmem:[%s5 + $0x1b0] sm:$0xff]
  %v731 = vld [vmem:[%s5 + $0x1b8] sm:$0xff]
  %v732 = vld [vmem:[%s5 + $0x1c0] sm:$0xff]
  %v733 = vld [vmem:[%s5 + $0x1c8] sm:$0xff]
  %v734 = vld [vmem:[%s5 + $0x1d0] sm:$0xff]
  %v735 = vld [vmem:[%s5 + $0x1d8] sm:$0xff]
  %v736 = vld [vmem:[%s5 + $0x1e0] sm:$0xff]
  %v737 = vld [vmem:[%s5 + $0x1e8] sm:$0xff]
  %v738 = vld [vmem:[%s5 + $0x1f0] sm:$0xff]
  %v739 = vld [vmem:[%s5 + $0x1f8] sm:$0xff]
  %v740 = vld [vmem:[%s6] sm:$0xf]
  %v742 = vperm.slane %v740, 0
  %v743 = vperm.slane %v740, 1
  %v744 = vperm.slane %v740, 2
  %v745 = vperm.slane %v740, 3
  %v751 = vunpack.c.l.b16 %v675
  %v752 = vunpack.c.h.b16 %v675
  %v753 = vpack.c.b16 %v751, %v751
  %v754 = vpack.c.b16 %v752, %v752
  %v821 = vunpack.c.l.b16 %v676
  %v822 = vunpack.c.h.b16 %v676
  %v823 = vunpack.c.l.b16 %v677
  %v824 = vunpack.c.h.b16 %v677
  %v825 = vunpack.c.l.b16 %v678
  %v826 = vunpack.c.h.b16 %v678
  %v827 = vunpack.c.l.b16 %v679
  %v828 = vunpack.c.h.b16 %v679
  %v829 = vunpack.c.l.b16 %v680
  %v830 = vunpack.c.h.b16 %v680
  %v831 = vunpack.c.l.b16 %v681
  %v832 = vunpack.c.h.b16 %v681
  %v833 = vunpack.c.l.b16 %v682
  %v834 = vunpack.c.h.b16 %v682
  %v835 = vunpack.c.l.b16 %v683
  %v836 = vunpack.c.h.b16 %v683
  %v837 = vunpack.c.l.b16 %v684
  %v838 = vunpack.c.h.b16 %v684
  %v839 = vunpack.c.l.b16 %v685
  %v840 = vunpack.c.h.b16 %v685
  %v841 = vunpack.c.l.b16 %v686
  %v842 = vunpack.c.h.b16 %v686
  %v843 = vunpack.c.l.b16 %v687
  %v844 = vunpack.c.h.b16 %v687
  %v845 = vunpack.c.l.b16 %v688
  %v846 = vunpack.c.h.b16 %v688
  %v847 = vunpack.c.l.b16 %v689
  %v848 = vunpack.c.h.b16 %v689
  %v849 = vunpack.c.l.b16 %v690
  %v850 = vunpack.c.h.b16 %v690
  %v851 = vunpack.c.l.b16 %v691
  %v852 = vunpack.c.h.b16 %v691
  %v853 = vunpack.c.l.b16 %v692
  %v854 = vunpack.c.h.b16 %v692
  %v855 = vunpack.c.l.b16 %v693
  %v856 = vunpack.c.h.b16 %v693
  %v857 = vunpack.c.l.b16 %v694
  %v858 = vunpack.c.h.b16 %v694
  %v859 = vunpack.c.l.b16 %v695
  %v860 = vunpack.c.h.b16 %v695
  %v861 = vunpack.c.l.b16 %v696
  %v862 = vunpack.c.h.b16 %v696
  %v863 = vunpack.c.l.b16 %v697
  %v864 = vunpack.c.h.b16 %v697
  %v865 = vunpack.c.l.b16 %v698
  %v866 = vunpack.c.h.b16 %v698
  %v867 = vunpack.c.l.b16 %v699
  %v868 = vunpack.c.h.b16 %v699
  %v869 = vunpack.c.l.b16 %v700
  %v870 = vunpack.c.h.b16 %v700
  %v871 = vunpack.c.l.b16 %v701
  %v872 = vunpack.c.h.b16 %v701
  %v873 = vunpack.c.l.b16 %v702
  %v874 = vunpack.c.h.b16 %v702
  %v875 = vunpack.c.l.b16 %v703
  %v876 = vunpack.c.h.b16 %v703
  %v877 = vunpack.c.l.b16 %v704
  %v878 = vunpack.c.h.b16 %v704
  %v879 = vunpack.c.l.b16 %v705
  %v880 = vunpack.c.h.b16 %v705
  %v881 = vunpack.c.l.b16 %v706
  %v882 = vunpack.c.h.b16 %v706
  %v883 = vunpack.c.l.b16 %v707
  %v884 = vunpack.c.h.b16 %v707
  %v885 = vunpack.c.l.b16 %v708
  %v886 = vunpack.c.h.b16 %v708
  %v887 = vunpack.c.l.b16 %v709
  %v888 = vunpack.c.h.b16 %v709
  %v889 = vunpack.c.l.b16 %v710
  %v890 = vunpack.c.h.b16 %v710
  %v891 = vunpack.c.l.b16 %v711
  %v892 = vunpack.c.h.b16 %v711
  %v893 = vunpack.c.l.b16 %v712
  %v894 = vunpack.c.h.b16 %v712
  %v895 = vunpack.c.l.b16 %v713
  %v896 = vunpack.c.h.b16 %v713
  %v897 = vunpack.c.l.b16 %v714
  %v898 = vunpack.c.h.b16 %v714
  %v899 = vunpack.c.l.b16 %v715
  %v900 = vunpack.c.h.b16 %v715
  %v901 = vunpack.c.l.b16 %v716
  %v902 = vunpack.c.h.b16 %v716
  %v903 = vunpack.c.l.b16 %v717
  %v904 = vunpack.c.h.b16 %v717
  %v905 = vunpack.c.l.b16 %v718
  %v906 = vunpack.c.h.b16 %v718
  %v907 = vunpack.c.l.b16 %v719
  %v908 = vunpack.c.h.b16 %v719
  %v909 = vunpack.c.l.b16 %v720
  %v910 = vunpack.c.h.b16 %v720
  %v911 = vunpack.c.l.b16 %v721
  %v912 = vunpack.c.h.b16 %v721
  %v913 = vunpack.c.l.b16 %v722
  %v914 = vunpack.c.h.b16 %v722
  %v915 = vunpack.c.l.b16 %v723
  %v916 = vunpack.c.h.b16 %v723
  %v917 = vunpack.c.l.b16 %v724
  %v918 = vunpack.c.h.b16 %v724
  %v919 = vunpack.c.l.b16 %v725
  %v920 = vunpack.c.h.b16 %v725
  %v921 = vunpack.c.l.b16 %v726
  %v922 = vunpack.c.h.b16 %v726
  %v923 = vunpack.c.l.b16 %v727
  %v924 = vunpack.c.h.b16 %v727
  %v925 = vunpack.c.l.b16 %v728
  %v926 = vunpack.c.h.b16 %v728
  %v927 = vunpack.c.l.b16 %v729
  %v928 = vunpack.c.h.b16 %v729
  %v929 = vunpack.c.l.b16 %v730
  %v930 = vunpack.c.h.b16 %v730
  %v931 = vunpack.c.l.b16 %v731
  %v932 = vunpack.c.h.b16 %v731
  %v933 = vunpack.c.l.b16 %v732
  %v934 = vunpack.c.h.b16 %v732
  %v935 = vunpack.c.l.b16 %v733
  %v936 = vunpack.c.h.b16 %v733
  %v937 = vunpack.c.l.b16 %v734
  %v938 = vunpack.c.h.b16 %v734
  %v939 = vunpack.c.l.b16 %v735
  %v940 = vunpack.c.h.b16 %v735
  %v941 = vunpack.c.l.b16 %v736
  %v942 = vunpack.c.h.b16 %v736
  %v943 = vunpack.c.l.b16 %v737
  %v944 = vunpack.c.h.b16 %v737
  %v945 = vunpack.c.l.b16 %v738
  %v946 = vunpack.c.h.b16 %v738
  %v947 = vunpack.c.l.b16 %v739
  %v948 = vunpack.c.h.b16 %v739
  %v949 = vpack.c.b16 %v825, %v821
  %v950 = vpack.c.b16 %v826, %v822
  %v951 = vpack.c.b16 %v827, %v823
  %v952 = vpack.c.b16 %v828, %v824
  %v953 = vpack.c.b16 %v833, %v829
  %v954 = vpack.c.b16 %v834, %v830
  %v955 = vpack.c.b16 %v835, %v831
  %v956 = vpack.c.b16 %v836, %v832
  %v957 = vpack.c.b16 %v841, %v837
  %v958 = vpack.c.b16 %v842, %v838
  %v959 = vpack.c.b16 %v843, %v839
  %v960 = vpack.c.b16 %v844, %v840
  %v961 = vpack.c.b16 %v849, %v845
  %v962 = vpack.c.b16 %v850, %v846
  %v963 = vpack.c.b16 %v851, %v847
  %v964 = vpack.c.b16 %v852, %v848
  %v965 = vpack.c.b16 %v857, %v853
  %v966 = vpack.c.b16 %v858, %v854
  %v967 = vpack.c.b16 %v859, %v855
  %v968 = vpack.c.b16 %v860, %v856
  %v969 = vpack.c.b16 %v865, %v861
  %v970 = vpack.c.b16 %v866, %v862
  %v971 = vpack.c.b16 %v867, %v863
  %v972 = vpack.c.b16 %v868, %v864
  %v973 = vpack.c.b16 %v873, %v869
  %v974 = vpack.c.b16 %v874, %v870
  %v975 = vpack.c.b16 %v875, %v871
  %v976 = vpack.c.b16 %v876, %v872
  %v977 = vpack.c.b16 %v881, %v877
  %v978 = vpack.c.b16 %v882, %v878
  %v979 = vpack.c.b16 %v883, %v879
  %v980 = vpack.c.b16 %v884, %v880
  %v981 = vpack.c.b16 %v889, %v885
  %v982 = vpack.c.b16 %v890, %v886
  %v983 = vpack.c.b16 %v891, %v887
  %v984 = vpack.c.b16 %v892, %v888
  %v985 = vpack.c.b16 %v897, %v893
  %v986 = vpack.c.b16 %v898, %v894
  %v987 = vpack.c.b16 %v899, %v895
  %v988 = vpack.c.b16 %v900, %v896
  %v989 = vpack.c.b16 %v905, %v901
  %v990 = vpack.c.b16 %v906, %v902
  %v991 = vpack.c.b16 %v907, %v903
  %v992 = vpack.c.b16 %v908, %v904
  %v993 = vpack.c.b16 %v913, %v909
  %v994 = vpack.c.b16 %v914, %v910
  %v995 = vpack.c.b16 %v915, %v911
  %v996 = vpack.c.b16 %v916, %v912
  %v997 = vpack.c.b16 %v921, %v917
  %v998 = vpack.c.b16 %v922, %v918
  %v999 = vpack.c.b16 %v923, %v919
  %v1000 = vpack.c.b16 %v924, %v920
  %v1001 = vpack.c.b16 %v929, %v925
  %v1002 = vpack.c.b16 %v930, %v926
  %v1003 = vpack.c.b16 %v931, %v927
  %v1004 = vpack.c.b16 %v932, %v928
  %v1005 = vpack.c.b16 %v937, %v933
  %v1006 = vpack.c.b16 %v938, %v934
  %v1007 = vpack.c.b16 %v939, %v935
  %v1008 = vpack.c.b16 %v940, %v936
  %v1009 = vpack.c.b16 %v945, %v941
  %v1010 = vpack.c.b16 %v946, %v942
  %v1011 = vpack.c.b16 %v947, %v943
  %v1012 = vpack.c.b16 %v948, %v944
  %1077 = vmatpush.bf16.msra.mxu0 %v977
  %1078 = vmatpush.bf16.msra.mxu0 %v973
  %1079 = vmatpush.bf16.msra.mxu0 %v969
  %1080 = vmatpush.bf16.msra.mxu0 %v965
  %1081 = vmatpush.bf16.msra.mxu0 %v961
  %1082 = vmatpush.bf16.msra.mxu0 %v957
  %1083 = vmatpush.bf16.msra.mxu0 %v953
  %1084 = vmatpush.bf16.msra.mxu0 %v949
  %1085 = vmatmul.bf16.gmra.mxu0 %v753
  %v1086 = vpop.f32.mrf.mxu0
  %v1087 = vadd.f32 %v742, %v1086
  %v1088 = vpop.f32.mrf.mxu0
  %1089 = vdwg.mxu0
  %1090 = vmatpush.bf16.msra.mxu0 %v1009
  %1091 = vmatpush.bf16.msra.mxu0 %v1005
  %1092 = vmatpush.bf16.msra.mxu0 %v1001
  %1093 = vmatpush.bf16.msra.mxu0 %v997
  %1094 = vmatpush.bf16.msra.mxu0 %v993
  %1095 = vmatpush.bf16.msra.mxu0 %v989
  %1096 = vmatpush.bf16.msra.mxu0 %v985
  %1097 = vmatpush.bf16.msra.mxu0 %v981
  %1098 = vmatmul.bf16.gmra.mxu0 %v754
  %v1099 = vpop.f32.mrf.mxu0
  %v1100 = vadd.f32 %v1087, %v1099
  %v1101 = vpop.f32.mrf.mxu0
  %1102 = vdwg.mxu0
  %1103 = vmatpush.bf16.msra.mxu0 %v978
  %1104 = vmatpush.bf16.msra.mxu0 %v974
  %1105 = vmatpush.bf16.msra.mxu0 %v970
  %1106 = vmatpush.bf16.msra.mxu0 %v966
  %1107 = vmatpush.bf16.msra.mxu0 %v962
  %1108 = vmatpush.bf16.msra.mxu0 %v958
  %1109 = vmatpush.bf16.msra.mxu0 %v954
  %1110 = vmatpush.bf16.msra.mxu0 %v950
  %1111 = vmatmul.bf16.gmra.mxu0 %v753
  %v1112 = vpop.f32.mrf.mxu0
  %v1113 = vadd.f32 %v743, %v1112
  %v1114 = vpop.f32.mrf.mxu0
  %1115 = vdwg.mxu0
  %1116 = vmatpush.bf16.msra.mxu0 %v1010
  %1117 = vmatpush.bf16.msra.mxu0 %v1006
  %1118 = vmatpush.bf16.msra.mxu0 %v1002
  %1119 = vmatpush.bf16.msra.mxu0 %v998
  %1120 = vmatpush.bf16.msra.mxu0 %v994
  %1121 = vmatpush.bf16.msra.mxu0 %v990
  %1122 = vmatpush.bf16.msra.mxu0 %v986
  %1123 = vmatpush.bf16.msra.mxu0 %v982
  %1124 = vmatmul.bf16.gmra.mxu0 %v754
  %v1125 = vpop.f32.mrf.mxu0
  %v1126 = vadd.f32 %v1113, %v1125
  %v1127 = vpop.f32.mrf.mxu0
  %1128 = vdwg.mxu0
  %1129 = vmatpush.bf16.msra.mxu0 %v979
  %1130 = vmatpush.bf16.msra.mxu0 %v975
  %1131 = vmatpush.bf16.msra.mxu0 %v971
  %1132 = vmatpush.bf16.msra.mxu0 %v967
  %1133 = vmatpush.bf16.msra.mxu0 %v963
  %1134 = vmatpush.bf16.msra.mxu0 %v959
  %1135 = vmatpush.bf16.msra.mxu0 %v955
  %1136 = vmatpush.bf16.msra.mxu0 %v951
  %1137 = vmatmul.bf16.gmra.mxu0 %v753
  %v1138 = vpop.f32.mrf.mxu0
  %v1139 = vadd.f32 %v744, %v1138
  %v1140 = vpop.f32.mrf.mxu0
  %1141 = vdwg.mxu0
  %1142 = vmatpush.bf16.msra.mxu0 %v1011
  %1143 = vmatpush.bf16.msra.mxu0 %v1007
  %1144 = vmatpush.bf16.msra.mxu0 %v1003
  %1145 = vmatpush.bf16.msra.mxu0 %v999
  %1146 = vmatpush.bf16.msra.mxu0 %v995
  %1147 = vmatpush.bf16.msra.mxu0 %v991
  %1148 = vmatpush.bf16.msra.mxu0 %v987
  %1149 = vmatpush.bf16.msra.mxu0 %v983
  %1150 = vmatmul.bf16.gmra.mxu0 %v754
  %v1151 = vpop.f32.mrf.mxu0
  %v1152 = vadd.f32 %v1139, %v1151
  %v1153 = vpop.f32.mrf.mxu0
  %1154 = vdwg.mxu0
  %1155 = vmatpush.bf16.msra.mxu0 %v980
  %1156 = vmatpush.bf16.msra.mxu0 %v976
  %1157 = vmatpush.bf16.msra.mxu0 %v972
  %1158 = vmatpush.bf16.msra.mxu0 %v968
  %1159 = vmatpush.bf16.msra.mxu0 %v964
  %1160 = vmatpush.bf16.msra.mxu0 %v960
  %1161 = vmatpush.bf16.msra.mxu0 %v956
  %1162 = vmatpush.bf16.msra.mxu0 %v952
  %1163 = vmatmul.bf16.gmra.mxu0 %v753
  %v1164 = vpop.f32.mrf.mxu0
  %v1165 = vadd.f32 %v745, %v1164
  %v1166 = vpop.f32.mrf.mxu0
  %1167 = vdwg.mxu0
  %1168 = vmatpush.bf16.msra.mxu0 %v1012
  %1169 = vmatpush.bf16.msra.mxu0 %v1008
  %1170 = vmatpush.bf16.msra.mxu0 %v1004
  %1171 = vmatpush.bf16.msra.mxu0 %v1000
  %1172 = vmatpush.bf16.msra.mxu0 %v996
  %1173 = vmatpush.bf16.msra.mxu0 %v992
  %1174 = vmatpush.bf16.msra.mxu0 %v988
  %1175 = vmatpush.bf16.msra.mxu0 %v984
  %1176 = vmatmul.bf16.gmra.mxu0 %v754
  %v1177 = vpop.f32.mrf.mxu0
  %v1178 = vadd.f32 %v1165, %v1177
  %v1179 = vpop.f32.mrf.mxu0
  %1180 = vdwg.mxu0
  %v1181 = vxor.u32 %v1100, 2147483648
  %v1182 = vmul.f32 %v1181, 1.442695
  %v1183 = vpow.pop %v1182
  %v1184 = vadd.f32 %v1183, 1.0
  %v1185 = vrcp.pop %v1184
  %v1186 = vmul.f32 %v1184, %v1185
  %v1187 = vsub.f32 1.0, %v1186
  %v1188 = vmul.f32 %v1185, %v1187
  %v1189 = vadd.f32 %v1185, %v1188
  %vm1190 = vweird.f32 %v1184
  %vm1191 = vweird.f32 %v1185
  %vm1192 = vmor %vm1190, %vm1191
  %v1193 = vsel %vm1192, %v1185, %v1189
  %v1194 = vand.u32 2147483647, %v1184
  %vm1195 = vcmp.eq.f32.partialorder %v1194, 8.507059e+37
  %v1196 = vand.u32 %v1184, 2147483648
  %v1197 = vor.u32 1.1754944e-38, %v1196
  %v1198 = vsel %vm1195, %v1197, %v1193
  %v1199 = vmul.f32 1.0, %v1198
  %v1200 = vxor.u32 %v1126, 2147483648
  %v1201 = vmul.f32 %v1200, 1.442695
  %v1202 = vpow.pop %v1201
  %v1203 = vadd.f32 %v1202, 1.0
  %v1204 = vrcp.pop %v1203
  %v1205 = vmul.f32 %v1203, %v1204
  %v1206 = vsub.f32 1.0, %v1205
  %v1207 = vmul.f32 %v1204, %v1206
  %v1208 = vadd.f32 %v1204, %v1207
  %vm1209 = vweird.f32 %v1203
  %vm1210 = vweird.f32 %v1204
  %vm1211 = vmor %vm1209, %vm1210
  %v1212 = vsel %vm1211, %v1204, %v1208
  %v1213 = vand.u32 2147483647, %v1203
  %vm1214 = vcmp.eq.f32.partialorder %v1213, 8.507059e+37
  %v1215 = vand.u32 %v1203, 2147483648
  %v1216 = vor.u32 1.1754944e-38, %v1215
  %v1217 = vsel %vm1214, %v1216, %v1212
  %v1218 = vmul.f32 1.0, %v1217
  %v1219 = vtanh.pop %v1152
  %v1220 = vxor.u32 %v1178, 2147483648
  %v1221 = vmul.f32 %v1220, 1.442695
  %v1222 = vpow.pop %v1221
  %v1223 = vadd.f32 %v1222, 1.0
  %v1224 = vrcp.pop %v1223
  %v1225 = vmul.f32 %v1223, %v1224
  %v1226 = vsub.f32 1.0, %v1225
  %v1227 = vmul.f32 %v1224, %v1226
  %v1228 = vadd.f32 %v1224, %v1227
  %vm1229 = vweird.f32 %v1223
  %vm1230 = vweird.f32 %v1224
  %vm1231 = vmor %vm1229, %vm1230
  %v1232 = vsel %vm1231, %v1224, %v1228
  %v1233 = vand.u32 2147483647, %v1223
  %vm1234 = vcmp.eq.f32.partialorder %v1233, 8.507059e+37
  %v1235 = vand.u32 %v1223, 2147483648
  %v1236 = vor.u32 1.1754944e-38, %v1235
  %v1237 = vsel %vm1234, %v1236, %v1232
  %v1238 = vmul.f32 1.0, %v1237
  %v1239 = vmul.f32 %v1218, %v338
  %v1240 = vmul.f32 %v1199, %v1219
  %v1241 = vadd.f32 %v1239, %v1240
  %v1242 = vtanh.pop %v1241
  %v1243 = vmul.f32 %v1238, %v1242
  %v1244 = vsel %vm668, %v1243, %v336
  %v1245 = vsel %vm668, %v1241, %v338
  %s1246 = sadd.s32 %s339, 1
  %v1247 = vld [vmem:[%s1] sm:$0xff]
  %v1248 = vstv %s1246
  %vm1249 = vcmp.lt.s32.totalorder %v1248, %v1247
  %s1250 = smul.u32 1, 4
  %s1251 = smul.addr %s1250, 4
  %s1252 = scalar_lea.vmem [#allocation2], %s1251
  %v1253 = vld [vmem:[%s1252] sm:$0xff]
  %v1254 = vld [vmem:[%s1252 + $0x8] sm:$0xff]
  %v1255 = vunpack.c.l.bf16 %v1253
  %v1256 = vunpack.c.h.bf16 %v1253
  %v1257 = vunpack.c.l.bf16 %v1254
  %v1258 = vunpack.c.h.bf16 %v1254
  %v1259 = vld [vmem:[%s3] sm:$0xff]
  %v1260 = vld [vmem:[%s3 + $0x8] sm:$0xff]
  %v1261 = vld [vmem:[%s3 + $0x10] sm:$0xff]
  %v1262 = vld [vmem:[%s3 + $0x18] sm:$0xff]
  %v1263 = vld [vmem:[%s3 + $0x20] sm:$0xff]
  %v1264 = vld [vmem:[%s3 + $0x28] sm:$0xff]
  %v1265 = vld [vmem:[%s3 + $0x30] sm:$0xff]
  %v1266 = vld [vmem:[%s3 + $0x38] sm:$0xff]
  %v1267 = vld [vmem:[%s3 + $0x40] sm:$0xff]
  %v1268 = vld [vmem:[%s3 + $0x48] sm:$0xff]
  %v1269 = vld [vmem:[%s3 + $0x50] sm:$0xff]
  %v1270 = vld [vmem:[%s3 + $0x58] sm:$0xff]
  %v1271 = vld [vmem:[%s3 + $0x60] sm:$0xff]
  %v1272 = vld [vmem:[%s3 + $0x68] sm:$0xff]
  %v1273 = vld [vmem:[%s3 + $0x70] sm:$0xff]
  %v1274 = vld [vmem:[%s3 + $0x78] sm:$0xff]
  %v1275 = vld [vmem:[%s3 + $0x80] sm:$0xff]
  %v1276 = vld [vmem:[%s3 + $0x88] sm:$0xff]
  %v1277 = vld [vmem:[%s3 + $0x90] sm:$0xff]
  %v1278 = vld [vmem:[%s3 + $0x98] sm:$0xff]
  %v1279 = vld [vmem:[%s3 + $0xa0] sm:$0xff]
  %v1280 = vld [vmem:[%s3 + $0xa8] sm:$0xff]
  %v1281 = vld [vmem:[%s3 + $0xb0] sm:$0xff]
  %v1282 = vld [vmem:[%s3 + $0xb8] sm:$0xff]
  %v1283 = vld [vmem:[%s3 + $0xc0] sm:$0xff]
  %v1284 = vld [vmem:[%s3 + $0xc8] sm:$0xff]
  %v1285 = vld [vmem:[%s3 + $0xd0] sm:$0xff]
  %v1286 = vld [vmem:[%s3 + $0xd8] sm:$0xff]
  %v1287 = vld [vmem:[%s3 + $0xe0] sm:$0xff]
  %v1288 = vld [vmem:[%s3 + $0xe8] sm:$0xff]
  %v1289 = vld [vmem:[%s3 + $0xf0] sm:$0xff]
  %v1290 = vld [vmem:[%s3 + $0xf8] sm:$0xff]
  %v1323 = vunpack.c.l.b16 %v1259
  %v1324 = vunpack.c.h.b16 %v1259
  %v1325 = vunpack.c.l.b16 %v1260
  %v1326 = vunpack.c.h.b16 %v1260
  %v1327 = vunpack.c.l.b16 %v1261
  %v1328 = vunpack.c.h.b16 %v1261
  %v1329 = vunpack.c.l.b16 %v1262
  %v1330 = vunpack.c.h.b16 %v1262
  %v1331 = vunpack.c.l.b16 %v1263
  %v1332 = vunpack.c.h.b16 %v1263
  %v1333 = vunpack.c.l.b16 %v1264
  %v1334 = vunpack.c.h.b16 %v1264
  %v1335 = vunpack.c.l.b16 %v1265
  %v1336 = vunpack.c.h.b16 %v1265
  %v1337 = vunpack.c.l.b16 %v1266
  %v1338 = vunpack.c.h.b16 %v1266
  %v1339 = vunpack.c.l.b16 %v1267
  %v1340 = vunpack.c.h.b16 %v1267
  %v1341 = vunpack.c.l.b16 %v1268
  %v1342 = vunpack.c.h.b16 %v1268
  %v1343 = vunpack.c.l.b16 %v1269
  %v1344 = vunpack.c.h.b16 %v1269
  %v1345 = vunpack.c.l.b16 %v1270
  %v1346 = vunpack.c.h.b16 %v1270
  %v1347 = vunpack.c.l.b16 %v1271
  %v1348 = vunpack.c.h.b16 %v1271
  %v1349 = vunpack.c.l.b16 %v1272
  %v1350 = vunpack.c.h.b16 %v1272
  %v1351 = vunpack.c.l.b16 %v1273
  %v1352 = vunpack.c.h.b16 %v1273
  %v1353 = vunpack.c.l.b16 %v1274
  %v1354 = vunpack.c.h.b16 %v1274
  %v1355 = vunpack.c.l.b16 %v1275
  %v1356 = vunpack.c.h.b16 %v1275
  %v1357 = vunpack.c.l.b16 %v1276
  %v1358 = vunpack.c.h.b16 %v1276
  %v1359 = vunpack.c.l.b16 %v1277
  %v1360 = vunpack.c.h.b16 %v1277
  %v1361 = vunpack.c.l.b16 %v1278
  %v1362 = vunpack.c.h.b16 %v1278
  %v1363 = vunpack.c.l.b16 %v1279
  %v1364 = vunpack.c.h.b16 %v1279
  %v1365 = vunpack.c.l.b16 %v1280
  %v1366 = vunpack.c.h.b16 %v1280
  %v1367 = vunpack.c.l.b16 %v1281
  %v1368 = vunpack.c.h.b16 %v1281
  %v1369 = vunpack.c.l.b16 %v1282
  %v1370 = vunpack.c.h.b16 %v1282
  %v1371 = vunpack.c.l.b16 %v1283
  %v1372 = vunpack.c.h.b16 %v1283
  %v1373 = vunpack.c.l.b16 %v1284
  %v1374 = vunpack.c.h.b16 %v1284
  %v1375 = vunpack.c.l.b16 %v1285
  %v1376 = vunpack.c.h.b16 %v1285
  %v1377 = vunpack.c.l.b16 %v1286
  %v1378 = vunpack.c.h.b16 %v1286
  %v1379 = vunpack.c.l.b16 %v1287
  %v1380 = vunpack.c.h.b16 %v1287
  %v1381 = vunpack.c.l.b16 %v1288
  %v1382 = vunpack.c.h.b16 %v1288
  %v1383 = vunpack.c.l.b16 %v1289
  %v1384 = vunpack.c.h.b16 %v1289
  %v1385 = vunpack.c.l.b16 %v1290
  %v1386 = vunpack.c.h.b16 %v1290
  %v1387 = vpack.c.b16 %v1327, %v1323
  %v1388 = vpack.c.b16 %v1328, %v1324
  %v1389 = vpack.c.b16 %v1329, %v1325
  %v1390 = vpack.c.b16 %v1330, %v1326
  %v1391 = vpack.c.b16 %v1335, %v1331
  %v1392 = vpack.c.b16 %v1336, %v1332
  %v1393 = vpack.c.b16 %v1337, %v1333
  %v1394 = vpack.c.b16 %v1338, %v1334
  %v1395 = vpack.c.b16 %v1343, %v1339
  %v1396 = vpack.c.b16 %v1344, %v1340
  %v1397 = vpack.c.b16 %v1345, %v1341
  %v1398 = vpack.c.b16 %v1346, %v1342
  %v1399 = vpack.c.b16 %v1351, %v1347
  %v1400 = vpack.c.b16 %v1352, %v1348
  %v1401 = vpack.c.b16 %v1353, %v1349
  %v1402 = vpack.c.b16 %v1354, %v1350
  %v1403 = vpack.c.b16 %v1359, %v1355
  %v1404 = vpack.c.b16 %v1360, %v1356
  %v1405 = vpack.c.b16 %v1361, %v1357
  %v1406 = vpack.c.b16 %v1362, %v1358
  %v1407 = vpack.c.b16 %v1367, %v1363
  %v1408 = vpack.c.b16 %v1368, %v1364
  %v1409 = vpack.c.b16 %v1369, %v1365
  %v1410 = vpack.c.b16 %v1370, %v1366
  %v1411 = vpack.c.b16 %v1375, %v1371
  %v1412 = vpack.c.b16 %v1376, %v1372
  %v1413 = vpack.c.b16 %v1377, %v1373
  %v1414 = vpack.c.b16 %v1378, %v1374
  %v1415 = vpack.c.b16 %v1383, %v1379
  %v1416 = vpack.c.b16 %v1384, %v1380
  %v1417 = vpack.c.b16 %v1385, %v1381
  %v1418 = vpack.c.b16 %v1386, %v1382
  %1451 = vmatpush.bf16.msra.mxu0 %v1415
  %1452 = vmatpush.bf16.msra.mxu0 %v1411
  %1453 = vmatpush.bf16.msra.mxu0 %v1407
  %1454 = vmatpush.bf16.msra.mxu0 %v1403
  %1455 = vmatpush.bf16.msra.mxu0 %v1399
  %1456 = vmatpush.bf16.msra.mxu0 %v1395
  %1457 = vmatpush.bf16.msra.mxu0 %v1391
  %1458 = vmatpush.bf16.msra.mxu0 %v1387
  %1459 = vmatmul.bf16.gmra.mxu0 %v671
  %v1460 = vpop.f32.mrf.mxu0
  %v1461 = vadd.f32 0.0, %v1460
  %v1462 = vpop.f32.mrf.mxu0
  %1463 = vdwg.mxu0
  %1464 = vmatpush.bf16.msra.mxu0 %v1416
  %1465 = vmatpush.bf16.msra.mxu0 %v1412
  %1466 = vmatpush.bf16.msra.mxu0 %v1408
  %1467 = vmatpush.bf16.msra.mxu0 %v1404
  %1468 = vmatpush.bf16.msra.mxu0 %v1400
  %1469 = vmatpush.bf16.msra.mxu0 %v1396
  %1470 = vmatpush.bf16.msra.mxu0 %v1392
  %1471 = vmatpush.bf16.msra.mxu0 %v1388
  %1472 = vmatmul.bf16.gmra.mxu0 %v671
  %v1473 = vpop.f32.mrf.mxu0
  %v1474 = vadd.f32 0.0, %v1473
  %v1475 = vpop.f32.mrf.mxu0
  %1476 = vdwg.mxu0
  %1477 = vmatpush.bf16.msra.mxu0 %v1417
  %1478 = vmatpush.bf16.msra.mxu0 %v1413
  %1479 = vmatpush.bf16.msra.mxu0 %v1409
  %1480 = vmatpush.bf16.msra.mxu0 %v1405
  %1481 = vmatpush.bf16.msra.mxu0 %v1401
  %1482 = vmatpush.bf16.msra.mxu0 %v1397
  %1483 = vmatpush.bf16.msra.mxu0 %v1393
  %1484 = vmatpush.bf16.msra.mxu0 %v1389
  %1485 = vmatmul.bf16.gmra.mxu0 %v671
  %v1486 = vpop.f32.mrf.mxu0
  %v1487 = vadd.f32 0.0, %v1486
  %v1488 = vpop.f32.mrf.mxu0
  %1489 = vdwg.mxu0
  %1490 = vmatpush.bf16.msra.mxu0 %v1418
  %1491 = vmatpush.bf16.msra.mxu0 %v1414
  %1492 = vmatpush.bf16.msra.mxu0 %v1410
  %1493 = vmatpush.bf16.msra.mxu0 %v1406
  %1494 = vmatpush.bf16.msra.mxu0 %v1402
  %1495 = vmatpush.bf16.msra.mxu0 %v1398
  %1496 = vmatpush.bf16.msra.mxu0 %v1394
  %1497 = vmatpush.bf16.msra.mxu0 %v1390
  %1498 = vmatmul.bf16.gmra.mxu0 %v671
  %v1499 = vpop.f32.mrf.mxu0
  %v1500 = vadd.f32 0.0, %v1499
  %v1501 = vpop.f32.mrf.mxu0
  %1502 = vdwg.mxu0
  %v1503 = vadd.f32 %v1255, %v1461
  %v1504 = vadd.f32 %v1256, %v1474
  %v1505 = vadd.f32 %v1257, %v1487
  %v1506 = vadd.f32 %v1258, %v1500
  %v1507 = vxor.u32 %v1503, 2147483648
  %v1508 = vmul.f32 %v1507, 1.442695
  %v1509 = vpow.pop %v1508
  %v1510 = vadd.f32 %v1509, 1.0
  %v1511 = vrcp.pop %v1510
  %v1512 = vmul.f32 %v1510, %v1511
  %v1513 = vsub.f32 1.0, %v1512
  %v1514 = vmul.f32 %v1511, %v1513
  %v1515 = vadd.f32 %v1511, %v1514
  %vm1516 = vweird.f32 %v1510
  %vm1517 = vweird.f32 %v1511
  %vm1518 = vmor %vm1516, %vm1517
  %v1519 = vsel %vm1518, %v1511, %v1515
  %v1520 = vand.u32 2147483647, %v1510
  %vm1521 = vcmp.eq.f32.partialorder %v1520, 8.507059e+37
  %v1522 = vand.u32 %v1510, 2147483648
  %v1523 = vor.u32 1.1754944e-38, %v1522
  %v1524 = vsel %vm1521, %v1523, %v1519
  %v1525 = vmul.f32 1.0, %v1524
  %v1526 = vxor.u32 %v1504, 2147483648
  %v1527 = vmul.f32 %v1526, 1.442695
  %v1528 = vpow.pop %v1527
  %v1529 = vadd.f32 %v1528, 1.0
  %v1530 = vrcp.pop %v1529
  %v1531 = vmul.f32 %v1529, %v1530
  %v1532 = vsub.f32 1.0, %v1531
  %v1533 = vmul.f32 %v1530, %v1532
  %v1534 = vadd.f32 %v1530, %v1533
  %vm1535 = vweird.f32 %v1529
  %vm1536 = vweird.f32 %v1530
  %vm1537 = vmor %vm1535, %vm1536
  %v1538 = vsel %vm1537, %v1530, %v1534
  %v1539 = vand.u32 2147483647, %v1529
  %vm1540 = vcmp.eq.f32.partialorder %v1539, 8.507059e+37
  %v1541 = vand.u32 %v1529, 2147483648
  %v1542 = vor.u32 1.1754944e-38, %v1541
  %v1543 = vsel %vm1540, %v1542, %v1538
  %v1544 = vmul.f32 1.0, %v1543
  %v1545 = vtanh.pop %v1505
  %v1546 = vxor.u32 %v1506, 2147483648
  %v1547 = vmul.f32 %v1546, 1.442695
  %v1548 = vpow.pop %v1547
  %v1549 = vadd.f32 %v1548, 1.0
  %v1550 = vrcp.pop %v1549
  %v1551 = vmul.f32 %v1549, %v1550
  %v1552 = vsub.f32 1.0, %v1551
  %v1553 = vmul.f32 %v1550, %v1552
  %v1554 = vadd.f32 %v1550, %v1553
  %vm1555 = vweird.f32 %v1549
  %vm1556 = vweird.f32 %v1550
  %vm1557 = vmor %vm1555, %vm1556
  %v1558 = vsel %vm1557, %v1550, %v1554
  %v1559 = vand.u32 2147483647, %v1549
  %vm1560 = vcmp.eq.f32.partialorder %v1559, 8.507059e+37
  %v1561 = vand.u32 %v1549, 2147483648
  %v1562 = vor.u32 1.1754944e-38, %v1561
  %v1563 = vsel %vm1560, %v1562, %v1558
  %v1564 = vmul.f32 1.0, %v1563
  %v1565 = vmul.f32 %v1544, %v670
  %v1566 = vmul.f32 %v1525, %v1545
  %v1567 = vadd.f32 %v1565, %v1566
  %v1568 = vtanh.pop %v1567
  %v1569 = vmul.f32 %v1564, %v1568
  %v1570 = vsel %vm1249, 1, 0
  %1571 = vset.pattern.permute.xlu0 0
  %1572 = vperm.xlu0 %1571, %v1570
  %v1573 = vpop.permute.xlu0 %1572
  %vm1574 = vcmp.eq.s32.totalorder %v1573, 1
  %v1575 = vsel %vm1574, %v1569, %v669
  %v1576 = vsel %vm1574, %v1567, %v670
  %v1577 = vpack.c.bf16 %v1575, %v1575
  %1578 = vst [vmem:[#allocation3] sm:$0xf] %v1577
  %v1579 = vpack.c.bf16 %v1244, %v1244
  %1580 = vst [vmem:[#allocation3 + $0x4] sm:$0xf] %v1579
  %v1581 = vld [vmem:[#allocation3] sm:$0xff]
  %v1582 = vld [vmem:[%s5] sm:$0xff]
  %v1583 = vld [vmem:[%s5 + $0x8] sm:$0xff]
  %v1584 = vld [vmem:[%s5 + $0x10] sm:$0xff]
  %v1585 = vld [vmem:[%s5 + $0x18] sm:$0xff]
  %v1586 = vld [vmem:[%s5 + $0x20] sm:$0xff]
  %v1587 = vld [vmem:[%s5 + $0x28] sm:$0xff]
  %v1588 = vld [vmem:[%s5 + $0x30] sm:$0xff]
  %v1589 = vld [vmem:[%s5 + $0x38] sm:$0xff]
  %v1590 = vld [vmem:[%s5 + $0x40] sm:$0xff]
  %v1591 = vld [vmem:[%s5 + $0x48] sm:$0xff]
  %v1592 = vld [vmem:[%s5 + $0x50] sm:$0xff]
  %v1593 = vld [vmem:[%s5 + $0x58] sm:$0xff]
  %v1594 = vld [vmem:[%s5 + $0x60] sm:$0xff]
  %v1595 = vld [vmem:[%s5 + $0x68] sm:$0xff]
  %v1596 = vld [vmem:[%s5 + $0x70] sm:$0xff]
  %v1597 = vld [vmem:[%s5 + $0x78] sm:$0xff]
  %v1598 = vld [vmem:[%s5 + $0x80] sm:$0xff]
  %v1599 = vld [vmem:[%s5 + $0x88] sm:$0xff]
  %v1600 = vld [vmem:[%s5 + $0x90] sm:$0xff]
  %v1601 = vld [vmem:[%s5 + $0x98] sm:$0xff]
  %v1602 = vld [vmem:[%s5 + $0xa0] sm:$0xff]
  %v1603 = vld [vmem:[%s5 + $0xa8] sm:$0xff]
  %v1604 = vld [vmem:[%s5 + $0xb0] sm:$0xff]
  %v1605 = vld [vmem:[%s5 + $0xb8] sm:$0xff]
  %v1606 = vld [vmem:[%s5 + $0xc0] sm:$0xff]
  %v1607 = vld [vmem:[%s5 + $0xc8] sm:$0xff]
  %v1608 = vld [vmem:[%s5 + $0xd0] sm:$0xff]
  %v1609 = vld [vmem:[%s5 + $0xd8] sm:$0xff]
  %v1610 = vld [vmem:[%s5 + $0xe0] sm:$0xff]
  %v1611 = vld [vmem:[%s5 + $0xe8] sm:$0xff]
  %v1612 = vld [vmem:[%s5 + $0xf0] sm:$0xff]
  %v1613 = vld [vmem:[%s5 + $0xf8] sm:$0xff]
  %v1614 = vld [vmem:[%s5 + $0x100] sm:$0xff]
  %v1615 = vld [vmem:[%s5 + $0x108] sm:$0xff]
  %v1616 = vld [vmem:[%s5 + $0x110] sm:$0xff]
  %v1617 = vld [vmem:[%s5 + $0x118] sm:$0xff]
  %v1618 = vld [vmem:[%s5 + $0x120] sm:$0xff]
  %v1619 = vld [vmem:[%s5 + $0x128] sm:$0xff]
  %v1620 = vld [vmem:[%s5 + $0x130] sm:$0xff]
  %v1621 = vld [vmem:[%s5 + $0x138] sm:$0xff]
  %v1622 = vld [vmem:[%s5 + $0x140] sm:$0xff]
  %v1623 = vld [vmem:[%s5 + $0x148] sm:$0xff]
  %v1624 = vld [vmem:[%s5 + $0x150] sm:$0xff]
  %v1625 = vld [vmem:[%s5 + $0x158] sm:$0xff]
  %v1626 = vld [vmem:[%s5 + $0x160] sm:$0xff]
  %v1627 = vld [vmem:[%s5 + $0x168] sm:$0xff]
  %v1628 = vld [vmem:[%s5 + $0x170] sm:$0xff]
  %v1629 = vld [vmem:[%s5 + $0x178] sm:$0xff]
  %v1630 = vld [vmem:[%s5 + $0x180] sm:$0xff]
  %v1631 = vld [vmem:[%s5 + $0x188] sm:$0xff]
  %v1632 = vld [vmem:[%s5 + $0x190] sm:$0xff]
  %v1633 = vld [vmem:[%s5 + $0x198] sm:$0xff]
  %v1634 = vld [vmem:[%s5 + $0x1a0] sm:$0xff]
  %v1635 = vld [vmem:[%s5 + $0x1a8] sm:$0xff]
  %v1636 = vld [vmem:[%s5 + $0x1b0] sm:$0xff]
  %v1637 = vld [vmem:[%s5 + $0x1b8] sm:$0xff]
  %v1638 = vld [vmem:[%s5 + $0x1c0] sm:$0xff]
  %v1639 = vld [vmem:[%s5 + $0x1c8] sm:$0xff]
  %v1640 = vld [vmem:[%s5 + $0x1d0] sm:$0xff]
  %v1641 = vld [vmem:[%s5 + $0x1d8] sm:$0xff]
  %v1642 = vld [vmem:[%s5 + $0x1e0] sm:$0xff]
  %v1643 = vld [vmem:[%s5 + $0x1e8] sm:$0xff]
  %v1644 = vld [vmem:[%s5 + $0x1f0] sm:$0xff]
  %v1645 = vld [vmem:[%s5 + $0x1f8] sm:$0xff]
  %v1646 = vld [vmem:[%s6] sm:$0xf]
  %v1648 = vperm.slane %v1646, 0
  %v1649 = vperm.slane %v1646, 1
  %v1650 = vperm.slane %v1646, 2
  %v1651 = vperm.slane %v1646, 3
  %v1657 = vunpack.c.l.b16 %v1581
  %v1658 = vunpack.c.h.b16 %v1581
  %v1659 = vpack.c.b16 %v1657, %v1657
  %v1660 = vpack.c.b16 %v1658, %v1658
  %v1727 = vunpack.c.l.b16 %v1582
  %v1728 = vunpack.c.h.b16 %v1582
  %v1729 = vunpack.c.l.b16 %v1583
  %v1730 = vunpack.c.h.b16 %v1583
  %v1731 = vunpack.c.l.b16 %v1584
  %v1732 = vunpack.c.h.b16 %v1584
  %v1733 = vunpack.c.l.b16 %v1585
  %v1734 = vunpack.c.h.b16 %v1585
  %v1735 = vunpack.c.l.b16 %v1586
  %v1736 = vunpack.c.h.b16 %v1586
  %v1737 = vunpack.c.l.b16 %v1587
  %v1738 = vunpack.c.h.b16 %v1587
  %v1739 = vunpack.c.l.b16 %v1588
  %v1740 = vunpack.c.h.b16 %v1588
  %v1741 = vunpack.c.l.b16 %v1589
  %v1742 = vunpack.c.h.b16 %v1589
  %v1743 = vunpack.c.l.b16 %v1590
  %v1744 = vunpack.c.h.b16 %v1590
  %v1745 = vunpack.c.l.b16 %v1591
  %v1746 = vunpack.c.h.b16 %v1591
  %v1747 = vunpack.c.l.b16 %v1592
  %v1748 = vunpack.c.h.b16 %v1592
  %v1749 = vunpack.c.l.b16 %v1593
  %v1750 = vunpack.c.h.b16 %v1593
  %v1751 = vunpack.c.l.b16 %v1594
  %v1752 = vunpack.c.h.b16 %v1594
  %v1753 = vunpack.c.l.b16 %v1595
  %v1754 = vunpack.c.h.b16 %v1595
  %v1755 = vunpack.c.l.b16 %v1596
  %v1756 = vunpack.c.h.b16 %v1596
  %v1757 = vunpack.c.l.b16 %v1597
  %v1758 = vunpack.c.h.b16 %v1597
  %v1759 = vunpack.c.l.b16 %v1598
  %v1760 = vunpack.c.h.b16 %v1598
  %v1761 = vunpack.c.l.b16 %v1599
  %v1762 = vunpack.c.h.b16 %v1599
  %v1763 = vunpack.c.l.b16 %v1600
  %v1764 = vunpack.c.h.b16 %v1600
  %v1765 = vunpack.c.l.b16 %v1601
  %v1766 = vunpack.c.h.b16 %v1601
  %v1767 = vunpack.c.l.b16 %v1602
  %v1768 = vunpack.c.h.b16 %v1602
  %v1769 = vunpack.c.l.b16 %v1603
  %v1770 = vunpack.c.h.b16 %v1603
  %v1771 = vunpack.c.l.b16 %v1604
  %v1772 = vunpack.c.h.b16 %v1604
  %v1773 = vunpack.c.l.b16 %v1605
  %v1774 = vunpack.c.h.b16 %v1605
  %v1775 = vunpack.c.l.b16 %v1606
  %v1776 = vunpack.c.h.b16 %v1606
  %v1777 = vunpack.c.l.b16 %v1607
  %v1778 = vunpack.c.h.b16 %v1607
  %v1779 = vunpack.c.l.b16 %v1608
  %v1780 = vunpack.c.h.b16 %v1608
  %v1781 = vunpack.c.l.b16 %v1609
  %v1782 = vunpack.c.h.b16 %v1609
  %v1783 = vunpack.c.l.b16 %v1610
  %v1784 = vunpack.c.h.b16 %v1610
  %v1785 = vunpack.c.l.b16 %v1611
  %v1786 = vunpack.c.h.b16 %v1611
  %v1787 = vunpack.c.l.b16 %v1612
  %v1788 = vunpack.c.h.b16 %v1612
  %v1789 = vunpack.c.l.b16 %v1613
  %v1790 = vunpack.c.h.b16 %v1613
  %v1791 = vunpack.c.l.b16 %v1614
  %v1792 = vunpack.c.h.b16 %v1614
  %v1793 = vunpack.c.l.b16 %v1615
  %v1794 = vunpack.c.h.b16 %v1615
  %v1795 = vunpack.c.l.b16 %v1616
  %v1796 = vunpack.c.h.b16 %v1616
  %v1797 = vunpack.c.l.b16 %v1617
  %v1798 = vunpack.c.h.b16 %v1617
  %v1799 = vunpack.c.l.b16 %v1618
  %v1800 = vunpack.c.h.b16 %v1618
  %v1801 = vunpack.c.l.b16 %v1619
  %v1802 = vunpack.c.h.b16 %v1619
  %v1803 = vunpack.c.l.b16 %v1620
  %v1804 = vunpack.c.h.b16 %v1620
  %v1805 = vunpack.c.l.b16 %v1621
  %v1806 = vunpack.c.h.b16 %v1621
  %v1807 = vunpack.c.l.b16 %v1622
  %v1808 = vunpack.c.h.b16 %v1622
  %v1809 = vunpack.c.l.b16 %v1623
  %v1810 = vunpack.c.h.b16 %v1623
  %v1811 = vunpack.c.l.b16 %v1624
  %v1812 = vunpack.c.h.b16 %v1624
  %v1813 = vunpack.c.l.b16 %v1625
  %v1814 = vunpack.c.h.b16 %v1625
  %v1815 = vunpack.c.l.b16 %v1626
  %v1816 = vunpack.c.h.b16 %v1626
  %v1817 = vunpack.c.l.b16 %v1627
  %v1818 = vunpack.c.h.b16 %v1627
  %v1819 = vunpack.c.l.b16 %v1628
  %v1820 = vunpack.c.h.b16 %v1628
  %v1821 = vunpack.c.l.b16 %v1629
  %v1822 = vunpack.c.h.b16 %v1629
  %v1823 = vunpack.c.l.b16 %v1630
  %v1824 = vunpack.c.h.b16 %v1630
  %v1825 = vunpack.c.l.b16 %v1631
  %v1826 = vunpack.c.h.b16 %v1631
  %v1827 = vunpack.c.l.b16 %v1632
  %v1828 = vunpack.c.h.b16 %v1632
  %v1829 = vunpack.c.l.b16 %v1633
  %v1830 = vunpack.c.h.b16 %v1633
  %v1831 = vunpack.c.l.b16 %v1634
  %v1832 = vunpack.c.h.b16 %v1634
  %v1833 = vunpack.c.l.b16 %v1635
  %v1834 = vunpack.c.h.b16 %v1635
  %v1835 = vunpack.c.l.b16 %v1636
  %v1836 = vunpack.c.h.b16 %v1636
  %v1837 = vunpack.c.l.b16 %v1637
  %v1838 = vunpack.c.h.b16 %v1637
  %v1839 = vunpack.c.l.b16 %v1638
  %v1840 = vunpack.c.h.b16 %v1638
  %v1841 = vunpack.c.l.b16 %v1639
  %v1842 = vunpack.c.h.b16 %v1639
  %v1843 = vunpack.c.l.b16 %v1640
  %v1844 = vunpack.c.h.b16 %v1640
  %v1845 = vunpack.c.l.b16 %v1641
  %v1846 = vunpack.c.h.b16 %v1641
  %v1847 = vunpack.c.l.b16 %v1642
  %v1848 = vunpack.c.h.b16 %v1642
  %v1849 = vunpack.c.l.b16 %v1643
  %v1850 = vunpack.c.h.b16 %v1643
  %v1851 = vunpack.c.l.b16 %v1644
  %v1852 = vunpack.c.h.b16 %v1644
  %v1853 = vunpack.c.l.b16 %v1645
  %v1854 = vunpack.c.h.b16 %v1645
  %v1855 = vpack.c.b16 %v1731, %v1727
  %v1856 = vpack.c.b16 %v1732, %v1728
  %v1857 = vpack.c.b16 %v1733, %v1729
  %v1858 = vpack.c.b16 %v1734, %v1730
  %v1859 = vpack.c.b16 %v1739, %v1735
  %v1860 = vpack.c.b16 %v1740, %v1736
  %v1861 = vpack.c.b16 %v1741, %v1737
  %v1862 = vpack.c.b16 %v1742, %v1738
  %v1863 = vpack.c.b16 %v1747, %v1743
  %v1864 = vpack.c.b16 %v1748, %v1744
  %v1865 = vpack.c.b16 %v1749, %v1745
  %v1866 = vpack.c.b16 %v1750, %v1746
  %v1867 = vpack.c.b16 %v1755, %v1751
  %v1868 = vpack.c.b16 %v1756, %v1752
  %v1869 = vpack.c.b16 %v1757, %v1753
  %v1870 = vpack.c.b16 %v1758, %v1754
  %v1871 = vpack.c.b16 %v1763, %v1759
  %v1872 = vpack.c.b16 %v1764, %v1760
  %v1873 = vpack.c.b16 %v1765, %v1761
  %v1874 = vpack.c.b16 %v1766, %v1762
  %v1875 = vpack.c.b16 %v1771, %v1767
  %v1876 = vpack.c.b16 %v1772, %v1768
  %v1877 = vpack.c.b16 %v1773, %v1769
  %v1878 = vpack.c.b16 %v1774, %v1770
  %v1879 = vpack.c.b16 %v1779, %v1775
  %v1880 = vpack.c.b16 %v1780, %v1776
  %v1881 = vpack.c.b16 %v1781, %v1777
  %v1882 = vpack.c.b16 %v1782, %v1778
  %v1883 = vpack.c.b16 %v1787, %v1783
  %v1884 = vpack.c.b16 %v1788, %v1784
  %v1885 = vpack.c.b16 %v1789, %v1785
  %v1886 = vpack.c.b16 %v1790, %v1786
  %v1887 = vpack.c.b16 %v1795, %v1791
  %v1888 = vpack.c.b16 %v1796, %v1792
  %v1889 = vpack.c.b16 %v1797, %v1793
  %v1890 = vpack.c.b16 %v1798, %v1794
  %v1891 = vpack.c.b16 %v1803, %v1799
  %v1892 = vpack.c.b16 %v1804, %v1800
  %v1893 = vpack.c.b16 %v1805, %v1801
  %v1894 = vpack.c.b16 %v1806, %v1802
  %v1895 = vpack.c.b16 %v1811, %v1807
  %v1896 = vpack.c.b16 %v1812, %v1808
  %v1897 = vpack.c.b16 %v1813, %v1809
  %v1898 = vpack.c.b16 %v1814, %v1810
  %v1899 = vpack.c.b16 %v1819, %v1815
  %v1900 = vpack.c.b16 %v1820, %v1816
  %v1901 = vpack.c.b16 %v1821, %v1817
  %v1902 = vpack.c.b16 %v1822, %v1818
  %v1903 = vpack.c.b16 %v1827, %v1823
  %v1904 = vpack.c.b16 %v1828, %v1824
  %v1905 = vpack.c.b16 %v1829, %v1825
  %v1906 = vpack.c.b16 %v1830, %v1826
  %v1907 = vpack.c.b16 %v1835, %v1831
  %v1908 = vpack.c.b16 %v1836, %v1832
  %v1909 = vpack.c.b16 %v1837, %v1833
  %v1910 = vpack.c.b16 %v1838, %v1834
  %v1911 = vpack.c.b16 %v1843, %v1839
  %v1912 = vpack.c.b16 %v1844, %v1840
  %v1913 = vpack.c.b16 %v1845, %v1841
  %v1914 = vpack.c.b16 %v1846, %v1842
  %v1915 = vpack.c.b16 %v1851, %v1847
  %v1916 = vpack.c.b16 %v1852, %v1848
  %v1917 = vpack.c.b16 %v1853, %v1849
  %v1918 = vpack.c.b16 %v1854, %v1850
  %1983 = vmatpush.bf16.msra.mxu0 %v1883
  %1984 = vmatpush.bf16.msra.mxu0 %v1879
  %1985 = vmatpush.bf16.msra.mxu0 %v1875
  %1986 = vmatpush.bf16.msra.mxu0 %v1871
  %1987 = vmatpush.bf16.msra.mxu0 %v1867
  %1988 = vmatpush.bf16.msra.mxu0 %v1863
  %1989 = vmatpush.bf16.msra.mxu0 %v1859
  %1990 = vmatpush.bf16.msra.mxu0 %v1855
  %1991 = vmatmul.bf16.gmra.mxu0 %v1659
  %v1992 = vpop.f32.mrf.mxu0
  %v1993 = vadd.f32 %v1648, %v1992
  %v1994 = vpop.f32.mrf.mxu0
  %1995 = vdwg.mxu0
  %1996 = vmatpush.bf16.msra.mxu0 %v1915
  %1997 = vmatpush.bf16.msra.mxu0 %v1911
  %1998 = vmatpush.bf16.msra.mxu0 %v1907
  %1999 = vmatpush.bf16.msra.mxu0 %v1903
  %2000 = vmatpush.bf16.msra.mxu0 %v1899
  %2001 = vmatpush.bf16.msra.mxu0 %v1895
  %2002 = vmatpush.bf16.msra.mxu0 %v1891
  %2003 = vmatpush.bf16.msra.mxu0 %v1887
  %2004 = vmatmul.bf16.gmra.mxu0 %v1660
  %v2005 = vpop.f32.mrf.mxu0
  %v2006 = vadd.f32 %v1993, %v2005
  %v2007 = vpop.f32.mrf.mxu0
  %2008 = vdwg.mxu0
  %2009 = vmatpush.bf16.msra.mxu0 %v1884
  %2010 = vmatpush.bf16.msra.mxu0 %v1880
  %2011 = vmatpush.bf16.msra.mxu0 %v1876
  %2012 = vmatpush.bf16.msra.mxu0 %v1872
  %2013 = vmatpush.bf16.msra.mxu0 %v1868
  %2014 = vmatpush.bf16.msra.mxu0 %v1864
  %2015 = vmatpush.bf16.msra.mxu0 %v1860
  %2016 = vmatpush.bf16.msra.mxu0 %v1856
  %2017 = vmatmul.bf16.gmra.mxu0 %v1659
  %v2018 = vpop.f32.mrf.mxu0
  %v2019 = vadd.f32 %v1649, %v2018
  %v2020 = vpop.f32.mrf.mxu0
  %2021 = vdwg.mxu0
  %2022 = vmatpush.bf16.msra.mxu0 %v1916
  %2023 = vmatpush.bf16.msra.mxu0 %v1912
  %2024 = vmatpush.bf16.msra.mxu0 %v1908
  %2025 = vmatpush.bf16.msra.mxu0 %v1904
  %2026 = vmatpush.bf16.msra.mxu0 %v1900
  %2027 = vmatpush.bf16.msra.mxu0 %v1896
  %2028 = vmatpush.bf16.msra.mxu0 %v1892
  %2029 = vmatpush.bf16.msra.mxu0 %v1888
  %2030 = vmatmul.bf16.gmra.mxu0 %v1660
  %v2031 = vpop.f32.mrf.mxu0
  %v2032 = vadd.f32 %v2019, %v2031
  %v2033 = vpop.f32.mrf.mxu0
  %2034 = vdwg.mxu0
  %2035 = vmatpush.bf16.msra.mxu0 %v1885
  %2036 = vmatpush.bf16.msra.mxu0 %v1881
  %2037 = vmatpush.bf16.msra.mxu0 %v1877
  %2038 = vmatpush.bf16.msra.mxu0 %v1873
  %2039 = vmatpush.bf16.msra.mxu0 %v1869
  %2040 = vmatpush.bf16.msra.mxu0 %v1865
  %2041 = vmatpush.bf16.msra.mxu0 %v1861
  %2042 = vmatpush.bf16.msra.mxu0 %v1857
  %2043 = vmatmul.bf16.gmra.mxu0 %v1659
  %v2044 = vpop.f32.mrf.mxu0
  %v2045 = vadd.f32 %v1650, %v2044
  %v2046 = vpop.f32.mrf.mxu0
  %2047 = vdwg.mxu0
  %2048 = vmatpush.bf16.msra.mxu0 %v1917
  %2049 = vmatpush.bf16.msra.mxu0 %v1913
  %2050 = vmatpush.bf16.msra.mxu0 %v1909
  %2051 = vmatpush.bf16.msra.mxu0 %v1905
  %2052 = vmatpush.bf16.msra.mxu0 %v1901
  %2053 = vmatpush.bf16.msra.mxu0 %v1897
  %2054 = vmatpush.bf16.msra.mxu0 %v1893
  %2055 = vmatpush.bf16.msra.mxu0 %v1889
  %2056 = vmatmul.bf16.gmra.mxu0 %v1660
  %v2057 = vpop.f32.mrf.mxu0
  %v2058 = vadd.f32 %v2045, %v2057
  %v2059 = vpop.f32.mrf.mxu0
  %2060 = vdwg.mxu0
  %2061 = vmatpush.bf16.msra.mxu0 %v1886
  %2062 = vmatpush.bf16.msra.mxu0 %v1882
  %2063 = vmatpush.bf16.msra.mxu0 %v1878
  %2064 = vmatpush.bf16.msra.mxu0 %v1874
  %2065 = vmatpush.bf16.msra.mxu0 %v1870
  %2066 = vmatpush.bf16.msra.mxu0 %v1866
  %2067 = vmatpush.bf16.msra.mxu0 %v1862
  %2068 = vmatpush.bf16.msra.mxu0 %v1858
  %2069 = vmatmul.bf16.gmra.mxu0 %v1659
  %v2070 = vpop.f32.mrf.mxu0
  %v2071 = vadd.f32 %v1651, %v2070
  %v2072 = vpop.f32.mrf.mxu0
  %2073 = vdwg.mxu0
  %2074 = vmatpush.bf16.msra.mxu0 %v1918
  %2075 = vmatpush.bf16.msra.mxu0 %v1914
  %2076 = vmatpush.bf16.msra.mxu0 %v1910
  %2077 = vmatpush.bf16.msra.mxu0 %v1906
  %2078 = vmatpush.bf16.msra.mxu0 %v1902
  %2079 = vmatpush.bf16.msra.mxu0 %v1898
  %2080 = vmatpush.bf16.msra.mxu0 %v1894
  %2081 = vmatpush.bf16.msra.mxu0 %v1890
  %2082 = vmatmul.bf16.gmra.mxu0 %v1660
  %v2083 = vpop.f32.mrf.mxu0
  %v2084 = vadd.f32 %v2071, %v2083
  %v2085 = vpop.f32.mrf.mxu0
  %2086 = vdwg.mxu0
  %v2087 = vxor.u32 %v2006, 2147483648
  %v2088 = vmul.f32 %v2087, 1.442695
  %v2089 = vpow.pop %v2088
  %v2090 = vadd.f32 %v2089, 1.0
  %v2091 = vrcp.pop %v2090
  %v2092 = vmul.f32 %v2090, %v2091
  %v2093 = vsub.f32 1.0, %v2092
  %v2094 = vmul.f32 %v2091, %v2093
  %v2095 = vadd.f32 %v2091, %v2094
  %vm2096 = vweird.f32 %v2090
  %vm2097 = vweird.f32 %v2091
  %vm2098 = vmor %vm2096, %vm2097
  %v2099 = vsel %vm2098, %v2091, %v2095
  %v2100 = vand.u32 2147483647, %v2090
  %vm2101 = vcmp.eq.f32.partialorder %v2100, 8.507059e+37
  %v2102 = vand.u32 %v2090, 2147483648
  %v2103 = vor.u32 1.1754944e-38, %v2102
  %v2104 = vsel %vm2101, %v2103, %v2099
  %v2105 = vmul.f32 1.0, %v2104
  %v2106 = vxor.u32 %v2032, 2147483648
  %v2107 = vmul.f32 %v2106, 1.442695
  %v2108 = vpow.pop %v2107
  %v2109 = vadd.f32 %v2108, 1.0
  %v2110 = vrcp.pop %v2109
  %v2111 = vmul.f32 %v2109, %v2110
  %v2112 = vsub.f32 1.0, %v2111
  %v2113 = vmul.f32 %v2110, %v2112
  %v2114 = vadd.f32 %v2110, %v2113
  %vm2115 = vweird.f32 %v2109
  %vm2116 = vweird.f32 %v2110
  %vm2117 = vmor %vm2115, %vm2116
  %v2118 = vsel %vm2117, %v2110, %v2114
  %v2119 = vand.u32 2147483647, %v2109
  %vm2120 = vcmp.eq.f32.partialorder %v2119, 8.507059e+37
  %v2121 = vand.u32 %v2109, 2147483648
  %v2122 = vor.u32 1.1754944e-38, %v2121
  %v2123 = vsel %vm2120, %v2122, %v2118
  %v2124 = vmul.f32 1.0, %v2123
  %v2125 = vtanh.pop %v2058
  %v2126 = vxor.u32 %v2084, 2147483648
  %v2127 = vmul.f32 %v2126, 1.442695
  %v2128 = vpow.pop %v2127
  %v2129 = vadd.f32 %v2128, 1.0
  %v2130 = vrcp.pop %v2129
  %v2131 = vmul.f32 %v2129, %v2130
  %v2132 = vsub.f32 1.0, %v2131
  %v2133 = vmul.f32 %v2130, %v2132
  %v2134 = vadd.f32 %v2130, %v2133
  %vm2135 = vweird.f32 %v2129
  %vm2136 = vweird.f32 %v2130
  %vm2137 = vmor %vm2135, %vm2136
  %v2138 = vsel %vm2137, %v2130, %v2134
  %v2139 = vand.u32 2147483647, %v2129
  %vm2140 = vcmp.eq.f32.partialorder %v2139, 8.507059e+37
  %v2141 = vand.u32 %v2129, 2147483648
  %v2142 = vor.u32 1.1754944e-38, %v2141
  %v2143 = vsel %vm2140, %v2142, %v2138
  %v2144 = vmul.f32 1.0, %v2143
  %v2145 = vmul.f32 %v2124, %v1245
  %v2146 = vmul.f32 %v2105, %v2125
  %v2147 = vadd.f32 %v2145, %v2146
  %v2148 = vtanh.pop %v2147
  %v2149 = vmul.f32 %v2144, %v2148
  %v2150 = vsel %vm1574, %v2149, %v1244
  %v2151 = vsel %vm1574, %v2147, %v1245
  %s2152 = sadd.s32 %s339, 2
  %v2153 = vld [vmem:[%s1] sm:$0xff]
  %v2154 = vstv %s2152
  %vm2155 = vcmp.lt.s32.totalorder %v2154, %v2153
  %s2156 = smul.u32 2, 4
  %s2157 = smul.addr %s2156, 4
  %s2158 = scalar_lea.vmem [#allocation2], %s2157
  %v2159 = vld [vmem:[%s2158] sm:$0xff]
  %v2160 = vld [vmem:[%s2158 + $0x8] sm:$0xff]
  %v2161 = vunpack.c.l.bf16 %v2159
  %v2162 = vunpack.c.h.bf16 %v2159
  %v2163 = vunpack.c.l.bf16 %v2160
  %v2164 = vunpack.c.h.bf16 %v2160
  %v2165 = vld [vmem:[%s3] sm:$0xff]
  %v2166 = vld [vmem:[%s3 + $0x8] sm:$0xff]
  %v2167 = vld [vmem:[%s3 + $0x10] sm:$0xff]
  %v2168 = vld [vmem:[%s3 + $0x18] sm:$0xff]
  %v2169 = vld [vmem:[%s3 + $0x20] sm:$0xff]
  %v2170 = vld [vmem:[%s3 + $0x28] sm:$0xff]
  %v2171 = vld [vmem:[%s3 + $0x30] sm:$0xff]
  %v2172 = vld [vmem:[%s3 + $0x38] sm:$0xff]
  %v2173 = vld [vmem:[%s3 + $0x40] sm:$0xff]
  %v2174 = vld [vmem:[%s3 + $0x48] sm:$0xff]
  %v2175 = vld [vmem:[%s3 + $0x50] sm:$0xff]
  %v2176 = vld [vmem:[%s3 + $0x58] sm:$0xff]
  %v2177 = vld [vmem:[%s3 + $0x60] sm:$0xff]
  %v2178 = vld [vmem:[%s3 + $0x68] sm:$0xff]
  %v2179 = vld [vmem:[%s3 + $0x70] sm:$0xff]
  %v2180 = vld [vmem:[%s3 + $0x78] sm:$0xff]
  %v2181 = vld [vmem:[%s3 + $0x80] sm:$0xff]
  %v2182 = vld [vmem:[%s3 + $0x88] sm:$0xff]
  %v2183 = vld [vmem:[%s3 + $0x90] sm:$0xff]
  %v2184 = vld [vmem:[%s3 + $0x98] sm:$0xff]
  %v2185 = vld [vmem:[%s3 + $0xa0] sm:$0xff]
  %v2186 = vld [vmem:[%s3 + $0xa8] sm:$0xff]
  %v2187 = vld [vmem:[%s3 + $0xb0] sm:$0xff]
  %v2188 = vld [vmem:[%s3 + $0xb8] sm:$0xff]
  %v2189 = vld [vmem:[%s3 + $0xc0] sm:$0xff]
  %v2190 = vld [vmem:[%s3 + $0xc8] sm:$0xff]
  %v2191 = vld [vmem:[%s3 + $0xd0] sm:$0xff]
  %v2192 = vld [vmem:[%s3 + $0xd8] sm:$0xff]
  %v2193 = vld [vmem:[%s3 + $0xe0] sm:$0xff]
  %v2194 = vld [vmem:[%s3 + $0xe8] sm:$0xff]
  %v2195 = vld [vmem:[%s3 + $0xf0] sm:$0xff]
  %v2196 = vld [vmem:[%s3 + $0xf8] sm:$0xff]
  %v2229 = vunpack.c.l.b16 %v2165
  %v2230 = vunpack.c.h.b16 %v2165
  %v2231 = vunpack.c.l.b16 %v2166
  %v2232 = vunpack.c.h.b16 %v2166
  %v2233 = vunpack.c.l.b16 %v2167
  %v2234 = vunpack.c.h.b16 %v2167
  %v2235 = vunpack.c.l.b16 %v2168
  %v2236 = vunpack.c.h.b16 %v2168
  %v2237 = vunpack.c.l.b16 %v2169
  %v2238 = vunpack.c.h.b16 %v2169
  %v2239 = vunpack.c.l.b16 %v2170
  %v2240 = vunpack.c.h.b16 %v2170
  %v2241 = vunpack.c.l.b16 %v2171
  %v2242 = vunpack.c.h.b16 %v2171
  %v2243 = vunpack.c.l.b16 %v2172
  %v2244 = vunpack.c.h.b16 %v2172
  %v2245 = vunpack.c.l.b16 %v2173
  %v2246 = vunpack.c.h.b16 %v2173
  %v2247 = vunpack.c.l.b16 %v2174
  %v2248 = vunpack.c.h.b16 %v2174
  %v2249 = vunpack.c.l.b16 %v2175
  %v2250 = vunpack.c.h.b16 %v2175
  %v2251 = vunpack.c.l.b16 %v2176
  %v2252 = vunpack.c.h.b16 %v2176
  %v2253 = vunpack.c.l.b16 %v2177
  %v2254 = vunpack.c.h.b16 %v2177
  %v2255 = vunpack.c.l.b16 %v2178
  %v2256 = vunpack.c.h.b16 %v2178
  %v2257 = vunpack.c.l.b16 %v2179
  %v2258 = vunpack.c.h.b16 %v2179
  %v2259 = vunpack.c.l.b16 %v2180
  %v2260 = vunpack.c.h.b16 %v2180
  %v2261 = vunpack.c.l.b16 %v2181
  %v2262 = vunpack.c.h.b16 %v2181
  %v2263 = vunpack.c.l.b16 %v2182
  %v2264 = vunpack.c.h.b16 %v2182
  %v2265 = vunpack.c.l.b16 %v2183
  %v2266 = vunpack.c.h.b16 %v2183
  %v2267 = vunpack.c.l.b16 %v2184
  %v2268 = vunpack.c.h.b16 %v2184
  %v2269 = vunpack.c.l.b16 %v2185
  %v2270 = vunpack.c.h.b16 %v2185
  %v2271 = vunpack.c.l.b16 %v2186
  %v2272 = vunpack.c.h.b16 %v2186
  %v2273 = vunpack.c.l.b16 %v2187
  %v2274 = vunpack.c.h.b16 %v2187
  %v2275 = vunpack.c.l.b16 %v2188
  %v2276 = vunpack.c.h.b16 %v2188
  %v2277 = vunpack.c.l.b16 %v2189
  %v2278 = vunpack.c.h.b16 %v2189
  %v2279 = vunpack.c.l.b16 %v2190
  %v2280 = vunpack.c.h.b16 %v2190
  %v2281 = vunpack.c.l.b16 %v2191
  %v2282 = vunpack.c.h.b16 %v2191
  %v2283 = vunpack.c.l.b16 %v2192
  %v2284 = vunpack.c.h.b16 %v2192
  %v2285 = vunpack.c.l.b16 %v2193
  %v2286 = vunpack.c.h.b16 %v2193
  %v2287 = vunpack.c.l.b16 %v2194
  %v2288 = vunpack.c.h.b16 %v2194
  %v2289 = vunpack.c.l.b16 %v2195
  %v2290 = vunpack.c.h.b16 %v2195
  %v2291 = vunpack.c.l.b16 %v2196
  %v2292 = vunpack.c.h.b16 %v2196
  %v2293 = vpack.c.b16 %v2233, %v2229
  %v2294 = vpack.c.b16 %v2234, %v2230
  %v2295 = vpack.c.b16 %v2235, %v2231
  %v2296 = vpack.c.b16 %v2236, %v2232
  %v2297 = vpack.c.b16 %v2241, %v2237
  %v2298 = vpack.c.b16 %v2242, %v2238
  %v2299 = vpack.c.b16 %v2243, %v2239
  %v2300 = vpack.c.b16 %v2244, %v2240
  %v2301 = vpack.c.b16 %v2249, %v2245
  %v2302 = vpack.c.b16 %v2250, %v2246
  %v2303 = vpack.c.b16 %v2251, %v2247
  %v2304 = vpack.c.b16 %v2252, %v2248
  %v2305 = vpack.c.b16 %v2257, %v2253
  %v2306 = vpack.c.b16 %v2258, %v2254
  %v2307 = vpack.c.b16 %v2259, %v2255
  %v2308 = vpack.c.b16 %v2260, %v2256
  %v2309 = vpack.c.b16 %v2265, %v2261
  %v2310 = vpack.c.b16 %v2266, %v2262
  %v2311 = vpack.c.b16 %v2267, %v2263
  %v2312 = vpack.c.b16 %v2268, %v2264
  %v2313 = vpack.c.b16 %v2273, %v2269
  %v2314 = vpack.c.b16 %v2274, %v2270
  %v2315 = vpack.c.b16 %v2275, %v2271
  %v2316 = vpack.c.b16 %v2276, %v2272
  %v2317 = vpack.c.b16 %v2281, %v2277
  %v2318 = vpack.c.b16 %v2282, %v2278
  %v2319 = vpack.c.b16 %v2283, %v2279
  %v2320 = vpack.c.b16 %v2284, %v2280
  %v2321 = vpack.c.b16 %v2289, %v2285
  %v2322 = vpack.c.b16 %v2290, %v2286
  %v2323 = vpack.c.b16 %v2291, %v2287
  %v2324 = vpack.c.b16 %v2292, %v2288
  %2357 = vmatpush.bf16.msra.mxu0 %v2321
  %2358 = vmatpush.bf16.msra.mxu0 %v2317
  %2359 = vmatpush.bf16.msra.mxu0 %v2313
  %2360 = vmatpush.bf16.msra.mxu0 %v2309
  %2361 = vmatpush.bf16.msra.mxu0 %v2305
  %2362 = vmatpush.bf16.msra.mxu0 %v2301
  %2363 = vmatpush.bf16.msra.mxu0 %v2297
  %2364 = vmatpush.bf16.msra.mxu0 %v2293
  %2365 = vmatmul.bf16.gmra.mxu0 %v1577
  %v2366 = vpop.f32.mrf.mxu0
  %v2367 = vadd.f32 0.0, %v2366
  %v2368 = vpop.f32.mrf.mxu0
  %2369 = vdwg.mxu0
  %2370 = vmatpush.bf16.msra.mxu0 %v2322
  %2371 = vmatpush.bf16.msra.mxu0 %v2318
  %2372 = vmatpush.bf16.msra.mxu0 %v2314
  %2373 = vmatpush.bf16.msra.mxu0 %v2310
  %2374 = vmatpush.bf16.msra.mxu0 %v2306
  %2375 = vmatpush.bf16.msra.mxu0 %v2302
  %2376 = vmatpush.bf16.msra.mxu0 %v2298
  %2377 = vmatpush.bf16.msra.mxu0 %v2294
  %2378 = vmatmul.bf16.gmra.mxu0 %v1577
  %v2379 = vpop.f32.mrf.mxu0
  %v2380 = vadd.f32 0.0, %v2379
  %v2381 = vpop.f32.mrf.mxu0
  %2382 = vdwg.mxu0
  %2383 = vmatpush.bf16.msra.mxu0 %v2323
  %2384 = vmatpush.bf16.msra.mxu0 %v2319
  %2385 = vmatpush.bf16.msra.mxu0 %v2315
  %2386 = vmatpush.bf16.msra.mxu0 %v2311
  %2387 = vmatpush.bf16.msra.mxu0 %v2307
  %2388 = vmatpush.bf16.msra.mxu0 %v2303
  %2389 = vmatpush.bf16.msra.mxu0 %v2299
  %2390 = vmatpush.bf16.msra.mxu0 %v2295
  %2391 = vmatmul.bf16.gmra.mxu0 %v1577
  %v2392 = vpop.f32.mrf.mxu0
  %v2393 = vadd.f32 0.0, %v2392
  %v2394 = vpop.f32.mrf.mxu0
  %2395 = vdwg.mxu0
  %2396 = vmatpush.bf16.msra.mxu0 %v2324
  %2397 = vmatpush.bf16.msra.mxu0 %v2320
  %2398 = vmatpush.bf16.msra.mxu0 %v2316
  %2399 = vmatpush.bf16.msra.mxu0 %v2312
  %2400 = vmatpush.bf16.msra.mxu0 %v2308
  %2401 = vmatpush.bf16.msra.mxu0 %v2304
  %2402 = vmatpush.bf16.msra.mxu0 %v2300
  %2403 = vmatpush.bf16.msra.mxu0 %v2296
  %2404 = vmatmul.bf16.gmra.mxu0 %v1577
  %v2405 = vpop.f32.mrf.mxu0
  %v2406 = vadd.f32 0.0, %v2405
  %v2407 = vpop.f32.mrf.mxu0
  %2408 = vdwg.mxu0
  %v2409 = vadd.f32 %v2161, %v2367
  %v2410 = vadd.f32 %v2162, %v2380
  %v2411 = vadd.f32 %v2163, %v2393
  %v2412 = vadd.f32 %v2164, %v2406
  %v2413 = vxor.u32 %v2409, 2147483648
  %v2414 = vmul.f32 %v2413, 1.442695
  %v2415 = vpow.pop %v2414
  %v2416 = vadd.f32 %v2415, 1.0
  %v2417 = vrcp.pop %v2416
  %v2418 = vmul.f32 %v2416, %v2417
  %v2419 = vsub.f32 1.0, %v2418
  %v2420 = vmul.f32 %v2417, %v2419
  %v2421 = vadd.f32 %v2417, %v2420
  %vm2422 = vweird.f32 %v2416
  %vm2423 = vweird.f32 %v2417
  %vm2424 = vmor %vm2422, %vm2423
  %v2425 = vsel %vm2424, %v2417, %v2421
  %v2426 = vand.u32 2147483647, %v2416
  %vm2427 = vcmp.eq.f32.partialorder %v2426, 8.507059e+37
  %v2428 = vand.u32 %v2416, 2147483648
  %v2429 = vor.u32 1.1754944e-38, %v2428
  %v2430 = vsel %vm2427, %v2429, %v2425
  %v2431 = vmul.f32 1.0, %v2430
  %v2432 = vxor.u32 %v2410, 2147483648
  %v2433 = vmul.f32 %v2432, 1.442695
  %v2434 = vpow.pop %v2433
  %v2435 = vadd.f32 %v2434, 1.0
  %v2436 = vrcp.pop %v2435
  %v2437 = vmul.f32 %v2435, %v2436
  %v2438 = vsub.f32 1.0, %v2437
  %v2439 = vmul.f32 %v2436, %v2438
  %v2440 = vadd.f32 %v2436, %v2439
  %vm2441 = vweird.f32 %v2435
  %vm2442 = vweird.f32 %v2436
  %vm2443 = vmor %vm2441, %vm2442
  %v2444 = vsel %vm2443, %v2436, %v2440
  %v2445 = vand.u32 2147483647, %v2435
  %vm2446 = vcmp.eq.f32.partialorder %v2445, 8.507059e+37
  %v2447 = vand.u32 %v2435, 2147483648
  %v2448 = vor.u32 1.1754944e-38, %v2447
  %v2449 = vsel %vm2446, %v2448, %v2444
  %v2450 = vmul.f32 1.0, %v2449
  %v2451 = vtanh.pop %v2411
  %v2452 = vxor.u32 %v2412, 2147483648
  %v2453 = vmul.f32 %v2452, 1.442695
  %v2454 = vpow.pop %v2453
  %v2455 = vadd.f32 %v2454, 1.0
  %v2456 = vrcp.pop %v2455
  %v2457 = vmul.f32 %v2455, %v2456
  %v2458 = vsub.f32 1.0, %v2457
  %v2459 = vmul.f32 %v2456, %v2458
  %v2460 = vadd.f32 %v2456, %v2459
  %vm2461 = vweird.f32 %v2455
  %vm2462 = vweird.f32 %v2456
  %vm2463 = vmor %vm2461, %vm2462
  %v2464 = vsel %vm2463, %v2456, %v2460
  %v2465 = vand.u32 2147483647, %v2455
  %vm2466 = vcmp.eq.f32.partialorder %v2465, 8.507059e+37
  %v2467 = vand.u32 %v2455, 2147483648
  %v2468 = vor.u32 1.1754944e-38, %v2467
  %v2469 = vsel %vm2466, %v2468, %v2464
  %v2470 = vmul.f32 1.0, %v2469
  %v2471 = vmul.f32 %v2450, %v1576
  %v2472 = vmul.f32 %v2431, %v2451
  %v2473 = vadd.f32 %v2471, %v2472
  %v2474 = vtanh.pop %v2473
  %v2475 = vmul.f32 %v2470, %v2474
  %v2476 = vsel %vm2155, 1, 0
  %2477 = vset.pattern.permute.xlu0 0
  %2478 = vperm.xlu0 %2477, %v2476
  %v2479 = vpop.permute.xlu0 %2478
  %vm2480 = vcmp.eq.s32.totalorder %v2479, 1
  %v2481 = vsel %vm2480, %v2475, %v1575
  %v2482 = vsel %vm2480, %v2473, %v1576
  %v2483 = vpack.c.bf16 %v2481, %v2481
  %2484 = vst [vmem:[#allocation3] sm:$0xf] %v2483
  %v2485 = vpack.c.bf16 %v2150, %v2150
  %2486 = vst [vmem:[#allocation3 + $0x4] sm:$0xf] %v2485
  %v2487 = vld [vmem:[#allocation3] sm:$0xff]
  %v2488 = vld [vmem:[%s5] sm:$0xff]
  %v2489 = vld [vmem:[%s5 + $0x8] sm:$0xff]
  %v2490 = vld [vmem:[%s5 + $0x10] sm:$0xff]
  %v2491 = vld [vmem:[%s5 + $0x18] sm:$0xff]
  %v2492 = vld [vmem:[%s5 + $0x20] sm:$0xff]
  %v2493 = vld [vmem:[%s5 + $0x28] sm:$0xff]
  %v2494 = vld [vmem:[%s5 + $0x30] sm:$0xff]
  %v2495 = vld [vmem:[%s5 + $0x38] sm:$0xff]
  %v2496 = vld [vmem:[%s5 + $0x40] sm:$0xff]
  %v2497 = vld [vmem:[%s5 + $0x48] sm:$0xff]
  %v2498 = vld [vmem:[%s5 + $0x50] sm:$0xff]
  %v2499 = vld [vmem:[%s5 + $0x58] sm:$0xff]
  %v2500 = vld [vmem:[%s5 + $0x60] sm:$0xff]
  %v2501 = vld [vmem:[%s5 + $0x68] sm:$0xff]
  %v2502 = vld [vmem:[%s5 + $0x70] sm:$0xff]
  %v2503 = vld [vmem:[%s5 + $0x78] sm:$0xff]
  %v2504 = vld [vmem:[%s5 + $0x80] sm:$0xff]
  %v2505 = vld [vmem:[%s5 + $0x88] sm:$0xff]
  %v2506 = vld [vmem:[%s5 + $0x90] sm:$0xff]
  %v2507 = vld [vmem:[%s5 + $0x98] sm:$0xff]
  %v2508 = vld [vmem:[%s5 + $0xa0] sm:$0xff]
  %v2509 = vld [vmem:[%s5 + $0xa8] sm:$0xff]
  %v2510 = vld [vmem:[%s5 + $0xb0] sm:$0xff]
  %v2511 = vld [vmem:[%s5 + $0xb8] sm:$0xff]
  %v2512 = vld [vmem:[%s5 + $0xc0] sm:$0xff]
  %v2513 = vld [vmem:[%s5 + $0xc8] sm:$0xff]
  %v2514 = vld [vmem:[%s5 + $0xd0] sm:$0xff]
  %v2515 = vld [vmem:[%s5 + $0xd8] sm:$0xff]
  %v2516 = vld [vmem:[%s5 + $0xe0] sm:$0xff]
  %v2517 = vld [vmem:[%s5 + $0xe8] sm:$0xff]
  %v2518 = vld [vmem:[%s5 + $0xf0] sm:$0xff]
  %v2519 = vld [vmem:[%s5 + $0xf8] sm:$0xff]
  %v2520 = vld [vmem:[%s5 + $0x100] sm:$0xff]
  %v2521 = vld [vmem:[%s5 + $0x108] sm:$0xff]
  %v2522 = vld [vmem:[%s5 + $0x110] sm:$0xff]
  %v2523 = vld [vmem:[%s5 + $0x118] sm:$0xff]
  %v2524 = vld [vmem:[%s5 + $0x120] sm:$0xff]
  %v2525 = vld [vmem:[%s5 + $0x128] sm:$0xff]
  %v2526 = vld [vmem:[%s5 + $0x130] sm:$0xff]
  %v2527 = vld [vmem:[%s5 + $0x138] sm:$0xff]
  %v2528 = vld [vmem:[%s5 + $0x140] sm:$0xff]
  %v2529 = vld [vmem:[%s5 + $0x148] sm:$0xff]
  %v2530 = vld [vmem:[%s5 + $0x150] sm:$0xff]
  %v2531 = vld [vmem:[%s5 + $0x158] sm:$0xff]
  %v2532 = vld [vmem:[%s5 + $0x160] sm:$0xff]
  %v2533 = vld [vmem:[%s5 + $0x168] sm:$0xff]
  %v2534 = vld [vmem:[%s5 + $0x170] sm:$0xff]
  %v2535 = vld [vmem:[%s5 + $0x178] sm:$0xff]
  %v2536 = vld [vmem:[%s5 + $0x180] sm:$0xff]
  %v2537 = vld [vmem:[%s5 + $0x188] sm:$0xff]
  %v2538 = vld [vmem:[%s5 + $0x190] sm:$0xff]
  %v2539 = vld [vmem:[%s5 + $0x198] sm:$0xff]
  %v2540 = vld [vmem:[%s5 + $0x1a0] sm:$0xff]
  %v2541 = vld [vmem:[%s5 + $0x1a8] sm:$0xff]
  %v2542 = vld [vmem:[%s5 + $0x1b0] sm:$0xff]
  %v2543 = vld [vmem:[%s5 + $0x1b8] sm:$0xff]
  %v2544 = vld [vmem:[%s5 + $0x1c0] sm:$0xff]
  %v2545 = vld [vmem:[%s5 + $0x1c8] sm:$0xff]
  %v2546 = vld [vmem:[%s5 + $0x1d0] sm:$0xff]
  %v2547 = vld [vmem:[%s5 + $0x1d8] sm:$0xff]
  %v2548 = vld [vmem:[%s5 + $0x1e0] sm:$0xff]
  %v2549 = vld [vmem:[%s5 + $0x1e8] sm:$0xff]
  %v2550 = vld [vmem:[%s5 + $0x1f0] sm:$0xff]
  %v2551 = vld [vmem:[%s5 + $0x1f8] sm:$0xff]
  %v2552 = vld [vmem:[%s6] sm:$0xf]
  %v2554 = vperm.slane %v2552, 0
  %v2555 = vperm.slane %v2552, 1
  %v2556 = vperm.slane %v2552, 2
  %v2557 = vperm.slane %v2552, 3
  %v2563 = vunpack.c.l.b16 %v2487
  %v2564 = vunpack.c.h.b16 %v2487
  %v2565 = vpack.c.b16 %v2563, %v2563
  %v2566 = vpack.c.b16 %v2564, %v2564
  %v2633 = vunpack.c.l.b16 %v2488
  %v2634 = vunpack.c.h.b16 %v2488
  %v2635 = vunpack.c.l.b16 %v2489
  %v2636 = vunpack.c.h.b16 %v2489
  %v2637 = vunpack.c.l.b16 %v2490
  %v2638 = vunpack.c.h.b16 %v2490
  %v2639 = vunpack.c.l.b16 %v2491
  %v2640 = vunpack.c.h.b16 %v2491
  %v2641 = vunpack.c.l.b16 %v2492
  %v2642 = vunpack.c.h.b16 %v2492
  %v2643 = vunpack.c.l.b16 %v2493
  %v2644 = vunpack.c.h.b16 %v2493
  %v2645 = vunpack.c.l.b16 %v2494
  %v2646 = vunpack.c.h.b16 %v2494
  %v2647 = vunpack.c.l.b16 %v2495
  %v2648 = vunpack.c.h.b16 %v2495
  %v2649 = vunpack.c.l.b16 %v2496
  %v2650 = vunpack.c.h.b16 %v2496
  %v2651 = vunpack.c.l.b16 %v2497
  %v2652 = vunpack.c.h.b16 %v2497
  %v2653 = vunpack.c.l.b16 %v2498
  %v2654 = vunpack.c.h.b16 %v2498
  %v2655 = vunpack.c.l.b16 %v2499
  %v2656 = vunpack.c.h.b16 %v2499
  %v2657 = vunpack.c.l.b16 %v2500
  %v2658 = vunpack.c.h.b16 %v2500
  %v2659 = vunpack.c.l.b16 %v2501
  %v2660 = vunpack.c.h.b16 %v2501
  %v2661 = vunpack.c.l.b16 %v2502
  %v2662 = vunpack.c.h.b16 %v2502
  %v2663 = vunpack.c.l.b16 %v2503
  %v2664 = vunpack.c.h.b16 %v2503
  %v2665 = vunpack.c.l.b16 %v2504
  %v2666 = vunpack.c.h.b16 %v2504
  %v2667 = vunpack.c.l.b16 %v2505
  %v2668 = vunpack.c.h.b16 %v2505
  %v2669 = vunpack.c.l.b16 %v2506
  %v2670 = vunpack.c.h.b16 %v2506
  %v2671 = vunpack.c.l.b16 %v2507
  %v2672 = vunpack.c.h.b16 %v2507
  %v2673 = vunpack.c.l.b16 %v2508
  %v2674 = vunpack.c.h.b16 %v2508
  %v2675 = vunpack.c.l.b16 %v2509
  %v2676 = vunpack.c.h.b16 %v2509
  %v2677 = vunpack.c.l.b16 %v2510
  %v2678 = vunpack.c.h.b16 %v2510
  %v2679 = vunpack.c.l.b16 %v2511
  %v2680 = vunpack.c.h.b16 %v2511
  %v2681 = vunpack.c.l.b16 %v2512
  %v2682 = vunpack.c.h.b16 %v2512
  %v2683 = vunpack.c.l.b16 %v2513
  %v2684 = vunpack.c.h.b16 %v2513
  %v2685 = vunpack.c.l.b16 %v2514
  %v2686 = vunpack.c.h.b16 %v2514
  %v2687 = vunpack.c.l.b16 %v2515
  %v2688 = vunpack.c.h.b16 %v2515
  %v2689 = vunpack.c.l.b16 %v2516
  %v2690 = vunpack.c.h.b16 %v2516
  %v2691 = vunpack.c.l.b16 %v2517
  %v2692 = vunpack.c.h.b16 %v2517
  %v2693 = vunpack.c.l.b16 %v2518
  %v2694 = vunpack.c.h.b16 %v2518
  %v2695 = vunpack.c.l.b16 %v2519
  %v2696 = vunpack.c.h.b16 %v2519
  %v2697 = vunpack.c.l.b16 %v2520
  %v2698 = vunpack.c.h.b16 %v2520
  %v2699 = vunpack.c.l.b16 %v2521
  %v2700 = vunpack.c.h.b16 %v2521
  %v2701 = vunpack.c.l.b16 %v2522
  %v2702 = vunpack.c.h.b16 %v2522
  %v2703 = vunpack.c.l.b16 %v2523
  %v2704 = vunpack.c.h.b16 %v2523
  %v2705 = vunpack.c.l.b16 %v2524
  %v2706 = vunpack.c.h.b16 %v2524
  %v2707 = vunpack.c.l.b16 %v2525
  %v2708 = vunpack.c.h.b16 %v2525
  %v2709 = vunpack.c.l.b16 %v2526
  %v2710 = vunpack.c.h.b16 %v2526
  %v2711 = vunpack.c.l.b16 %v2527
  %v2712 = vunpack.c.h.b16 %v2527
  %v2713 = vunpack.c.l.b16 %v2528
  %v2714 = vunpack.c.h.b16 %v2528
  %v2715 = vunpack.c.l.b16 %v2529
  %v2716 = vunpack.c.h.b16 %v2529
  %v2717 = vunpack.c.l.b16 %v2530
  %v2718 = vunpack.c.h.b16 %v2530
  %v2719 = vunpack.c.l.b16 %v2531
  %v2720 = vunpack.c.h.b16 %v2531
  %v2721 = vunpack.c.l.b16 %v2532
  %v2722 = vunpack.c.h.b16 %v2532
  %v2723 = vunpack.c.l.b16 %v2533
  %v2724 = vunpack.c.h.b16 %v2533
  %v2725 = vunpack.c.l.b16 %v2534
  %v2726 = vunpack.c.h.b16 %v2534
  %v2727 = vunpack.c.l.b16 %v2535
  %v2728 = vunpack.c.h.b16 %v2535
  %v2729 = vunpack.c.l.b16 %v2536
  %v2730 = vunpack.c.h.b16 %v2536
  %v2731 = vunpack.c.l.b16 %v2537
  %v2732 = vunpack.c.h.b16 %v2537
  %v2733 = vunpack.c.l.b16 %v2538
  %v2734 = vunpack.c.h.b16 %v2538
  %v2735 = vunpack.c.l.b16 %v2539
  %v2736 = vunpack.c.h.b16 %v2539
  %v2737 = vunpack.c.l.b16 %v2540
  %v2738 = vunpack.c.h.b16 %v2540
  %v2739 = vunpack.c.l.b16 %v2541
  %v2740 = vunpack.c.h.b16 %v2541
  %v2741 = vunpack.c.l.b16 %v2542
  %v2742 = vunpack.c.h.b16 %v2542
  %v2743 = vunpack.c.l.b16 %v2543
  %v2744 = vunpack.c.h.b16 %v2543
  %v2745 = vunpack.c.l.b16 %v2544
  %v2746 = vunpack.c.h.b16 %v2544
  %v2747 = vunpack.c.l.b16 %v2545
  %v2748 = vunpack.c.h.b16 %v2545
  %v2749 = vunpack.c.l.b16 %v2546
  %v2750 = vunpack.c.h.b16 %v2546
  %v2751 = vunpack.c.l.b16 %v2547
  %v2752 = vunpack.c.h.b16 %v2547
  %v2753 = vunpack.c.l.b16 %v2548
  %v2754 = vunpack.c.h.b16 %v2548
  %v2755 = vunpack.c.l.b16 %v2549
  %v2756 = vunpack.c.h.b16 %v2549
  %v2757 = vunpack.c.l.b16 %v2550
  %v2758 = vunpack.c.h.b16 %v2550
  %v2759 = vunpack.c.l.b16 %v2551
  %v2760 = vunpack.c.h.b16 %v2551
  %v2761 = vpack.c.b16 %v2637, %v2633
  %v2762 = vpack.c.b16 %v2638, %v2634
  %v2763 = vpack.c.b16 %v2639, %v2635
  %v2764 = vpack.c.b16 %v2640, %v2636
  %v2765 = vpack.c.b16 %v2645, %v2641
  %v2766 = vpack.c.b16 %v2646, %v2642
  %v2767 = vpack.c.b16 %v2647, %v2643
  %v2768 = vpack.c.b16 %v2648, %v2644
  %v2769 = vpack.c.b16 %v2653, %v2649
  %v2770 = vpack.c.b16 %v2654, %v2650
  %v2771 = vpack.c.b16 %v2655, %v2651
  %v2772 = vpack.c.b16 %v2656, %v2652
  %v2773 = vpack.c.b16 %v2661, %v2657
  %v2774 = vpack.c.b16 %v2662, %v2658
  %v2775 = vpack.c.b16 %v2663, %v2659
  %v2776 = vpack.c.b16 %v2664, %v2660
  %v2777 = vpack.c.b16 %v2669, %v2665
  %v2778 = vpack.c.b16 %v2670, %v2666
  %v2779 = vpack.c.b16 %v2671, %v2667
  %v2780 = vpack.c.b16 %v2672, %v2668
  %v2781 = vpack.c.b16 %v2677, %v2673
  %v2782 = vpack.c.b16 %v2678, %v2674
  %v2783 = vpack.c.b16 %v2679, %v2675
  %v2784 = vpack.c.b16 %v2680, %v2676
  %v2785 = vpack.c.b16 %v2685, %v2681
  %v2786 = vpack.c.b16 %v2686, %v2682
  %v2787 = vpack.c.b16 %v2687, %v2683
  %v2788 = vpack.c.b16 %v2688, %v2684
  %v2789 = vpack.c.b16 %v2693, %v2689
  %v2790 = vpack.c.b16 %v2694, %v2690
  %v2791 = vpack.c.b16 %v2695, %v2691
  %v2792 = vpack.c.b16 %v2696, %v2692
  %v2793 = vpack.c.b16 %v2701, %v2697
  %v2794 = vpack.c.b16 %v2702, %v2698
  %v2795 = vpack.c.b16 %v2703, %v2699
  %v2796 = vpack.c.b16 %v2704, %v2700
  %v2797 = vpack.c.b16 %v2709, %v2705
  %v2798 = vpack.c.b16 %v2710, %v2706
  %v2799 = vpack.c.b16 %v2711, %v2707
  %v2800 = vpack.c.b16 %v2712, %v2708
  %v2801 = vpack.c.b16 %v2717, %v2713
  %v2802 = vpack.c.b16 %v2718, %v2714
  %v2803 = vpack.c.b16 %v2719, %v2715
  %v2804 = vpack.c.b16 %v2720, %v2716
  %v2805 = vpack.c.b16 %v2725, %v2721
  %v2806 = vpack.c.b16 %v2726, %v2722
  %v2807 = vpack.c.b16 %v2727, %v2723
  %v2808 = vpack.c.b16 %v2728, %v2724
  %v2809 = vpack.c.b16 %v2733, %v2729
  %v2810 = vpack.c.b16 %v2734, %v2730
  %v2811 = vpack.c.b16 %v2735, %v2731
  %v2812 = vpack.c.b16 %v2736, %v2732
  %v2813 = vpack.c.b16 %v2741, %v2737
  %v2814 = vpack.c.b16 %v2742, %v2738
  %v2815 = vpack.c.b16 %v2743, %v2739
  %v2816 = vpack.c.b16 %v2744, %v2740
  %v2817 = vpack.c.b16 %v2749, %v2745
  %v2818 = vpack.c.b16 %v2750, %v2746
  %v2819 = vpack.c.b16 %v2751, %v2747
  %v2820 = vpack.c.b16 %v2752, %v2748
  %v2821 = vpack.c.b16 %v2757, %v2753
  %v2822 = vpack.c.b16 %v2758, %v2754
  %v2823 = vpack.c.b16 %v2759, %v2755
  %v2824 = vpack.c.b16 %v2760, %v2756
  %2889 = vmatpush.bf16.msra.mxu0 %v2789
  %2890 = vmatpush.bf16.msra.mxu0 %v2785
  %2891 = vmatpush.bf16.msra.mxu0 %v2781
  %2892 = vmatpush.bf16.msra.mxu0 %v2777
  %2893 = vmatpush.bf16.msra.mxu0 %v2773
  %2894 = vmatpush.bf16.msra.mxu0 %v2769
  %2895 = vmatpush.bf16.msra.mxu0 %v2765
  %2896 = vmatpush.bf16.msra.mxu0 %v2761
  %2897 = vmatmul.bf16.gmra.mxu0 %v2565
  %v2898 = vpop.f32.mrf.mxu0
  %v2899 = vadd.f32 %v2554, %v2898
  %v2900 = vpop.f32.mrf.mxu0
  %2901 = vdwg.mxu0
  %2902 = vmatpush.bf16.msra.mxu0 %v2821
  %2903 = vmatpush.bf16.msra.mxu0 %v2817
  %2904 = vmatpush.bf16.msra.mxu0 %v2813
  %2905 = vmatpush.bf16.msra.mxu0 %v2809
  %2906 = vmatpush.bf16.msra.mxu0 %v2805
  %2907 = vmatpush.bf16.msra.mxu0 %v2801
  %2908 = vmatpush.bf16.msra.mxu0 %v2797
  %2909 = vmatpush.bf16.msra.mxu0 %v2793
  %2910 = vmatmul.bf16.gmra.mxu0 %v2566
  %v2911 = vpop.f32.mrf.mxu0
  %v2912 = vadd.f32 %v2899, %v2911
  %v2913 = vpop.f32.mrf.mxu0
  %2914 = vdwg.mxu0
  %2915 = vmatpush.bf16.msra.mxu0 %v2790
  %2916 = vmatpush.bf16.msra.mxu0 %v2786
  %2917 = vmatpush.bf16.msra.mxu0 %v2782
  %2918 = vmatpush.bf16.msra.mxu0 %v2778
  %2919 = vmatpush.bf16.msra.mxu0 %v2774
  %2920 = vmatpush.bf16.msra.mxu0 %v2770
  %2921 = vmatpush.bf16.msra.mxu0 %v2766
  %2922 = vmatpush.bf16.msra.mxu0 %v2762
  %2923 = vmatmul.bf16.gmra.mxu0 %v2565
  %v2924 = vpop.f32.mrf.mxu0
  %v2925 = vadd.f32 %v2555, %v2924
  %v2926 = vpop.f32.mrf.mxu0
  %2927 = vdwg.mxu0
  %2928 = vmatpush.bf16.msra.mxu0 %v2822
  %2929 = vmatpush.bf16.msra.mxu0 %v2818
  %2930 = vmatpush.bf16.msra.mxu0 %v2814
  %2931 = vmatpush.bf16.msra.mxu0 %v2810
  %2932 = vmatpush.bf16.msra.mxu0 %v2806
  %2933 = vmatpush.bf16.msra.mxu0 %v2802
  %2934 = vmatpush.bf16.msra.mxu0 %v2798
  %2935 = vmatpush.bf16.msra.mxu0 %v2794
  %2936 = vmatmul.bf16.gmra.mxu0 %v2566
  %v2937 = vpop.f32.mrf.mxu0
  %v2938 = vadd.f32 %v2925, %v2937
  %v2939 = vpop.f32.mrf.mxu0
  %2940 = vdwg.mxu0
  %2941 = vmatpush.bf16.msra.mxu0 %v2791
  %2942 = vmatpush.bf16.msra.mxu0 %v2787
  %2943 = vmatpush.bf16.msra.mxu0 %v2783
  %2944 = vmatpush.bf16.msra.mxu0 %v2779
  %2945 = vmatpush.bf16.msra.mxu0 %v2775
  %2946 = vmatpush.bf16.msra.mxu0 %v2771
  %2947 = vmatpush.bf16.msra.mxu0 %v2767
  %2948 = vmatpush.bf16.msra.mxu0 %v2763
  %2949 = vmatmul.bf16.gmra.mxu0 %v2565
  %v2950 = vpop.f32.mrf.mxu0
  %v2951 = vadd.f32 %v2556, %v2950
  %v2952 = vpop.f32.mrf.mxu0
  %2953 = vdwg.mxu0
  %2954 = vmatpush.bf16.msra.mxu0 %v2823
  %2955 = vmatpush.bf16.msra.mxu0 %v2819
  %2956 = vmatpush.bf16.msra.mxu0 %v2815
  %2957 = vmatpush.bf16.msra.mxu0 %v2811
  %2958 = vmatpush.bf16.msra.mxu0 %v2807
  %2959 = vmatpush.bf16.msra.mxu0 %v2803
  %2960 = vmatpush.bf16.msra.mxu0 %v2799
  %2961 = vmatpush.bf16.msra.mxu0 %v2795
  %2962 = vmatmul.bf16.gmra.mxu0 %v2566
  %v2963 = vpop.f32.mrf.mxu0
  %v2964 = vadd.f32 %v2951, %v2963
  %v2965 = vpop.f32.mrf.mxu0
  %2966 = vdwg.mxu0
  %2967 = vmatpush.bf16.msra.mxu0 %v2792
  %2968 = vmatpush.bf16.msra.mxu0 %v2788
  %2969 = vmatpush.bf16.msra.mxu0 %v2784
  %2970 = vmatpush.bf16.msra.mxu0 %v2780
  %2971 = vmatpush.bf16.msra.mxu0 %v2776
  %2972 = vmatpush.bf16.msra.mxu0 %v2772
  %2973 = vmatpush.bf16.msra.mxu0 %v2768
  %2974 = vmatpush.bf16.msra.mxu0 %v2764
  %2975 = vmatmul.bf16.gmra.mxu0 %v2565
  %v2976 = vpop.f32.mrf.mxu0
  %v2977 = vadd.f32 %v2557, %v2976
  %v2978 = vpop.f32.mrf.mxu0
  %2979 = vdwg.mxu0
  %2980 = vmatpush.bf16.msra.mxu0 %v2824
  %2981 = vmatpush.bf16.msra.mxu0 %v2820
  %2982 = vmatpush.bf16.msra.mxu0 %v2816
  %2983 = vmatpush.bf16.msra.mxu0 %v2812
  %2984 = vmatpush.bf16.msra.mxu0 %v2808
  %2985 = vmatpush.bf16.msra.mxu0 %v2804
  %2986 = vmatpush.bf16.msra.mxu0 %v2800
  %2987 = vmatpush.bf16.msra.mxu0 %v2796
  %2988 = vmatmul.bf16.gmra.mxu0 %v2566
  %v2989 = vpop.f32.mrf.mxu0
  %v2990 = vadd.f32 %v2977, %v2989
  %v2991 = vpop.f32.mrf.mxu0
  %2992 = vdwg.mxu0
  %v2993 = vxor.u32 %v2912, 2147483648
  %v2994 = vmul.f32 %v2993, 1.442695
  %v2995 = vpow.pop %v2994
  %v2996 = vadd.f32 %v2995, 1.0
  %v2997 = vrcp.pop %v2996
  %v2998 = vmul.f32 %v2996, %v2997
  %v2999 = vsub.f32 1.0, %v2998
  %v3000 = vmul.f32 %v2997, %v2999
  %v3001 = vadd.f32 %v2997, %v3000
  %vm3002 = vweird.f32 %v2996
  %vm3003 = vweird.f32 %v2997
  %vm3004 = vmor %vm3002, %vm3003
  %v3005 = vsel %vm3004, %v2997, %v3001
  %v3006 = vand.u32 2147483647, %v2996
  %vm3007 = vcmp.eq.f32.partialorder %v3006, 8.507059e+37
  %v3008 = vand.u32 %v2996, 2147483648
  %v3009 = vor.u32 1.1754944e-38, %v3008
  %v3010 = vsel %vm3007, %v3009, %v3005
  %v3011 = vmul.f32 1.0, %v3010
  %v3012 = vxor.u32 %v2938, 2147483648
  %v3013 = vmul.f32 %v3012, 1.442695
  %v3014 = vpow.pop %v3013
  %v3015 = vadd.f32 %v3014, 1.0
  %v3016 = vrcp.pop %v3015
  %v3017 = vmul.f32 %v3015, %v3016
  %v3018 = vsub.f32 1.0, %v3017
  %v3019 = vmul.f32 %v3016, %v3018
  %v3020 = vadd.f32 %v3016, %v3019
  %vm3021 = vweird.f32 %v3015
  %vm3022 = vweird.f32 %v3016
  %vm3023 = vmor %vm3021, %vm3022
  %v3024 = vsel %vm3023, %v3016, %v3020
  %v3025 = vand.u32 2147483647, %v3015
  %vm3026 = vcmp.eq.f32.partialorder %v3025, 8.507059e+37
  %v3027 = vand.u32 %v3015, 2147483648
  %v3028 = vor.u32 1.1754944e-38, %v3027
  %v3029 = vsel %vm3026, %v3028, %v3024
  %v3030 = vmul.f32 1.0, %v3029
  %v3031 = vtanh.pop %v2964
  %v3032 = vxor.u32 %v2990, 2147483648
  %v3033 = vmul.f32 %v3032, 1.442695
  %v3034 = vpow.pop %v3033
  %v3035 = vadd.f32 %v3034, 1.0
  %v3036 = vrcp.pop %v3035
  %v3037 = vmul.f32 %v3035, %v3036
  %v3038 = vsub.f32 1.0, %v3037
  %v3039 = vmul.f32 %v3036, %v3038
  %v3040 = vadd.f32 %v3036, %v3039
  %vm3041 = vweird.f32 %v3035
  %vm3042 = vweird.f32 %v3036
  %vm3043 = vmor %vm3041, %vm3042
  %v3044 = vsel %vm3043, %v3036, %v3040
  %v3045 = vand.u32 2147483647, %v3035
  %vm3046 = vcmp.eq.f32.partialorder %v3045, 8.507059e+37
  %v3047 = vand.u32 %v3035, 2147483648
  %v3048 = vor.u32 1.1754944e-38, %v3047
  %v3049 = vsel %vm3046, %v3048, %v3044
  %v3050 = vmul.f32 1.0, %v3049
  %v3051 = vmul.f32 %v3030, %v2151
  %v3052 = vmul.f32 %v3011, %v3031
  %v3053 = vadd.f32 %v3051, %v3052
  %v3054 = vtanh.pop %v3053
  %v3055 = vmul.f32 %v3050, %v3054
  %v3056 = vsel %vm2480, %v3055, %v2150
  %v3057 = vsel %vm2480, %v3053, %v2151
  %s3058 = sadd.s32 %s339, 3
  %v3059 = vld [vmem:[%s1] sm:$0xff]
  %v3060 = vstv %s3058
  %vm3061 = vcmp.lt.s32.totalorder %v3060, %v3059
  %s3062 = smul.u32 3, 4
  %s3063 = smul.addr %s3062, 4
  %s3064 = scalar_lea.vmem [#allocation2], %s3063
  %v3065 = vld [vmem:[%s3064] sm:$0xff]
  %v3066 = vld [vmem:[%s3064 + $0x8] sm:$0xff]
  %v3067 = vunpack.c.l.bf16 %v3065
  %v3068 = vunpack.c.h.bf16 %v3065
  %v3069 = vunpack.c.l.bf16 %v3066
  %v3070 = vunpack.c.h.bf16 %v3066
  %v3071 = vld [vmem:[%s3] sm:$0xff]
  %v3072 = vld [vmem:[%s3 + $0x8] sm:$0xff]
  %v3073 = vld [vmem:[%s3 + $0x10] sm:$0xff]
  %v3074 = vld [vmem:[%s3 + $0x18] sm:$0xff]
  %v3075 = vld [vmem:[%s3 + $0x20] sm:$0xff]
  %v3076 = vld [vmem:[%s3 + $0x28] sm:$0xff]
  %v3077 = vld [vmem:[%s3 + $0x30] sm:$0xff]
  %v3078 = vld [vmem:[%s3 + $0x38] sm:$0xff]
  %v3079 = vld [vmem:[%s3 + $0x40] sm:$0xff]
  %v3080 = vld [vmem:[%s3 + $0x48] sm:$0xff]
  %v3081 = vld [vmem:[%s3 + $0x50] sm:$0xff]
  %v3082 = vld [vmem:[%s3 + $0x58] sm:$0xff]
  %v3083 = vld [vmem:[%s3 + $0x60] sm:$0xff]
  %v3084 = vld [vmem:[%s3 + $0x68] sm:$0xff]
  %v3085 = vld [vmem:[%s3 + $0x70] sm:$0xff]
  %v3086 = vld [vmem:[%s3 + $0x78] sm:$0xff]
  %v3087 = vld [vmem:[%s3 + $0x80] sm:$0xff]
  %v3088 = vld [vmem:[%s3 + $0x88] sm:$0xff]
  %v3089 = vld [vmem:[%s3 + $0x90] sm:$0xff]
  %v3090 = vld [vmem:[%s3 + $0x98] sm:$0xff]
  %v3091 = vld [vmem:[%s3 + $0xa0] sm:$0xff]
  %v3092 = vld [vmem:[%s3 + $0xa8] sm:$0xff]
  %v3093 = vld [vmem:[%s3 + $0xb0] sm:$0xff]
  %v3094 = vld [vmem:[%s3 + $0xb8] sm:$0xff]
  %v3095 = vld [vmem:[%s3 + $0xc0] sm:$0xff]
  %v3096 = vld [vmem:[%s3 + $0xc8] sm:$0xff]
  %v3097 = vld [vmem:[%s3 + $0xd0] sm:$0xff]
  %v3098 = vld [vmem:[%s3 + $0xd8] sm:$0xff]
  %v3099 = vld [vmem:[%s3 + $0xe0] sm:$0xff]
  %v3100 = vld [vmem:[%s3 + $0xe8] sm:$0xff]
  %v3101 = vld [vmem:[%s3 + $0xf0] sm:$0xff]
  %v3102 = vld [vmem:[%s3 + $0xf8] sm:$0xff]
  %v3135 = vunpack.c.l.b16 %v3071
  %v3136 = vunpack.c.h.b16 %v3071
  %v3137 = vunpack.c.l.b16 %v3072
  %v3138 = vunpack.c.h.b16 %v3072
  %v3139 = vunpack.c.l.b16 %v3073
  %v3140 = vunpack.c.h.b16 %v3073
  %v3141 = vunpack.c.l.b16 %v3074
  %v3142 = vunpack.c.h.b16 %v3074
  %v3143 = vunpack.c.l.b16 %v3075
  %v3144 = vunpack.c.h.b16 %v3075
  %v3145 = vunpack.c.l.b16 %v3076
  %v3146 = vunpack.c.h.b16 %v3076
  %v3147 = vunpack.c.l.b16 %v3077
  %v3148 = vunpack.c.h.b16 %v3077
  %v3149 = vunpack.c.l.b16 %v3078
  %v3150 = vunpack.c.h.b16 %v3078
  %v3151 = vunpack.c.l.b16 %v3079
  %v3152 = vunpack.c.h.b16 %v3079
  %v3153 = vunpack.c.l.b16 %v3080
  %v3154 = vunpack.c.h.b16 %v3080
  %v3155 = vunpack.c.l.b16 %v3081
  %v3156 = vunpack.c.h.b16 %v3081
  %v3157 = vunpack.c.l.b16 %v3082
  %v3158 = vunpack.c.h.b16 %v3082
  %v3159 = vunpack.c.l.b16 %v3083
  %v3160 = vunpack.c.h.b16 %v3083
  %v3161 = vunpack.c.l.b16 %v3084
  %v3162 = vunpack.c.h.b16 %v3084
  %v3163 = vunpack.c.l.b16 %v3085
  %v3164 = vunpack.c.h.b16 %v3085
  %v3165 = vunpack.c.l.b16 %v3086
  %v3166 = vunpack.c.h.b16 %v3086
  %v3167 = vunpack.c.l.b16 %v3087
  %v3168 = vunpack.c.h.b16 %v3087
  %v3169 = vunpack.c.l.b16 %v3088
  %v3170 = vunpack.c.h.b16 %v3088
  %v3171 = vunpack.c.l.b16 %v3089
  %v3172 = vunpack.c.h.b16 %v3089
  %v3173 = vunpack.c.l.b16 %v3090
  %v3174 = vunpack.c.h.b16 %v3090
  %v3175 = vunpack.c.l.b16 %v3091
  %v3176 = vunpack.c.h.b16 %v3091
  %v3177 = vunpack.c.l.b16 %v3092
  %v3178 = vunpack.c.h.b16 %v3092
  %v3179 = vunpack.c.l.b16 %v3093
  %v3180 = vunpack.c.h.b16 %v3093
  %v3181 = vunpack.c.l.b16 %v3094
  %v3182 = vunpack.c.h.b16 %v3094
  %v3183 = vunpack.c.l.b16 %v3095
  %v3184 = vunpack.c.h.b16 %v3095
  %v3185 = vunpack.c.l.b16 %v3096
  %v3186 = vunpack.c.h.b16 %v3096
  %v3187 = vunpack.c.l.b16 %v3097
  %v3188 = vunpack.c.h.b16 %v3097
  %v3189 = vunpack.c.l.b16 %v3098
  %v3190 = vunpack.c.h.b16 %v3098
  %v3191 = vunpack.c.l.b16 %v3099
  %v3192 = vunpack.c.h.b16 %v3099
  %v3193 = vunpack.c.l.b16 %v3100
  %v3194 = vunpack.c.h.b16 %v3100
  %v3195 = vunpack.c.l.b16 %v3101
  %v3196 = vunpack.c.h.b16 %v3101
  %v3197 = vunpack.c.l.b16 %v3102
  %v3198 = vunpack.c.h.b16 %v3102
  %v3199 = vpack.c.b16 %v3139, %v3135
  %v3200 = vpack.c.b16 %v3140, %v3136
  %v3201 = vpack.c.b16 %v3141, %v3137
  %v3202 = vpack.c.b16 %v3142, %v3138
  %v3203 = vpack.c.b16 %v3147, %v3143
  %v3204 = vpack.c.b16 %v3148, %v3144
  %v3205 = vpack.c.b16 %v3149, %v3145
  %v3206 = vpack.c.b16 %v3150, %v3146
  %v3207 = vpack.c.b16 %v3155, %v3151
  %v3208 = vpack.c.b16 %v3156, %v3152
  %v3209 = vpack.c.b16 %v3157, %v3153
  %v3210 = vpack.c.b16 %v3158, %v3154
  %v3211 = vpack.c.b16 %v3163, %v3159
  %v3212 = vpack.c.b16 %v3164, %v3160
  %v3213 = vpack.c.b16 %v3165, %v3161
  %v3214 = vpack.c.b16 %v3166, %v3162
  %v3215 = vpack.c.b16 %v3171, %v3167
  %v3216 = vpack.c.b16 %v3172, %v3168
  %v3217 = vpack.c.b16 %v3173, %v3169
  %v3218 = vpack.c.b16 %v3174, %v3170
  %v3219 = vpack.c.b16 %v3179, %v3175
  %v3220 = vpack.c.b16 %v3180, %v3176
  %v3221 = vpack.c.b16 %v3181, %v3177
  %v3222 = vpack.c.b16 %v3182, %v3178
  %v3223 = vpack.c.b16 %v3187, %v3183
  %v3224 = vpack.c.b16 %v3188, %v3184
  %v3225 = vpack.c.b16 %v3189, %v3185
  %v3226 = vpack.c.b16 %v3190, %v3186
  %v3227 = vpack.c.b16 %v3195, %v3191
  %v3228 = vpack.c.b16 %v3196, %v3192
  %v3229 = vpack.c.b16 %v3197, %v3193
  %v3230 = vpack.c.b16 %v3198, %v3194
  %3263 = vmatpush.bf16.msra.mxu0 %v3227
  %3264 = vmatpush.bf16.msra.mxu0 %v3223
  %3265 = vmatpush.bf16.msra.mxu0 %v3219
  %3266 = vmatpush.bf16.msra.mxu0 %v3215
  %3267 = vmatpush.bf16.msra.mxu0 %v3211
  %3268 = vmatpush.bf16.msra.mxu0 %v3207
  %3269 = vmatpush.bf16.msra.mxu0 %v3203
  %3270 = vmatpush.bf16.msra.mxu0 %v3199
  %3271 = vmatmul.bf16.gmra.mxu0 %v2483
  %v3272 = vpop.f32.mrf.mxu0
  %v3273 = vadd.f32 0.0, %v3272
  %v3274 = vpop.f32.mrf.mxu0
  %3275 = vdwg.mxu0
  %3276 = vmatpush.bf16.msra.mxu0 %v3228
  %3277 = vmatpush.bf16.msra.mxu0 %v3224
  %3278 = vmatpush.bf16.msra.mxu0 %v3220
  %3279 = vmatpush.bf16.msra.mxu0 %v3216
  %3280 = vmatpush.bf16.msra.mxu0 %v3212
  %3281 = vmatpush.bf16.msra.mxu0 %v3208
  %3282 = vmatpush.bf16.msra.mxu0 %v3204
  %3283 = vmatpush.bf16.msra.mxu0 %v3200
  %3284 = vmatmul.bf16.gmra.mxu0 %v2483
  %v3285 = vpop.f32.mrf.mxu0
  %v3286 = vadd.f32 0.0, %v3285
  %v3287 = vpop.f32.mrf.mxu0
  %3288 = vdwg.mxu0
  %3289 = vmatpush.bf16.msra.mxu0 %v3229
  %3290 = vmatpush.bf16.msra.mxu0 %v3225
  %3291 = vmatpush.bf16.msra.mxu0 %v3221
  %3292 = vmatpush.bf16.msra.mxu0 %v3217
  %3293 = vmatpush.bf16.msra.mxu0 %v3213
  %3294 = vmatpush.bf16.msra.mxu0 %v3209
  %3295 = vmatpush.bf16.msra.mxu0 %v3205
  %3296 = vmatpush.bf16.msra.mxu0 %v3201
  %3297 = vmatmul.bf16.gmra.mxu0 %v2483
  %v3298 = vpop.f32.mrf.mxu0
  %v3299 = vadd.f32 0.0, %v3298
  %v3300 = vpop.f32.mrf.mxu0
  %3301 = vdwg.mxu0
  %3302 = vmatpush.bf16.msra.mxu0 %v3230
  %3303 = vmatpush.bf16.msra.mxu0 %v3226
  %3304 = vmatpush.bf16.msra.mxu0 %v3222
  %3305 = vmatpush.bf16.msra.mxu0 %v3218
  %3306 = vmatpush.bf16.msra.mxu0 %v3214
  %3307 = vmatpush.bf16.msra.mxu0 %v3210
  %3308 = vmatpush.bf16.msra.mxu0 %v3206
  %3309 = vmatpush.bf16.msra.mxu0 %v3202
  %3310 = vmatmul.bf16.gmra.mxu0 %v2483
  %v3311 = vpop.f32.mrf.mxu0
  %v3312 = vadd.f32 0.0, %v3311
  %v3313 = vpop.f32.mrf.mxu0
  %3314 = vdwg.mxu0
  %v3315 = vadd.f32 %v3067, %v3273
  %v3316 = vadd.f32 %v3068, %v3286
  %v3317 = vadd.f32 %v3069, %v3299
  %v3318 = vadd.f32 %v3070, %v3312
  %v3319 = vxor.u32 %v3315, 2147483648
  %v3320 = vmul.f32 %v3319, 1.442695
  %v3321 = vpow.pop %v3320
  %v3322 = vadd.f32 %v3321, 1.0
  %v3323 = vrcp.pop %v3322
  %v3324 = vmul.f32 %v3322, %v3323
  %v3325 = vsub.f32 1.0, %v3324
  %v3326 = vmul.f32 %v3323, %v3325
  %v3327 = vadd.f32 %v3323, %v3326
  %vm3328 = vweird.f32 %v3322
  %vm3329 = vweird.f32 %v3323
  %vm3330 = vmor %vm3328, %vm3329
  %v3331 = vsel %vm3330, %v3323, %v3327
  %v3332 = vand.u32 2147483647, %v3322
  %vm3333 = vcmp.eq.f32.partialorder %v3332, 8.507059e+37
  %v3334 = vand.u32 %v3322, 2147483648
  %v3335 = vor.u32 1.1754944e-38, %v3334
  %v3336 = vsel %vm3333, %v3335, %v3331
  %v3337 = vmul.f32 1.0, %v3336
  %v3338 = vxor.u32 %v3316, 2147483648
  %v3339 = vmul.f32 %v3338, 1.442695
  %v3340 = vpow.pop %v3339
  %v3341 = vadd.f32 %v3340, 1.0
  %v3342 = vrcp.pop %v3341
  %v3343 = vmul.f32 %v3341, %v3342
  %v3344 = vsub.f32 1.0, %v3343
  %v3345 = vmul.f32 %v3342, %v3344
  %v3346 = vadd.f32 %v3342, %v3345
  %vm3347 = vweird.f32 %v3341
  %vm3348 = vweird.f32 %v3342
  %vm3349 = vmor %vm3347, %vm3348
  %v3350 = vsel %vm3349, %v3342, %v3346
  %v3351 = vand.u32 2147483647, %v3341
  %vm3352 = vcmp.eq.f32.partialorder %v3351, 8.507059e+37
  %v3353 = vand.u32 %v3341, 2147483648
  %v3354 = vor.u32 1.1754944e-38, %v3353
  %v3355 = vsel %vm3352, %v3354, %v3350
  %v3356 = vmul.f32 1.0, %v3355
  %v3357 = vtanh.pop %v3317
  %v3358 = vxor.u32 %v3318, 2147483648
  %v3359 = vmul.f32 %v3358, 1.442695
  %v3360 = vpow.pop %v3359
  %v3361 = vadd.f32 %v3360, 1.0
  %v3362 = vrcp.pop %v3361
  %v3363 = vmul.f32 %v3361, %v3362
  %v3364 = vsub.f32 1.0, %v3363
  %v3365 = vmul.f32 %v3362, %v3364
  %v3366 = vadd.f32 %v3362, %v3365
  %vm3367 = vweird.f32 %v3361
  %vm3368 = vweird.f32 %v3362
  %vm3369 = vmor %vm3367, %vm3368
  %v3370 = vsel %vm3369, %v3362, %v3366
  %v3371 = vand.u32 2147483647, %v3361
  %vm3372 = vcmp.eq.f32.partialorder %v3371, 8.507059e+37
  %v3373 = vand.u32 %v3361, 2147483648
  %v3374 = vor.u32 1.1754944e-38, %v3373
  %v3375 = vsel %vm3372, %v3374, %v3370
  %v3376 = vmul.f32 1.0, %v3375
  %v3377 = vmul.f32 %v3356, %v2482
  %v3378 = vmul.f32 %v3337, %v3357
  %v3379 = vadd.f32 %v3377, %v3378
  %v3380 = vtanh.pop %v3379
  %v3381 = vmul.f32 %v3376, %v3380
  %v3382 = vsel %vm3061, 1, 0
  %3383 = vset.pattern.permute.xlu0 0
  %3384 = vperm.xlu0 %3383, %v3382
  %v3385 = vpop.permute.xlu0 %3384
  %vm3386 = vcmp.eq.s32.totalorder %v3385, 1
  %v3387 = vsel %vm3386, %v3381, %v2481
  %v3388 = vsel %vm3386, %v3379, %v2482
  %v3389 = vpack.c.bf16 %v3387, %v3387
  %3390 = vst [vmem:[#allocation3] sm:$0xf] %v3389
  %v3391 = vpack.c.bf16 %v3056, %v3056
  %3392 = vst [vmem:[#allocation3 + $0x4] sm:$0xf] %v3391
  %v3393 = vld [vmem:[#allocation3] sm:$0xff]
  %v3394 = vld [vmem:[%s5] sm:$0xff]
  %v3395 = vld [vmem:[%s5 + $0x8] sm:$0xff]
  %v3396 = vld [vmem:[%s5 + $0x10] sm:$0xff]
  %v3397 = vld [vmem:[%s5 + $0x18] sm:$0xff]
  %v3398 = vld [vmem:[%s5 + $0x20] sm:$0xff]
  %v3399 = vld [vmem:[%s5 + $0x28] sm:$0xff]
  %v3400 = vld [vmem:[%s5 + $0x30] sm:$0xff]
  %v3401 = vld [vmem:[%s5 + $0x38] sm:$0xff]
  %v3402 = vld [vmem:[%s5 + $0x40] sm:$0xff]
  %v3403 = vld [vmem:[%s5 + $0x48] sm:$0xff]
  %v3404 = vld [vmem:[%s5 + $0x50] sm:$0xff]
  %v3405 = vld [vmem:[%s5 + $0x58] sm:$0xff]
  %v3406 = vld [vmem:[%s5 + $0x60] sm:$0xff]
  %v3407 = vld [vmem:[%s5 + $0x68] sm:$0xff]
  %v3408 = vld [vmem:[%s5 + $0x70] sm:$0xff]
  %v3409 = vld [vmem:[%s5 + $0x78] sm:$0xff]
  %v3410 = vld [vmem:[%s5 + $0x80] sm:$0xff]
  %v3411 = vld [vmem:[%s5 + $0x88] sm:$0xff]
  %v3412 = vld [vmem:[%s5 + $0x90] sm:$0xff]
  %v3413 = vld [vmem:[%s5 + $0x98] sm:$0xff]
  %v3414 = vld [vmem:[%s5 + $0xa0] sm:$0xff]
  %v3415 = vld [vmem:[%s5 + $0xa8] sm:$0xff]
  %v3416 = vld [vmem:[%s5 + $0xb0] sm:$0xff]
  %v3417 = vld [vmem:[%s5 + $0xb8] sm:$0xff]
  %v3418 = vld [vmem:[%s5 + $0xc0] sm:$0xff]
  %v3419 = vld [vmem:[%s5 + $0xc8] sm:$0xff]
  %v3420 = vld [vmem:[%s5 + $0xd0] sm:$0xff]
  %v3421 = vld [vmem:[%s5 + $0xd8] sm:$0xff]
  %v3422 = vld [vmem:[%s5 + $0xe0] sm:$0xff]
  %v3423 = vld [vmem:[%s5 + $0xe8] sm:$0xff]
  %v3424 = vld [vmem:[%s5 + $0xf0] sm:$0xff]
  %v3425 = vld [vmem:[%s5 + $0xf8] sm:$0xff]
  %v3426 = vld [vmem:[%s5 + $0x100] sm:$0xff]
  %v3427 = vld [vmem:[%s5 + $0x108] sm:$0xff]
  %v3428 = vld [vmem:[%s5 + $0x110] sm:$0xff]
  %v3429 = vld [vmem:[%s5 + $0x118] sm:$0xff]
  %v3430 = vld [vmem:[%s5 + $0x120] sm:$0xff]
  %v3431 = vld [vmem:[%s5 + $0x128] sm:$0xff]
  %v3432 = vld [vmem:[%s5 + $0x130] sm:$0xff]
  %v3433 = vld [vmem:[%s5 + $0x138] sm:$0xff]
  %v3434 = vld [vmem:[%s5 + $0x140] sm:$0xff]
  %v3435 = vld [vmem:[%s5 + $0x148] sm:$0xff]
  %v3436 = vld [vmem:[%s5 + $0x150] sm:$0xff]
  %v3437 = vld [vmem:[%s5 + $0x158] sm:$0xff]
  %v3438 = vld [vmem:[%s5 + $0x160] sm:$0xff]
  %v3439 = vld [vmem:[%s5 + $0x168] sm:$0xff]
  %v3440 = vld [vmem:[%s5 + $0x170] sm:$0xff]
  %v3441 = vld [vmem:[%s5 + $0x178] sm:$0xff]
  %v3442 = vld [vmem:[%s5 + $0x180] sm:$0xff]
  %v3443 = vld [vmem:[%s5 + $0x188] sm:$0xff]
  %v3444 = vld [vmem:[%s5 + $0x190] sm:$0xff]
  %v3445 = vld [vmem:[%s5 + $0x198] sm:$0xff]
  %v3446 = vld [vmem:[%s5 + $0x1a0] sm:$0xff]
  %v3447 = vld [vmem:[%s5 + $0x1a8] sm:$0xff]
  %v3448 = vld [vmem:[%s5 + $0x1b0] sm:$0xff]
  %v3449 = vld [vmem:[%s5 + $0x1b8] sm:$0xff]
  %v3450 = vld [vmem:[%s5 + $0x1c0] sm:$0xff]
  %v3451 = vld [vmem:[%s5 + $0x1c8] sm:$0xff]
  %v3452 = vld [vmem:[%s5 + $0x1d0] sm:$0xff]
  %v3453 = vld [vmem:[%s5 + $0x1d8] sm:$0xff]
  %v3454 = vld [vmem:[%s5 + $0x1e0] sm:$0xff]
  %v3455 = vld [vmem:[%s5 + $0x1e8] sm:$0xff]
  %v3456 = vld [vmem:[%s5 + $0x1f0] sm:$0xff]
  %v3457 = vld [vmem:[%s5 + $0x1f8] sm:$0xff]
  %v3458 = vld [vmem:[%s6] sm:$0xf]
  %v3460 = vperm.slane %v3458, 0
  %v3461 = vperm.slane %v3458, 1
  %v3462 = vperm.slane %v3458, 2
  %v3463 = vperm.slane %v3458, 3
  %v3469 = vunpack.c.l.b16 %v3393
  %v3470 = vunpack.c.h.b16 %v3393
  %v3471 = vpack.c.b16 %v3469, %v3469
  %v3472 = vpack.c.b16 %v3470, %v3470
  %v3539 = vunpack.c.l.b16 %v3394
  %v3540 = vunpack.c.h.b16 %v3394
  %v3541 = vunpack.c.l.b16 %v3395
  %v3542 = vunpack.c.h.b16 %v3395
  %v3543 = vunpack.c.l.b16 %v3396
  %v3544 = vunpack.c.h.b16 %v3396
  %v3545 = vunpack.c.l.b16 %v3397
  %v3546 = vunpack.c.h.b16 %v3397
  %v3547 = vunpack.c.l.b16 %v3398
  %v3548 = vunpack.c.h.b16 %v3398
  %v3549 = vunpack.c.l.b16 %v3399
  %v3550 = vunpack.c.h.b16 %v3399
  %v3551 = vunpack.c.l.b16 %v3400
  %v3552 = vunpack.c.h.b16 %v3400
  %v3553 = vunpack.c.l.b16 %v3401
  %v3554 = vunpack.c.h.b16 %v3401
  %v3555 = vunpack.c.l.b16 %v3402
  %v3556 = vunpack.c.h.b16 %v3402
  %v3557 = vunpack.c.l.b16 %v3403
  %v3558 = vunpack.c.h.b16 %v3403
  %v3559 = vunpack.c.l.b16 %v3404
  %v3560 = vunpack.c.h.b16 %v3404
  %v3561 = vunpack.c.l.b16 %v3405
  %v3562 = vunpack.c.h.b16 %v3405
  %v3563 = vunpack.c.l.b16 %v3406
  %v3564 = vunpack.c.h.b16 %v3406
  %v3565 = vunpack.c.l.b16 %v3407
  %v3566 = vunpack.c.h.b16 %v3407
  %v3567 = vunpack.c.l.b16 %v3408
  %v3568 = vunpack.c.h.b16 %v3408
  %v3569 = vunpack.c.l.b16 %v3409
  %v3570 = vunpack.c.h.b16 %v3409
  %v3571 = vunpack.c.l.b16 %v3410
  %v3572 = vunpack.c.h.b16 %v3410
  %v3573 = vunpack.c.l.b16 %v3411
  %v3574 = vunpack.c.h.b16 %v3411
  %v3575 = vunpack.c.l.b16 %v3412
  %v3576 = vunpack.c.h.b16 %v3412
  %v3577 = vunpack.c.l.b16 %v3413
  %v3578 = vunpack.c.h.b16 %v3413
  %v3579 = vunpack.c.l.b16 %v3414
  %v3580 = vunpack.c.h.b16 %v3414
  %v3581 = vunpack.c.l.b16 %v3415
  %v3582 = vunpack.c.h.b16 %v3415
  %v3583 = vunpack.c.l.b16 %v3416
  %v3584 = vunpack.c.h.b16 %v3416
  %v3585 = vunpack.c.l.b16 %v3417
  %v3586 = vunpack.c.h.b16 %v3417
  %v3587 = vunpack.c.l.b16 %v3418
  %v3588 = vunpack.c.h.b16 %v3418
  %v3589 = vunpack.c.l.b16 %v3419
  %v3590 = vunpack.c.h.b16 %v3419
  %v3591 = vunpack.c.l.b16 %v3420
  %v3592 = vunpack.c.h.b16 %v3420
  %v3593 = vunpack.c.l.b16 %v3421
  %v3594 = vunpack.c.h.b16 %v3421
  %v3595 = vunpack.c.l.b16 %v3422
  %v3596 = vunpack.c.h.b16 %v3422
  %v3597 = vunpack.c.l.b16 %v3423
  %v3598 = vunpack.c.h.b16 %v3423
  %v3599 = vunpack.c.l.b16 %v3424
  %v3600 = vunpack.c.h.b16 %v3424
  %v3601 = vunpack.c.l.b16 %v3425
  %v3602 = vunpack.c.h.b16 %v3425
  %v3603 = vunpack.c.l.b16 %v3426
  %v3604 = vunpack.c.h.b16 %v3426
  %v3605 = vunpack.c.l.b16 %v3427
  %v3606 = vunpack.c.h.b16 %v3427
  %v3607 = vunpack.c.l.b16 %v3428
  %v3608 = vunpack.c.h.b16 %v3428
  %v3609 = vunpack.c.l.b16 %v3429
  %v3610 = vunpack.c.h.b16 %v3429
  %v3611 = vunpack.c.l.b16 %v3430
  %v3612 = vunpack.c.h.b16 %v3430
  %v3613 = vunpack.c.l.b16 %v3431
  %v3614 = vunpack.c.h.b16 %v3431
  %v3615 = vunpack.c.l.b16 %v3432
  %v3616 = vunpack.c.h.b16 %v3432
  %v3617 = vunpack.c.l.b16 %v3433
  %v3618 = vunpack.c.h.b16 %v3433
  %v3619 = vunpack.c.l.b16 %v3434
  %v3620 = vunpack.c.h.b16 %v3434
  %v3621 = vunpack.c.l.b16 %v3435
  %v3622 = vunpack.c.h.b16 %v3435
  %v3623 = vunpack.c.l.b16 %v3436
  %v3624 = vunpack.c.h.b16 %v3436
  %v3625 = vunpack.c.l.b16 %v3437
  %v3626 = vunpack.c.h.b16 %v3437
  %v3627 = vunpack.c.l.b16 %v3438
  %v3628 = vunpack.c.h.b16 %v3438
  %v3629 = vunpack.c.l.b16 %v3439
  %v3630 = vunpack.c.h.b16 %v3439
  %v3631 = vunpack.c.l.b16 %v3440
  %v3632 = vunpack.c.h.b16 %v3440
  %v3633 = vunpack.c.l.b16 %v3441
  %v3634 = vunpack.c.h.b16 %v3441
  %v3635 = vunpack.c.l.b16 %v3442
  %v3636 = vunpack.c.h.b16 %v3442
  %v3637 = vunpack.c.l.b16 %v3443
  %v3638 = vunpack.c.h.b16 %v3443
  %v3639 = vunpack.c.l.b16 %v3444
  %v3640 = vunpack.c.h.b16 %v3444
  %v3641 = vunpack.c.l.b16 %v3445
  %v3642 = vunpack.c.h.b16 %v3445
  %v3643 = vunpack.c.l.b16 %v3446
  %v3644 = vunpack.c.h.b16 %v3446
  %v3645 = vunpack.c.l.b16 %v3447
  %v3646 = vunpack.c.h.b16 %v3447
  %v3647 = vunpack.c.l.b16 %v3448
  %v3648 = vunpack.c.h.b16 %v3448
  %v3649 = vunpack.c.l.b16 %v3449
  %v3650 = vunpack.c.h.b16 %v3449
  %v3651 = vunpack.c.l.b16 %v3450
  %v3652 = vunpack.c.h.b16 %v3450
  %v3653 = vunpack.c.l.b16 %v3451
  %v3654 = vunpack.c.h.b16 %v3451
  %v3655 = vunpack.c.l.b16 %v3452
  %v3656 = vunpack.c.h.b16 %v3452
  %v3657 = vunpack.c.l.b16 %v3453
  %v3658 = vunpack.c.h.b16 %v3453
  %v3659 = vunpack.c.l.b16 %v3454
  %v3660 = vunpack.c.h.b16 %v3454
  %v3661 = vunpack.c.l.b16 %v3455
  %v3662 = vunpack.c.h.b16 %v3455
  %v3663 = vunpack.c.l.b16 %v3456
  %v3664 = vunpack.c.h.b16 %v3456
  %v3665 = vunpack.c.l.b16 %v3457
  %v3666 = vunpack.c.h.b16 %v3457
  %v3667 = vpack.c.b16 %v3543, %v3539
  %v3668 = vpack.c.b16 %v3544, %v3540
  %v3669 = vpack.c.b16 %v3545, %v3541
  %v3670 = vpack.c.b16 %v3546, %v3542
  %v3671 = vpack.c.b16 %v3551, %v3547
  %v3672 = vpack.c.b16 %v3552, %v3548
  %v3673 = vpack.c.b16 %v3553, %v3549
  %v3674 = vpack.c.b16 %v3554, %v3550
  %v3675 = vpack.c.b16 %v3559, %v3555
  %v3676 = vpack.c.b16 %v3560, %v3556
  %v3677 = vpack.c.b16 %v3561, %v3557
  %v3678 = vpack.c.b16 %v3562, %v3558
  %v3679 = vpack.c.b16 %v3567, %v3563
  %v3680 = vpack.c.b16 %v3568, %v3564
  %v3681 = vpack.c.b16 %v3569, %v3565
  %v3682 = vpack.c.b16 %v3570, %v3566
  %v3683 = vpack.c.b16 %v3575, %v3571
  %v3684 = vpack.c.b16 %v3576, %v3572
  %v3685 = vpack.c.b16 %v3577, %v3573
  %v3686 = vpack.c.b16 %v3578, %v3574
  %v3687 = vpack.c.b16 %v3583, %v3579
  %v3688 = vpack.c.b16 %v3584, %v3580
  %v3689 = vpack.c.b16 %v3585, %v3581
  %v3690 = vpack.c.b16 %v3586, %v3582
  %v3691 = vpack.c.b16 %v3591, %v3587
  %v3692 = vpack.c.b16 %v3592, %v3588
  %v3693 = vpack.c.b16 %v3593, %v3589
  %v3694 = vpack.c.b16 %v3594, %v3590
  %v3695 = vpack.c.b16 %v3599, %v3595
  %v3696 = vpack.c.b16 %v3600, %v3596
  %v3697 = vpack.c.b16 %v3601, %v3597
  %v3698 = vpack.c.b16 %v3602, %v3598
  %v3699 = vpack.c.b16 %v3607, %v3603
  %v3700 = vpack.c.b16 %v3608, %v3604
  %v3701 = vpack.c.b16 %v3609, %v3605
  %v3702 = vpack.c.b16 %v3610, %v3606
  %v3703 = vpack.c.b16 %v3615, %v3611
  %v3704 = vpack.c.b16 %v3616, %v3612
  %v3705 = vpack.c.b16 %v3617, %v3613
  %v3706 = vpack.c.b16 %v3618, %v3614
  %v3707 = vpack.c.b16 %v3623, %v3619
  %v3708 = vpack.c.b16 %v3624, %v3620
  %v3709 = vpack.c.b16 %v3625, %v3621
  %v3710 = vpack.c.b16 %v3626, %v3622
  %v3711 = vpack.c.b16 %v3631, %v3627
  %v3712 = vpack.c.b16 %v3632, %v3628
  %v3713 = vpack.c.b16 %v3633, %v3629
  %v3714 = vpack.c.b16 %v3634, %v3630
  %v3715 = vpack.c.b16 %v3639, %v3635
  %v3716 = vpack.c.b16 %v3640, %v3636
  %v3717 = vpack.c.b16 %v3641, %v3637
  %v3718 = vpack.c.b16 %v3642, %v3638
  %v3719 = vpack.c.b16 %v3647, %v3643
  %v3720 = vpack.c.b16 %v3648, %v3644
  %v3721 = vpack.c.b16 %v3649, %v3645
  %v3722 = vpack.c.b16 %v3650, %v3646
  %v3723 = vpack.c.b16 %v3655, %v3651
  %v3724 = vpack.c.b16 %v3656, %v3652
  %v3725 = vpack.c.b16 %v3657, %v3653
  %v3726 = vpack.c.b16 %v3658, %v3654
  %v3727 = vpack.c.b16 %v3663, %v3659
  %v3728 = vpack.c.b16 %v3664, %v3660
  %v3729 = vpack.c.b16 %v3665, %v3661
  %v3730 = vpack.c.b16 %v3666, %v3662
  %3795 = vmatpush.bf16.msra.mxu0 %v3695
  %3796 = vmatpush.bf16.msra.mxu0 %v3691
  %3797 = vmatpush.bf16.msra.mxu0 %v3687
  %3798 = vmatpush.bf16.msra.mxu0 %v3683
  %3799 = vmatpush.bf16.msra.mxu0 %v3679
  %3800 = vmatpush.bf16.msra.mxu0 %v3675
  %3801 = vmatpush.bf16.msra.mxu0 %v3671
  %3802 = vmatpush.bf16.msra.mxu0 %v3667
  %3803 = vmatmul.bf16.gmra.mxu0 %v3471
  %v3804 = vpop.f32.mrf.mxu0
  %v3805 = vadd.f32 %v3460, %v3804
  %v3806 = vpop.f32.mrf.mxu0
  %3807 = vdwg.mxu0
  %3808 = vmatpush.bf16.msra.mxu0 %v3727
  %3809 = vmatpush.bf16.msra.mxu0 %v3723
  %3810 = vmatpush.bf16.msra.mxu0 %v3719
  %3811 = vmatpush.bf16.msra.mxu0 %v3715
  %3812 = vmatpush.bf16.msra.mxu0 %v3711
  %3813 = vmatpush.bf16.msra.mxu0 %v3707
  %3814 = vmatpush.bf16.msra.mxu0 %v3703
  %3815 = vmatpush.bf16.msra.mxu0 %v3699
  %3816 = vmatmul.bf16.gmra.mxu0 %v3472
  %v3817 = vpop.f32.mrf.mxu0
  %v3818 = vadd.f32 %v3805, %v3817
  %v3819 = vpop.f32.mrf.mxu0
  %3820 = vdwg.mxu0
  %3821 = vmatpush.bf16.msra.mxu0 %v3696
  %3822 = vmatpush.bf16.msra.mxu0 %v3692
  %3823 = vmatpush.bf16.msra.mxu0 %v3688
  %3824 = vmatpush.bf16.msra.mxu0 %v3684
  %3825 = vmatpush.bf16.msra.mxu0 %v3680
  %3826 = vmatpush.bf16.msra.mxu0 %v3676
  %3827 = vmatpush.bf16.msra.mxu0 %v3672
  %3828 = vmatpush.bf16.msra.mxu0 %v3668
  %3829 = vmatmul.bf16.gmra.mxu0 %v3471
  %v3830 = vpop.f32.mrf.mxu0
  %v3831 = vadd.f32 %v3461, %v3830
  %v3832 = vpop.f32.mrf.mxu0
  %3833 = vdwg.mxu0
  %3834 = vmatpush.bf16.msra.mxu0 %v3728
  %3835 = vmatpush.bf16.msra.mxu0 %v3724
  %3836 = vmatpush.bf16.msra.mxu0 %v3720
  %3837 = vmatpush.bf16.msra.mxu0 %v3716
  %3838 = vmatpush.bf16.msra.mxu0 %v3712
  %3839 = vmatpush.bf16.msra.mxu0 %v3708
  %3840 = vmatpush.bf16.msra.mxu0 %v3704
  %3841 = vmatpush.bf16.msra.mxu0 %v3700
  %3842 = vmatmul.bf16.gmra.mxu0 %v3472
  %v3843 = vpop.f32.mrf.mxu0
  %v3844 = vadd.f32 %v3831, %v3843
  %v3845 = vpop.f32.mrf.mxu0
  %3846 = vdwg.mxu0
  %3847 = vmatpush.bf16.msra.mxu0 %v3697
  %3848 = vmatpush.bf16.msra.mxu0 %v3693
  %3849 = vmatpush.bf16.msra.mxu0 %v3689
  %3850 = vmatpush.bf16.msra.mxu0 %v3685
  %3851 = vmatpush.bf16.msra.mxu0 %v3681
  %3852 = vmatpush.bf16.msra.mxu0 %v3677
  %3853 = vmatpush.bf16.msra.mxu0 %v3673
  %3854 = vmatpush.bf16.msra.mxu0 %v3669
  %3855 = vmatmul.bf16.gmra.mxu0 %v3471
  %v3856 = vpop.f32.mrf.mxu0
  %v3857 = vadd.f32 %v3462, %v3856
  %v3858 = vpop.f32.mrf.mxu0
  %3859 = vdwg.mxu0
  %3860 = vmatpush.bf16.msra.mxu0 %v3729
  %3861 = vmatpush.bf16.msra.mxu0 %v3725
  %3862 = vmatpush.bf16.msra.mxu0 %v3721
  %3863 = vmatpush.bf16.msra.mxu0 %v3717
  %3864 = vmatpush.bf16.msra.mxu0 %v3713
  %3865 = vmatpush.bf16.msra.mxu0 %v3709
  %3866 = vmatpush.bf16.msra.mxu0 %v3705
  %3867 = vmatpush.bf16.msra.mxu0 %v3701
  %3868 = vmatmul.bf16.gmra.mxu0 %v3472
  %v3869 = vpop.f32.mrf.mxu0
  %v3870 = vadd.f32 %v3857, %v3869
  %v3871 = vpop.f32.mrf.mxu0
  %3872 = vdwg.mxu0
  %3873 = vmatpush.bf16.msra.mxu0 %v3698
  %3874 = vmatpush.bf16.msra.mxu0 %v3694
  %3875 = vmatpush.bf16.msra.mxu0 %v3690
  %3876 = vmatpush.bf16.msra.mxu0 %v3686
  %3877 = vmatpush.bf16.msra.mxu0 %v3682
  %3878 = vmatpush.bf16.msra.mxu0 %v3678
  %3879 = vmatpush.bf16.msra.mxu0 %v3674
  %3880 = vmatpush.bf16.msra.mxu0 %v3670
  %3881 = vmatmul.bf16.gmra.mxu0 %v3471
  %v3882 = vpop.f32.mrf.mxu0
  %v3883 = vadd.f32 %v3463, %v3882
  %v3884 = vpop.f32.mrf.mxu0
  %3885 = vdwg.mxu0
  %3886 = vmatpush.bf16.msra.mxu0 %v3730
  %3887 = vmatpush.bf16.msra.mxu0 %v3726
  %3888 = vmatpush.bf16.msra.mxu0 %v3722
  %3889 = vmatpush.bf16.msra.mxu0 %v3718
  %3890 = vmatpush.bf16.msra.mxu0 %v3714
  %3891 = vmatpush.bf16.msra.mxu0 %v3710
  %3892 = vmatpush.bf16.msra.mxu0 %v3706
  %3893 = vmatpush.bf16.msra.mxu0 %v3702
  %3894 = vmatmul.bf16.gmra.mxu0 %v3472
  %v3895 = vpop.f32.mrf.mxu0
  %v3896 = vadd.f32 %v3883, %v3895
  %v3897 = vpop.f32.mrf.mxu0
  %3898 = vdwg.mxu0
  %v3899 = vxor.u32 %v3818, 2147483648
  %v3900 = vmul.f32 %v3899, 1.442695
  %v3901 = vpow.pop %v3900
  %v3902 = vadd.f32 %v3901, 1.0
  %v3903 = vrcp.pop %v3902
  %v3904 = vmul.f32 %v3902, %v3903
  %v3905 = vsub.f32 1.0, %v3904
  %v3906 = vmul.f32 %v3903, %v3905
  %v3907 = vadd.f32 %v3903, %v3906
  %vm3908 = vweird.f32 %v3902
  %vm3909 = vweird.f32 %v3903
  %vm3910 = vmor %vm3908, %vm3909
  %v3911 = vsel %vm3910, %v3903, %v3907
  %v3912 = vand.u32 2147483647, %v3902
  %vm3913 = vcmp.eq.f32.partialorder %v3912, 8.507059e+37
  %v3914 = vand.u32 %v3902, 2147483648
  %v3915 = vor.u32 1.1754944e-38, %v3914
  %v3916 = vsel %vm3913, %v3915, %v3911
  %v3917 = vmul.f32 1.0, %v3916
  %v3918 = vxor.u32 %v3844, 2147483648
  %v3919 = vmul.f32 %v3918, 1.442695
  %v3920 = vpow.pop %v3919
  %v3921 = vadd.f32 %v3920, 1.0
  %v3922 = vrcp.pop %v3921
  %v3923 = vmul.f32 %v3921, %v3922
  %v3924 = vsub.f32 1.0, %v3923
  %v3925 = vmul.f32 %v3922, %v3924
  %v3926 = vadd.f32 %v3922, %v3925
  %vm3927 = vweird.f32 %v3921
  %vm3928 = vweird.f32 %v3922
  %vm3929 = vmor %vm3927, %vm3928
  %v3930 = vsel %vm3929, %v3922, %v3926
  %v3931 = vand.u32 2147483647, %v3921
  %vm3932 = vcmp.eq.f32.partialorder %v3931, 8.507059e+37
  %v3933 = vand.u32 %v3921, 2147483648
  %v3934 = vor.u32 1.1754944e-38, %v3933
  %v3935 = vsel %vm3932, %v3934, %v3930
  %v3936 = vmul.f32 1.0, %v3935
  %v3937 = vtanh.pop %v3870
  %v3938 = vxor.u32 %v3896, 2147483648
  %v3939 = vmul.f32 %v3938, 1.442695
  %v3940 = vpow.pop %v3939
  %v3941 = vadd.f32 %v3940, 1.0
  %v3942 = vrcp.pop %v3941
  %v3943 = vmul.f32 %v3941, %v3942
  %v3944 = vsub.f32 1.0, %v3943
  %v3945 = vmul.f32 %v3942, %v3944
  %v3946 = vadd.f32 %v3942, %v3945
  %vm3947 = vweird.f32 %v3941
  %vm3948 = vweird.f32 %v3942
  %vm3949 = vmor %vm3947, %vm3948
  %v3950 = vsel %vm3949, %v3942, %v3946
  %v3951 = vand.u32 2147483647, %v3941
  %vm3952 = vcmp.eq.f32.partialorder %v3951, 8.507059e+37
  %v3953 = vand.u32 %v3941, 2147483648
  %v3954 = vor.u32 1.1754944e-38, %v3953
  %v3955 = vsel %vm3952, %v3954, %v3950
  %v3956 = vmul.f32 1.0, %v3955
  %v3957 = vmul.f32 %v3936, %v3057
  %v3958 = vmul.f32 %v3917, %v3937
  %v3959 = vadd.f32 %v3957, %v3958
  %v3960 = vtanh.pop %v3959
  %v3961 = vmul.f32 %v3956, %v3960
  %v3962 = vsel %vm3386, %v3961, %v3056
  %v3963 = vsel %vm3386, %v3959, %v3057
  %s3964 = sadd.s32 %s339, 4
  %v3965 = vld [vmem:[%s1] sm:$0xff]
  %v3966 = vstv %s3964
  %vm3967 = vcmp.lt.s32.totalorder %v3966, %v3965
  %s3968 = smul.u32 4, 4
  %s3969 = smul.addr %s3968, 4
  %s3970 = scalar_lea.vmem [#allocation2], %s3969
  %v3971 = vld [vmem:[%s3970] sm:$0xff]
  %v3972 = vld [vmem:[%s3970 + $0x8] sm:$0xff]
  %v3973 = vunpack.c.l.bf16 %v3971
  %v3974 = vunpack.c.h.bf16 %v3971
  %v3975 = vunpack.c.l.bf16 %v3972
  %v3976 = vunpack.c.h.bf16 %v3972
  %v3977 = vld [vmem:[%s3] sm:$0xff]
  %v3978 = vld [vmem:[%s3 + $0x8] sm:$0xff]
  %v3979 = vld [vmem:[%s3 + $0x10] sm:$0xff]
  %v3980 = vld [vmem:[%s3 + $0x18] sm:$0xff]
  %v3981 = vld [vmem:[%s3 + $0x20] sm:$0xff]
  %v3982 = vld [vmem:[%s3 + $0x28] sm:$0xff]
  %v3983 = vld [vmem:[%s3 + $0x30] sm:$0xff]
  %v3984 = vld [vmem:[%s3 + $0x38] sm:$0xff]
  %v3985 = vld [vmem:[%s3 + $0x40] sm:$0xff]
  %v3986 = vld [vmem:[%s3 + $0x48] sm:$0xff]
  %v3987 = vld [vmem:[%s3 + $0x50] sm:$0xff]
  %v3988 = vld [vmem:[%s3 + $0x58] sm:$0xff]
  %v3989 = vld [vmem:[%s3 + $0x60] sm:$0xff]
  %v3990 = vld [vmem:[%s3 + $0x68] sm:$0xff]
  %v3991 = vld [vmem:[%s3 + $0x70] sm:$0xff]
  %v3992 = vld [vmem:[%s3 + $0x78] sm:$0xff]
  %v3993 = vld [vmem:[%s3 + $0x80] sm:$0xff]
  %v3994 = vld [vmem:[%s3 + $0x88] sm:$0xff]
  %v3995 = vld [vmem:[%s3 + $0x90] sm:$0xff]
  %v3996 = vld [vmem:[%s3 + $0x98] sm:$0xff]
  %v3997 = vld [vmem:[%s3 + $0xa0] sm:$0xff]
  %v3998 = vld [vmem:[%s3 + $0xa8] sm:$0xff]
  %v3999 = vld [vmem:[%s3 + $0xb0] sm:$0xff]
  %v4000 = vld [vmem:[%s3 + $0xb8] sm:$0xff]
  %v4001 = vld [vmem:[%s3 + $0xc0] sm:$0xff]
  %v4002 = vld [vmem:[%s3 + $0xc8] sm:$0xff]
  %v4003 = vld [vmem:[%s3 + $0xd0] sm:$0xff]
  %v4004 = vld [vmem:[%s3 + $0xd8] sm:$0xff]
  %v4005 = vld [vmem:[%s3 + $0xe0] sm:$0xff]
  %v4006 = vld [vmem:[%s3 + $0xe8] sm:$0xff]
  %v4007 = vld [vmem:[%s3 + $0xf0] sm:$0xff]
  %v4008 = vld [vmem:[%s3 + $0xf8] sm:$0xff]
  %v4041 = vunpack.c.l.b16 %v3977
  %v4042 = vunpack.c.h.b16 %v3977
  %v4043 = vunpack.c.l.b16 %v3978
  %v4044 = vunpack.c.h.b16 %v3978
  %v4045 = vunpack.c.l.b16 %v3979
  %v4046 = vunpack.c.h.b16 %v3979
  %v4047 = vunpack.c.l.b16 %v3980
  %v4048 = vunpack.c.h.b16 %v3980
  %v4049 = vunpack.c.l.b16 %v3981
  %v4050 = vunpack.c.h.b16 %v3981
  %v4051 = vunpack.c.l.b16 %v3982
  %v4052 = vunpack.c.h.b16 %v3982
  %v4053 = vunpack.c.l.b16 %v3983
  %v4054 = vunpack.c.h.b16 %v3983
  %v4055 = vunpack.c.l.b16 %v3984
  %v4056 = vunpack.c.h.b16 %v3984
  %v4057 = vunpack.c.l.b16 %v3985
  %v4058 = vunpack.c.h.b16 %v3985
  %v4059 = vunpack.c.l.b16 %v3986
  %v4060 = vunpack.c.h.b16 %v3986
  %v4061 = vunpack.c.l.b16 %v3987
  %v4062 = vunpack.c.h.b16 %v3987
  %v4063 = vunpack.c.l.b16 %v3988
  %v4064 = vunpack.c.h.b16 %v3988
  %v4065 = vunpack.c.l.b16 %v3989
  %v4066 = vunpack.c.h.b16 %v3989
  %v4067 = vunpack.c.l.b16 %v3990
  %v4068 = vunpack.c.h.b16 %v3990
  %v4069 = vunpack.c.l.b16 %v3991
  %v4070 = vunpack.c.h.b16 %v3991
  %v4071 = vunpack.c.l.b16 %v3992
  %v4072 = vunpack.c.h.b16 %v3992
  %v4073 = vunpack.c.l.b16 %v3993
  %v4074 = vunpack.c.h.b16 %v3993
  %v4075 = vunpack.c.l.b16 %v3994
  %v4076 = vunpack.c.h.b16 %v3994
  %v4077 = vunpack.c.l.b16 %v3995
  %v4078 = vunpack.c.h.b16 %v3995
  %v4079 = vunpack.c.l.b16 %v3996
  %v4080 = vunpack.c.h.b16 %v3996
  %v4081 = vunpack.c.l.b16 %v3997
  %v4082 = vunpack.c.h.b16 %v3997
  %v4083 = vunpack.c.l.b16 %v3998
  %v4084 = vunpack.c.h.b16 %v3998
  %v4085 = vunpack.c.l.b16 %v3999
  %v4086 = vunpack.c.h.b16 %v3999
  %v4087 = vunpack.c.l.b16 %v4000
  %v4088 = vunpack.c.h.b16 %v4000
  %v4089 = vunpack.c.l.b16 %v4001
  %v4090 = vunpack.c.h.b16 %v4001
  %v4091 = vunpack.c.l.b16 %v4002
  %v4092 = vunpack.c.h.b16 %v4002
  %v4093 = vunpack.c.l.b16 %v4003
  %v4094 = vunpack.c.h.b16 %v4003
  %v4095 = vunpack.c.l.b16 %v4004
  %v4096 = vunpack.c.h.b16 %v4004
  %v4097 = vunpack.c.l.b16 %v4005
  %v4098 = vunpack.c.h.b16 %v4005
  %v4099 = vunpack.c.l.b16 %v4006
  %v4100 = vunpack.c.h.b16 %v4006
  %v4101 = vunpack.c.l.b16 %v4007
  %v4102 = vunpack.c.h.b16 %v4007
  %v4103 = vunpack.c.l.b16 %v4008
  %v4104 = vunpack.c.h.b16 %v4008
  %v4105 = vpack.c.b16 %v4045, %v4041
  %v4106 = vpack.c.b16 %v4046, %v4042
  %v4107 = vpack.c.b16 %v4047, %v4043
  %v4108 = vpack.c.b16 %v4048, %v4044
  %v4109 = vpack.c.b16 %v4053, %v4049
  %v4110 = vpack.c.b16 %v4054, %v4050
  %v4111 = vpack.c.b16 %v4055, %v4051
  %v4112 = vpack.c.b16 %v4056, %v4052
  %v4113 = vpack.c.b16 %v4061, %v4057
  %v4114 = vpack.c.b16 %v4062, %v4058
  %v4115 = vpack.c.b16 %v4063, %v4059
  %v4116 = vpack.c.b16 %v4064, %v4060
  %v4117 = vpack.c.b16 %v4069, %v4065
  %v4118 = vpack.c.b16 %v4070, %v4066
  %v4119 = vpack.c.b16 %v4071, %v4067
  %v4120 = vpack.c.b16 %v4072, %v4068
  %v4121 = vpack.c.b16 %v4077, %v4073
  %v4122 = vpack.c.b16 %v4078, %v4074
  %v4123 = vpack.c.b16 %v4079, %v4075
  %v4124 = vpack.c.b16 %v4080, %v4076
  %v4125 = vpack.c.b16 %v4085, %v4081
  %v4126 = vpack.c.b16 %v4086, %v4082
  %v4127 = vpack.c.b16 %v4087, %v4083
  %v4128 = vpack.c.b16 %v4088, %v4084
  %v4129 = vpack.c.b16 %v4093, %v4089
  %v4130 = vpack.c.b16 %v4094, %v4090
  %v4131 = vpack.c.b16 %v4095, %v4091
  %v4132 = vpack.c.b16 %v4096, %v4092
  %v4133 = vpack.c.b16 %v4101, %v4097
  %v4134 = vpack.c.b16 %v4102, %v4098
  %v4135 = vpack.c.b16 %v4103, %v4099
  %v4136 = vpack.c.b16 %v4104, %v4100
  %4169 = vmatpush.bf16.msra.mxu0 %v4133
  %4170 = vmatpush.bf16.msra.mxu0 %v4129
  %4171 = vmatpush.bf16.msra.mxu0 %v4125
  %4172 = vmatpush.bf16.msra.mxu0 %v4121
  %4173 = vmatpush.bf16.msra.mxu0 %v4117
  %4174 = vmatpush.bf16.msra.mxu0 %v4113
  %4175 = vmatpush.bf16.msra.mxu0 %v4109
  %4176 = vmatpush.bf16.msra.mxu0 %v4105
  %4177 = vmatmul.bf16.gmra.mxu0 %v3389
  %v4178 = vpop.f32.mrf.mxu0
  %v4179 = vadd.f32 0.0, %v4178
  %v4180 = vpop.f32.mrf.mxu0
  %4181 = vdwg.mxu0
  %4182 = vmatpush.bf16.msra.mxu0 %v4134
  %4183 = vmatpush.bf16.msra.mxu0 %v4130
  %4184 = vmatpush.bf16.msra.mxu0 %v4126
  %4185 = vmatpush.bf16.msra.mxu0 %v4122
  %4186 = vmatpush.bf16.msra.mxu0 %v4118
  %4187 = vmatpush.bf16.msra.mxu0 %v4114
  %4188 = vmatpush.bf16.msra.mxu0 %v4110
  %4189 = vmatpush.bf16.msra.mxu0 %v4106
  %4190 = vmatmul.bf16.gmra.mxu0 %v3389
  %v4191 = vpop.f32.mrf.mxu0
  %v4192 = vadd.f32 0.0, %v4191
  %v4193 = vpop.f32.mrf.mxu0
  %4194 = vdwg.mxu0
  %4195 = vmatpush.bf16.msra.mxu0 %v4135
  %4196 = vmatpush.bf16.msra.mxu0 %v4131
  %4197 = vmatpush.bf16.msra.mxu0 %v4127
  %4198 = vmatpush.bf16.msra.mxu0 %v4123
  %4199 = vmatpush.bf16.msra.mxu0 %v4119
  %4200 = vmatpush.bf16.msra.mxu0 %v4115
  %4201 = vmatpush.bf16.msra.mxu0 %v4111
  %4202 = vmatpush.bf16.msra.mxu0 %v4107
  %4203 = vmatmul.bf16.gmra.mxu0 %v3389
  %v4204 = vpop.f32.mrf.mxu0
  %v4205 = vadd.f32 0.0, %v4204
  %v4206 = vpop.f32.mrf.mxu0
  %4207 = vdwg.mxu0
  %4208 = vmatpush.bf16.msra.mxu0 %v4136
  %4209 = vmatpush.bf16.msra.mxu0 %v4132
  %4210 = vmatpush.bf16.msra.mxu0 %v4128
  %4211 = vmatpush.bf16.msra.mxu0 %v4124
  %4212 = vmatpush.bf16.msra.mxu0 %v4120
  %4213 = vmatpush.bf16.msra.mxu0 %v4116
  %4214 = vmatpush.bf16.msra.mxu0 %v4112
  %4215 = vmatpush.bf16.msra.mxu0 %v4108
  %4216 = vmatmul.bf16.gmra.mxu0 %v3389
  %v4217 = vpop.f32.mrf.mxu0
  %v4218 = vadd.f32 0.0, %v4217
  %v4219 = vpop.f32.mrf.mxu0
  %4220 = vdwg.mxu0
  %v4221 = vadd.f32 %v3973, %v4179
  %v4222 = vadd.f32 %v3974, %v4192
  %v4223 = vadd.f32 %v3975, %v4205
  %v4224 = vadd.f32 %v3976, %v4218
  %v4225 = vxor.u32 %v4221, 2147483648
  %v4226 = vmul.f32 %v4225, 1.442695
  %v4227 = vpow.pop %v4226
  %v4228 = vadd.f32 %v4227, 1.0
  %v4229 = vrcp.pop %v4228
  %v4230 = vmul.f32 %v4228, %v4229
  %v4231 = vsub.f32 1.0, %v4230
  %v4232 = vmul.f32 %v4229, %v4231
  %v4233 = vadd.f32 %v4229, %v4232
  %vm4234 = vweird.f32 %v4228
  %vm4235 = vweird.f32 %v4229
  %vm4236 = vmor %vm4234, %vm4235
  %v4237 = vsel %vm4236, %v4229, %v4233
  %v4238 = vand.u32 2147483647, %v4228
  %vm4239 = vcmp.eq.f32.partialorder %v4238, 8.507059e+37
  %v4240 = vand.u32 %v4228, 2147483648
  %v4241 = vor.u32 1.1754944e-38, %v4240
  %v4242 = vsel %vm4239, %v4241, %v4237
  %v4243 = vmul.f32 1.0, %v4242
  %v4244 = vxor.u32 %v4222, 2147483648
  %v4245 = vmul.f32 %v4244, 1.442695
  %v4246 = vpow.pop %v4245
  %v4247 = vadd.f32 %v4246, 1.0
  %v4248 = vrcp.pop %v4247
  %v4249 = vmul.f32 %v4247, %v4248
  %v4250 = vsub.f32 1.0, %v4249
  %v4251 = vmul.f32 %v4248, %v4250
  %v4252 = vadd.f32 %v4248, %v4251
  %vm4253 = vweird.f32 %v4247
  %vm4254 = vweird.f32 %v4248
  %vm4255 = vmor %vm4253, %vm4254
  %v4256 = vsel %vm4255, %v4248, %v4252
  %v4257 = vand.u32 2147483647, %v4247
  %vm4258 = vcmp.eq.f32.partialorder %v4257, 8.507059e+37
  %v4259 = vand.u32 %v4247, 2147483648
  %v4260 = vor.u32 1.1754944e-38, %v4259
  %v4261 = vsel %vm4258, %v4260, %v4256
  %v4262 = vmul.f32 1.0, %v4261
  %v4263 = vtanh.pop %v4223
  %v4264 = vxor.u32 %v4224, 2147483648
  %v4265 = vmul.f32 %v4264, 1.442695
  %v4266 = vpow.pop %v4265
  %v4267 = vadd.f32 %v4266, 1.0
  %v4268 = vrcp.pop %v4267
  %v4269 = vmul.f32 %v4267, %v4268
  %v4270 = vsub.f32 1.0, %v4269
  %v4271 = vmul.f32 %v4268, %v4270
  %v4272 = vadd.f32 %v4268, %v4271
  %vm4273 = vweird.f32 %v4267
  %vm4274 = vweird.f32 %v4268
  %vm4275 = vmor %vm4273, %vm4274
  %v4276 = vsel %vm4275, %v4268, %v4272
  %v4277 = vand.u32 2147483647, %v4267
  %vm4278 = vcmp.eq.f32.partialorder %v4277, 8.507059e+37
  %v4279 = vand.u32 %v4267, 2147483648
  %v4280 = vor.u32 1.1754944e-38, %v4279
  %v4281 = vsel %vm4278, %v4280, %v4276
  %v4282 = vmul.f32 1.0, %v4281
  %v4283 = vmul.f32 %v4262, %v3388
  %v4284 = vmul.f32 %v4243, %v4263
  %v4285 = vadd.f32 %v4283, %v4284
  %v4286 = vtanh.pop %v4285
  %v4287 = vmul.f32 %v4282, %v4286
  %v4288 = vsel %vm3967, 1, 0
  %4289 = vset.pattern.permute.xlu0 0
  %4290 = vperm.xlu0 %4289, %v4288
  %v4291 = vpop.permute.xlu0 %4290
  %vm4292 = vcmp.eq.s32.totalorder %v4291, 1
  %v4293 = vsel %vm4292, %v4287, %v3387
  %v4294 = vsel %vm4292, %v4285, %v3388
  %v4295 = vpack.c.bf16 %v4293, %v4293
  %4296 = vst [vmem:[#allocation3] sm:$0xf] %v4295
  %v4297 = vpack.c.bf16 %v3962, %v3962
  %4298 = vst [vmem:[#allocation3 + $0x4] sm:$0xf] %v4297
  %v4299 = vld [vmem:[#allocation3] sm:$0xff]
  %v4300 = vld [vmem:[%s5] sm:$0xff]
  %v4301 = vld [vmem:[%s5 + $0x8] sm:$0xff]
  %v4302 = vld [vmem:[%s5 + $0x10] sm:$0xff]
  %v4303 = vld [vmem:[%s5 + $0x18] sm:$0xff]
  %v4304 = vld [vmem:[%s5 + $0x20] sm:$0xff]
  %v4305 = vld [vmem:[%s5 + $0x28] sm:$0xff]
  %v4306 = vld [vmem:[%s5 + $0x30] sm:$0xff]
  %v4307 = vld [vmem:[%s5 + $0x38] sm:$0xff]
  %v4308 = vld [vmem:[%s5 + $0x40] sm:$0xff]
  %v4309 = vld [vmem:[%s5 + $0x48] sm:$0xff]
  %v4310 = vld [vmem:[%s5 + $0x50] sm:$0xff]
  %v4311 = vld [vmem:[%s5 + $0x58] sm:$0xff]
  %v4312 = vld [vmem:[%s5 + $0x60] sm:$0xff]
  %v4313 = vld [vmem:[%s5 + $0x68] sm:$0xff]
  %v4314 = vld [vmem:[%s5 + $0x70] sm:$0xff]
  %v4315 = vld [vmem:[%s5 + $0x78] sm:$0xff]
  %v4316 = vld [vmem:[%s5 + $0x80] sm:$0xff]
  %v4317 = vld [vmem:[%s5 + $0x88] sm:$0xff]
  %v4318 = vld [vmem:[%s5 + $0x90] sm:$0xff]
  %v4319 = vld [vmem:[%s5 + $0x98] sm:$0xff]
  %v4320 = vld [vmem:[%s5 + $0xa0] sm:$0xff]
  %v4321 = vld [vmem:[%s5 + $0xa8] sm:$0xff]
  %v4322 = vld [vmem:[%s5 + $0xb0] sm:$0xff]
  %v4323 = vld [vmem:[%s5 + $0xb8] sm:$0xff]
  %v4324 = vld [vmem:[%s5 + $0xc0] sm:$0xff]
  %v4325 = vld [vmem:[%s5 + $0xc8] sm:$0xff]
  %v4326 = vld [vmem:[%s5 + $0xd0] sm:$0xff]
  %v4327 = vld [vmem:[%s5 + $0xd8] sm:$0xff]
  %v4328 = vld [vmem:[%s5 + $0xe0] sm:$0xff]
  %v4329 = vld [vmem:[%s5 + $0xe8] sm:$0xff]
  %v4330 = vld [vmem:[%s5 + $0xf0] sm:$0xff]
  %v4331 = vld [vmem:[%s5 + $0xf8] sm:$0xff]
  %v4332 = vld [vmem:[%s5 + $0x100] sm:$0xff]
  %v4333 = vld [vmem:[%s5 + $0x108] sm:$0xff]
  %v4334 = vld [vmem:[%s5 + $0x110] sm:$0xff]
  %v4335 = vld [vmem:[%s5 + $0x118] sm:$0xff]
  %v4336 = vld [vmem:[%s5 + $0x120] sm:$0xff]
  %v4337 = vld [vmem:[%s5 + $0x128] sm:$0xff]
  %v4338 = vld [vmem:[%s5 + $0x130] sm:$0xff]
  %v4339 = vld [vmem:[%s5 + $0x138] sm:$0xff]
  %v4340 = vld [vmem:[%s5 + $0x140] sm:$0xff]
  %v4341 = vld [vmem:[%s5 + $0x148] sm:$0xff]
  %v4342 = vld [vmem:[%s5 + $0x150] sm:$0xff]
  %v4343 = vld [vmem:[%s5 + $0x158] sm:$0xff]
  %v4344 = vld [vmem:[%s5 + $0x160] sm:$0xff]
  %v4345 = vld [vmem:[%s5 + $0x168] sm:$0xff]
  %v4346 = vld [vmem:[%s5 + $0x170] sm:$0xff]
  %v4347 = vld [vmem:[%s5 + $0x178] sm:$0xff]
  %v4348 = vld [vmem:[%s5 + $0x180] sm:$0xff]
  %v4349 = vld [vmem:[%s5 + $0x188] sm:$0xff]
  %v4350 = vld [vmem:[%s5 + $0x190] sm:$0xff]
  %v4351 = vld [vmem:[%s5 + $0x198] sm:$0xff]
  %v4352 = vld [vmem:[%s5 + $0x1a0] sm:$0xff]
  %v4353 = vld [vmem:[%s5 + $0x1a8] sm:$0xff]
  %v4354 = vld [vmem:[%s5 + $0x1b0] sm:$0xff]
  %v4355 = vld [vmem:[%s5 + $0x1b8] sm:$0xff]
  %v4356 = vld [vmem:[%s5 + $0x1c0] sm:$0xff]
  %v4357 = vld [vmem:[%s5 + $0x1c8] sm:$0xff]
  %v4358 = vld [vmem:[%s5 + $0x1d0] sm:$0xff]
  %v4359 = vld [vmem:[%s5 + $0x1d8] sm:$0xff]
  %v4360 = vld [vmem:[%s5 + $0x1e0] sm:$0xff]
  %v4361 = vld [vmem:[%s5 + $0x1e8] sm:$0xff]
  %v4362 = vld [vmem:[%s5 + $0x1f0] sm:$0xff]
  %v4363 = vld [vmem:[%s5 + $0x1f8] sm:$0xff]
  %v4364 = vld [vmem:[%s6] sm:$0xf]
  %v4366 = vperm.slane %v4364, 0
  %v4367 = vperm.slane %v4364, 1
  %v4368 = vperm.slane %v4364, 2
  %v4369 = vperm.slane %v4364, 3
  %v4375 = vunpack.c.l.b16 %v4299
  %v4376 = vunpack.c.h.b16 %v4299
  %v4377 = vpack.c.b16 %v4375, %v4375
  %v4378 = vpack.c.b16 %v4376, %v4376
  %v4445 = vunpack.c.l.b16 %v4300
  %v4446 = vunpack.c.h.b16 %v4300
  %v4447 = vunpack.c.l.b16 %v4301
  %v4448 = vunpack.c.h.b16 %v4301
  %v4449 = vunpack.c.l.b16 %v4302
  %v4450 = vunpack.c.h.b16 %v4302
  %v4451 = vunpack.c.l.b16 %v4303
  %v4452 = vunpack.c.h.b16 %v4303
  %v4453 = vunpack.c.l.b16 %v4304
  %v4454 = vunpack.c.h.b16 %v4304
  %v4455 = vunpack.c.l.b16 %v4305
  %v4456 = vunpack.c.h.b16 %v4305
  %v4457 = vunpack.c.l.b16 %v4306
  %v4458 = vunpack.c.h.b16 %v4306
  %v4459 = vunpack.c.l.b16 %v4307
  %v4460 = vunpack.c.h.b16 %v4307
  %v4461 = vunpack.c.l.b16 %v4308
  %v4462 = vunpack.c.h.b16 %v4308
  %v4463 = vunpack.c.l.b16 %v4309
  %v4464 = vunpack.c.h.b16 %v4309
  %v4465 = vunpack.c.l.b16 %v4310
  %v4466 = vunpack.c.h.b16 %v4310
  %v4467 = vunpack.c.l.b16 %v4311
  %v4468 = vunpack.c.h.b16 %v4311
  %v4469 = vunpack.c.l.b16 %v4312
  %v4470 = vunpack.c.h.b16 %v4312
  %v4471 = vunpack.c.l.b16 %v4313
  %v4472 = vunpack.c.h.b16 %v4313
  %v4473 = vunpack.c.l.b16 %v4314
  %v4474 = vunpack.c.h.b16 %v4314
  %v4475 = vunpack.c.l.b16 %v4315
  %v4476 = vunpack.c.h.b16 %v4315
  %v4477 = vunpack.c.l.b16 %v4316
  %v4478 = vunpack.c.h.b16 %v4316
  %v4479 = vunpack.c.l.b16 %v4317
  %v4480 = vunpack.c.h.b16 %v4317
  %v4481 = vunpack.c.l.b16 %v4318
  %v4482 = vunpack.c.h.b16 %v4318
  %v4483 = vunpack.c.l.b16 %v4319
  %v4484 = vunpack.c.h.b16 %v4319
  %v4485 = vunpack.c.l.b16 %v4320
  %v4486 = vunpack.c.h.b16 %v4320
  %v4487 = vunpack.c.l.b16 %v4321
  %v4488 = vunpack.c.h.b16 %v4321
  %v4489 = vunpack.c.l.b16 %v4322
  %v4490 = vunpack.c.h.b16 %v4322
  %v4491 = vunpack.c.l.b16 %v4323
  %v4492 = vunpack.c.h.b16 %v4323
  %v4493 = vunpack.c.l.b16 %v4324
  %v4494 = vunpack.c.h.b16 %v4324
  %v4495 = vunpack.c.l.b16 %v4325
  %v4496 = vunpack.c.h.b16 %v4325
  %v4497 = vunpack.c.l.b16 %v4326
  %v4498 = vunpack.c.h.b16 %v4326
  %v4499 = vunpack.c.l.b16 %v4327
  %v4500 = vunpack.c.h.b16 %v4327
  %v4501 = vunpack.c.l.b16 %v4328
  %v4502 = vunpack.c.h.b16 %v4328
  %v4503 = vunpack.c.l.b16 %v4329
  %v4504 = vunpack.c.h.b16 %v4329
  %v4505 = vunpack.c.l.b16 %v4330
  %v4506 = vunpack.c.h.b16 %v4330
  %v4507 = vunpack.c.l.b16 %v4331
  %v4508 = vunpack.c.h.b16 %v4331
  %v4509 = vunpack.c.l.b16 %v4332
  %v4510 = vunpack.c.h.b16 %v4332
  %v4511 = vunpack.c.l.b16 %v4333
  %v4512 = vunpack.c.h.b16 %v4333
  %v4513 = vunpack.c.l.b16 %v4334
  %v4514 = vunpack.c.h.b16 %v4334
  %v4515 = vunpack.c.l.b16 %v4335
  %v4516 = vunpack.c.h.b16 %v4335
  %v4517 = vunpack.c.l.b16 %v4336
  %v4518 = vunpack.c.h.b16 %v4336
  %v4519 = vunpack.c.l.b16 %v4337
  %v4520 = vunpack.c.h.b16 %v4337
  %v4521 = vunpack.c.l.b16 %v4338
  %v4522 = vunpack.c.h.b16 %v4338
  %v4523 = vunpack.c.l.b16 %v4339
  %v4524 = vunpack.c.h.b16 %v4339
  %v4525 = vunpack.c.l.b16 %v4340
  %v4526 = vunpack.c.h.b16 %v4340
  %v4527 = vunpack.c.l.b16 %v4341
  %v4528 = vunpack.c.h.b16 %v4341
  %v4529 = vunpack.c.l.b16 %v4342
  %v4530 = vunpack.c.h.b16 %v4342
  %v4531 = vunpack.c.l.b16 %v4343
  %v4532 = vunpack.c.h.b16 %v4343
  %v4533 = vunpack.c.l.b16 %v4344
  %v4534 = vunpack.c.h.b16 %v4344
  %v4535 = vunpack.c.l.b16 %v4345
  %v4536 = vunpack.c.h.b16 %v4345
  %v4537 = vunpack.c.l.b16 %v4346
  %v4538 = vunpack.c.h.b16 %v4346
  %v4539 = vunpack.c.l.b16 %v4347
  %v4540 = vunpack.c.h.b16 %v4347
  %v4541 = vunpack.c.l.b16 %v4348
  %v4542 = vunpack.c.h.b16 %v4348
  %v4543 = vunpack.c.l.b16 %v4349
  %v4544 = vunpack.c.h.b16 %v4349
  %v4545 = vunpack.c.l.b16 %v4350
  %v4546 = vunpack.c.h.b16 %v4350
  %v4547 = vunpack.c.l.b16 %v4351
  %v4548 = vunpack.c.h.b16 %v4351
  %v4549 = vunpack.c.l.b16 %v4352
  %v4550 = vunpack.c.h.b16 %v4352
  %v4551 = vunpack.c.l.b16 %v4353
  %v4552 = vunpack.c.h.b16 %v4353
  %v4553 = vunpack.c.l.b16 %v4354
  %v4554 = vunpack.c.h.b16 %v4354
  %v4555 = vunpack.c.l.b16 %v4355
  %v4556 = vunpack.c.h.b16 %v4355
  %v4557 = vunpack.c.l.b16 %v4356
  %v4558 = vunpack.c.h.b16 %v4356
  %v4559 = vunpack.c.l.b16 %v4357
  %v4560 = vunpack.c.h.b16 %v4357
  %v4561 = vunpack.c.l.b16 %v4358
  %v4562 = vunpack.c.h.b16 %v4358
  %v4563 = vunpack.c.l.b16 %v4359
  %v4564 = vunpack.c.h.b16 %v4359
  %v4565 = vunpack.c.l.b16 %v4360
  %v4566 = vunpack.c.h.b16 %v4360
  %v4567 = vunpack.c.l.b16 %v4361
  %v4568 = vunpack.c.h.b16 %v4361
  %v4569 = vunpack.c.l.b16 %v4362
  %v4570 = vunpack.c.h.b16 %v4362
  %v4571 = vunpack.c.l.b16 %v4363
  %v4572 = vunpack.c.h.b16 %v4363
  %v4573 = vpack.c.b16 %v4449, %v4445
  %v4574 = vpack.c.b16 %v4450, %v4446
  %v4575 = vpack.c.b16 %v4451, %v4447
  %v4576 = vpack.c.b16 %v4452, %v4448
  %v4577 = vpack.c.b16 %v4457, %v4453
  %v4578 = vpack.c.b16 %v4458, %v4454
  %v4579 = vpack.c.b16 %v4459, %v4455
  %v4580 = vpack.c.b16 %v4460, %v4456
  %v4581 = vpack.c.b16 %v4465, %v4461
  %v4582 = vpack.c.b16 %v4466, %v4462
  %v4583 = vpack.c.b16 %v4467, %v4463
  %v4584 = vpack.c.b16 %v4468, %v4464
  %v4585 = vpack.c.b16 %v4473, %v4469
  %v4586 = vpack.c.b16 %v4474, %v4470
  %v4587 = vpack.c.b16 %v4475, %v4471
  %v4588 = vpack.c.b16 %v4476, %v4472
  %v4589 = vpack.c.b16 %v4481, %v4477
  %v4590 = vpack.c.b16 %v4482, %v4478
  %v4591 = vpack.c.b16 %v4483, %v4479
  %v4592 = vpack.c.b16 %v4484, %v4480
  %v4593 = vpack.c.b16 %v4489, %v4485
  %v4594 = vpack.c.b16 %v4490, %v4486
  %v4595 = vpack.c.b16 %v4491, %v4487
  %v4596 = vpack.c.b16 %v4492, %v4488
  %v4597 = vpack.c.b16 %v4497, %v4493
  %v4598 = vpack.c.b16 %v4498, %v4494
  %v4599 = vpack.c.b16 %v4499, %v4495
  %v4600 = vpack.c.b16 %v4500, %v4496
  %v4601 = vpack.c.b16 %v4505, %v4501
  %v4602 = vpack.c.b16 %v4506, %v4502
  %v4603 = vpack.c.b16 %v4507, %v4503
  %v4604 = vpack.c.b16 %v4508, %v4504
  %v4605 = vpack.c.b16 %v4513, %v4509
  %v4606 = vpack.c.b16 %v4514, %v4510
  %v4607 = vpack.c.b16 %v4515, %v4511
  %v4608 = vpack.c.b16 %v4516, %v4512
  %v4609 = vpack.c.b16 %v4521, %v4517
  %v4610 = vpack.c.b16 %v4522, %v4518
  %v4611 = vpack.c.b16 %v4523, %v4519
  %v4612 = vpack.c.b16 %v4524, %v4520
  %v4613 = vpack.c.b16 %v4529, %v4525
  %v4614 = vpack.c.b16 %v4530, %v4526
  %v4615 = vpack.c.b16 %v4531, %v4527
  %v4616 = vpack.c.b16 %v4532, %v4528
  %v4617 = vpack.c.b16 %v4537, %v4533
  %v4618 = vpack.c.b16 %v4538, %v4534
  %v4619 = vpack.c.b16 %v4539, %v4535
  %v4620 = vpack.c.b16 %v4540, %v4536
  %v4621 = vpack.c.b16 %v4545, %v4541
  %v4622 = vpack.c.b16 %v4546, %v4542
  %v4623 = vpack.c.b16 %v4547, %v4543
  %v4624 = vpack.c.b16 %v4548, %v4544
  %v4625 = vpack.c.b16 %v4553, %v4549
  %v4626 = vpack.c.b16 %v4554, %v4550
  %v4627 = vpack.c.b16 %v4555, %v4551
  %v4628 = vpack.c.b16 %v4556, %v4552
  %v4629 = vpack.c.b16 %v4561, %v4557
  %v4630 = vpack.c.b16 %v4562, %v4558
  %v4631 = vpack.c.b16 %v4563, %v4559
  %v4632 = vpack.c.b16 %v4564, %v4560
  %v4633 = vpack.c.b16 %v4569, %v4565
  %v4634 = vpack.c.b16 %v4570, %v4566
  %v4635 = vpack.c.b16 %v4571, %v4567
  %v4636 = vpack.c.b16 %v4572, %v4568
  %4701 = vmatpush.bf16.msra.mxu0 %v4601
  %4702 = vmatpush.bf16.msra.mxu0 %v4597
  %4703 = vmatpush.bf16.msra.mxu0 %v4593
  %4704 = vmatpush.bf16.msra.mxu0 %v4589
  %4705 = vmatpush.bf16.msra.mxu0 %v4585
  %4706 = vmatpush.bf16.msra.mxu0 %v4581
  %4707 = vmatpush.bf16.msra.mxu0 %v4577
  %4708 = vmatpush.bf16.msra.mxu0 %v4573
  %4709 = vmatmul.bf16.gmra.mxu0 %v4377
  %v4710 = vpop.f32.mrf.mxu0
  %v4711 = vadd.f32 %v4366, %v4710
  %v4712 = vpop.f32.mrf.mxu0
  %4713 = vdwg.mxu0
  %4714 = vmatpush.bf16.msra.mxu0 %v4633
  %4715 = vmatpush.bf16.msra.mxu0 %v4629
  %4716 = vmatpush.bf16.msra.mxu0 %v4625
  %4717 = vmatpush.bf16.msra.mxu0 %v4621
  %4718 = vmatpush.bf16.msra.mxu0 %v4617
  %4719 = vmatpush.bf16.msra.mxu0 %v4613
  %4720 = vmatpush.bf16.msra.mxu0 %v4609
  %4721 = vmatpush.bf16.msra.mxu0 %v4605
  %4722 = vmatmul.bf16.gmra.mxu0 %v4378
  %v4723 = vpop.f32.mrf.mxu0
  %v4724 = vadd.f32 %v4711, %v4723
  %v4725 = vpop.f32.mrf.mxu0
  %4726 = vdwg.mxu0
  %4727 = vmatpush.bf16.msra.mxu0 %v4602
  %4728 = vmatpush.bf16.msra.mxu0 %v4598
  %4729 = vmatpush.bf16.msra.mxu0 %v4594
  %4730 = vmatpush.bf16.msra.mxu0 %v4590
  %4731 = vmatpush.bf16.msra.mxu0 %v4586
  %4732 = vmatpush.bf16.msra.mxu0 %v4582
  %4733 = vmatpush.bf16.msra.mxu0 %v4578
  %4734 = vmatpush.bf16.msra.mxu0 %v4574
  %4735 = vmatmul.bf16.gmra.mxu0 %v4377
  %v4736 = vpop.f32.mrf.mxu0
  %v4737 = vadd.f32 %v4367, %v4736
  %v4738 = vpop.f32.mrf.mxu0
  %4739 = vdwg.mxu0
  %4740 = vmatpush.bf16.msra.mxu0 %v4634
  %4741 = vmatpush.bf16.msra.mxu0 %v4630
  %4742 = vmatpush.bf16.msra.mxu0 %v4626
  %4743 = vmatpush.bf16.msra.mxu0 %v4622
  %4744 = vmatpush.bf16.msra.mxu0 %v4618
  %4745 = vmatpush.bf16.msra.mxu0 %v4614
  %4746 = vmatpush.bf16.msra.mxu0 %v4610
  %4747 = vmatpush.bf16.msra.mxu0 %v4606
  %4748 = vmatmul.bf16.gmra.mxu0 %v4378
  %v4749 = vpop.f32.mrf.mxu0
  %v4750 = vadd.f32 %v4737, %v4749
  %v4751 = vpop.f32.mrf.mxu0
  %4752 = vdwg.mxu0
  %4753 = vmatpush.bf16.msra.mxu0 %v4603
  %4754 = vmatpush.bf16.msra.mxu0 %v4599
  %4755 = vmatpush.bf16.msra.mxu0 %v4595
  %4756 = vmatpush.bf16.msra.mxu0 %v4591
  %4757 = vmatpush.bf16.msra.mxu0 %v4587
  %4758 = vmatpush.bf16.msra.mxu0 %v4583
  %4759 = vmatpush.bf16.msra.mxu0 %v4579
  %4760 = vmatpush.bf16.msra.mxu0 %v4575
  %4761 = vmatmul.bf16.gmra.mxu0 %v4377
  %v4762 = vpop.f32.mrf.mxu0
  %v4763 = vadd.f32 %v4368, %v4762
  %v4764 = vpop.f32.mrf.mxu0
  %4765 = vdwg.mxu0
  %4766 = vmatpush.bf16.msra.mxu0 %v4635
  %4767 = vmatpush.bf16.msra.mxu0 %v4631
  %4768 = vmatpush.bf16.msra.mxu0 %v4627
  %4769 = vmatpush.bf16.msra.mxu0 %v4623
  %4770 = vmatpush.bf16.msra.mxu0 %v4619
  %4771 = vmatpush.bf16.msra.mxu0 %v4615
  %4772 = vmatpush.bf16.msra.mxu0 %v4611
  %4773 = vmatpush.bf16.msra.mxu0 %v4607
  %4774 = vmatmul.bf16.gmra.mxu0 %v4378
  %v4775 = vpop.f32.mrf.mxu0
  %v4776 = vadd.f32 %v4763, %v4775
  %v4777 = vpop.f32.mrf.mxu0
  %4778 = vdwg.mxu0
  %4779 = vmatpush.bf16.msra.mxu0 %v4604
  %4780 = vmatpush.bf16.msra.mxu0 %v4600
  %4781 = vmatpush.bf16.msra.mxu0 %v4596
  %4782 = vmatpush.bf16.msra.mxu0 %v4592
  %4783 = vmatpush.bf16.msra.mxu0 %v4588
  %4784 = vmatpush.bf16.msra.mxu0 %v4584
  %4785 = vmatpush.bf16.msra.mxu0 %v4580
  %4786 = vmatpush.bf16.msra.mxu0 %v4576
  %4787 = vmatmul.bf16.gmra.mxu0 %v4377
  %v4788 = vpop.f32.mrf.mxu0
  %v4789 = vadd.f32 %v4369, %v4788
  %v4790 = vpop.f32.mrf.mxu0
  %4791 = vdwg.mxu0
  %4792 = vmatpush.bf16.msra.mxu0 %v4636
  %4793 = vmatpush.bf16.msra.mxu0 %v4632
  %4794 = vmatpush.bf16.msra.mxu0 %v4628
  %4795 = vmatpush.bf16.msra.mxu0 %v4624
  %4796 = vmatpush.bf16.msra.mxu0 %v4620
  %4797 = vmatpush.bf16.msra.mxu0 %v4616
  %4798 = vmatpush.bf16.msra.mxu0 %v4612
  %4799 = vmatpush.bf16.msra.mxu0 %v4608
  %4800 = vmatmul.bf16.gmra.mxu0 %v4378
  %v4801 = vpop.f32.mrf.mxu0
  %v4802 = vadd.f32 %v4789, %v4801
  %v4803 = vpop.f32.mrf.mxu0
  %4804 = vdwg.mxu0
  %v4805 = vxor.u32 %v4724, 2147483648
  %v4806 = vmul.f32 %v4805, 1.442695
  %v4807 = vpow.pop %v4806
  %v4808 = vadd.f32 %v4807, 1.0
  %v4809 = vrcp.pop %v4808
  %v4810 = vmul.f32 %v4808, %v4809
  %v4811 = vsub.f32 1.0, %v4810
  %v4812 = vmul.f32 %v4809, %v4811
  %v4813 = vadd.f32 %v4809, %v4812
  %vm4814 = vweird.f32 %v4808
  %vm4815 = vweird.f32 %v4809
  %vm4816 = vmor %vm4814, %vm4815
  %v4817 = vsel %vm4816, %v4809, %v4813
  %v4818 = vand.u32 2147483647, %v4808
  %vm4819 = vcmp.eq.f32.partialorder %v4818, 8.507059e+37
  %v4820 = vand.u32 %v4808, 2147483648
  %v4821 = vor.u32 1.1754944e-38, %v4820
  %v4822 = vsel %vm4819, %v4821, %v4817
  %v4823 = vmul.f32 1.0, %v4822
  %v4824 = vxor.u32 %v4750, 2147483648
  %v4825 = vmul.f32 %v4824, 1.442695
  %v4826 = vpow.pop %v4825
  %v4827 = vadd.f32 %v4826, 1.0
  %v4828 = vrcp.pop %v4827
  %v4829 = vmul.f32 %v4827, %v4828
  %v4830 = vsub.f32 1.0, %v4829
  %v4831 = vmul.f32 %v4828, %v4830
  %v4832 = vadd.f32 %v4828, %v4831
  %vm4833 = vweird.f32 %v4827
  %vm4834 = vweird.f32 %v4828
  %vm4835 = vmor %vm4833, %vm4834
  %v4836 = vsel %vm4835, %v4828, %v4832
  %v4837 = vand.u32 2147483647, %v4827
  %vm4838 = vcmp.eq.f32.partialorder %v4837, 8.507059e+37
  %v4839 = vand.u32 %v4827, 2147483648
  %v4840 = vor.u32 1.1754944e-38, %v4839
  %v4841 = vsel %vm4838, %v4840, %v4836
  %v4842 = vmul.f32 1.0, %v4841
  %v4843 = vtanh.pop %v4776
  %v4844 = vxor.u32 %v4802, 2147483648
  %v4845 = vmul.f32 %v4844, 1.442695
  %v4846 = vpow.pop %v4845
  %v4847 = vadd.f32 %v4846, 1.0
  %v4848 = vrcp.pop %v4847
  %v4849 = vmul.f32 %v4847, %v4848
  %v4850 = vsub.f32 1.0, %v4849
  %v4851 = vmul.f32 %v4848, %v4850
  %v4852 = vadd.f32 %v4848, %v4851
  %vm4853 = vweird.f32 %v4847
  %vm4854 = vweird.f32 %v4848
  %vm4855 = vmor %vm4853, %vm4854
  %v4856 = vsel %vm4855, %v4848, %v4852
  %v4857 = vand.u32 2147483647, %v4847
  %vm4858 = vcmp.eq.f32.partialorder %v4857, 8.507059e+37
  %v4859 = vand.u32 %v4847, 2147483648
  %v4860 = vor.u32 1.1754944e-38, %v4859
  %v4861 = vsel %vm4858, %v4860, %v4856
  %v4862 = vmul.f32 1.0, %v4861
  %v4863 = vmul.f32 %v4842, %v3963
  %v4864 = vmul.f32 %v4823, %v4843
  %v4865 = vadd.f32 %v4863, %v4864
  %v4866 = vtanh.pop %v4865
  %v4867 = vmul.f32 %v4862, %v4866
  %v4868 = vsel %vm4292, %v4867, %v3962
  %v4869 = vsel %vm4292, %v4865, %v3963
  %s4870 = sadd.s32 %s339, 5
  %v4871 = vld [vmem:[%s1] sm:$0xff]
  %v4872 = vstv %s4870
  %vm4873 = vcmp.lt.s32.totalorder %v4872, %v4871
  %s4874 = smul.u32 5, 4
  %s4875 = smul.addr %s4874, 4
  %s4876 = scalar_lea.vmem [#allocation2], %s4875
  %v4877 = vld [vmem:[%s4876] sm:$0xff]
  %v4878 = vld [vmem:[%s4876 + $0x8] sm:$0xff]
  %v4879 = vunpack.c.l.bf16 %v4877
  %v4880 = vunpack.c.h.bf16 %v4877
  %v4881 = vunpack.c.l.bf16 %v4878
  %v4882 = vunpack.c.h.bf16 %v4878
  %v4883 = vld [vmem:[%s3] sm:$0xff]
  %v4884 = vld [vmem:[%s3 + $0x8] sm:$0xff]
  %v4885 = vld [vmem:[%s3 + $0x10] sm:$0xff]
  %v4886 = vld [vmem:[%s3 + $0x18] sm:$0xff]
  %v4887 = vld [vmem:[%s3 + $0x20] sm:$0xff]
  %v4888 = vld [vmem:[%s3 + $0x28] sm:$0xff]
  %v4889 = vld [vmem:[%s3 + $0x30] sm:$0xff]
  %v4890 = vld [vmem:[%s3 + $0x38] sm:$0xff]
  %v4891 = vld [vmem:[%s3 + $0x40] sm:$0xff]
  %v4892 = vld [vmem:[%s3 + $0x48] sm:$0xff]
  %v4893 = vld [vmem:[%s3 + $0x50] sm:$0xff]
  %v4894 = vld [vmem:[%s3 + $0x58] sm:$0xff]
  %v4895 = vld [vmem:[%s3 + $0x60] sm:$0xff]
  %v4896 = vld [vmem:[%s3 + $0x68] sm:$0xff]
  %v4897 = vld [vmem:[%s3 + $0x70] sm:$0xff]
  %v4898 = vld [vmem:[%s3 + $0x78] sm:$0xff]
  %v4899 = vld [vmem:[%s3 + $0x80] sm:$0xff]
  %v4900 = vld [vmem:[%s3 + $0x88] sm:$0xff]
  %v4901 = vld [vmem:[%s3 + $0x90] sm:$0xff]
  %v4902 = vld [vmem:[%s3 + $0x98] sm:$0xff]
  %v4903 = vld [vmem:[%s3 + $0xa0] sm:$0xff]
  %v4904 = vld [vmem:[%s3 + $0xa8] sm:$0xff]
  %v4905 = vld [vmem:[%s3 + $0xb0] sm:$0xff]
  %v4906 = vld [vmem:[%s3 + $0xb8] sm:$0xff]
  %v4907 = vld [vmem:[%s3 + $0xc0] sm:$0xff]
  %v4908 = vld [vmem:[%s3 + $0xc8] sm:$0xff]
  %v4909 = vld [vmem:[%s3 + $0xd0] sm:$0xff]
  %v4910 = vld [vmem:[%s3 + $0xd8] sm:$0xff]
  %v4911 = vld [vmem:[%s3 + $0xe0] sm:$0xff]
  %v4912 = vld [vmem:[%s3 + $0xe8] sm:$0xff]
  %v4913 = vld [vmem:[%s3 + $0xf0] sm:$0xff]
  %v4914 = vld [vmem:[%s3 + $0xf8] sm:$0xff]
  %v4947 = vunpack.c.l.b16 %v4883
  %v4948 = vunpack.c.h.b16 %v4883
  %v4949 = vunpack.c.l.b16 %v4884
  %v4950 = vunpack.c.h.b16 %v4884
  %v4951 = vunpack.c.l.b16 %v4885
  %v4952 = vunpack.c.h.b16 %v4885
  %v4953 = vunpack.c.l.b16 %v4886
  %v4954 = vunpack.c.h.b16 %v4886
  %v4955 = vunpack.c.l.b16 %v4887
  %v4956 = vunpack.c.h.b16 %v4887
  %v4957 = vunpack.c.l.b16 %v4888
  %v4958 = vunpack.c.h.b16 %v4888
  %v4959 = vunpack.c.l.b16 %v4889
  %v4960 = vunpack.c.h.b16 %v4889
  %v4961 = vunpack.c.l.b16 %v4890
  %v4962 = vunpack.c.h.b16 %v4890
  %v4963 = vunpack.c.l.b16 %v4891
  %v4964 = vunpack.c.h.b16 %v4891
  %v4965 = vunpack.c.l.b16 %v4892
  %v4966 = vunpack.c.h.b16 %v4892
  %v4967 = vunpack.c.l.b16 %v4893
  %v4968 = vunpack.c.h.b16 %v4893
  %v4969 = vunpack.c.l.b16 %v4894
  %v4970 = vunpack.c.h.b16 %v4894
  %v4971 = vunpack.c.l.b16 %v4895
  %v4972 = vunpack.c.h.b16 %v4895
  %v4973 = vunpack.c.l.b16 %v4896
  %v4974 = vunpack.c.h.b16 %v4896
  %v4975 = vunpack.c.l.b16 %v4897
  %v4976 = vunpack.c.h.b16 %v4897
  %v4977 = vunpack.c.l.b16 %v4898
  %v4978 = vunpack.c.h.b16 %v4898
  %v4979 = vunpack.c.l.b16 %v4899
  %v4980 = vunpack.c.h.b16 %v4899
  %v4981 = vunpack.c.l.b16 %v4900
  %v4982 = vunpack.c.h.b16 %v4900
  %v4983 = vunpack.c.l.b16 %v4901
  %v4984 = vunpack.c.h.b16 %v4901
  %v4985 = vunpack.c.l.b16 %v4902
  %v4986 = vunpack.c.h.b16 %v4902
  %v4987 = vunpack.c.l.b16 %v4903
  %v4988 = vunpack.c.h.b16 %v4903
  %v4989 = vunpack.c.l.b16 %v4904
  %v4990 = vunpack.c.h.b16 %v4904
  %v4991 = vunpack.c.l.b16 %v4905
  %v4992 = vunpack.c.h.b16 %v4905
  %v4993 = vunpack.c.l.b16 %v4906
  %v4994 = vunpack.c.h.b16 %v4906
  %v4995 = vunpack.c.l.b16 %v4907
  %v4996 = vunpack.c.h.b16 %v4907
  %v4997 = vunpack.c.l.b16 %v4908
  %v4998 = vunpack.c.h.b16 %v4908
  %v4999 = vunpack.c.l.b16 %v4909
  %v5000 = vunpack.c.h.b16 %v4909
  %v5001 = vunpack.c.l.b16 %v4910
  %v5002 = vunpack.c.h.b16 %v4910
  %v5003 = vunpack.c.l.b16 %v4911
  %v5004 = vunpack.c.h.b16 %v4911
  %v5005 = vunpack.c.l.b16 %v4912
  %v5006 = vunpack.c.h.b16 %v4912
  %v5007 = vunpack.c.l.b16 %v4913
  %v5008 = vunpack.c.h.b16 %v4913
  %v5009 = vunpack.c.l.b16 %v4914
  %v5010 = vunpack.c.h.b16 %v4914
  %v5011 = vpack.c.b16 %v4951, %v4947
  %v5012 = vpack.c.b16 %v4952, %v4948
  %v5013 = vpack.c.b16 %v4953, %v4949
  %v5014 = vpack.c.b16 %v4954, %v4950
  %v5015 = vpack.c.b16 %v4959, %v4955
  %v5016 = vpack.c.b16 %v4960, %v4956
  %v5017 = vpack.c.b16 %v4961, %v4957
  %v5018 = vpack.c.b16 %v4962, %v4958
  %v5019 = vpack.c.b16 %v4967, %v4963
  %v5020 = vpack.c.b16 %v4968, %v4964
  %v5021 = vpack.c.b16 %v4969, %v4965
  %v5022 = vpack.c.b16 %v4970, %v4966
  %v5023 = vpack.c.b16 %v4975, %v4971
  %v5024 = vpack.c.b16 %v4976, %v4972
  %v5025 = vpack.c.b16 %v4977, %v4973
  %v5026 = vpack.c.b16 %v4978, %v4974
  %v5027 = vpack.c.b16 %v4983, %v4979
  %v5028 = vpack.c.b16 %v4984, %v4980
  %v5029 = vpack.c.b16 %v4985, %v4981
  %v5030 = vpack.c.b16 %v4986, %v4982
  %v5031 = vpack.c.b16 %v4991, %v4987
  %v5032 = vpack.c.b16 %v4992, %v4988
  %v5033 = vpack.c.b16 %v4993, %v4989
  %v5034 = vpack.c.b16 %v4994, %v4990
  %v5035 = vpack.c.b16 %v4999, %v4995
  %v5036 = vpack.c.b16 %v5000, %v4996
  %v5037 = vpack.c.b16 %v5001, %v4997
  %v5038 = vpack.c.b16 %v5002, %v4998
  %v5039 = vpack.c.b16 %v5007, %v5003
  %v5040 = vpack.c.b16 %v5008, %v5004
  %v5041 = vpack.c.b16 %v5009, %v5005
  %v5042 = vpack.c.b16 %v5010, %v5006
  %5075 = vmatpush.bf16.msra.mxu0 %v5039
  %5076 = vmatpush.bf16.msra.mxu0 %v5035
  %5077 = vmatpush.bf16.msra.mxu0 %v5031
  %5078 = vmatpush.bf16.msra.mxu0 %v5027
  %5079 = vmatpush.bf16.msra.mxu0 %v5023
  %5080 = vmatpush.bf16.msra.mxu0 %v5019
  %5081 = vmatpush.bf16.msra.mxu0 %v5015
  %5082 = vmatpush.bf16.msra.mxu0 %v5011
  %5083 = vmatmul.bf16.gmra.mxu0 %v4295
  %v5084 = vpop.f32.mrf.mxu0
  %v5085 = vadd.f32 0.0, %v5084
  %v5086 = vpop.f32.mrf.mxu0
  %5087 = vdwg.mxu0
  %5088 = vmatpush.bf16.msra.mxu0 %v5040
  %5089 = vmatpush.bf16.msra.mxu0 %v5036
  %5090 = vmatpush.bf16.msra.mxu0 %v5032
  %5091 = vmatpush.bf16.msra.mxu0 %v5028
  %5092 = vmatpush.bf16.msra.mxu0 %v5024
  %5093 = vmatpush.bf16.msra.mxu0 %v5020
  %5094 = vmatpush.bf16.msra.mxu0 %v5016
  %5095 = vmatpush.bf16.msra.mxu0 %v5012
  %5096 = vmatmul.bf16.gmra.mxu0 %v4295
  %v5097 = vpop.f32.mrf.mxu0
  %v5098 = vadd.f32 0.0, %v5097
  %v5099 = vpop.f32.mrf.mxu0
  %5100 = vdwg.mxu0
  %5101 = vmatpush.bf16.msra.mxu0 %v5041
  %5102 = vmatpush.bf16.msra.mxu0 %v5037
  %5103 = vmatpush.bf16.msra.mxu0 %v5033
  %5104 = vmatpush.bf16.msra.mxu0 %v5029
  %5105 = vmatpush.bf16.msra.mxu0 %v5025
  %5106 = vmatpush.bf16.msra.mxu0 %v5021
  %5107 = vmatpush.bf16.msra.mxu0 %v5017
  %5108 = vmatpush.bf16.msra.mxu0 %v5013
  %5109 = vmatmul.bf16.gmra.mxu0 %v4295
  %v5110 = vpop.f32.mrf.mxu0
  %v5111 = vadd.f32 0.0, %v5110
  %v5112 = vpop.f32.mrf.mxu0
  %5113 = vdwg.mxu0
  %5114 = vmatpush.bf16.msra.mxu0 %v5042
  %5115 = vmatpush.bf16.msra.mxu0 %v5038
  %5116 = vmatpush.bf16.msra.mxu0 %v5034
  %5117 = vmatpush.bf16.msra.mxu0 %v5030
  %5118 = vmatpush.bf16.msra.mxu0 %v5026
  %5119 = vmatpush.bf16.msra.mxu0 %v5022
  %5120 = vmatpush.bf16.msra.mxu0 %v5018
  %5121 = vmatpush.bf16.msra.mxu0 %v5014
  %5122 = vmatmul.bf16.gmra.mxu0 %v4295
  %v5123 = vpop.f32.mrf.mxu0
  %v5124 = vadd.f32 0.0, %v5123
  %v5125 = vpop.f32.mrf.mxu0
  %5126 = vdwg.mxu0
  %v5127 = vadd.f32 %v4879, %v5085
  %v5128 = vadd.f32 %v4880, %v5098
  %v5129 = vadd.f32 %v4881, %v5111
  %v5130 = vadd.f32 %v4882, %v5124
  %v5131 = vxor.u32 %v5127, 2147483648
  %v5132 = vmul.f32 %v5131, 1.442695
  %v5133 = vpow.pop %v5132
  %v5134 = vadd.f32 %v5133, 1.0
  %v5135 = vrcp.pop %v5134
  %v5136 = vmul.f32 %v5134, %v5135
  %v5137 = vsub.f32 1.0, %v5136
  %v5138 = vmul.f32 %v5135, %v5137
  %v5139 = vadd.f32 %v5135, %v5138
  %vm5140 = vweird.f32 %v5134
  %vm5141 = vweird.f32 %v5135
  %vm5142 = vmor %vm5140, %vm5141
  %v5143 = vsel %vm5142, %v5135, %v5139
  %v5144 = vand.u32 2147483647, %v5134
  %vm5145 = vcmp.eq.f32.partialorder %v5144, 8.507059e+37
  %v5146 = vand.u32 %v5134, 2147483648
  %v5147 = vor.u32 1.1754944e-38, %v5146
  %v5148 = vsel %vm5145, %v5147, %v5143
  %v5149 = vmul.f32 1.0, %v5148
  %v5150 = vxor.u32 %v5128, 2147483648
  %v5151 = vmul.f32 %v5150, 1.442695
  %v5152 = vpow.pop %v5151
  %v5153 = vadd.f32 %v5152, 1.0
  %v5154 = vrcp.pop %v5153
  %v5155 = vmul.f32 %v5153, %v5154
  %v5156 = vsub.f32 1.0, %v5155
  %v5157 = vmul.f32 %v5154, %v5156
  %v5158 = vadd.f32 %v5154, %v5157
  %vm5159 = vweird.f32 %v5153
  %vm5160 = vweird.f32 %v5154
  %vm5161 = vmor %vm5159, %vm5160
  %v5162 = vsel %vm5161, %v5154, %v5158
  %v5163 = vand.u32 2147483647, %v5153
  %vm5164 = vcmp.eq.f32.partialorder %v5163, 8.507059e+37
  %v5165 = vand.u32 %v5153, 2147483648
  %v5166 = vor.u32 1.1754944e-38, %v5165
  %v5167 = vsel %vm5164, %v5166, %v5162
  %v5168 = vmul.f32 1.0, %v5167
  %v5169 = vtanh.pop %v5129
  %v5170 = vxor.u32 %v5130, 2147483648
  %v5171 = vmul.f32 %v5170, 1.442695
  %v5172 = vpow.pop %v5171
  %v5173 = vadd.f32 %v5172, 1.0
  %v5174 = vrcp.pop %v5173
  %v5175 = vmul.f32 %v5173, %v5174
  %v5176 = vsub.f32 1.0, %v5175
  %v5177 = vmul.f32 %v5174, %v5176
  %v5178 = vadd.f32 %v5174, %v5177
  %vm5179 = vweird.f32 %v5173
  %vm5180 = vweird.f32 %v5174
  %vm5181 = vmor %vm5179, %vm5180
  %v5182 = vsel %vm5181, %v5174, %v5178
  %v5183 = vand.u32 2147483647, %v5173
  %vm5184 = vcmp.eq.f32.partialorder %v5183, 8.507059e+37
  %v5185 = vand.u32 %v5173, 2147483648
  %v5186 = vor.u32 1.1754944e-38, %v5185
  %v5187 = vsel %vm5184, %v5186, %v5182
  %v5188 = vmul.f32 1.0, %v5187
  %v5189 = vmul.f32 %v5168, %v4294
  %v5190 = vmul.f32 %v5149, %v5169
  %v5191 = vadd.f32 %v5189, %v5190
  %v5192 = vtanh.pop %v5191
  %v5193 = vmul.f32 %v5188, %v5192
  %v5194 = vsel %vm4873, 1, 0
  %5195 = vset.pattern.permute.xlu0 0
  %5196 = vperm.xlu0 %5195, %v5194
  %v5197 = vpop.permute.xlu0 %5196
  %vm5198 = vcmp.eq.s32.totalorder %v5197, 1
  %v5199 = vsel %vm5198, %v5193, %v4293
  %v5200 = vsel %vm5198, %v5191, %v4294
  %v5201 = vpack.c.bf16 %v5199, %v5199
  %5202 = vst [vmem:[#allocation3] sm:$0xf] %v5201
  %v5203 = vpack.c.bf16 %v4868, %v4868
  %5204 = vst [vmem:[#allocation3 + $0x4] sm:$0xf] %v5203
  %v5205 = vld [vmem:[#allocation3] sm:$0xff]
  %v5206 = vld [vmem:[%s5] sm:$0xff]
  %v5207 = vld [vmem:[%s5 + $0x8] sm:$0xff]
  %v5208 = vld [vmem:[%s5 + $0x10] sm:$0xff]
  %v5209 = vld [vmem:[%s5 + $0x18] sm:$0xff]
  %v5210 = vld [vmem:[%s5 + $0x20] sm:$0xff]
  %v5211 = vld [vmem:[%s5 + $0x28] sm:$0xff]
  %v5212 = vld [vmem:[%s5 + $0x30] sm:$0xff]
  %v5213 = vld [vmem:[%s5 + $0x38] sm:$0xff]
  %v5214 = vld [vmem:[%s5 + $0x40] sm:$0xff]
  %v5215 = vld [vmem:[%s5 + $0x48] sm:$0xff]
  %v5216 = vld [vmem:[%s5 + $0x50] sm:$0xff]
  %v5217 = vld [vmem:[%s5 + $0x58] sm:$0xff]
  %v5218 = vld [vmem:[%s5 + $0x60] sm:$0xff]
  %v5219 = vld [vmem:[%s5 + $0x68] sm:$0xff]
  %v5220 = vld [vmem:[%s5 + $0x70] sm:$0xff]
  %v5221 = vld [vmem:[%s5 + $0x78] sm:$0xff]
  %v5222 = vld [vmem:[%s5 + $0x80] sm:$0xff]
  %v5223 = vld [vmem:[%s5 + $0x88] sm:$0xff]
  %v5224 = vld [vmem:[%s5 + $0x90] sm:$0xff]
  %v5225 = vld [vmem:[%s5 + $0x98] sm:$0xff]
  %v5226 = vld [vmem:[%s5 + $0xa0] sm:$0xff]
  %v5227 = vld [vmem:[%s5 + $0xa8] sm:$0xff]
  %v5228 = vld [vmem:[%s5 + $0xb0] sm:$0xff]
  %v5229 = vld [vmem:[%s5 + $0xb8] sm:$0xff]
  %v5230 = vld [vmem:[%s5 + $0xc0] sm:$0xff]
  %v5231 = vld [vmem:[%s5 + $0xc8] sm:$0xff]
  %v5232 = vld [vmem:[%s5 + $0xd0] sm:$0xff]
  %v5233 = vld [vmem:[%s5 + $0xd8] sm:$0xff]
  %v5234 = vld [vmem:[%s5 + $0xe0] sm:$0xff]
  %v5235 = vld [vmem:[%s5 + $0xe8] sm:$0xff]
  %v5236 = vld [vmem:[%s5 + $0xf0] sm:$0xff]
  %v5237 = vld [vmem:[%s5 + $0xf8] sm:$0xff]
  %v5238 = vld [vmem:[%s5 + $0x100] sm:$0xff]
  %v5239 = vld [vmem:[%s5 + $0x108] sm:$0xff]
  %v5240 = vld [vmem:[%s5 + $0x110] sm:$0xff]
  %v5241 = vld [vmem:[%s5 + $0x118] sm:$0xff]
  %v5242 = vld [vmem:[%s5 + $0x120] sm:$0xff]
  %v5243 = vld [vmem:[%s5 + $0x128] sm:$0xff]
  %v5244 = vld [vmem:[%s5 + $0x130] sm:$0xff]
  %v5245 = vld [vmem:[%s5 + $0x138] sm:$0xff]
  %v5246 = vld [vmem:[%s5 + $0x140] sm:$0xff]
  %v5247 = vld [vmem:[%s5 + $0x148] sm:$0xff]
  %v5248 = vld [vmem:[%s5 + $0x150] sm:$0xff]
  %v5249 = vld [vmem:[%s5 + $0x158] sm:$0xff]
  %v5250 = vld [vmem:[%s5 + $0x160] sm:$0xff]
  %v5251 = vld [vmem:[%s5 + $0x168] sm:$0xff]
  %v5252 = vld [vmem:[%s5 + $0x170] sm:$0xff]
  %v5253 = vld [vmem:[%s5 + $0x178] sm:$0xff]
  %v5254 = vld [vmem:[%s5 + $0x180] sm:$0xff]
  %v5255 = vld [vmem:[%s5 + $0x188] sm:$0xff]
  %v5256 = vld [vmem:[%s5 + $0x190] sm:$0xff]
  %v5257 = vld [vmem:[%s5 + $0x198] sm:$0xff]
  %v5258 = vld [vmem:[%s5 + $0x1a0] sm:$0xff]
  %v5259 = vld [vmem:[%s5 + $0x1a8] sm:$0xff]
  %v5260 = vld [vmem:[%s5 + $0x1b0] sm:$0xff]
  %v5261 = vld [vmem:[%s5 + $0x1b8] sm:$0xff]
  %v5262 = vld [vmem:[%s5 + $0x1c0] sm:$0xff]
  %v5263 = vld [vmem:[%s5 + $0x1c8] sm:$0xff]
  %v5264 = vld [vmem:[%s5 + $0x1d0] sm:$0xff]
  %v5265 = vld [vmem:[%s5 + $0x1d8] sm:$0xff]
  %v5266 = vld [vmem:[%s5 + $0x1e0] sm:$0xff]
  %v5267 = vld [vmem:[%s5 + $0x1e8] sm:$0xff]
  %v5268 = vld [vmem:[%s5 + $0x1f0] sm:$0xff]
  %v5269 = vld [vmem:[%s5 + $0x1f8] sm:$0xff]
  %v5270 = vld [vmem:[%s6] sm:$0xf]
  %v5272 = vperm.slane %v5270, 0
  %v5273 = vperm.slane %v5270, 1
  %v5274 = vperm.slane %v5270, 2
  %v5275 = vperm.slane %v5270, 3
  %v5281 = vunpack.c.l.b16 %v5205
  %v5282 = vunpack.c.h.b16 %v5205
  %v5283 = vpack.c.b16 %v5281, %v5281
  %v5284 = vpack.c.b16 %v5282, %v5282
  %v5351 = vunpack.c.l.b16 %v5206
  %v5352 = vunpack.c.h.b16 %v5206
  %v5353 = vunpack.c.l.b16 %v5207
  %v5354 = vunpack.c.h.b16 %v5207
  %v5355 = vunpack.c.l.b16 %v5208
  %v5356 = vunpack.c.h.b16 %v5208
  %v5357 = vunpack.c.l.b16 %v5209
  %v5358 = vunpack.c.h.b16 %v5209
  %v5359 = vunpack.c.l.b16 %v5210
  %v5360 = vunpack.c.h.b16 %v5210
  %v5361 = vunpack.c.l.b16 %v5211
  %v5362 = vunpack.c.h.b16 %v5211
  %v5363 = vunpack.c.l.b16 %v5212
  %v5364 = vunpack.c.h.b16 %v5212
  %v5365 = vunpack.c.l.b16 %v5213
  %v5366 = vunpack.c.h.b16 %v5213
  %v5367 = vunpack.c.l.b16 %v5214
  %v5368 = vunpack.c.h.b16 %v5214
  %v5369 = vunpack.c.l.b16 %v5215
  %v5370 = vunpack.c.h.b16 %v5215
  %v5371 = vunpack.c.l.b16 %v5216
  %v5372 = vunpack.c.h.b16 %v5216
  %v5373 = vunpack.c.l.b16 %v5217
  %v5374 = vunpack.c.h.b16 %v5217
  %v5375 = vunpack.c.l.b16 %v5218
  %v5376 = vunpack.c.h.b16 %v5218
  %v5377 = vunpack.c.l.b16 %v5219
  %v5378 = vunpack.c.h.b16 %v5219
  %v5379 = vunpack.c.l.b16 %v5220
  %v5380 = vunpack.c.h.b16 %v5220
  %v5381 = vunpack.c.l.b16 %v5221
  %v5382 = vunpack.c.h.b16 %v5221
  %v5383 = vunpack.c.l.b16 %v5222
  %v5384 = vunpack.c.h.b16 %v5222
  %v5385 = vunpack.c.l.b16 %v5223
  %v5386 = vunpack.c.h.b16 %v5223
  %v5387 = vunpack.c.l.b16 %v5224
  %v5388 = vunpack.c.h.b16 %v5224
  %v5389 = vunpack.c.l.b16 %v5225
  %v5390 = vunpack.c.h.b16 %v5225
  %v5391 = vunpack.c.l.b16 %v5226
  %v5392 = vunpack.c.h.b16 %v5226
  %v5393 = vunpack.c.l.b16 %v5227
  %v5394 = vunpack.c.h.b16 %v5227
  %v5395 = vunpack.c.l.b16 %v5228
  %v5396 = vunpack.c.h.b16 %v5228
  %v5397 = vunpack.c.l.b16 %v5229
  %v5398 = vunpack.c.h.b16 %v5229
  %v5399 = vunpack.c.l.b16 %v5230
  %v5400 = vunpack.c.h.b16 %v5230
  %v5401 = vunpack.c.l.b16 %v5231
  %v5402 = vunpack.c.h.b16 %v5231
  %v5403 = vunpack.c.l.b16 %v5232
  %v5404 = vunpack.c.h.b16 %v5232
  %v5405 = vunpack.c.l.b16 %v5233
  %v5406 = vunpack.c.h.b16 %v5233
  %v5407 = vunpack.c.l.b16 %v5234
  %v5408 = vunpack.c.h.b16 %v5234
  %v5409 = vunpack.c.l.b16 %v5235
  %v5410 = vunpack.c.h.b16 %v5235
  %v5411 = vunpack.c.l.b16 %v5236
  %v5412 = vunpack.c.h.b16 %v5236
  %v5413 = vunpack.c.l.b16 %v5237
  %v5414 = vunpack.c.h.b16 %v5237
  %v5415 = vunpack.c.l.b16 %v5238
  %v5416 = vunpack.c.h.b16 %v5238
  %v5417 = vunpack.c.l.b16 %v5239
  %v5418 = vunpack.c.h.b16 %v5239
  %v5419 = vunpack.c.l.b16 %v5240
  %v5420 = vunpack.c.h.b16 %v5240
  %v5421 = vunpack.c.l.b16 %v5241
  %v5422 = vunpack.c.h.b16 %v5241
  %v5423 = vunpack.c.l.b16 %v5242
  %v5424 = vunpack.c.h.b16 %v5242
  %v5425 = vunpack.c.l.b16 %v5243
  %v5426 = vunpack.c.h.b16 %v5243
  %v5427 = vunpack.c.l.b16 %v5244
  %v5428 = vunpack.c.h.b16 %v5244
  %v5429 = vunpack.c.l.b16 %v5245
  %v5430 = vunpack.c.h.b16 %v5245
  %v5431 = vunpack.c.l.b16 %v5246
  %v5432 = vunpack.c.h.b16 %v5246
  %v5433 = vunpack.c.l.b16 %v5247
  %v5434 = vunpack.c.h.b16 %v5247
  %v5435 = vunpack.c.l.b16 %v5248
  %v5436 = vunpack.c.h.b16 %v5248
  %v5437 = vunpack.c.l.b16 %v5249
  %v5438 = vunpack.c.h.b16 %v5249
  %v5439 = vunpack.c.l.b16 %v5250
  %v5440 = vunpack.c.h.b16 %v5250
  %v5441 = vunpack.c.l.b16 %v5251
  %v5442 = vunpack.c.h.b16 %v5251
  %v5443 = vunpack.c.l.b16 %v5252
  %v5444 = vunpack.c.h.b16 %v5252
  %v5445 = vunpack.c.l.b16 %v5253
  %v5446 = vunpack.c.h.b16 %v5253
  %v5447 = vunpack.c.l.b16 %v5254
  %v5448 = vunpack.c.h.b16 %v5254
  %v5449 = vunpack.c.l.b16 %v5255
  %v5450 = vunpack.c.h.b16 %v5255
  %v5451 = vunpack.c.l.b16 %v5256
  %v5452 = vunpack.c.h.b16 %v5256
  %v5453 = vunpack.c.l.b16 %v5257
  %v5454 = vunpack.c.h.b16 %v5257
  %v5455 = vunpack.c.l.b16 %v5258
  %v5456 = vunpack.c.h.b16 %v5258
  %v5457 = vunpack.c.l.b16 %v5259
  %v5458 = vunpack.c.h.b16 %v5259
  %v5459 = vunpack.c.l.b16 %v5260
  %v5460 = vunpack.c.h.b16 %v5260
  %v5461 = vunpack.c.l.b16 %v5261
  %v5462 = vunpack.c.h.b16 %v5261
  %v5463 = vunpack.c.l.b16 %v5262
  %v5464 = vunpack.c.h.b16 %v5262
  %v5465 = vunpack.c.l.b16 %v5263
  %v5466 = vunpack.c.h.b16 %v5263
  %v5467 = vunpack.c.l.b16 %v5264
  %v5468 = vunpack.c.h.b16 %v5264
  %v5469 = vunpack.c.l.b16 %v5265
  %v5470 = vunpack.c.h.b16 %v5265
  %v5471 = vunpack.c.l.b16 %v5266
  %v5472 = vunpack.c.h.b16 %v5266
  %v5473 = vunpack.c.l.b16 %v5267
  %v5474 = vunpack.c.h.b16 %v5267
  %v5475 = vunpack.c.l.b16 %v5268
  %v5476 = vunpack.c.h.b16 %v5268
  %v5477 = vunpack.c.l.b16 %v5269
  %v5478 = vunpack.c.h.b16 %v5269
  %v5479 = vpack.c.b16 %v5355, %v5351
  %v5480 = vpack.c.b16 %v5356, %v5352
  %v5481 = vpack.c.b16 %v5357, %v5353
  %v5482 = vpack.c.b16 %v5358, %v5354
  %v5483 = vpack.c.b16 %v5363, %v5359
  %v5484 = vpack.c.b16 %v5364, %v5360
  %v5485 = vpack.c.b16 %v5365, %v5361
  %v5486 = vpack.c.b16 %v5366, %v5362
  %v5487 = vpack.c.b16 %v5371, %v5367
  %v5488 = vpack.c.b16 %v5372, %v5368
  %v5489 = vpack.c.b16 %v5373, %v5369
  %v5490 = vpack.c.b16 %v5374, %v5370
  %v5491 = vpack.c.b16 %v5379, %v5375
  %v5492 = vpack.c.b16 %v5380, %v5376
  %v5493 = vpack.c.b16 %v5381, %v5377
  %v5494 = vpack.c.b16 %v5382, %v5378
  %v5495 = vpack.c.b16 %v5387, %v5383
  %v5496 = vpack.c.b16 %v5388, %v5384
  %v5497 = vpack.c.b16 %v5389, %v5385
  %v5498 = vpack.c.b16 %v5390, %v5386
  %v5499 = vpack.c.b16 %v5395, %v5391
  %v5500 = vpack.c.b16 %v5396, %v5392
  %v5501 = vpack.c.b16 %v5397, %v5393
  %v5502 = vpack.c.b16 %v5398, %v5394
  %v5503 = vpack.c.b16 %v5403, %v5399
  %v5504 = vpack.c.b16 %v5404, %v5400
  %v5505 = vpack.c.b16 %v5405, %v5401
  %v5506 = vpack.c.b16 %v5406, %v5402
  %v5507 = vpack.c.b16 %v5411, %v5407
  %v5508 = vpack.c.b16 %v5412, %v5408
  %v5509 = vpack.c.b16 %v5413, %v5409
  %v5510 = vpack.c.b16 %v5414, %v5410
  %v5511 = vpack.c.b16 %v5419, %v5415
  %v5512 = vpack.c.b16 %v5420, %v5416
  %v5513 = vpack.c.b16 %v5421, %v5417
  %v5514 = vpack.c.b16 %v5422, %v5418
  %v5515 = vpack.c.b16 %v5427, %v5423
  %v5516 = vpack.c.b16 %v5428, %v5424
  %v5517 = vpack.c.b16 %v5429, %v5425
  %v5518 = vpack.c.b16 %v5430, %v5426
  %v5519 = vpack.c.b16 %v5435, %v5431
  %v5520 = vpack.c.b16 %v5436, %v5432
  %v5521 = vpack.c.b16 %v5437, %v5433
  %v5522 = vpack.c.b16 %v5438, %v5434
  %v5523 = vpack.c.b16 %v5443, %v5439
  %v5524 = vpack.c.b16 %v5444, %v5440
  %v5525 = vpack.c.b16 %v5445, %v5441
  %v5526 = vpack.c.b16 %v5446, %v5442
  %v5527 = vpack.c.b16 %v5451, %v5447
  %v5528 = vpack.c.b16 %v5452, %v5448
  %v5529 = vpack.c.b16 %v5453, %v5449
  %v5530 = vpack.c.b16 %v5454, %v5450
  %v5531 = vpack.c.b16 %v5459, %v5455
  %v5532 = vpack.c.b16 %v5460, %v5456
  %v5533 = vpack.c.b16 %v5461, %v5457
  %v5534 = vpack.c.b16 %v5462, %v5458
  %v5535 = vpack.c.b16 %v5467, %v5463
  %v5536 = vpack.c.b16 %v5468, %v5464
  %v5537 = vpack.c.b16 %v5469, %v5465
  %v5538 = vpack.c.b16 %v5470, %v5466
  %v5539 = vpack.c.b16 %v5475, %v5471
  %v5540 = vpack.c.b16 %v5476, %v5472
  %v5541 = vpack.c.b16 %v5477, %v5473
  %v5542 = vpack.c.b16 %v5478, %v5474
  %5607 = vmatpush.bf16.msra.mxu0 %v5507
  %5608 = vmatpush.bf16.msra.mxu0 %v5503
  %5609 = vmatpush.bf16.msra.mxu0 %v5499
  %5610 = vmatpush.bf16.msra.mxu0 %v5495
  %5611 = vmatpush.bf16.msra.mxu0 %v5491
  %5612 = vmatpush.bf16.msra.mxu0 %v5487
  %5613 = vmatpush.bf16.msra.mxu0 %v5483
  %5614 = vmatpush.bf16.msra.mxu0 %v5479
  %5615 = vmatmul.bf16.gmra.mxu0 %v5283
  %v5616 = vpop.f32.mrf.mxu0
  %v5617 = vadd.f32 %v5272, %v5616
  %v5618 = vpop.f32.mrf.mxu0
  %5619 = vdwg.mxu0
  %5620 = vmatpush.bf16.msra.mxu0 %v5539
  %5621 = vmatpush.bf16.msra.mxu0 %v5535
  %5622 = vmatpush.bf16.msra.mxu0 %v5531
  %5623 = vmatpush.bf16.msra.mxu0 %v5527
  %5624 = vmatpush.bf16.msra.mxu0 %v5523
  %5625 = vmatpush.bf16.msra.mxu0 %v5519
  %5626 = vmatpush.bf16.msra.mxu0 %v5515
  %5627 = vmatpush.bf16.msra.mxu0 %v5511
  %5628 = vmatmul.bf16.gmra.mxu0 %v5284
  %v5629 = vpop.f32.mrf.mxu0
  %v5630 = vadd.f32 %v5617, %v5629
  %v5631 = vpop.f32.mrf.mxu0
  %5632 = vdwg.mxu0
  %5633 = vmatpush.bf16.msra.mxu0 %v5508
  %5634 = vmatpush.bf16.msra.mxu0 %v5504
  %5635 = vmatpush.bf16.msra.mxu0 %v5500
  %5636 = vmatpush.bf16.msra.mxu0 %v5496
  %5637 = vmatpush.bf16.msra.mxu0 %v5492
  %5638 = vmatpush.bf16.msra.mxu0 %v5488
  %5639 = vmatpush.bf16.msra.mxu0 %v5484
  %5640 = vmatpush.bf16.msra.mxu0 %v5480
  %5641 = vmatmul.bf16.gmra.mxu0 %v5283
  %v5642 = vpop.f32.mrf.mxu0
  %v5643 = vadd.f32 %v5273, %v5642
  %v5644 = vpop.f32.mrf.mxu0
  %5645 = vdwg.mxu0
  %5646 = vmatpush.bf16.msra.mxu0 %v5540
  %5647 = vmatpush.bf16.msra.mxu0 %v5536
  %5648 = vmatpush.bf16.msra.mxu0 %v5532
  %5649 = vmatpush.bf16.msra.mxu0 %v5528
  %5650 = vmatpush.bf16.msra.mxu0 %v5524
  %5651 = vmatpush.bf16.msra.mxu0 %v5520
  %5652 = vmatpush.bf16.msra.mxu0 %v5516
  %5653 = vmatpush.bf16.msra.mxu0 %v5512
  %5654 = vmatmul.bf16.gmra.mxu0 %v5284
  %v5655 = vpop.f32.mrf.mxu0
  %v5656 = vadd.f32 %v5643, %v5655
  %v5657 = vpop.f32.mrf.mxu0
  %5658 = vdwg.mxu0
  %5659 = vmatpush.bf16.msra.mxu0 %v5509
  %5660 = vmatpush.bf16.msra.mxu0 %v5505
  %5661 = vmatpush.bf16.msra.mxu0 %v5501
  %5662 = vmatpush.bf16.msra.mxu0 %v5497
  %5663 = vmatpush.bf16.msra.mxu0 %v5493
  %5664 = vmatpush.bf16.msra.mxu0 %v5489
  %5665 = vmatpush.bf16.msra.mxu0 %v5485
  %5666 = vmatpush.bf16.msra.mxu0 %v5481
  %5667 = vmatmul.bf16.gmra.mxu0 %v5283
  %v5668 = vpop.f32.mrf.mxu0
  %v5669 = vadd.f32 %v5274, %v5668
  %v5670 = vpop.f32.mrf.mxu0
  %5671 = vdwg.mxu0
  %5672 = vmatpush.bf16.msra.mxu0 %v5541
  %5673 = vmatpush.bf16.msra.mxu0 %v5537
  %5674 = vmatpush.bf16.msra.mxu0 %v5533
  %5675 = vmatpush.bf16.msra.mxu0 %v5529
  %5676 = vmatpush.bf16.msra.mxu0 %v5525
  %5677 = vmatpush.bf16.msra.mxu0 %v5521
  %5678 = vmatpush.bf16.msra.mxu0 %v5517
  %5679 = vmatpush.bf16.msra.mxu0 %v5513
  %5680 = vmatmul.bf16.gmra.mxu0 %v5284
  %v5681 = vpop.f32.mrf.mxu0
  %v5682 = vadd.f32 %v5669, %v5681
  %v5683 = vpop.f32.mrf.mxu0
  %5684 = vdwg.mxu0
  %5685 = vmatpush.bf16.msra.mxu0 %v5510
  %5686 = vmatpush.bf16.msra.mxu0 %v5506
  %5687 = vmatpush.bf16.msra.mxu0 %v5502
  %5688 = vmatpush.bf16.msra.mxu0 %v5498
  %5689 = vmatpush.bf16.msra.mxu0 %v5494
  %5690 = vmatpush.bf16.msra.mxu0 %v5490
  %5691 = vmatpush.bf16.msra.mxu0 %v5486
  %5692 = vmatpush.bf16.msra.mxu0 %v5482
  %5693 = vmatmul.bf16.gmra.mxu0 %v5283
  %v5694 = vpop.f32.mrf.mxu0
  %v5695 = vadd.f32 %v5275, %v5694
  %v5696 = vpop.f32.mrf.mxu0
  %5697 = vdwg.mxu0
  %5698 = vmatpush.bf16.msra.mxu0 %v5542
  %5699 = vmatpush.bf16.msra.mxu0 %v5538
  %5700 = vmatpush.bf16.msra.mxu0 %v5534
  %5701 = vmatpush.bf16.msra.mxu0 %v5530
  %5702 = vmatpush.bf16.msra.mxu0 %v5526
  %5703 = vmatpush.bf16.msra.mxu0 %v5522
  %5704 = vmatpush.bf16.msra.mxu0 %v5518
  %5705 = vmatpush.bf16.msra.mxu0 %v5514
  %5706 = vmatmul.bf16.gmra.mxu0 %v5284
  %v5707 = vpop.f32.mrf.mxu0
  %v5708 = vadd.f32 %v5695, %v5707
  %v5709 = vpop.f32.mrf.mxu0
  %5710 = vdwg.mxu0
  %v5711 = vxor.u32 %v5630, 2147483648
  %v5712 = vmul.f32 %v5711, 1.442695
  %v5713 = vpow.pop %v5712
  %v5714 = vadd.f32 %v5713, 1.0
  %v5715 = vrcp.pop %v5714
  %v5716 = vmul.f32 %v5714, %v5715
  %v5717 = vsub.f32 1.0, %v5716
  %v5718 = vmul.f32 %v5715, %v5717
  %v5719 = vadd.f32 %v5715, %v5718
  %vm5720 = vweird.f32 %v5714
  %vm5721 = vweird.f32 %v5715
  %vm5722 = vmor %vm5720, %vm5721
  %v5723 = vsel %vm5722, %v5715, %v5719
  %v5724 = vand.u32 2147483647, %v5714
  %vm5725 = vcmp.eq.f32.partialorder %v5724, 8.507059e+37
  %v5726 = vand.u32 %v5714, 2147483648
  %v5727 = vor.u32 1.1754944e-38, %v5726
  %v5728 = vsel %vm5725, %v5727, %v5723
  %v5729 = vmul.f32 1.0, %v5728
  %v5730 = vxor.u32 %v5656, 2147483648
  %v5731 = vmul.f32 %v5730, 1.442695
  %v5732 = vpow.pop %v5731
  %v5733 = vadd.f32 %v5732, 1.0
  %v5734 = vrcp.pop %v5733
  %v5735 = vmul.f32 %v5733, %v5734
  %v5736 = vsub.f32 1.0, %v5735
  %v5737 = vmul.f32 %v5734, %v5736
  %v5738 = vadd.f32 %v5734, %v5737
  %vm5739 = vweird.f32 %v5733
  %vm5740 = vweird.f32 %v5734
  %vm5741 = vmor %vm5739, %vm5740
  %v5742 = vsel %vm5741, %v5734, %v5738
  %v5743 = vand.u32 2147483647, %v5733
  %vm5744 = vcmp.eq.f32.partialorder %v5743, 8.507059e+37
  %v5745 = vand.u32 %v5733, 2147483648
  %v5746 = vor.u32 1.1754944e-38, %v5745
  %v5747 = vsel %vm5744, %v5746, %v5742
  %v5748 = vmul.f32 1.0, %v5747
  %v5749 = vtanh.pop %v5682
  %v5750 = vxor.u32 %v5708, 2147483648
  %v5751 = vmul.f32 %v5750, 1.442695
  %v5752 = vpow.pop %v5751
  %v5753 = vadd.f32 %v5752, 1.0
  %v5754 = vrcp.pop %v5753
  %v5755 = vmul.f32 %v5753, %v5754
  %v5756 = vsub.f32 1.0, %v5755
  %v5757 = vmul.f32 %v5754, %v5756
  %v5758 = vadd.f32 %v5754, %v5757
  %vm5759 = vweird.f32 %v5753
  %vm5760 = vweird.f32 %v5754
  %vm5761 = vmor %vm5759, %vm5760
  %v5762 = vsel %vm5761, %v5754, %v5758
  %v5763 = vand.u32 2147483647, %v5753
  %vm5764 = vcmp.eq.f32.partialorder %v5763, 8.507059e+37
  %v5765 = vand.u32 %v5753, 2147483648
  %v5766 = vor.u32 1.1754944e-38, %v5765
  %v5767 = vsel %vm5764, %v5766, %v5762
  %v5768 = vmul.f32 1.0, %v5767
  %v5769 = vmul.f32 %v5748, %v4869
  %v5770 = vmul.f32 %v5729, %v5749
  %v5771 = vadd.f32 %v5769, %v5770
  %v5772 = vtanh.pop %v5771
  %v5773 = vmul.f32 %v5768, %v5772
  %v5774 = vsel %vm5198, %v5773, %v4868
  %v5775 = vsel %vm5198, %v5771, %v4869
  %s5776 = sadd.s32 %s339, 6
  %v5777 = vld [vmem:[%s1] sm:$0xff]
  %v5778 = vstv %s5776
  %vm5779 = vcmp.lt.s32.totalorder %v5778, %v5777
  %s5780 = smul.u32 6, 4
  %s5781 = smul.addr %s5780, 4
  %s5782 = scalar_lea.vmem [#allocation2], %s5781
  %v5783 = vld [vmem:[%s5782] sm:$0xff]
  %v5784 = vld [vmem:[%s5782 + $0x8] sm:$0xff]
  %v5785 = vunpack.c.l.bf16 %v5783
  %v5786 = vunpack.c.h.bf16 %v5783
  %v5787 = vunpack.c.l.bf16 %v5784
  %v5788 = vunpack.c.h.bf16 %v5784
  %v5789 = vld [vmem:[%s3] sm:$0xff]
  %v5790 = vld [vmem:[%s3 + $0x8] sm:$0xff]
  %v5791 = vld [vmem:[%s3 + $0x10] sm:$0xff]
  %v5792 = vld [vmem:[%s3 + $0x18] sm:$0xff]
  %v5793 = vld [vmem:[%s3 + $0x20] sm:$0xff]
  %v5794 = vld [vmem:[%s3 + $0x28] sm:$0xff]
  %v5795 = vld [vmem:[%s3 + $0x30] sm:$0xff]
  %v5796 = vld [vmem:[%s3 + $0x38] sm:$0xff]
  %v5797 = vld [vmem:[%s3 + $0x40] sm:$0xff]
  %v5798 = vld [vmem:[%s3 + $0x48] sm:$0xff]
  %v5799 = vld [vmem:[%s3 + $0x50] sm:$0xff]
  %v5800 = vld [vmem:[%s3 + $0x58] sm:$0xff]
  %v5801 = vld [vmem:[%s3 + $0x60] sm:$0xff]
  %v5802 = vld [vmem:[%s3 + $0x68] sm:$0xff]
  %v5803 = vld [vmem:[%s3 + $0x70] sm:$0xff]
  %v5804 = vld [vmem:[%s3 + $0x78] sm:$0xff]
  %v5805 = vld [vmem:[%s3 + $0x80] sm:$0xff]
  %v5806 = vld [vmem:[%s3 + $0x88] sm:$0xff]
  %v5807 = vld [vmem:[%s3 + $0x90] sm:$0xff]
  %v5808 = vld [vmem:[%s3 + $0x98] sm:$0xff]
  %v5809 = vld [vmem:[%s3 + $0xa0] sm:$0xff]
  %v5810 = vld [vmem:[%s3 + $0xa8] sm:$0xff]
  %v5811 = vld [vmem:[%s3 + $0xb0] sm:$0xff]
  %v5812 = vld [vmem:[%s3 + $0xb8] sm:$0xff]
  %v5813 = vld [vmem:[%s3 + $0xc0] sm:$0xff]
  %v5814 = vld [vmem:[%s3 + $0xc8] sm:$0xff]
  %v5815 = vld [vmem:[%s3 + $0xd0] sm:$0xff]
  %v5816 = vld [vmem:[%s3 + $0xd8] sm:$0xff]
  %v5817 = vld [vmem:[%s3 + $0xe0] sm:$0xff]
  %v5818 = vld [vmem:[%s3 + $0xe8] sm:$0xff]
  %v5819 = vld [vmem:[%s3 + $0xf0] sm:$0xff]
  %v5820 = vld [vmem:[%s3 + $0xf8] sm:$0xff]
  %v5853 = vunpack.c.l.b16 %v5789
  %v5854 = vunpack.c.h.b16 %v5789
  %v5855 = vunpack.c.l.b16 %v5790
  %v5856 = vunpack.c.h.b16 %v5790
  %v5857 = vunpack.c.l.b16 %v5791
  %v5858 = vunpack.c.h.b16 %v5791
  %v5859 = vunpack.c.l.b16 %v5792
  %v5860 = vunpack.c.h.b16 %v5792
  %v5861 = vunpack.c.l.b16 %v5793
  %v5862 = vunpack.c.h.b16 %v5793
  %v5863 = vunpack.c.l.b16 %v5794
  %v5864 = vunpack.c.h.b16 %v5794
  %v5865 = vunpack.c.l.b16 %v5795
  %v5866 = vunpack.c.h.b16 %v5795
  %v5867 = vunpack.c.l.b16 %v5796
  %v5868 = vunpack.c.h.b16 %v5796
  %v5869 = vunpack.c.l.b16 %v5797
  %v5870 = vunpack.c.h.b16 %v5797
  %v5871 = vunpack.c.l.b16 %v5798
  %v5872 = vunpack.c.h.b16 %v5798
  %v5873 = vunpack.c.l.b16 %v5799
  %v5874 = vunpack.c.h.b16 %v5799
  %v5875 = vunpack.c.l.b16 %v5800
  %v5876 = vunpack.c.h.b16 %v5800
  %v5877 = vunpack.c.l.b16 %v5801
  %v5878 = vunpack.c.h.b16 %v5801
  %v5879 = vunpack.c.l.b16 %v5802
  %v5880 = vunpack.c.h.b16 %v5802
  %v5881 = vunpack.c.l.b16 %v5803
  %v5882 = vunpack.c.h.b16 %v5803
  %v5883 = vunpack.c.l.b16 %v5804
  %v5884 = vunpack.c.h.b16 %v5804
  %v5885 = vunpack.c.l.b16 %v5805
  %v5886 = vunpack.c.h.b16 %v5805
  %v5887 = vunpack.c.l.b16 %v5806
  %v5888 = vunpack.c.h.b16 %v5806
  %v5889 = vunpack.c.l.b16 %v5807
  %v5890 = vunpack.c.h.b16 %v5807
  %v5891 = vunpack.c.l.b16 %v5808
  %v5892 = vunpack.c.h.b16 %v5808
  %v5893 = vunpack.c.l.b16 %v5809
  %v5894 = vunpack.c.h.b16 %v5809
  %v5895 = vunpack.c.l.b16 %v5810
  %v5896 = vunpack.c.h.b16 %v5810
  %v5897 = vunpack.c.l.b16 %v5811
  %v5898 = vunpack.c.h.b16 %v5811
  %v5899 = vunpack.c.l.b16 %v5812
  %v5900 = vunpack.c.h.b16 %v5812
  %v5901 = vunpack.c.l.b16 %v5813
  %v5902 = vunpack.c.h.b16 %v5813
  %v5903 = vunpack.c.l.b16 %v5814
  %v5904 = vunpack.c.h.b16 %v5814
  %v5905 = vunpack.c.l.b16 %v5815
  %v5906 = vunpack.c.h.b16 %v5815
  %v5907 = vunpack.c.l.b16 %v5816
  %v5908 = vunpack.c.h.b16 %v5816
  %v5909 = vunpack.c.l.b16 %v5817
  %v5910 = vunpack.c.h.b16 %v5817
  %v5911 = vunpack.c.l.b16 %v5818
  %v5912 = vunpack.c.h.b16 %v5818
  %v5913 = vunpack.c.l.b16 %v5819
  %v5914 = vunpack.c.h.b16 %v5819
  %v5915 = vunpack.c.l.b16 %v5820
  %v5916 = vunpack.c.h.b16 %v5820
  %v5917 = vpack.c.b16 %v5857, %v5853
  %v5918 = vpack.c.b16 %v5858, %v5854
  %v5919 = vpack.c.b16 %v5859, %v5855
  %v5920 = vpack.c.b16 %v5860, %v5856
  %v5921 = vpack.c.b16 %v5865, %v5861
  %v5922 = vpack.c.b16 %v5866, %v5862
  %v5923 = vpack.c.b16 %v5867, %v5863
  %v5924 = vpack.c.b16 %v5868, %v5864
  %v5925 = vpack.c.b16 %v5873, %v5869
  %v5926 = vpack.c.b16 %v5874, %v5870
  %v5927 = vpack.c.b16 %v5875, %v5871
  %v5928 = vpack.c.b16 %v5876, %v5872
  %v5929 = vpack.c.b16 %v5881, %v5877
  %v5930 = vpack.c.b16 %v5882, %v5878
  %v5931 = vpack.c.b16 %v5883, %v5879
  %v5932 = vpack.c.b16 %v5884, %v5880
  %v5933 = vpack.c.b16 %v5889, %v5885
  %v5934 = vpack.c.b16 %v5890, %v5886
  %v5935 = vpack.c.b16 %v5891, %v5887
  %v5936 = vpack.c.b16 %v5892, %v5888
  %v5937 = vpack.c.b16 %v5897, %v5893
  %v5938 = vpack.c.b16 %v5898, %v5894
  %v5939 = vpack.c.b16 %v5899, %v5895
  %v5940 = vpack.c.b16 %v5900, %v5896
  %v5941 = vpack.c.b16 %v5905, %v5901
  %v5942 = vpack.c.b16 %v5906, %v5902
  %v5943 = vpack.c.b16 %v5907, %v5903
  %v5944 = vpack.c.b16 %v5908, %v5904
  %v5945 = vpack.c.b16 %v5913, %v5909
  %v5946 = vpack.c.b16 %v5914, %v5910
  %v5947 = vpack.c.b16 %v5915, %v5911
  %v5948 = vpack.c.b16 %v5916, %v5912
  %5981 = vmatpush.bf16.msra.mxu0 %v5945
  %5982 = vmatpush.bf16.msra.mxu0 %v5941
  %5983 = vmatpush.bf16.msra.mxu0 %v5937
  %5984 = vmatpush.bf16.msra.mxu0 %v5933
  %5985 = vmatpush.bf16.msra.mxu0 %v5929
  %5986 = vmatpush.bf16.msra.mxu0 %v5925
  %5987 = vmatpush.bf16.msra.mxu0 %v5921
  %5988 = vmatpush.bf16.msra.mxu0 %v5917
  %5989 = vmatmul.bf16.gmra.mxu0 %v5201
  %v5990 = vpop.f32.mrf.mxu0
  %v5991 = vadd.f32 0.0, %v5990
  %v5992 = vpop.f32.mrf.mxu0
  %5993 = vdwg.mxu0
  %5994 = vmatpush.bf16.msra.mxu0 %v5946
  %5995 = vmatpush.bf16.msra.mxu0 %v5942
  %5996 = vmatpush.bf16.msra.mxu0 %v5938
  %5997 = vmatpush.bf16.msra.mxu0 %v5934
  %5998 = vmatpush.bf16.msra.mxu0 %v5930
  %5999 = vmatpush.bf16.msra.mxu0 %v5926
  %6000 = vmatpush.bf16.msra.mxu0 %v5922
  %6001 = vmatpush.bf16.msra.mxu0 %v5918
  %6002 = vmatmul.bf16.gmra.mxu0 %v5201
  %v6003 = vpop.f32.mrf.mxu0
  %v6004 = vadd.f32 0.0, %v6003
  %v6005 = vpop.f32.mrf.mxu0
  %6006 = vdwg.mxu0
  %6007 = vmatpush.bf16.msra.mxu0 %v5947
  %6008 = vmatpush.bf16.msra.mxu0 %v5943
  %6009 = vmatpush.bf16.msra.mxu0 %v5939
  %6010 = vmatpush.bf16.msra.mxu0 %v5935
  %6011 = vmatpush.bf16.msra.mxu0 %v5931
  %6012 = vmatpush.bf16.msra.mxu0 %v5927
  %6013 = vmatpush.bf16.msra.mxu0 %v5923
  %6014 = vmatpush.bf16.msra.mxu0 %v5919
  %6015 = vmatmul.bf16.gmra.mxu0 %v5201
  %v6016 = vpop.f32.mrf.mxu0
  %v6017 = vadd.f32 0.0, %v6016
  %v6018 = vpop.f32.mrf.mxu0
  %6019 = vdwg.mxu0
  %6020 = vmatpush.bf16.msra.mxu0 %v5948
  %6021 = vmatpush.bf16.msra.mxu0 %v5944
  %6022 = vmatpush.bf16.msra.mxu0 %v5940
  %6023 = vmatpush.bf16.msra.mxu0 %v5936
  %6024 = vmatpush.bf16.msra.mxu0 %v5932
  %6025 = vmatpush.bf16.msra.mxu0 %v5928
  %6026 = vmatpush.bf16.msra.mxu0 %v5924
  %6027 = vmatpush.bf16.msra.mxu0 %v5920
  %6028 = vmatmul.bf16.gmra.mxu0 %v5201
  %v6029 = vpop.f32.mrf.mxu0
  %v6030 = vadd.f32 0.0, %v6029
  %v6031 = vpop.f32.mrf.mxu0
  %6032 = vdwg.mxu0
  %v6033 = vadd.f32 %v5785, %v5991
  %v6034 = vadd.f32 %v5786, %v6004
  %v6035 = vadd.f32 %v5787, %v6017
  %v6036 = vadd.f32 %v5788, %v6030
  %v6037 = vxor.u32 %v6033, 2147483648
  %v6038 = vmul.f32 %v6037, 1.442695
  %v6039 = vpow.pop %v6038
  %v6040 = vadd.f32 %v6039, 1.0
  %v6041 = vrcp.pop %v6040
  %v6042 = vmul.f32 %v6040, %v6041
  %v6043 = vsub.f32 1.0, %v6042
  %v6044 = vmul.f32 %v6041, %v6043
  %v6045 = vadd.f32 %v6041, %v6044
  %vm6046 = vweird.f32 %v6040
  %vm6047 = vweird.f32 %v6041
  %vm6048 = vmor %vm6046, %vm6047
  %v6049 = vsel %vm6048, %v6041, %v6045
  %v6050 = vand.u32 2147483647, %v6040
  %vm6051 = vcmp.eq.f32.partialorder %v6050, 8.507059e+37
  %v6052 = vand.u32 %v6040, 2147483648
  %v6053 = vor.u32 1.1754944e-38, %v6052
  %v6054 = vsel %vm6051, %v6053, %v6049
  %v6055 = vmul.f32 1.0, %v6054
  %v6056 = vxor.u32 %v6034, 2147483648
  %v6057 = vmul.f32 %v6056, 1.442695
  %v6058 = vpow.pop %v6057
  %v6059 = vadd.f32 %v6058, 1.0
  %v6060 = vrcp.pop %v6059
  %v6061 = vmul.f32 %v6059, %v6060
  %v6062 = vsub.f32 1.0, %v6061
  %v6063 = vmul.f32 %v6060, %v6062
  %v6064 = vadd.f32 %v6060, %v6063
  %vm6065 = vweird.f32 %v6059
  %vm6066 = vweird.f32 %v6060
  %vm6067 = vmor %vm6065, %vm6066
  %v6068 = vsel %vm6067, %v6060, %v6064
  %v6069 = vand.u32 2147483647, %v6059
  %vm6070 = vcmp.eq.f32.partialorder %v6069, 8.507059e+37
  %v6071 = vand.u32 %v6059, 2147483648
  %v6072 = vor.u32 1.1754944e-38, %v6071
  %v6073 = vsel %vm6070, %v6072, %v6068
  %v6074 = vmul.f32 1.0, %v6073
  %v6075 = vtanh.pop %v6035
  %v6076 = vxor.u32 %v6036, 2147483648
  %v6077 = vmul.f32 %v6076, 1.442695
  %v6078 = vpow.pop %v6077
  %v6079 = vadd.f32 %v6078, 1.0
  %v6080 = vrcp.pop %v6079
  %v6081 = vmul.f32 %v6079, %v6080
  %v6082 = vsub.f32 1.0, %v6081
  %v6083 = vmul.f32 %v6080, %v6082
  %v6084 = vadd.f32 %v6080, %v6083
  %vm6085 = vweird.f32 %v6079
  %vm6086 = vweird.f32 %v6080
  %vm6087 = vmor %vm6085, %vm6086
  %v6088 = vsel %vm6087, %v6080, %v6084
  %v6089 = vand.u32 2147483647, %v6079
  %vm6090 = vcmp.eq.f32.partialorder %v6089, 8.507059e+37
  %v6091 = vand.u32 %v6079, 2147483648
  %v6092 = vor.u32 1.1754944e-38, %v6091
  %v6093 = vsel %vm6090, %v6092, %v6088
  %v6094 = vmul.f32 1.0, %v6093
  %v6095 = vmul.f32 %v6074, %v5200
  %v6096 = vmul.f32 %v6055, %v6075
  %v6097 = vadd.f32 %v6095, %v6096
  %v6098 = vtanh.pop %v6097
  %v6099 = vmul.f32 %v6094, %v6098
  %v6100 = vsel %vm5779, 1, 0
  %6101 = vset.pattern.permute.xlu0 0
  %6102 = vperm.xlu0 %6101, %v6100
  %v6103 = vpop.permute.xlu0 %6102
  %vm6104 = vcmp.eq.s32.totalorder %v6103, 1
  %v6105 = vsel %vm6104, %v6099, %v5199
  %v6106 = vsel %vm6104, %v6097, %v5200
  %v6107 = vpack.c.bf16 %v6105, %v6105
  %6108 = vst [vmem:[#allocation3] sm:$0xf] %v6107
  %v6109 = vpack.c.bf16 %v5774, %v5774
  %6110 = vst [vmem:[#allocation3 + $0x4] sm:$0xf] %v6109
  %v6111 = vld [vmem:[#allocation3] sm:$0xff]
  %v6112 = vld [vmem:[%s5] sm:$0xff]
  %v6113 = vld [vmem:[%s5 + $0x8] sm:$0xff]
  %v6114 = vld [vmem:[%s5 + $0x10] sm:$0xff]
  %v6115 = vld [vmem:[%s5 + $0x18] sm:$0xff]
  %v6116 = vld [vmem:[%s5 + $0x20] sm:$0xff]
  %v6117 = vld [vmem:[%s5 + $0x28] sm:$0xff]
  %v6118 = vld [vmem:[%s5 + $0x30] sm:$0xff]
  %v6119 = vld [vmem:[%s5 + $0x38] sm:$0xff]
  %v6120 = vld [vmem:[%s5 + $0x40] sm:$0xff]
  %v6121 = vld [vmem:[%s5 + $0x48] sm:$0xff]
  %v6122 = vld [vmem:[%s5 + $0x50] sm:$0xff]
  %v6123 = vld [vmem:[%s5 + $0x58] sm:$0xff]
  %v6124 = vld [vmem:[%s5 + $0x60] sm:$0xff]
  %v6125 = vld [vmem:[%s5 + $0x68] sm:$0xff]
  %v6126 = vld [vmem:[%s5 + $0x70] sm:$0xff]
  %v6127 = vld [vmem:[%s5 + $0x78] sm:$0xff]
  %v6128 = vld [vmem:[%s5 + $0x80] sm:$0xff]
  %v6129 = vld [vmem:[%s5 + $0x88] sm:$0xff]
  %v6130 = vld [vmem:[%s5 + $0x90] sm:$0xff]
  %v6131 = vld [vmem:[%s5 + $0x98] sm:$0xff]
  %v6132 = vld [vmem:[%s5 + $0xa0] sm:$0xff]
  %v6133 = vld [vmem:[%s5 + $0xa8] sm:$0xff]
  %v6134 = vld [vmem:[%s5 + $0xb0] sm:$0xff]
  %v6135 = vld [vmem:[%s5 + $0xb8] sm:$0xff]
  %v6136 = vld [vmem:[%s5 + $0xc0] sm:$0xff]
  %v6137 = vld [vmem:[%s5 + $0xc8] sm:$0xff]
  %v6138 = vld [vmem:[%s5 + $0xd0] sm:$0xff]
  %v6139 = vld [vmem:[%s5 + $0xd8] sm:$0xff]
  %v6140 = vld [vmem:[%s5 + $0xe0] sm:$0xff]
  %v6141 = vld [vmem:[%s5 + $0xe8] sm:$0xff]
  %v6142 = vld [vmem:[%s5 + $0xf0] sm:$0xff]
  %v6143 = vld [vmem:[%s5 + $0xf8] sm:$0xff]
  %v6144 = vld [vmem:[%s5 + $0x100] sm:$0xff]
  %v6145 = vld [vmem:[%s5 + $0x108] sm:$0xff]
  %v6146 = vld [vmem:[%s5 + $0x110] sm:$0xff]
  %v6147 = vld [vmem:[%s5 + $0x118] sm:$0xff]
  %v6148 = vld [vmem:[%s5 + $0x120] sm:$0xff]
  %v6149 = vld [vmem:[%s5 + $0x128] sm:$0xff]
  %v6150 = vld [vmem:[%s5 + $0x130] sm:$0xff]
  %v6151 = vld [vmem:[%s5 + $0x138] sm:$0xff]
  %v6152 = vld [vmem:[%s5 + $0x140] sm:$0xff]
  %v6153 = vld [vmem:[%s5 + $0x148] sm:$0xff]
  %v6154 = vld [vmem:[%s5 + $0x150] sm:$0xff]
  %v6155 = vld [vmem:[%s5 + $0x158] sm:$0xff]
  %v6156 = vld [vmem:[%s5 + $0x160] sm:$0xff]
  %v6157 = vld [vmem:[%s5 + $0x168] sm:$0xff]
  %v6158 = vld [vmem:[%s5 + $0x170] sm:$0xff]
  %v6159 = vld [vmem:[%s5 + $0x178] sm:$0xff]
  %v6160 = vld [vmem:[%s5 + $0x180] sm:$0xff]
  %v6161 = vld [vmem:[%s5 + $0x188] sm:$0xff]
  %v6162 = vld [vmem:[%s5 + $0x190] sm:$0xff]
  %v6163 = vld [vmem:[%s5 + $0x198] sm:$0xff]
  %v6164 = vld [vmem:[%s5 + $0x1a0] sm:$0xff]
  %v6165 = vld [vmem:[%s5 + $0x1a8] sm:$0xff]
  %v6166 = vld [vmem:[%s5 + $0x1b0] sm:$0xff]
  %v6167 = vld [vmem:[%s5 + $0x1b8] sm:$0xff]
  %v6168 = vld [vmem:[%s5 + $0x1c0] sm:$0xff]
  %v6169 = vld [vmem:[%s5 + $0x1c8] sm:$0xff]
  %v6170 = vld [vmem:[%s5 + $0x1d0] sm:$0xff]
  %v6171 = vld [vmem:[%s5 + $0x1d8] sm:$0xff]
  %v6172 = vld [vmem:[%s5 + $0x1e0] sm:$0xff]
  %v6173 = vld [vmem:[%s5 + $0x1e8] sm:$0xff]
  %v6174 = vld [vmem:[%s5 + $0x1f0] sm:$0xff]
  %v6175 = vld [vmem:[%s5 + $0x1f8] sm:$0xff]
  %v6176 = vld [vmem:[%s6] sm:$0xf]
  %v6178 = vperm.slane %v6176, 0
  %v6179 = vperm.slane %v6176, 1
  %v6180 = vperm.slane %v6176, 2
  %v6181 = vperm.slane %v6176, 3
  %v6187 = vunpack.c.l.b16 %v6111
  %v6188 = vunpack.c.h.b16 %v6111
  %v6189 = vpack.c.b16 %v6187, %v6187
  %v6190 = vpack.c.b16 %v6188, %v6188
  %v6257 = vunpack.c.l.b16 %v6112
  %v6258 = vunpack.c.h.b16 %v6112
  %v6259 = vunpack.c.l.b16 %v6113
  %v6260 = vunpack.c.h.b16 %v6113
  %v6261 = vunpack.c.l.b16 %v6114
  %v6262 = vunpack.c.h.b16 %v6114
  %v6263 = vunpack.c.l.b16 %v6115
  %v6264 = vunpack.c.h.b16 %v6115
  %v6265 = vunpack.c.l.b16 %v6116
  %v6266 = vunpack.c.h.b16 %v6116
  %v6267 = vunpack.c.l.b16 %v6117
  %v6268 = vunpack.c.h.b16 %v6117
  %v6269 = vunpack.c.l.b16 %v6118
  %v6270 = vunpack.c.h.b16 %v6118
  %v6271 = vunpack.c.l.b16 %v6119
  %v6272 = vunpack.c.h.b16 %v6119
  %v6273 = vunpack.c.l.b16 %v6120
  %v6274 = vunpack.c.h.b16 %v6120
  %v6275 = vunpack.c.l.b16 %v6121
  %v6276 = vunpack.c.h.b16 %v6121
  %v6277 = vunpack.c.l.b16 %v6122
  %v6278 = vunpack.c.h.b16 %v6122
  %v6279 = vunpack.c.l.b16 %v6123
  %v6280 = vunpack.c.h.b16 %v6123
  %v6281 = vunpack.c.l.b16 %v6124
  %v6282 = vunpack.c.h.b16 %v6124
  %v6283 = vunpack.c.l.b16 %v6125
  %v6284 = vunpack.c.h.b16 %v6125
  %v6285 = vunpack.c.l.b16 %v6126
  %v6286 = vunpack.c.h.b16 %v6126
  %v6287 = vunpack.c.l.b16 %v6127
  %v6288 = vunpack.c.h.b16 %v6127
  %v6289 = vunpack.c.l.b16 %v6128
  %v6290 = vunpack.c.h.b16 %v6128
  %v6291 = vunpack.c.l.b16 %v6129
  %v6292 = vunpack.c.h.b16 %v6129
  %v6293 = vunpack.c.l.b16 %v6130
  %v6294 = vunpack.c.h.b16 %v6130
  %v6295 = vunpack.c.l.b16 %v6131
  %v6296 = vunpack.c.h.b16 %v6131
  %v6297 = vunpack.c.l.b16 %v6132
  %v6298 = vunpack.c.h.b16 %v6132
  %v6299 = vunpack.c.l.b16 %v6133
  %v6300 = vunpack.c.h.b16 %v6133
  %v6301 = vunpack.c.l.b16 %v6134
  %v6302 = vunpack.c.h.b16 %v6134
  %v6303 = vunpack.c.l.b16 %v6135
  %v6304 = vunpack.c.h.b16 %v6135
  %v6305 = vunpack.c.l.b16 %v6136
  %v6306 = vunpack.c.h.b16 %v6136
  %v6307 = vunpack.c.l.b16 %v6137
  %v6308 = vunpack.c.h.b16 %v6137
  %v6309 = vunpack.c.l.b16 %v6138
  %v6310 = vunpack.c.h.b16 %v6138
  %v6311 = vunpack.c.l.b16 %v6139
  %v6312 = vunpack.c.h.b16 %v6139
  %v6313 = vunpack.c.l.b16 %v6140
  %v6314 = vunpack.c.h.b16 %v6140
  %v6315 = vunpack.c.l.b16 %v6141
  %v6316 = vunpack.c.h.b16 %v6141
  %v6317 = vunpack.c.l.b16 %v6142
  %v6318 = vunpack.c.h.b16 %v6142
  %v6319 = vunpack.c.l.b16 %v6143
  %v6320 = vunpack.c.h.b16 %v6143
  %v6321 = vunpack.c.l.b16 %v6144
  %v6322 = vunpack.c.h.b16 %v6144
  %v6323 = vunpack.c.l.b16 %v6145
  %v6324 = vunpack.c.h.b16 %v6145
  %v6325 = vunpack.c.l.b16 %v6146
  %v6326 = vunpack.c.h.b16 %v6146
  %v6327 = vunpack.c.l.b16 %v6147
  %v6328 = vunpack.c.h.b16 %v6147
  %v6329 = vunpack.c.l.b16 %v6148
  %v6330 = vunpack.c.h.b16 %v6148
  %v6331 = vunpack.c.l.b16 %v6149
  %v6332 = vunpack.c.h.b16 %v6149
  %v6333 = vunpack.c.l.b16 %v6150
  %v6334 = vunpack.c.h.b16 %v6150
  %v6335 = vunpack.c.l.b16 %v6151
  %v6336 = vunpack.c.h.b16 %v6151
  %v6337 = vunpack.c.l.b16 %v6152
  %v6338 = vunpack.c.h.b16 %v6152
  %v6339 = vunpack.c.l.b16 %v6153
  %v6340 = vunpack.c.h.b16 %v6153
  %v6341 = vunpack.c.l.b16 %v6154
  %v6342 = vunpack.c.h.b16 %v6154
  %v6343 = vunpack.c.l.b16 %v6155
  %v6344 = vunpack.c.h.b16 %v6155
  %v6345 = vunpack.c.l.b16 %v6156
  %v6346 = vunpack.c.h.b16 %v6156
  %v6347 = vunpack.c.l.b16 %v6157
  %v6348 = vunpack.c.h.b16 %v6157
  %v6349 = vunpack.c.l.b16 %v6158
  %v6350 = vunpack.c.h.b16 %v6158
  %v6351 = vunpack.c.l.b16 %v6159
  %v6352 = vunpack.c.h.b16 %v6159
  %v6353 = vunpack.c.l.b16 %v6160
  %v6354 = vunpack.c.h.b16 %v6160
  %v6355 = vunpack.c.l.b16 %v6161
  %v6356 = vunpack.c.h.b16 %v6161
  %v6357 = vunpack.c.l.b16 %v6162
  %v6358 = vunpack.c.h.b16 %v6162
  %v6359 = vunpack.c.l.b16 %v6163
  %v6360 = vunpack.c.h.b16 %v6163
  %v6361 = vunpack.c.l.b16 %v6164
  %v6362 = vunpack.c.h.b16 %v6164
  %v6363 = vunpack.c.l.b16 %v6165
  %v6364 = vunpack.c.h.b16 %v6165
  %v6365 = vunpack.c.l.b16 %v6166
  %v6366 = vunpack.c.h.b16 %v6166
  %v6367 = vunpack.c.l.b16 %v6167
  %v6368 = vunpack.c.h.b16 %v6167
  %v6369 = vunpack.c.l.b16 %v6168
  %v6370 = vunpack.c.h.b16 %v6168
  %v6371 = vunpack.c.l.b16 %v6169
  %v6372 = vunpack.c.h.b16 %v6169
  %v6373 = vunpack.c.l.b16 %v6170
  %v6374 = vunpack.c.h.b16 %v6170
  %v6375 = vunpack.c.l.b16 %v6171
  %v6376 = vunpack.c.h.b16 %v6171
  %v6377 = vunpack.c.l.b16 %v6172
  %v6378 = vunpack.c.h.b16 %v6172
  %v6379 = vunpack.c.l.b16 %v6173
  %v6380 = vunpack.c.h.b16 %v6173
  %v6381 = vunpack.c.l.b16 %v6174
  %v6382 = vunpack.c.h.b16 %v6174
  %v6383 = vunpack.c.l.b16 %v6175
  %v6384 = vunpack.c.h.b16 %v6175
  %v6385 = vpack.c.b16 %v6261, %v6257
  %v6386 = vpack.c.b16 %v6262, %v6258
  %v6387 = vpack.c.b16 %v6263, %v6259
  %v6388 = vpack.c.b16 %v6264, %v6260
  %v6389 = vpack.c.b16 %v6269, %v6265
  %v6390 = vpack.c.b16 %v6270, %v6266
  %v6391 = vpack.c.b16 %v6271, %v6267
  %v6392 = vpack.c.b16 %v6272, %v6268
  %v6393 = vpack.c.b16 %v6277, %v6273
  %v6394 = vpack.c.b16 %v6278, %v6274
  %v6395 = vpack.c.b16 %v6279, %v6275
  %v6396 = vpack.c.b16 %v6280, %v6276
  %v6397 = vpack.c.b16 %v6285, %v6281
  %v6398 = vpack.c.b16 %v6286, %v6282
  %v6399 = vpack.c.b16 %v6287, %v6283
  %v6400 = vpack.c.b16 %v6288, %v6284
  %v6401 = vpack.c.b16 %v6293, %v6289
  %v6402 = vpack.c.b16 %v6294, %v6290
  %v6403 = vpack.c.b16 %v6295, %v6291
  %v6404 = vpack.c.b16 %v6296, %v6292
  %v6405 = vpack.c.b16 %v6301, %v6297
  %v6406 = vpack.c.b16 %v6302, %v6298
  %v6407 = vpack.c.b16 %v6303, %v6299
  %v6408 = vpack.c.b16 %v6304, %v6300
  %v6409 = vpack.c.b16 %v6309, %v6305
  %v6410 = vpack.c.b16 %v6310, %v6306
  %v6411 = vpack.c.b16 %v6311, %v6307
  %v6412 = vpack.c.b16 %v6312, %v6308
  %v6413 = vpack.c.b16 %v6317, %v6313
  %v6414 = vpack.c.b16 %v6318, %v6314
  %v6415 = vpack.c.b16 %v6319, %v6315
  %v6416 = vpack.c.b16 %v6320, %v6316
  %v6417 = vpack.c.b16 %v6325, %v6321
  %v6418 = vpack.c.b16 %v6326, %v6322
  %v6419 = vpack.c.b16 %v6327, %v6323
  %v6420 = vpack.c.b16 %v6328, %v6324
  %v6421 = vpack.c.b16 %v6333, %v6329
  %v6422 = vpack.c.b16 %v6334, %v6330
  %v6423 = vpack.c.b16 %v6335, %v6331
  %v6424 = vpack.c.b16 %v6336, %v6332
  %v6425 = vpack.c.b16 %v6341, %v6337
  %v6426 = vpack.c.b16 %v6342, %v6338
  %v6427 = vpack.c.b16 %v6343, %v6339
  %v6428 = vpack.c.b16 %v6344, %v6340
  %v6429 = vpack.c.b16 %v6349, %v6345
  %v6430 = vpack.c.b16 %v6350, %v6346
  %v6431 = vpack.c.b16 %v6351, %v6347
  %v6432 = vpack.c.b16 %v6352, %v6348
  %v6433 = vpack.c.b16 %v6357, %v6353
  %v6434 = vpack.c.b16 %v6358, %v6354
  %v6435 = vpack.c.b16 %v6359, %v6355
  %v6436 = vpack.c.b16 %v6360, %v6356
  %v6437 = vpack.c.b16 %v6365, %v6361
  %v6438 = vpack.c.b16 %v6366, %v6362
  %v6439 = vpack.c.b16 %v6367, %v6363
  %v6440 = vpack.c.b16 %v6368, %v6364
  %v6441 = vpack.c.b16 %v6373, %v6369
  %v6442 = vpack.c.b16 %v6374, %v6370
  %v6443 = vpack.c.b16 %v6375, %v6371
  %v6444 = vpack.c.b16 %v6376, %v6372
  %v6445 = vpack.c.b16 %v6381, %v6377
  %v6446 = vpack.c.b16 %v6382, %v6378
  %v6447 = vpack.c.b16 %v6383, %v6379
  %v6448 = vpack.c.b16 %v6384, %v6380
  %6513 = vmatpush.bf16.msra.mxu0 %v6413
  %6514 = vmatpush.bf16.msra.mxu0 %v6409
  %6515 = vmatpush.bf16.msra.mxu0 %v6405
  %6516 = vmatpush.bf16.msra.mxu0 %v6401
  %6517 = vmatpush.bf16.msra.mxu0 %v6397
  %6518 = vmatpush.bf16.msra.mxu0 %v6393
  %6519 = vmatpush.bf16.msra.mxu0 %v6389
  %6520 = vmatpush.bf16.msra.mxu0 %v6385
  %6521 = vmatmul.bf16.gmra.mxu0 %v6189
  %v6522 = vpop.f32.mrf.mxu0
  %v6523 = vadd.f32 %v6178, %v6522
  %v6524 = vpop.f32.mrf.mxu0
  %6525 = vdwg.mxu0
  %6526 = vmatpush.bf16.msra.mxu0 %v6445
  %6527 = vmatpush.bf16.msra.mxu0 %v6441
  %6528 = vmatpush.bf16.msra.mxu0 %v6437
  %6529 = vmatpush.bf16.msra.mxu0 %v6433
  %6530 = vmatpush.bf16.msra.mxu0 %v6429
  %6531 = vmatpush.bf16.msra.mxu0 %v6425
  %6532 = vmatpush.bf16.msra.mxu0 %v6421
  %6533 = vmatpush.bf16.msra.mxu0 %v6417
  %6534 = vmatmul.bf16.gmra.mxu0 %v6190
  %v6535 = vpop.f32.mrf.mxu0
  %v6536 = vadd.f32 %v6523, %v6535
  %v6537 = vpop.f32.mrf.mxu0
  %6538 = vdwg.mxu0
  %6539 = vmatpush.bf16.msra.mxu0 %v6414
  %6540 = vmatpush.bf16.msra.mxu0 %v6410
  %6541 = vmatpush.bf16.msra.mxu0 %v6406
  %6542 = vmatpush.bf16.msra.mxu0 %v6402
  %6543 = vmatpush.bf16.msra.mxu0 %v6398
  %6544 = vmatpush.bf16.msra.mxu0 %v6394
  %6545 = vmatpush.bf16.msra.mxu0 %v6390
  %6546 = vmatpush.bf16.msra.mxu0 %v6386
  %6547 = vmatmul.bf16.gmra.mxu0 %v6189
  %v6548 = vpop.f32.mrf.mxu0
  %v6549 = vadd.f32 %v6179, %v6548
  %v6550 = vpop.f32.mrf.mxu0
  %6551 = vdwg.mxu0
  %6552 = vmatpush.bf16.msra.mxu0 %v6446
  %6553 = vmatpush.bf16.msra.mxu0 %v6442
  %6554 = vmatpush.bf16.msra.mxu0 %v6438
  %6555 = vmatpush.bf16.msra.mxu0 %v6434
  %6556 = vmatpush.bf16.msra.mxu0 %v6430
  %6557 = vmatpush.bf16.msra.mxu0 %v6426
  %6558 = vmatpush.bf16.msra.mxu0 %v6422
  %6559 = vmatpush.bf16.msra.mxu0 %v6418
  %6560 = vmatmul.bf16.gmra.mxu0 %v6190
  %v6561 = vpop.f32.mrf.mxu0
  %v6562 = vadd.f32 %v6549, %v6561
  %v6563 = vpop.f32.mrf.mxu0
  %6564 = vdwg.mxu0
  %6565 = vmatpush.bf16.msra.mxu0 %v6415
  %6566 = vmatpush.bf16.msra.mxu0 %v6411
  %6567 = vmatpush.bf16.msra.mxu0 %v6407
  %6568 = vmatpush.bf16.msra.mxu0 %v6403
  %6569 = vmatpush.bf16.msra.mxu0 %v6399
  %6570 = vmatpush.bf16.msra.mxu0 %v6395
  %6571 = vmatpush.bf16.msra.mxu0 %v6391
  %6572 = vmatpush.bf16.msra.mxu0 %v6387
  %6573 = vmatmul.bf16.gmra.mxu0 %v6189
  %v6574 = vpop.f32.mrf.mxu0
  %v6575 = vadd.f32 %v6180, %v6574
  %v6576 = vpop.f32.mrf.mxu0
  %6577 = vdwg.mxu0
  %6578 = vmatpush.bf16.msra.mxu0 %v6447
  %6579 = vmatpush.bf16.msra.mxu0 %v6443
  %6580 = vmatpush.bf16.msra.mxu0 %v6439
  %6581 = vmatpush.bf16.msra.mxu0 %v6435
  %6582 = vmatpush.bf16.msra.mxu0 %v6431
  %6583 = vmatpush.bf16.msra.mxu0 %v6427
  %6584 = vmatpush.bf16.msra.mxu0 %v6423
  %6585 = vmatpush.bf16.msra.mxu0 %v6419
  %6586 = vmatmul.bf16.gmra.mxu0 %v6190
  %v6587 = vpop.f32.mrf.mxu0
  %v6588 = vadd.f32 %v6575, %v6587
  %v6589 = vpop.f32.mrf.mxu0
  %6590 = vdwg.mxu0
  %6591 = vmatpush.bf16.msra.mxu0 %v6416
  %6592 = vmatpush.bf16.msra.mxu0 %v6412
  %6593 = vmatpush.bf16.msra.mxu0 %v6408
  %6594 = vmatpush.bf16.msra.mxu0 %v6404
  %6595 = vmatpush.bf16.msra.mxu0 %v6400
  %6596 = vmatpush.bf16.msra.mxu0 %v6396
  %6597 = vmatpush.bf16.msra.mxu0 %v6392
  %6598 = vmatpush.bf16.msra.mxu0 %v6388
  %6599 = vmatmul.bf16.gmra.mxu0 %v6189
  %v6600 = vpop.f32.mrf.mxu0
  %v6601 = vadd.f32 %v6181, %v6600
  %v6602 = vpop.f32.mrf.mxu0
  %6603 = vdwg.mxu0
  %6604 = vmatpush.bf16.msra.mxu0 %v6448
  %6605 = vmatpush.bf16.msra.mxu0 %v6444
  %6606 = vmatpush.bf16.msra.mxu0 %v6440
  %6607 = vmatpush.bf16.msra.mxu0 %v6436
  %6608 = vmatpush.bf16.msra.mxu0 %v6432
  %6609 = vmatpush.bf16.msra.mxu0 %v6428
  %6610 = vmatpush.bf16.msra.mxu0 %v6424
  %6611 = vmatpush.bf16.msra.mxu0 %v6420
  %6612 = vmatmul.bf16.gmra.mxu0 %v6190
  %v6613 = vpop.f32.mrf.mxu0
  %v6614 = vadd.f32 %v6601, %v6613
  %v6615 = vpop.f32.mrf.mxu0
  %6616 = vdwg.mxu0
  %v6617 = vxor.u32 %v6536, 2147483648
  %v6618 = vmul.f32 %v6617, 1.442695
  %v6619 = vpow.pop %v6618
  %v6620 = vadd.f32 %v6619, 1.0
  %v6621 = vrcp.pop %v6620
  %v6622 = vmul.f32 %v6620, %v6621
  %v6623 = vsub.f32 1.0, %v6622
  %v6624 = vmul.f32 %v6621, %v6623
  %v6625 = vadd.f32 %v6621, %v6624
  %vm6626 = vweird.f32 %v6620
  %vm6627 = vweird.f32 %v6621
  %vm6628 = vmor %vm6626, %vm6627
  %v6629 = vsel %vm6628, %v6621, %v6625
  %v6630 = vand.u32 2147483647, %v6620
  %vm6631 = vcmp.eq.f32.partialorder %v6630, 8.507059e+37
  %v6632 = vand.u32 %v6620, 2147483648
  %v6633 = vor.u32 1.1754944e-38, %v6632
  %v6634 = vsel %vm6631, %v6633, %v6629
  %v6635 = vmul.f32 1.0, %v6634
  %v6636 = vxor.u32 %v6562, 2147483648
  %v6637 = vmul.f32 %v6636, 1.442695
  %v6638 = vpow.pop %v6637
  %v6639 = vadd.f32 %v6638, 1.0
  %v6640 = vrcp.pop %v6639
  %v6641 = vmul.f32 %v6639, %v6640
  %v6642 = vsub.f32 1.0, %v6641
  %v6643 = vmul.f32 %v6640, %v6642
  %v6644 = vadd.f32 %v6640, %v6643
  %vm6645 = vweird.f32 %v6639
  %vm6646 = vweird.f32 %v6640
  %vm6647 = vmor %vm6645, %vm6646
  %v6648 = vsel %vm6647, %v6640, %v6644
  %v6649 = vand.u32 2147483647, %v6639
  %vm6650 = vcmp.eq.f32.partialorder %v6649, 8.507059e+37
  %v6651 = vand.u32 %v6639, 2147483648
  %v6652 = vor.u32 1.1754944e-38, %v6651
  %v6653 = vsel %vm6650, %v6652, %v6648
  %v6654 = vmul.f32 1.0, %v6653
  %v6655 = vtanh.pop %v6588
  %v6656 = vxor.u32 %v6614, 2147483648
  %v6657 = vmul.f32 %v6656, 1.442695
  %v6658 = vpow.pop %v6657
  %v6659 = vadd.f32 %v6658, 1.0
  %v6660 = vrcp.pop %v6659
  %v6661 = vmul.f32 %v6659, %v6660
  %v6662 = vsub.f32 1.0, %v6661
  %v6663 = vmul.f32 %v6660, %v6662
  %v6664 = vadd.f32 %v6660, %v6663
  %vm6665 = vweird.f32 %v6659
  %vm6666 = vweird.f32 %v6660
  %vm6667 = vmor %vm6665, %vm6666
  %v6668 = vsel %vm6667, %v6660, %v6664
  %v6669 = vand.u32 2147483647, %v6659
  %vm6670 = vcmp.eq.f32.partialorder %v6669, 8.507059e+37
  %v6671 = vand.u32 %v6659, 2147483648
  %v6672 = vor.u32 1.1754944e-38, %v6671
  %v6673 = vsel %vm6670, %v6672, %v6668
  %v6674 = vmul.f32 1.0, %v6673
  %v6675 = vmul.f32 %v6654, %v5775
  %v6676 = vmul.f32 %v6635, %v6655
  %v6677 = vadd.f32 %v6675, %v6676
  %v6678 = vtanh.pop %v6677
  %v6679 = vmul.f32 %v6674, %v6678
  %v6680 = vsel %vm6104, %v6679, %v5774
  %v6681 = vsel %vm6104, %v6677, %v5775
  %s6682 = sadd.s32 %s339, 7
  %v6683 = vld [vmem:[%s1] sm:$0xff]
  %v6684 = vstv %s6682
  %vm6685 = vcmp.lt.s32.totalorder %v6684, %v6683
  %s6686 = smul.u32 7, 4
  %s6687 = smul.addr %s6686, 4
  %s6688 = scalar_lea.vmem [#allocation2], %s6687
  %v6689 = vld [vmem:[%s6688] sm:$0xff]
  %v6690 = vld [vmem:[%s6688 + $0x8] sm:$0xff]
  %v6691 = vunpack.c.l.bf16 %v6689
  %v6692 = vunpack.c.h.bf16 %v6689
  %v6693 = vunpack.c.l.bf16 %v6690
  %v6694 = vunpack.c.h.bf16 %v6690
  %v6695 = vld [vmem:[%s3] sm:$0xff]
  %v6696 = vld [vmem:[%s3 + $0x8] sm:$0xff]
  %v6697 = vld [vmem:[%s3 + $0x10] sm:$0xff]
  %v6698 = vld [vmem:[%s3 + $0x18] sm:$0xff]
  %v6699 = vld [vmem:[%s3 + $0x20] sm:$0xff]
  %v6700 = vld [vmem:[%s3 + $0x28] sm:$0xff]
  %v6701 = vld [vmem:[%s3 + $0x30] sm:$0xff]
  %v6702 = vld [vmem:[%s3 + $0x38] sm:$0xff]
  %v6703 = vld [vmem:[%s3 + $0x40] sm:$0xff]
  %v6704 = vld [vmem:[%s3 + $0x48] sm:$0xff]
  %v6705 = vld [vmem:[%s3 + $0x50] sm:$0xff]
  %v6706 = vld [vmem:[%s3 + $0x58] sm:$0xff]
  %v6707 = vld [vmem:[%s3 + $0x60] sm:$0xff]
  %v6708 = vld [vmem:[%s3 + $0x68] sm:$0xff]
  %v6709 = vld [vmem:[%s3 + $0x70] sm:$0xff]
  %v6710 = vld [vmem:[%s3 + $0x78] sm:$0xff]
  %v6711 = vld [vmem:[%s3 + $0x80] sm:$0xff]
  %v6712 = vld [vmem:[%s3 + $0x88] sm:$0xff]
  %v6713 = vld [vmem:[%s3 + $0x90] sm:$0xff]
  %v6714 = vld [vmem:[%s3 + $0x98] sm:$0xff]
  %v6715 = vld [vmem:[%s3 + $0xa0] sm:$0xff]
  %v6716 = vld [vmem:[%s3 + $0xa8] sm:$0xff]
  %v6717 = vld [vmem:[%s3 + $0xb0] sm:$0xff]
  %v6718 = vld [vmem:[%s3 + $0xb8] sm:$0xff]
  %v6719 = vld [vmem:[%s3 + $0xc0] sm:$0xff]
  %v6720 = vld [vmem:[%s3 + $0xc8] sm:$0xff]
  %v6721 = vld [vmem:[%s3 + $0xd0] sm:$0xff]
  %v6722 = vld [vmem:[%s3 + $0xd8] sm:$0xff]
  %v6723 = vld [vmem:[%s3 + $0xe0] sm:$0xff]
  %v6724 = vld [vmem:[%s3 + $0xe8] sm:$0xff]
  %v6725 = vld [vmem:[%s3 + $0xf0] sm:$0xff]
  %v6726 = vld [vmem:[%s3 + $0xf8] sm:$0xff]
  %v6759 = vunpack.c.l.b16 %v6695
  %v6760 = vunpack.c.h.b16 %v6695
  %v6761 = vunpack.c.l.b16 %v6696
  %v6762 = vunpack.c.h.b16 %v6696
  %v6763 = vunpack.c.l.b16 %v6697
  %v6764 = vunpack.c.h.b16 %v6697
  %v6765 = vunpack.c.l.b16 %v6698
  %v6766 = vunpack.c.h.b16 %v6698
  %v6767 = vunpack.c.l.b16 %v6699
  %v6768 = vunpack.c.h.b16 %v6699
  %v6769 = vunpack.c.l.b16 %v6700
  %v6770 = vunpack.c.h.b16 %v6700
  %v6771 = vunpack.c.l.b16 %v6701
  %v6772 = vunpack.c.h.b16 %v6701
  %v6773 = vunpack.c.l.b16 %v6702
  %v6774 = vunpack.c.h.b16 %v6702
  %v6775 = vunpack.c.l.b16 %v6703
  %v6776 = vunpack.c.h.b16 %v6703
  %v6777 = vunpack.c.l.b16 %v6704
  %v6778 = vunpack.c.h.b16 %v6704
  %v6779 = vunpack.c.l.b16 %v6705
  %v6780 = vunpack.c.h.b16 %v6705
  %v6781 = vunpack.c.l.b16 %v6706
  %v6782 = vunpack.c.h.b16 %v6706
  %v6783 = vunpack.c.l.b16 %v6707
  %v6784 = vunpack.c.h.b16 %v6707
  %v6785 = vunpack.c.l.b16 %v6708
  %v6786 = vunpack.c.h.b16 %v6708
  %v6787 = vunpack.c.l.b16 %v6709
  %v6788 = vunpack.c.h.b16 %v6709
  %v6789 = vunpack.c.l.b16 %v6710
  %v6790 = vunpack.c.h.b16 %v6710
  %v6791 = vunpack.c.l.b16 %v6711
  %v6792 = vunpack.c.h.b16 %v6711
  %v6793 = vunpack.c.l.b16 %v6712
  %v6794 = vunpack.c.h.b16 %v6712
  %v6795 = vunpack.c.l.b16 %v6713
  %v6796 = vunpack.c.h.b16 %v6713
  %v6797 = vunpack.c.l.b16 %v6714
  %v6798 = vunpack.c.h.b16 %v6714
  %v6799 = vunpack.c.l.b16 %v6715
  %v6800 = vunpack.c.h.b16 %v6715
  %v6801 = vunpack.c.l.b16 %v6716
  %v6802 = vunpack.c.h.b16 %v6716
  %v6803 = vunpack.c.l.b16 %v6717
  %v6804 = vunpack.c.h.b16 %v6717
  %v6805 = vunpack.c.l.b16 %v6718
  %v6806 = vunpack.c.h.b16 %v6718
  %v6807 = vunpack.c.l.b16 %v6719
  %v6808 = vunpack.c.h.b16 %v6719
  %v6809 = vunpack.c.l.b16 %v6720
  %v6810 = vunpack.c.h.b16 %v6720
  %v6811 = vunpack.c.l.b16 %v6721
  %v6812 = vunpack.c.h.b16 %v6721
  %v6813 = vunpack.c.l.b16 %v6722
  %v6814 = vunpack.c.h.b16 %v6722
  %v6815 = vunpack.c.l.b16 %v6723
  %v6816 = vunpack.c.h.b16 %v6723
  %v6817 = vunpack.c.l.b16 %v6724
  %v6818 = vunpack.c.h.b16 %v6724
  %v6819 = vunpack.c.l.b16 %v6725
  %v6820 = vunpack.c.h.b16 %v6725
  %v6821 = vunpack.c.l.b16 %v6726
  %v6822 = vunpack.c.h.b16 %v6726
  %v6823 = vpack.c.b16 %v6763, %v6759
  %v6824 = vpack.c.b16 %v6764, %v6760
  %v6825 = vpack.c.b16 %v6765, %v6761
  %v6826 = vpack.c.b16 %v6766, %v6762
  %v6827 = vpack.c.b16 %v6771, %v6767
  %v6828 = vpack.c.b16 %v6772, %v6768
  %v6829 = vpack.c.b16 %v6773, %v6769
  %v6830 = vpack.c.b16 %v6774, %v6770
  %v6831 = vpack.c.b16 %v6779, %v6775
  %v6832 = vpack.c.b16 %v6780, %v6776
  %v6833 = vpack.c.b16 %v6781, %v6777
  %v6834 = vpack.c.b16 %v6782, %v6778
  %v6835 = vpack.c.b16 %v6787, %v6783
  %v6836 = vpack.c.b16 %v6788, %v6784
  %v6837 = vpack.c.b16 %v6789, %v6785
  %v6838 = vpack.c.b16 %v6790, %v6786
  %v6839 = vpack.c.b16 %v6795, %v6791
  %v6840 = vpack.c.b16 %v6796, %v6792
  %v6841 = vpack.c.b16 %v6797, %v6793
  %v6842 = vpack.c.b16 %v6798, %v6794
  %v6843 = vpack.c.b16 %v6803, %v6799
  %v6844 = vpack.c.b16 %v6804, %v6800
  %v6845 = vpack.c.b16 %v6805, %v6801
  %v6846 = vpack.c.b16 %v6806, %v6802
  %v6847 = vpack.c.b16 %v6811, %v6807
  %v6848 = vpack.c.b16 %v6812, %v6808
  %v6849 = vpack.c.b16 %v6813, %v6809
  %v6850 = vpack.c.b16 %v6814, %v6810
  %v6851 = vpack.c.b16 %v6819, %v6815
  %v6852 = vpack.c.b16 %v6820, %v6816
  %v6853 = vpack.c.b16 %v6821, %v6817
  %v6854 = vpack.c.b16 %v6822, %v6818
  %6887 = vmatpush.bf16.msra.mxu0 %v6851
  %6888 = vmatpush.bf16.msra.mxu0 %v6847
  %6889 = vmatpush.bf16.msra.mxu0 %v6843
  %6890 = vmatpush.bf16.msra.mxu0 %v6839
  %6891 = vmatpush.bf16.msra.mxu0 %v6835
  %6892 = vmatpush.bf16.msra.mxu0 %v6831
  %6893 = vmatpush.bf16.msra.mxu0 %v6827
  %6894 = vmatpush.bf16.msra.mxu0 %v6823
  %6895 = vmatmul.bf16.gmra.mxu0 %v6107
  %v6896 = vpop.f32.mrf.mxu0
  %v6897 = vadd.f32 0.0, %v6896
  %v6898 = vpop.f32.mrf.mxu0
  %6899 = vdwg.mxu0
  %6900 = vmatpush.bf16.msra.mxu0 %v6852
  %6901 = vmatpush.bf16.msra.mxu0 %v6848
  %6902 = vmatpush.bf16.msra.mxu0 %v6844
  %6903 = vmatpush.bf16.msra.mxu0 %v6840
  %6904 = vmatpush.bf16.msra.mxu0 %v6836
  %6905 = vmatpush.bf16.msra.mxu0 %v6832
  %6906 = vmatpush.bf16.msra.mxu0 %v6828
  %6907 = vmatpush.bf16.msra.mxu0 %v6824
  %6908 = vmatmul.bf16.gmra.mxu0 %v6107
  %v6909 = vpop.f32.mrf.mxu0
  %v6910 = vadd.f32 0.0, %v6909
  %v6911 = vpop.f32.mrf.mxu0
  %6912 = vdwg.mxu0
  %6913 = vmatpush.bf16.msra.mxu0 %v6853
  %6914 = vmatpush.bf16.msra.mxu0 %v6849
  %6915 = vmatpush.bf16.msra.mxu0 %v6845
  %6916 = vmatpush.bf16.msra.mxu0 %v6841
  %6917 = vmatpush.bf16.msra.mxu0 %v6837
  %6918 = vmatpush.bf16.msra.mxu0 %v6833
  %6919 = vmatpush.bf16.msra.mxu0 %v6829
  %6920 = vmatpush.bf16.msra.mxu0 %v6825
  %6921 = vmatmul.bf16.gmra.mxu0 %v6107
  %v6922 = vpop.f32.mrf.mxu0
  %v6923 = vadd.f32 0.0, %v6922
  %v6924 = vpop.f32.mrf.mxu0
  %6925 = vdwg.mxu0
  %6926 = vmatpush.bf16.msra.mxu0 %v6854
  %6927 = vmatpush.bf16.msra.mxu0 %v6850
  %6928 = vmatpush.bf16.msra.mxu0 %v6846
  %6929 = vmatpush.bf16.msra.mxu0 %v6842
  %6930 = vmatpush.bf16.msra.mxu0 %v6838
  %6931 = vmatpush.bf16.msra.mxu0 %v6834
  %6932 = vmatpush.bf16.msra.mxu0 %v6830
  %6933 = vmatpush.bf16.msra.mxu0 %v6826
  %6934 = vmatmul.bf16.gmra.mxu0 %v6107
  %v6935 = vpop.f32.mrf.mxu0
  %v6936 = vadd.f32 0.0, %v6935
  %v6937 = vpop.f32.mrf.mxu0
  %6938 = vdwg.mxu0
  %v6939 = vadd.f32 %v6691, %v6897
  %v6940 = vadd.f32 %v6692, %v6910
  %v6941 = vadd.f32 %v6693, %v6923
  %v6942 = vadd.f32 %v6694, %v6936
  %v6943 = vxor.u32 %v6939, 2147483648
  %v6944 = vmul.f32 %v6943, 1.442695
  %v6945 = vpow.pop %v6944
  %v6946 = vadd.f32 %v6945, 1.0
  %v6947 = vrcp.pop %v6946
  %v6948 = vmul.f32 %v6946, %v6947
  %v6949 = vsub.f32 1.0, %v6948
  %v6950 = vmul.f32 %v6947, %v6949
  %v6951 = vadd.f32 %v6947, %v6950
  %vm6952 = vweird.f32 %v6946
  %vm6953 = vweird.f32 %v6947
  %vm6954 = vmor %vm6952, %vm6953
  %v6955 = vsel %vm6954, %v6947, %v6951
  %v6956 = vand.u32 2147483647, %v6946
  %vm6957 = vcmp.eq.f32.partialorder %v6956, 8.507059e+37
  %v6958 = vand.u32 %v6946, 2147483648
  %v6959 = vor.u32 1.1754944e-38, %v6958
  %v6960 = vsel %vm6957, %v6959, %v6955
  %v6961 = vmul.f32 1.0, %v6960
  %v6962 = vxor.u32 %v6940, 2147483648
  %v6963 = vmul.f32 %v6962, 1.442695
  %v6964 = vpow.pop %v6963
  %v6965 = vadd.f32 %v6964, 1.0
  %v6966 = vrcp.pop %v6965
  %v6967 = vmul.f32 %v6965, %v6966
  %v6968 = vsub.f32 1.0, %v6967
  %v6969 = vmul.f32 %v6966, %v6968
  %v6970 = vadd.f32 %v6966, %v6969
  %vm6971 = vweird.f32 %v6965
  %vm6972 = vweird.f32 %v6966
  %vm6973 = vmor %vm6971, %vm6972
  %v6974 = vsel %vm6973, %v6966, %v6970
  %v6975 = vand.u32 2147483647, %v6965
  %vm6976 = vcmp.eq.f32.partialorder %v6975, 8.507059e+37
  %v6977 = vand.u32 %v6965, 2147483648
  %v6978 = vor.u32 1.1754944e-38, %v6977
  %v6979 = vsel %vm6976, %v6978, %v6974
  %v6980 = vmul.f32 1.0, %v6979
  %v6981 = vtanh.pop %v6941
  %v6982 = vxor.u32 %v6942, 2147483648
  %v6983 = vmul.f32 %v6982, 1.442695
  %v6984 = vpow.pop %v6983
  %v6985 = vadd.f32 %v6984, 1.0
  %v6986 = vrcp.pop %v6985
  %v6987 = vmul.f32 %v6985, %v6986
  %v6988 = vsub.f32 1.0, %v6987
  %v6989 = vmul.f32 %v6986, %v6988
  %v6990 = vadd.f32 %v6986, %v6989
  %vm6991 = vweird.f32 %v6985
  %vm6992 = vweird.f32 %v6986
  %vm6993 = vmor %vm6991, %vm6992
  %v6994 = vsel %vm6993, %v6986, %v6990
  %v6995 = vand.u32 2147483647, %v6985
  %vm6996 = vcmp.eq.f32.partialorder %v6995, 8.507059e+37
  %v6997 = vand.u32 %v6985, 2147483648
  %v6998 = vor.u32 1.1754944e-38, %v6997
  %v6999 = vsel %vm6996, %v6998, %v6994
  %v7000 = vmul.f32 1.0, %v6999
  %v7001 = vmul.f32 %v6980, %v6106
  %v7002 = vmul.f32 %v6961, %v6981
  %v7003 = vadd.f32 %v7001, %v7002
  %v7004 = vtanh.pop %v7003
  %v7005 = vmul.f32 %v7000, %v7004
  %v7006 = vsel %vm6685, 1, 0
  %7007 = vset.pattern.permute.xlu0 0
  %7008 = vperm.xlu0 %7007, %v7006
  %v7009 = vpop.permute.xlu0 %7008
  %vm7010 = vcmp.eq.s32.totalorder %v7009, 1
  %v7011 = vsel %vm7010, %v7005, %v6105
  %v7012 = vsel %vm7010, %v7003, %v6106
  %v7013 = vpack.c.bf16 %v7011, %v7011
  %7014 = vst [vmem:[#allocation3] sm:$0xf] %v7013
  %v7015 = vpack.c.bf16 %v6680, %v6680
  %7016 = vst [vmem:[#allocation3 + $0x4] sm:$0xf] %v7015
  %v7017 = vld [vmem:[#allocation3] sm:$0xff]
  %v7018 = vld [vmem:[%s5] sm:$0xff]
  %v7019 = vld [vmem:[%s5 + $0x8] sm:$0xff]
  %v7020 = vld [vmem:[%s5 + $0x10] sm:$0xff]
  %v7021 = vld [vmem:[%s5 + $0x18] sm:$0xff]
  %v7022 = vld [vmem:[%s5 + $0x20] sm:$0xff]
  %v7023 = vld [vmem:[%s5 + $0x28] sm:$0xff]
  %v7024 = vld [vmem:[%s5 + $0x30] sm:$0xff]
  %v7025 = vld [vmem:[%s5 + $0x38] sm:$0xff]
  %v7026 = vld [vmem:[%s5 + $0x40] sm:$0xff]
  %v7027 = vld [vmem:[%s5 + $0x48] sm:$0xff]
  %v7028 = vld [vmem:[%s5 + $0x50] sm:$0xff]
  %v7029 = vld [vmem:[%s5 + $0x58] sm:$0xff]
  %v7030 = vld [vmem:[%s5 + $0x60] sm:$0xff]
  %v7031 = vld [vmem:[%s5 + $0x68] sm:$0xff]
  %v7032 = vld [vmem:[%s5 + $0x70] sm:$0xff]
  %v7033 = vld [vmem:[%s5 + $0x78] sm:$0xff]
  %v7034 = vld [vmem:[%s5 + $0x80] sm:$0xff]
  %v7035 = vld [vmem:[%s5 + $0x88] sm:$0xff]
  %v7036 = vld [vmem:[%s5 + $0x90] sm:$0xff]
  %v7037 = vld [vmem:[%s5 + $0x98] sm:$0xff]
  %v7038 = vld [vmem:[%s5 + $0xa0] sm:$0xff]
  %v7039 = vld [vmem:[%s5 + $0xa8] sm:$0xff]
  %v7040 = vld [vmem:[%s5 + $0xb0] sm:$0xff]
  %v7041 = vld [vmem:[%s5 + $0xb8] sm:$0xff]
  %v7042 = vld [vmem:[%s5 + $0xc0] sm:$0xff]
  %v7043 = vld [vmem:[%s5 + $0xc8] sm:$0xff]
  %v7044 = vld [vmem:[%s5 + $0xd0] sm:$0xff]
  %v7045 = vld [vmem:[%s5 + $0xd8] sm:$0xff]
  %v7046 = vld [vmem:[%s5 + $0xe0] sm:$0xff]
  %v7047 = vld [vmem:[%s5 + $0xe8] sm:$0xff]
  %v7048 = vld [vmem:[%s5 + $0xf0] sm:$0xff]
  %v7049 = vld [vmem:[%s5 + $0xf8] sm:$0xff]
  %v7050 = vld [vmem:[%s5 + $0x100] sm:$0xff]
  %v7051 = vld [vmem:[%s5 + $0x108] sm:$0xff]
  %v7052 = vld [vmem:[%s5 + $0x110] sm:$0xff]
  %v7053 = vld [vmem:[%s5 + $0x118] sm:$0xff]
  %v7054 = vld [vmem:[%s5 + $0x120] sm:$0xff]
  %v7055 = vld [vmem:[%s5 + $0x128] sm:$0xff]
  %v7056 = vld [vmem:[%s5 + $0x130] sm:$0xff]
  %v7057 = vld [vmem:[%s5 + $0x138] sm:$0xff]
  %v7058 = vld [vmem:[%s5 + $0x140] sm:$0xff]
  %v7059 = vld [vmem:[%s5 + $0x148] sm:$0xff]
  %v7060 = vld [vmem:[%s5 + $0x150] sm:$0xff]
  %v7061 = vld [vmem:[%s5 + $0x158] sm:$0xff]
  %v7062 = vld [vmem:[%s5 + $0x160] sm:$0xff]
  %v7063 = vld [vmem:[%s5 + $0x168] sm:$0xff]
  %v7064 = vld [vmem:[%s5 + $0x170] sm:$0xff]
  %v7065 = vld [vmem:[%s5 + $0x178] sm:$0xff]
  %v7066 = vld [vmem:[%s5 + $0x180] sm:$0xff]
  %v7067 = vld [vmem:[%s5 + $0x188] sm:$0xff]
  %v7068 = vld [vmem:[%s5 + $0x190] sm:$0xff]
  %v7069 = vld [vmem:[%s5 + $0x198] sm:$0xff]
  %v7070 = vld [vmem:[%s5 + $0x1a0] sm:$0xff]
  %v7071 = vld [vmem:[%s5 + $0x1a8] sm:$0xff]
  %v7072 = vld [vmem:[%s5 + $0x1b0] sm:$0xff]
  %v7073 = vld [vmem:[%s5 + $0x1b8] sm:$0xff]
  %v7074 = vld [vmem:[%s5 + $0x1c0] sm:$0xff]
  %v7075 = vld [vmem:[%s5 + $0x1c8] sm:$0xff]
  %v7076 = vld [vmem:[%s5 + $0x1d0] sm:$0xff]
  %v7077 = vld [vmem:[%s5 + $0x1d8] sm:$0xff]
  %v7078 = vld [vmem:[%s5 + $0x1e0] sm:$0xff]
  %v7079 = vld [vmem:[%s5 + $0x1e8] sm:$0xff]
  %v7080 = vld [vmem:[%s5 + $0x1f0] sm:$0xff]
  %v7081 = vld [vmem:[%s5 + $0x1f8] sm:$0xff]
  %v7082 = vld [vmem:[%s6] sm:$0xf]
  %v7084 = vperm.slane %v7082, 0
  %v7085 = vperm.slane %v7082, 1
  %v7086 = vperm.slane %v7082, 2
  %v7087 = vperm.slane %v7082, 3
  %v7093 = vunpack.c.l.b16 %v7017
  %v7094 = vunpack.c.h.b16 %v7017
  %v7095 = vpack.c.b16 %v7093, %v7093
  %v7096 = vpack.c.b16 %v7094, %v7094
  %v7163 = vunpack.c.l.b16 %v7018
  %v7164 = vunpack.c.h.b16 %v7018
  %v7165 = vunpack.c.l.b16 %v7019
  %v7166 = vunpack.c.h.b16 %v7019
  %v7167 = vunpack.c.l.b16 %v7020
  %v7168 = vunpack.c.h.b16 %v7020
  %v7169 = vunpack.c.l.b16 %v7021
  %v7170 = vunpack.c.h.b16 %v7021
  %v7171 = vunpack.c.l.b16 %v7022
  %v7172 = vunpack.c.h.b16 %v7022
  %v7173 = vunpack.c.l.b16 %v7023
  %v7174 = vunpack.c.h.b16 %v7023
  %v7175 = vunpack.c.l.b16 %v7024
  %v7176 = vunpack.c.h.b16 %v7024
  %v7177 = vunpack.c.l.b16 %v7025
  %v7178 = vunpack.c.h.b16 %v7025
  %v7179 = vunpack.c.l.b16 %v7026
  %v7180 = vunpack.c.h.b16 %v7026
  %v7181 = vunpack.c.l.b16 %v7027
  %v7182 = vunpack.c.h.b16 %v7027
  %v7183 = vunpack.c.l.b16 %v7028
  %v7184 = vunpack.c.h.b16 %v7028
  %v7185 = vunpack.c.l.b16 %v7029
  %v7186 = vunpack.c.h.b16 %v7029
  %v7187 = vunpack.c.l.b16 %v7030
  %v7188 = vunpack.c.h.b16 %v7030
  %v7189 = vunpack.c.l.b16 %v7031
  %v7190 = vunpack.c.h.b16 %v7031
  %v7191 = vunpack.c.l.b16 %v7032
  %v7192 = vunpack.c.h.b16 %v7032
  %v7193 = vunpack.c.l.b16 %v7033
  %v7194 = vunpack.c.h.b16 %v7033
  %v7195 = vunpack.c.l.b16 %v7034
  %v7196 = vunpack.c.h.b16 %v7034
  %v7197 = vunpack.c.l.b16 %v7035
  %v7198 = vunpack.c.h.b16 %v7035
  %v7199 = vunpack.c.l.b16 %v7036
  %v7200 = vunpack.c.h.b16 %v7036
  %v7201 = vunpack.c.l.b16 %v7037
  %v7202 = vunpack.c.h.b16 %v7037
  %v7203 = vunpack.c.l.b16 %v7038
  %v7204 = vunpack.c.h.b16 %v7038
  %v7205 = vunpack.c.l.b16 %v7039
  %v7206 = vunpack.c.h.b16 %v7039
  %v7207 = vunpack.c.l.b16 %v7040
  %v7208 = vunpack.c.h.b16 %v7040
  %v7209 = vunpack.c.l.b16 %v7041
  %v7210 = vunpack.c.h.b16 %v7041
  %v7211 = vunpack.c.l.b16 %v7042
  %v7212 = vunpack.c.h.b16 %v7042
  %v7213 = vunpack.c.l.b16 %v7043
  %v7214 = vunpack.c.h.b16 %v7043
  %v7215 = vunpack.c.l.b16 %v7044
  %v7216 = vunpack.c.h.b16 %v7044
  %v7217 = vunpack.c.l.b16 %v7045
  %v7218 = vunpack.c.h.b16 %v7045
  %v7219 = vunpack.c.l.b16 %v7046
  %v7220 = vunpack.c.h.b16 %v7046
  %v7221 = vunpack.c.l.b16 %v7047
  %v7222 = vunpack.c.h.b16 %v7047
  %v7223 = vunpack.c.l.b16 %v7048
  %v7224 = vunpack.c.h.b16 %v7048
  %v7225 = vunpack.c.l.b16 %v7049
  %v7226 = vunpack.c.h.b16 %v7049
  %v7227 = vunpack.c.l.b16 %v7050
  %v7228 = vunpack.c.h.b16 %v7050
  %v7229 = vunpack.c.l.b16 %v7051
  %v7230 = vunpack.c.h.b16 %v7051
  %v7231 = vunpack.c.l.b16 %v7052
  %v7232 = vunpack.c.h.b16 %v7052
  %v7233 = vunpack.c.l.b16 %v7053
  %v7234 = vunpack.c.h.b16 %v7053
  %v7235 = vunpack.c.l.b16 %v7054
  %v7236 = vunpack.c.h.b16 %v7054
  %v7237 = vunpack.c.l.b16 %v7055
  %v7238 = vunpack.c.h.b16 %v7055
  %v7239 = vunpack.c.l.b16 %v7056
  %v7240 = vunpack.c.h.b16 %v7056
  %v7241 = vunpack.c.l.b16 %v7057
  %v7242 = vunpack.c.h.b16 %v7057
  %v7243 = vunpack.c.l.b16 %v7058
  %v7244 = vunpack.c.h.b16 %v7058
  %v7245 = vunpack.c.l.b16 %v7059
  %v7246 = vunpack.c.h.b16 %v7059
  %v7247 = vunpack.c.l.b16 %v7060
  %v7248 = vunpack.c.h.b16 %v7060
  %v7249 = vunpack.c.l.b16 %v7061
  %v7250 = vunpack.c.h.b16 %v7061
  %v7251 = vunpack.c.l.b16 %v7062
  %v7252 = vunpack.c.h.b16 %v7062
  %v7253 = vunpack.c.l.b16 %v7063
  %v7254 = vunpack.c.h.b16 %v7063
  %v7255 = vunpack.c.l.b16 %v7064
  %v7256 = vunpack.c.h.b16 %v7064
  %v7257 = vunpack.c.l.b16 %v7065
  %v7258 = vunpack.c.h.b16 %v7065
  %v7259 = vunpack.c.l.b16 %v7066
  %v7260 = vunpack.c.h.b16 %v7066
  %v7261 = vunpack.c.l.b16 %v7067
  %v7262 = vunpack.c.h.b16 %v7067
  %v7263 = vunpack.c.l.b16 %v7068
  %v7264 = vunpack.c.h.b16 %v7068
  %v7265 = vunpack.c.l.b16 %v7069
  %v7266 = vunpack.c.h.b16 %v7069
  %v7267 = vunpack.c.l.b16 %v7070
  %v7268 = vunpack.c.h.b16 %v7070
  %v7269 = vunpack.c.l.b16 %v7071
  %v7270 = vunpack.c.h.b16 %v7071
  %v7271 = vunpack.c.l.b16 %v7072
  %v7272 = vunpack.c.h.b16 %v7072
  %v7273 = vunpack.c.l.b16 %v7073
  %v7274 = vunpack.c.h.b16 %v7073
  %v7275 = vunpack.c.l.b16 %v7074
  %v7276 = vunpack.c.h.b16 %v7074
  %v7277 = vunpack.c.l.b16 %v7075
  %v7278 = vunpack.c.h.b16 %v7075
  %v7279 = vunpack.c.l.b16 %v7076
  %v7280 = vunpack.c.h.b16 %v7076
  %v7281 = vunpack.c.l.b16 %v7077
  %v7282 = vunpack.c.h.b16 %v7077
  %v7283 = vunpack.c.l.b16 %v7078
  %v7284 = vunpack.c.h.b16 %v7078
  %v7285 = vunpack.c.l.b16 %v7079
  %v7286 = vunpack.c.h.b16 %v7079
  %v7287 = vunpack.c.l.b16 %v7080
  %v7288 = vunpack.c.h.b16 %v7080
  %v7289 = vunpack.c.l.b16 %v7081
  %v7290 = vunpack.c.h.b16 %v7081
  %v7291 = vpack.c.b16 %v7167, %v7163
  %v7292 = vpack.c.b16 %v7168, %v7164
  %v7293 = vpack.c.b16 %v7169, %v7165
  %v7294 = vpack.c.b16 %v7170, %v7166
  %v7295 = vpack.c.b16 %v7175, %v7171
  %v7296 = vpack.c.b16 %v7176, %v7172
  %v7297 = vpack.c.b16 %v7177, %v7173
  %v7298 = vpack.c.b16 %v7178, %v7174
  %v7299 = vpack.c.b16 %v7183, %v7179
  %v7300 = vpack.c.b16 %v7184, %v7180
  %v7301 = vpack.c.b16 %v7185, %v7181
  %v7302 = vpack.c.b16 %v7186, %v7182
  %v7303 = vpack.c.b16 %v7191, %v7187
  %v7304 = vpack.c.b16 %v7192, %v7188
  %v7305 = vpack.c.b16 %v7193, %v7189
  %v7306 = vpack.c.b16 %v7194, %v7190
  %v7307 = vpack.c.b16 %v7199, %v7195
  %v7308 = vpack.c.b16 %v7200, %v7196
  %v7309 = vpack.c.b16 %v7201, %v7197
  %v7310 = vpack.c.b16 %v7202, %v7198
  %v7311 = vpack.c.b16 %v7207, %v7203
  %v7312 = vpack.c.b16 %v7208, %v7204
  %v7313 = vpack.c.b16 %v7209, %v7205
  %v7314 = vpack.c.b16 %v7210, %v7206
  %v7315 = vpack.c.b16 %v7215, %v7211
  %v7316 = vpack.c.b16 %v7216, %v7212
  %v7317 = vpack.c.b16 %v7217, %v7213
  %v7318 = vpack.c.b16 %v7218, %v7214
  %v7319 = vpack.c.b16 %v7223, %v7219
  %v7320 = vpack.c.b16 %v7224, %v7220
  %v7321 = vpack.c.b16 %v7225, %v7221
  %v7322 = vpack.c.b16 %v7226, %v7222
  %v7323 = vpack.c.b16 %v7231, %v7227
  %v7324 = vpack.c.b16 %v7232, %v7228
  %v7325 = vpack.c.b16 %v7233, %v7229
  %v7326 = vpack.c.b16 %v7234, %v7230
  %v7327 = vpack.c.b16 %v7239, %v7235
  %v7328 = vpack.c.b16 %v7240, %v7236
  %v7329 = vpack.c.b16 %v7241, %v7237
  %v7330 = vpack.c.b16 %v7242, %v7238
  %v7331 = vpack.c.b16 %v7247, %v7243
  %v7332 = vpack.c.b16 %v7248, %v7244
  %v7333 = vpack.c.b16 %v7249, %v7245
  %v7334 = vpack.c.b16 %v7250, %v7246
  %v7335 = vpack.c.b16 %v7255, %v7251
  %v7336 = vpack.c.b16 %v7256, %v7252
  %v7337 = vpack.c.b16 %v7257, %v7253
  %v7338 = vpack.c.b16 %v7258, %v7254
  %v7339 = vpack.c.b16 %v7263, %v7259
  %v7340 = vpack.c.b16 %v7264, %v7260
  %v7341 = vpack.c.b16 %v7265, %v7261
  %v7342 = vpack.c.b16 %v7266, %v7262
  %v7343 = vpack.c.b16 %v7271, %v7267
  %v7344 = vpack.c.b16 %v7272, %v7268
  %v7345 = vpack.c.b16 %v7273, %v7269
  %v7346 = vpack.c.b16 %v7274, %v7270
  %v7347 = vpack.c.b16 %v7279, %v7275
  %v7348 = vpack.c.b16 %v7280, %v7276
  %v7349 = vpack.c.b16 %v7281, %v7277
  %v7350 = vpack.c.b16 %v7282, %v7278
  %v7351 = vpack.c.b16 %v7287, %v7283
  %v7352 = vpack.c.b16 %v7288, %v7284
  %v7353 = vpack.c.b16 %v7289, %v7285
  %v7354 = vpack.c.b16 %v7290, %v7286
  %7419 = vmatpush.bf16.msra.mxu0 %v7319
  %7420 = vmatpush.bf16.msra.mxu0 %v7315
  %7421 = vmatpush.bf16.msra.mxu0 %v7311
  %7422 = vmatpush.bf16.msra.mxu0 %v7307
  %7423 = vmatpush.bf16.msra.mxu0 %v7303
  %7424 = vmatpush.bf16.msra.mxu0 %v7299
  %7425 = vmatpush.bf16.msra.mxu0 %v7295
  %7426 = vmatpush.bf16.msra.mxu0 %v7291
  %7427 = vmatmul.bf16.gmra.mxu0 %v7095
  %v7428 = vpop.f32.mrf.mxu0
  %v7429 = vadd.f32 %v7084, %v7428
  %v7430 = vpop.f32.mrf.mxu0
  %7431 = vdwg.mxu0
  %7432 = vmatpush.bf16.msra.mxu0 %v7351
  %7433 = vmatpush.bf16.msra.mxu0 %v7347
  %7434 = vmatpush.bf16.msra.mxu0 %v7343
  %7435 = vmatpush.bf16.msra.mxu0 %v7339
  %7436 = vmatpush.bf16.msra.mxu0 %v7335
  %7437 = vmatpush.bf16.msra.mxu0 %v7331
  %7438 = vmatpush.bf16.msra.mxu0 %v7327
  %7439 = vmatpush.bf16.msra.mxu0 %v7323
  %7440 = vmatmul.bf16.gmra.mxu0 %v7096
  %v7441 = vpop.f32.mrf.mxu0
  %v7442 = vadd.f32 %v7429, %v7441
  %v7443 = vpop.f32.mrf.mxu0
  %7444 = vdwg.mxu0
  %7445 = vmatpush.bf16.msra.mxu0 %v7320
  %7446 = vmatpush.bf16.msra.mxu0 %v7316
  %7447 = vmatpush.bf16.msra.mxu0 %v7312
  %7448 = vmatpush.bf16.msra.mxu0 %v7308
  %7449 = vmatpush.bf16.msra.mxu0 %v7304
  %7450 = vmatpush.bf16.msra.mxu0 %v7300
  %7451 = vmatpush.bf16.msra.mxu0 %v7296
  %7452 = vmatpush.bf16.msra.mxu0 %v7292
  %7453 = vmatmul.bf16.gmra.mxu0 %v7095
  %v7454 = vpop.f32.mrf.mxu0
  %v7455 = vadd.f32 %v7085, %v7454
  %v7456 = vpop.f32.mrf.mxu0
  %7457 = vdwg.mxu0
  %7458 = vmatpush.bf16.msra.mxu0 %v7352
  %7459 = vmatpush.bf16.msra.mxu0 %v7348
  %7460 = vmatpush.bf16.msra.mxu0 %v7344
  %7461 = vmatpush.bf16.msra.mxu0 %v7340
  %7462 = vmatpush.bf16.msra.mxu0 %v7336
  %7463 = vmatpush.bf16.msra.mxu0 %v7332
  %7464 = vmatpush.bf16.msra.mxu0 %v7328
  %7465 = vmatpush.bf16.msra.mxu0 %v7324
  %7466 = vmatmul.bf16.gmra.mxu0 %v7096
  %v7467 = vpop.f32.mrf.mxu0
  %v7468 = vadd.f32 %v7455, %v7467
  %v7469 = vpop.f32.mrf.mxu0
  %7470 = vdwg.mxu0
  %7471 = vmatpush.bf16.msra.mxu0 %v7321
  %7472 = vmatpush.bf16.msra.mxu0 %v7317
  %7473 = vmatpush.bf16.msra.mxu0 %v7313
  %7474 = vmatpush.bf16.msra.mxu0 %v7309
  %7475 = vmatpush.bf16.msra.mxu0 %v7305
  %7476 = vmatpush.bf16.msra.mxu0 %v7301
  %7477 = vmatpush.bf16.msra.mxu0 %v7297
  %7478 = vmatpush.bf16.msra.mxu0 %v7293
  %7479 = vmatmul.bf16.gmra.mxu0 %v7095
  %v7480 = vpop.f32.mrf.mxu0
  %v7481 = vadd.f32 %v7086, %v7480
  %v7482 = vpop.f32.mrf.mxu0
  %7483 = vdwg.mxu0
  %7484 = vmatpush.bf16.msra.mxu0 %v7353
  %7485 = vmatpush.bf16.msra.mxu0 %v7349
  %7486 = vmatpush.bf16.msra.mxu0 %v7345
  %7487 = vmatpush.bf16.msra.mxu0 %v7341
  %7488 = vmatpush.bf16.msra.mxu0 %v7337
  %7489 = vmatpush.bf16.msra.mxu0 %v7333
  %7490 = vmatpush.bf16.msra.mxu0 %v7329
  %7491 = vmatpush.bf16.msra.mxu0 %v7325
  %7492 = vmatmul.bf16.gmra.mxu0 %v7096
  %v7493 = vpop.f32.mrf.mxu0
  %v7494 = vadd.f32 %v7481, %v7493
  %v7495 = vpop.f32.mrf.mxu0
  %7496 = vdwg.mxu0
  %7497 = vmatpush.bf16.msra.mxu0 %v7322
  %7498 = vmatpush.bf16.msra.mxu0 %v7318
  %7499 = vmatpush.bf16.msra.mxu0 %v7314
  %7500 = vmatpush.bf16.msra.mxu0 %v7310
  %7501 = vmatpush.bf16.msra.mxu0 %v7306
  %7502 = vmatpush.bf16.msra.mxu0 %v7302
  %7503 = vmatpush.bf16.msra.mxu0 %v7298
  %7504 = vmatpush.bf16.msra.mxu0 %v7294
  %7505 = vmatmul.bf16.gmra.mxu0 %v7095
  %v7506 = vpop.f32.mrf.mxu0
  %v7507 = vadd.f32 %v7087, %v7506
  %v7508 = vpop.f32.mrf.mxu0
  %7509 = vdwg.mxu0
  %7510 = vmatpush.bf16.msra.mxu0 %v7354
  %7511 = vmatpush.bf16.msra.mxu0 %v7350
  %7512 = vmatpush.bf16.msra.mxu0 %v7346
  %7513 = vmatpush.bf16.msra.mxu0 %v7342
  %7514 = vmatpush.bf16.msra.mxu0 %v7338
  %7515 = vmatpush.bf16.msra.mxu0 %v7334
  %7516 = vmatpush.bf16.msra.mxu0 %v7330
  %7517 = vmatpush.bf16.msra.mxu0 %v7326
  %7518 = vmatmul.bf16.gmra.mxu0 %v7096
  %v7519 = vpop.f32.mrf.mxu0
  %v7520 = vadd.f32 %v7507, %v7519
  %v7521 = vpop.f32.mrf.mxu0
  %7522 = vdwg.mxu0
  %v7523 = vxor.u32 %v7442, 2147483648
  %v7524 = vmul.f32 %v7523, 1.442695
  %v7525 = vpow.pop %v7524
  %v7526 = vadd.f32 %v7525, 1.0
  %v7527 = vrcp.pop %v7526
  %v7528 = vmul.f32 %v7526, %v7527
  %v7529 = vsub.f32 1.0, %v7528
  %v7530 = vmul.f32 %v7527, %v7529
  %v7531 = vadd.f32 %v7527, %v7530
  %vm7532 = vweird.f32 %v7526
  %vm7533 = vweird.f32 %v7527
  %vm7534 = vmor %vm7532, %vm7533
  %v7535 = vsel %vm7534, %v7527, %v7531
  %v7536 = vand.u32 2147483647, %v7526
  %vm7537 = vcmp.eq.f32.partialorder %v7536, 8.507059e+37
  %v7538 = vand.u32 %v7526, 2147483648
  %v7539 = vor.u32 1.1754944e-38, %v7538
  %v7540 = vsel %vm7537, %v7539, %v7535
  %v7541 = vmul.f32 1.0, %v7540
  %v7542 = vxor.u32 %v7468, 2147483648
  %v7543 = vmul.f32 %v7542, 1.442695
  %v7544 = vpow.pop %v7543
  %v7545 = vadd.f32 %v7544, 1.0
  %v7546 = vrcp.pop %v7545
  %v7547 = vmul.f32 %v7545, %v7546
  %v7548 = vsub.f32 1.0, %v7547
  %v7549 = vmul.f32 %v7546, %v7548
  %v7550 = vadd.f32 %v7546, %v7549
  %vm7551 = vweird.f32 %v7545
  %vm7552 = vweird.f32 %v7546
  %vm7553 = vmor %vm7551, %vm7552
  %v7554 = vsel %vm7553, %v7546, %v7550
  %v7555 = vand.u32 2147483647, %v7545
  %vm7556 = vcmp.eq.f32.partialorder %v7555, 8.507059e+37
  %v7557 = vand.u32 %v7545, 2147483648
  %v7558 = vor.u32 1.1754944e-38, %v7557
  %v7559 = vsel %vm7556, %v7558, %v7554
  %v7560 = vmul.f32 1.0, %v7559
  %v7561 = vtanh.pop %v7494
  %v7562 = vxor.u32 %v7520, 2147483648
  %v7563 = vmul.f32 %v7562, 1.442695
  %v7564 = vpow.pop %v7563
  %v7565 = vadd.f32 %v7564, 1.0
  %v7566 = vrcp.pop %v7565
  %v7567 = vmul.f32 %v7565, %v7566
  %v7568 = vsub.f32 1.0, %v7567
  %v7569 = vmul.f32 %v7566, %v7568
  %v7570 = vadd.f32 %v7566, %v7569
  %vm7571 = vweird.f32 %v7565
  %vm7572 = vweird.f32 %v7566
  %vm7573 = vmor %vm7571, %vm7572
  %v7574 = vsel %vm7573, %v7566, %v7570
  %v7575 = vand.u32 2147483647, %v7565
  %vm7576 = vcmp.eq.f32.partialorder %v7575, 8.507059e+37
  %v7577 = vand.u32 %v7565, 2147483648
  %v7578 = vor.u32 1.1754944e-38, %v7577
  %v7579 = vsel %vm7576, %v7578, %v7574
  %v7580 = vmul.f32 1.0, %v7579
  %v7581 = vmul.f32 %v7560, %v6681
  %v7582 = vmul.f32 %v7541, %v7561
  %v7583 = vadd.f32 %v7581, %v7582
  %v7584 = vtanh.pop %v7583
  %v7585 = vmul.f32 %v7580, %v7584
  %v7586 = vsel %vm7010, %v7585, %v6680
  %v7587 = vsel %vm7010, %v7583, %v6681
  %7588 = vst [vmem:[#allocation4] sm:$0xff] %v7011
  %7589 = vst [vmem:[%s333] sm:$0xff] %v7012
  %7590 = vst [vmem:[%s335] sm:$0xff] %v7586
  %7591 = vst [vmem:[%s337] sm:$0xff] %v7587
  // Predicated region
  $region34: #{seq2seq_forward.2} parent=0 // pred_check
    %p7592 = pneg %p29
  $region35: #{seq2seq_forward.2} parent=0 // pred_check_branch
    %7594 = sbr.rel (%p7592) target = $region37
  $region36: #{seq2seq_forward.2} parent=0 // pred_region
    %7595 = vst [vmem:[%s7] sm:$0xff] %v7011
    %s7596 = scalar_lea.vmem %s7, 8
    %7597 = vst [vmem:[%s7596] sm:$0xff] %v7586
    %7598 = vst [vmem:[%s8] sm:$0xff] %v7012
    %s7599 = scalar_lea.vmem %s8, 8
    %7600 = vst [vmem:[%s7599] sm:$0xff] %v7587
  $region37: #{seq2seq_forward.2} parent=0 // pred_fallthru
    _
  // Predicated region
  $region38: #{seq2seq_forward.2} parent=0 // pred_check
    _
  $region39: #{seq2seq_forward.2} parent=0 // pred_check_branch
    %7602 = sbr.rel (0) target = $region41
  $region40: #{seq2seq_forward.2} parent=0 // pred_region
    _
  $region41: #{seq2seq_forward.2} parent=0 // pred_fallthru
    _
  // Predicated region
  $region42: #{seq2seq_forward.2} parent=0 // pred_check
    _
  $region43: #{seq2seq_forward.2} parent=0 // pred_check_branch
    %7604 = sbr.rel (0) target = $region45
  $region44: #{seq2seq_forward.2} parent=0 // pred_region
    _
  $region45: #{seq2seq_forward.2} parent=0 // pred_fallthru
    _
  // Predicated region
  $region46: #{seq2seq_forward.2} parent=0 // pred_check
    _
  $region47: #{seq2seq_forward.2} parent=0 // pred_check_branch
    %7606 = sbr.rel (0) target = $region49
  $region48: #{seq2seq_forward.2} parent=0 // pred_region
    _
  $region49: #{seq2seq_forward.2} parent=0 // pred_fallthru
    _
  // Predicated region
  $region50: #{seq2seq_forward.2} parent=0 // pred_check
    _
  $region51: #{seq2seq_forward.2} parent=0 // pred_check_branch
    %7608 = sbr.rel (0) target = $region53
  $region52: #{seq2seq_forward.2} parent=0 // pred_region
    _
  $region53: #{seq2seq_forward.2} parent=0 // pred_fallthru
    _

</llo_original>
